<compile_context>
chip_gen: v7x
topology: tpu7x:2x2x1
jax: 0.10.0
libtpu: 0.0.40
codegen_flags: <defaults>
</compile_context>

<pallas_src>
import jax
import jax.numpy as jnp
from jax.experimental import pallas as pl
from jax.experimental.pallas import tpu as pltpu


def _softmax_lastdim(a):
    m = jnp.max(a, axis=-1, keepdims=True)
    e = jnp.exp(a - m)
    return e / jnp.sum(e, axis=-1, keepdims=True)  # exact normalisation


def vae_kernel(
    x_ref, noise_ref,
    w_bow_ref,                    # [V, E]  bf16 (no bias)
    w_pi_ref, b_pi_ref,           # [E, E]  bf16, [1, E]  f32
    w_ms_ref, b_ms_ref,           # [E, 2T] bf16 (fused mu|sigma), [1, 2T] f32
    w_th_ref, b_th_ref,           # [T, T]  bf16, [1, T]  f32
    w_phi_ref, b_phi_ref,         # [T, V]  bf16, [1, V]  f32
    out_bow_ref, theta_ref, mulogvar_ref, xsm_ref,
):
    f32 = jnp.float32
    bf16 = jnp.bfloat16
    T = noise_ref.shape[-1]

    # softmax over vocab (torch dim=1 == last dim here); x arrives bf16, math in f32
    x = _softmax_lastdim(x_ref[...].astype(f32))
    xsm_ref[...] = x.astype(xsm_ref.dtype)   # post-softmax X_Bows (returned, bf16)

    # encoder: f_pi(relu(f_bow(x)))  -- bf16 MXU operands, f32 accumulation
    h = jnp.dot(x.astype(bf16), w_bow_ref[...], preferred_element_type=f32)
    h = jnp.maximum(h, 0.0)
    h = jnp.dot(h.astype(bf16), w_pi_ref[...], preferred_element_type=f32) + b_pi_ref[...]
    pi = jnp.maximum(h, 0.0)

    # fused mu / log_var head -> single lane-dense [TB, 2T] result
    ml = jnp.dot(pi.astype(bf16), w_ms_ref[...], preferred_element_type=f32) + b_ms_ref[...]
    mulogvar_ref[...] = ml.astype(mulogvar_ref.dtype)
    mu = ml[:, :T]
    log_var = ml[:, T:]

    # reparameterize: z = mu + exp(0.5*log_var) * eps,  eps ~ N(0,1) from host PRNG
    z = mu + jnp.exp(0.5 * log_var) * noise_ref[...].astype(f32)

    # theta = softmax(relu(f_theta(z)))
    th = jnp.dot(z.astype(bf16), w_th_ref[...], preferred_element_type=f32) + b_th_ref[...]
    th = _softmax_lastdim(jnp.maximum(th, 0.0))

    # lane-dense theta store: pad to the (128-multiple) width of theta_ref
    t_pad = theta_ref.shape[-1]
    if t_pad != T:
        th_slab = jnp.concatenate(
            [th, jnp.zeros((th.shape[0], t_pad - T), f32)], axis=-1)
    else:
        th_slab = th
    theta_ref[...] = th_slab.astype(theta_ref.dtype)

    # out_bow = softmax(f_phi(theta))
    ob = jnp.dot(th.astype(bf16), w_phi_ref[...], preferred_element_type=f32) + b_phi_ref[...]
    out_bow_ref[...] = _softmax_lastdim(ob).astype(out_bow_ref.dtype)


def vae_forward(x, noise, params, *, block_batch=256):
    """x: [B, V] bows, noise: [B, T] standard-normal eps, params: dict (init_params).

    Returns (out_bow, theta, mu, log_var, softmax(x)) like the PyTorch module.
    out_bow and softmax(x) come back as bf16 (the kernel is HBM-bound; bf16
    halves the V-wide traffic).
    """
    B, V = x.shape
    T = noise.shape[1]
    E = params["w_bow"].shape[1]
    Tpad = pl.cdiv(T, 128) * 128          # lane-dense theta slab width

    # bf16 input halves the dominant HBM read; the kernel upcasts before softmax.
    x = x.astype(jnp.bfloat16)
    noise = noise.astype(jnp.float32)

    weights = (
        params["w_bow"],
        params["w_pi"], params["b_pi"],
        params["w_ms"], params["b_ms"],
        params["w_theta"], params["b_theta"],
        params["w_phi"], params["b_phi"],
    )
    weight_bytes = sum(int(w.size) * w.dtype.itemsize for w in weights)

    # ---- batch tile selection ------------------------------------------------
    # multiple of 16 sublanes (bf16 packing); >= 2 grid steps when the batch
    # allows so a v7x megacore can shard the "parallel" axis over both TCs.
    TB = min(block_batch, B)
    if B >= 32:
        TB = min(TB, B // 2)
    TB = max(16, (TB // 16) * 16)

    def vmem_estimate(tb):
        # double-buffered streamed tiles: x(bf16), noise(f32), out_bow(bf16),
        # theta(f32,Tpad), mulogvar(f32,2T), xsm(bf16)
        tile = tb * (2 * V + 4 * T + 2 * V + 4 * Tpad + 4 * 2 * T + 2 * V)
        # live f32 intermediates in the kernel (the two V-wide softmax slabs dominate)
        interm = 4 * tb * V * 4
        return weight_bytes + 2 * tile + interm

    try:
        vmem_cap = int(getattr(pltpu.get_tpu_info(), "vmem_capacity_bytes",
                               64 * 1024 * 1024))
    except Exception:
        vmem_cap = 64 * 1024 * 1024        # conservative default (v7x: 64 MiB / TC)
    budget = vmem_cap - 8 * 1024 * 1024    # leave headroom for the compiler

    while TB > 16 and vmem_estimate(TB) > budget:
        TB = max(16, ((TB // 2) // 16) * 16)
    # TODO(synk): for very large vocabularies (resident weights alone near `budget`),
    # add a second "arbitrary" grid axis tiling V (w_bow rows / w_phi cols / the two
    # V-wide outputs) with a VMEM h-accumulator and two-pass/online softmaxes.

    vmem_limit = None
    est = vmem_estimate(TB)
    if est > 24 * 1024 * 1024:
        vmem_limit = int(min(max(int(est * 1.25), 32 * 1024 * 1024), budget))

    Bp = pl.cdiv(B, TB) * TB
    if Bp != B:
        x = jnp.pad(x, ((0, Bp - B), (0, 0)))
        noise = jnp.pad(noise, ((0, Bp - B), (0, 0)))
    grid = (Bp // TB,)

    out_shapes = (
        jax.ShapeDtypeStruct((Bp, V), jnp.bfloat16),     # out_bow
        jax.ShapeDtypeStruct((Bp, Tpad), jnp.float32),   # theta (lane-padded)
        jax.ShapeDtypeStruct((Bp, 2 * T), jnp.float32),  # [mu | log_var]
        jax.ShapeDtypeStruct((Bp, V), jnp.bfloat16),     # softmax(X_Bows)
    )

    flops = int(2 * Bp * (V * E + E * E + E * 2 * T + T * T + T * V))
    transcendentals = int(Bp * (2 * V + 2 * T))
    out_bytes = Bp * (2 * V + 4 * Tpad + 4 * 2 * T + 2 * V)
    bytes_accessed = int(x.nbytes + noise.nbytes + weight_bytes + out_bytes)

    def run(single_buffer_weights):
        def tiled(last):
            return pl.BlockSpec((TB, last), lambda i: (i, 0))

        def resident(arr):
            if single_buffer_weights:
                # weights never change across grid steps -> single VMEM buffer
                return pl.BlockSpec(arr.shape, lambda i: (0, 0),
                                    pipeline_mode=pl.Buffered(1))
            return pl.BlockSpec(arr.shape, lambda i: (0, 0))

        in_specs = [tiled(V), tiled(T)] + [resident(w) for w in weights]
        out_specs = (tiled(V), tiled(Tpad), tiled(2 * T), tiled(V))

        return pl.pallas_call(
            vae_kernel,
            out_shape=out_shapes,
            grid=grid,
            in_specs=in_specs,
            out_specs=out_specs,
            compiler_params=pltpu.CompilerParams(
                dimension_semantics=("parallel",),
                vmem_limit_bytes=vmem_limit,
            ),
            cost_estimate=pl.CostEstimate(
                flops=flops,
                transcendentals=transcendentals,
                bytes_accessed=bytes_accessed,
            ),
        )(x, noise, *weights)

    try:
        out_bow, theta, ml, xsm = run(single_buffer_weights=True)
    except Exception:
        # Fallback for jax versions without BlockSpec(pipeline_mode=) / Buffered(1).
        out_bow, theta, ml, xsm = run(single_buffer_weights=False)

    out_bow = out_bow[:B]
    theta = theta[:B, :T]
    ml = ml[:B]
    xsm = xsm[:B]
    mu = ml[:, :T]
    log_var = ml[:, T:]
    return out_bow, theta, mu, log_var, xsm


def init_params(key, vocab_size, embedding_size, topic_size):
    """PyTorch-Linear-style init (uniform +-1/sqrt(fan_in)).
    Weights are pre-transposed to [in, out] and stored in bf16 (MXU operands);
    biases stay f32. mu/sigma heads are fused into one [E, 2T] weight."""
    ks = jax.random.split(key, 9)
    V, E, T = vocab_size, embedding_size, topic_size
    bf16, f32 = jnp.bfloat16, jnp.float32

    def u(k, shape, fan_in, dtype):
        bound = 1.0 / float(fan_in) ** 0.5
        return jax.random.uniform(k, shape, f32, -bound, bound).astype(dtype)

    return {
        "w_bow":   u(ks[0], (V, E), V, bf16),
        "w_pi":    u(ks[1], (E, E), E, bf16),
        "b_pi":    u(ks[2], (1, E), E, f32),
        "w_ms":    u(ks[3], (E, 2 * T), E, bf16),   # [w_mu | w_sigma]
        "b_ms":    u(ks[4], (1, 2 * T), E, f32),    # [b_mu | b_sigma]
        "w_theta": u(ks[5], (T, T), T, bf16),
        "b_theta": u(ks[6], (1, T), T, f32),
        "w_phi":   u(ks[7], (T, V), T, bf16),
        "b_phi":   u(ks[8], (1, V), T, f32),
    }


def _reference(x, noise, p):
    """Pure-JAX reference with the same numerics (bf16 x / weights, f32 accum)."""
    f32, bf16 = jnp.float32, jnp.bfloat16
    T = noise.shape[1]
    sm = lambda a: jax.nn.softmax(a, axis=1)
    xs = sm(x.astype(bf16).astype(f32))
    h = jnp.dot(xs.astype(bf16), p["w_bow"], preferred_element_type=f32)
    h = jnp.maximum(h, 0.0)
    h = jnp.dot(h.astype(bf16), p["w_pi"], preferred_element_type=f32) + p["b_pi"]
    pi = jnp.maximum(h, 0.0)
    ml = jnp.dot(pi.astype(bf16), p["w_ms"], preferred_element_type=f32) + p["b_ms"]
    mu, log_var = ml[:, :T], ml[:, T:]
    z = mu + jnp.exp(0.5 * log_var) * noise
    th = jnp.dot(z.astype(bf16), p["w_theta"], preferred_element_type=f32) + p["b_theta"]
    th = sm(jnp.maximum(th, 0.0))
    ob = jnp.dot(th.astype(bf16), p["w_phi"], preferred_element_type=f32) + p["b_phi"]
    return sm(ob), th, mu, log_var, xs


if __name__ == "__main__":
    # bsz, vocab_size, embedding_size, topic_size — small, but large enough to
    # exercise the batch grid (B=256 -> TB=128 -> grid=(2,), 2 TC-shardable steps).
    B, V, E, T = 256, 512, 128, 64

    key = jax.random.PRNGKey(0)
    k_x, k_noise, k_params = jax.random.split(key, 3)

    x = jax.random.normal(k_x, (B, V), jnp.float32)
    noise = jax.random.normal(k_noise, (B, T), jnp.float32)  # eps for reparameterize
    params = init_params(k_params, V, E, T)

    outs = jax.block_until_ready(vae_forward(x, noise, params, block_batch=256))
    refs = _reference(x, noise, params)

    tols = {
        "out_bow":   (1e-2, 5e-2),   # bf16 output
        "theta":     (3e-3, 2e-2),
        "mu":        (3e-3, 2e-2),
        "log_var":   (3e-3, 2e-2),
        "x_softmax": (1e-2, 5e-2),   # bf16 output
    }
    for name, o, r in zip(tols, outs, refs):
        o = jnp.asarray(o, jnp.float32)
        r = jnp.asarray(r, jnp.float32)
        assert o.shape == r.shape, (name, o.shape, r.shape)
        atol, rtol = tols[name]
        err = float(jnp.max(jnp.abs(o - r)))
        assert jnp.allclose(o, r, atol=atol, rtol=rtol), (name, err)

    print("KERNEL_OK")
</pallas_src>

<mosaic_0001>
module attributes {stable_mosaic.version = 11 : i64} {
  func.func @vae_kernel(%arg0: i32, %arg1: memref<128x512xbf16, #tpu.memory_space<vmem>>, %arg2: memref<128x64xf32, #tpu.memory_space<vmem>>, %arg3: memref<512x128xbf16, #tpu.memory_space<vmem>>, %arg4: memref<128x128xbf16, #tpu.memory_space<vmem>>, %arg5: memref<1x128xf32, #tpu.memory_space<vmem>>, %arg6: memref<128x128xbf16, #tpu.memory_space<vmem>>, %arg7: memref<1x128xf32, #tpu.memory_space<vmem>>, %arg8: memref<64x64xbf16, #tpu.memory_space<vmem>>, %arg9: memref<1x64xf32, #tpu.memory_space<vmem>>, %arg10: memref<64x512xbf16, #tpu.memory_space<vmem>>, %arg11: memref<1x512xf32, #tpu.memory_space<vmem>>, %arg12: memref<128x512xbf16, #tpu.memory_space<vmem>>, %arg13: memref<128x128xf32, #tpu.memory_space<vmem>>, %arg14: memref<128x128xf32, #tpu.memory_space<vmem>>, %arg15: memref<128x512xbf16, #tpu.memory_space<vmem>>) attributes {dimension_semantics = [#tpu.dimension_semantics<parallel>], iteration_bounds = array<i64: 2>, scalar_prefetch = 0 : i64, scratch_operands = 0 : i64, tpu.core_type = #tpu.core_type<tc>, window_params = [{transform_indices = @transform_0, window_bounds = array<i64: 128, 512>}, {transform_indices = @transform_1, window_bounds = array<i64: 128, 64>}, {pipeline_mode = #tpu.pipeline_mode<synchronous>, transform_indices = @transform_2, window_bounds = array<i64: 512, 128>}, {pipeline_mode = #tpu.pipeline_mode<synchronous>, transform_indices = @transform_3, window_bounds = array<i64: 128, 128>}, {pipeline_mode = #tpu.pipeline_mode<synchronous>, transform_indices = @transform_4, window_bounds = array<i64: 1, 128>}, {pipeline_mode = #tpu.pipeline_mode<synchronous>, transform_indices = @transform_5, window_bounds = array<i64: 128, 128>}, {pipeline_mode = #tpu.pipeline_mode<synchronous>, transform_indices = @transform_6, window_bounds = array<i64: 1, 128>}, {pipeline_mode = #tpu.pipeline_mode<synchronous>, transform_indices = @transform_7, window_bounds = array<i64: 64, 64>}, {pipeline_mode = #tpu.pipeline_mode<synchronous>, transform_indices = @transform_8, window_bounds = array<i64: 1, 64>}, {pipeline_mode = #tpu.pipeline_mode<synchronous>, transform_indices = @transform_9, window_bounds = array<i64: 64, 512>}, {pipeline_mode = #tpu.pipeline_mode<synchronous>, transform_indices = @transform_10, window_bounds = array<i64: 1, 512>}, {transform_indices = @transform_11, window_bounds = array<i64: 128, 512>}, {transform_indices = @transform_12, window_bounds = array<i64: 128, 128>}, {transform_indices = @transform_13, window_bounds = array<i64: 128, 128>}, {transform_indices = @transform_14, window_bounds = array<i64: 128, 512>}]} {
    %c0 = arith.constant 0 : index
    %c0_0 = arith.constant 0 : index
    %0 = vector.load %arg1[%c0, %c0_0] : memref<128x512xbf16, #tpu.memory_space<vmem>>, vector<128x512xbf16>
    %1 = arith.extf %0 : vector<128x512xbf16> to vector<128x512xf32>
    %cst = arith.constant dense<0xFF800000> : vector<128xf32>
    %2 = vector.multi_reduction <maximumf>, %1, %cst [1] : vector<128x512xf32> to vector<128xf32>
    %3 = vector.shape_cast %2 : vector<128xf32> to vector<128x1xf32>
    %4 = vector.broadcast %3 : vector<128x1xf32> to vector<128x512xf32>
    %5 = arith.subf %1, %4 : vector<128x512xf32>
    %6 = math.exp %5 : vector<128x512xf32>
    %cst_1 = arith.constant dense<0.000000e+00> : vector<128xf32>
    %7 = vector.multi_reduction <add>, %6, %cst_1 [1] : vector<128x512xf32> to vector<128xf32>
    %8 = vector.shape_cast %7 : vector<128xf32> to vector<128x1xf32>
    %9 = vector.broadcast %8 : vector<128x1xf32> to vector<128x512xf32>
    %10 = arith.divf %6, %9 : vector<128x512xf32>
    %11 = arith.truncf %10 : vector<128x512xf32> to vector<128x512xbf16>
    %c0_2 = arith.constant 0 : index
    %c0_3 = arith.constant 0 : index
    %12 = vector.load %arg15[%c0_2, %c0_3] : memref<128x512xbf16, #tpu.memory_space<vmem>>, vector<128x512xbf16>
    tpu.vector_store %arg15[%c0_2, %c0_3], %11 {strides = array<i32>} : memref<128x512xbf16, #tpu.memory_space<vmem>>, vector<128x512xbf16>,
    %13 = arith.truncf %10 : vector<128x512xf32> to vector<128x512xbf16>
    %c0_4 = arith.constant 0 : index
    %c0_5 = arith.constant 0 : index
    %14 = vector.load %arg3[%c0_4, %c0_5] : memref<512x128xbf16, #tpu.memory_space<vmem>>, vector<512x128xbf16>
    %cst_6 = arith.constant dense<0.000000e+00> : vector<128x128xf32>
    %15 = tpu.matmul %13, %14, %cst_6 {dimension_numbers = #tpu.dot_dimension_numbers<[1], [0], [0], [1], [0, 0, 1, 1], [], []>} : vector<128x512xbf16>, vector<512x128xbf16>, vector<128x128xf32> -> vector<128x128xf32>
    %cst_7 = arith.constant 0.000000e+00 : f32
    %16 = vector.broadcast %cst_7 : f32 to vector<128x128xf32>
    %17 = arith.maximumf %15, %16 : vector<128x128xf32>
    %18 = arith.truncf %17 : vector<128x128xf32> to vector<128x128xbf16>
    %c0_8 = arith.constant 0 : index
    %c0_9 = arith.constant 0 : index
    %19 = vector.load %arg4[%c0_8, %c0_9] : memref<128x128xbf16, #tpu.memory_space<vmem>>, vector<128x128xbf16>
    %cst_10 = arith.constant dense<0.000000e+00> : vector<128x128xf32>
    %20 = tpu.matmul %18, %19, %cst_10 {dimension_numbers = #tpu.dot_dimension_numbers<[1], [0], [0], [1], [0, 0, 1, 1], [], []>} : vector<128x128xbf16>, vector<128x128xbf16>, vector<128x128xf32> -> vector<128x128xf32>
    %c0_11 = arith.constant 0 : index
    %c0_12 = arith.constant 0 : index
    %21 = vector.load %arg5[%c0_11, %c0_12] : memref<1x128xf32, #tpu.memory_space<vmem>>, vector<1x128xf32>
    %22 = vector.broadcast %21 : vector<1x128xf32> to vector<128x128xf32>
    %23 = arith.addf %20, %22 : vector<128x128xf32>
    %cst_13 = arith.constant 0.000000e+00 : f32
    %24 = vector.broadcast %cst_13 : f32 to vector<128x128xf32>
    %25 = arith.maximumf %23, %24 : vector<128x128xf32>
    %26 = arith.truncf %25 : vector<128x128xf32> to vector<128x128xbf16>
    %c0_14 = arith.constant 0 : index
    %c0_15 = arith.constant 0 : index
    %27 = vector.load %arg6[%c0_14, %c0_15] : memref<128x128xbf16, #tpu.memory_space<vmem>>, vector<128x128xbf16>
    %cst_16 = arith.constant dense<0.000000e+00> : vector<128x128xf32>
    %28 = tpu.matmul %26, %27, %cst_16 {dimension_numbers = #tpu.dot_dimension_numbers<[1], [0], [0], [1], [0, 0, 1, 1], [], []>} : vector<128x128xbf16>, vector<128x128xbf16>, vector<128x128xf32> -> vector<128x128xf32>
    %c0_17 = arith.constant 0 : index
    %c0_18 = arith.constant 0 : index
    %29 = vector.load %arg7[%c0_17, %c0_18] : memref<1x128xf32, #tpu.memory_space<vmem>>, vector<1x128xf32>
    %30 = vector.broadcast %29 : vector<1x128xf32> to vector<128x128xf32>
    %31 = arith.addf %28, %30 : vector<128x128xf32>
    %c0_19 = arith.constant 0 : index
    %c0_20 = arith.constant 0 : index
    %32 = vector.load %arg14[%c0_19, %c0_20] : memref<128x128xf32, #tpu.memory_space<vmem>>, vector<128x128xf32>
    tpu.vector_store %arg14[%c0_19, %c0_20], %31 {strides = array<i32>} : memref<128x128xf32, #tpu.memory_space<vmem>>, vector<128x128xf32>,
    %33 = vector.extract_strided_slice %31 {offsets = [0, 0], sizes = [128, 64], strides = [1, 1]} : vector<128x128xf32> to vector<128x64xf32>
    %34 = vector.extract_strided_slice %31 {offsets = [0, 64], sizes = [128, 64], strides = [1, 1]} : vector<128x128xf32> to vector<128x64xf32>
    %cst_21 = arith.constant 5.000000e-01 : f32
    %35 = vector.broadcast %cst_21 : f32 to vector<128x64xf32>
    %36 = arith.mulf %35, %34 : vector<128x64xf32>
    %37 = math.exp %36 : vector<128x64xf32>
    %c0_22 = arith.constant 0 : index
    %c0_23 = arith.constant 0 : index
    %38 = vector.load %arg2[%c0_22, %c0_23] : memref<128x64xf32, #tpu.memory_space<vmem>>, vector<128x64xf32>
    %39 = arith.mulf %37, %38 : vector<128x64xf32>
    %40 = arith.addf %33, %39 : vector<128x64xf32>
    %41 = arith.truncf %40 : vector<128x64xf32> to vector<128x64xbf16>
    %c0_24 = arith.constant 0 : index
    %c0_25 = arith.constant 0 : index
    %42 = vector.load %arg8[%c0_24, %c0_25] : memref<64x64xbf16, #tpu.memory_space<vmem>>, vector<64x64xbf16>
    %cst_26 = arith.constant dense<0.000000e+00> : vector<128x64xf32>
    %43 = tpu.matmul %41, %42, %cst_26 {dimension_numbers = #tpu.dot_dimension_numbers<[1], [0], [0], [1], [0, 0, 1, 1], [], []>} : vector<128x64xbf16>, vector<64x64xbf16>, vector<128x64xf32> -> vector<128x64xf32>
    %c0_27 = arith.constant 0 : index
    %c0_28 = arith.constant 0 : index
    %44 = vector.load %arg9[%c0_27, %c0_28] : memref<1x64xf32, #tpu.memory_space<vmem>>, vector<1x64xf32>
    %45 = vector.broadcast %44 : vector<1x64xf32> to vector<128x64xf32>
    %46 = arith.addf %43, %45 : vector<128x64xf32>
    %cst_29 = arith.constant 0.000000e+00 : f32
    %47 = vector.broadcast %cst_29 : f32 to vector<128x64xf32>
    %48 = arith.maximumf %46, %47 : vector<128x64xf32>
    %cst_30 = arith.constant dense<0xFF800000> : vector<128xf32>
    %49 = vector.multi_reduction <maximumf>, %48, %cst_30 [1] : vector<128x64xf32> to vector<128xf32>
    %50 = vector.shape_cast %49 : vector<128xf32> to vector<128x1xf32>
    %51 = vector.broadcast %50 : vector<128x1xf32> to vector<128x64xf32>
    %52 = arith.subf %48, %51 : vector<128x64xf32>
    %53 = math.exp %52 : vector<128x64xf32>
    %cst_31 = arith.constant dense<0.000000e+00> : vector<128xf32>
    %54 = vector.multi_reduction <add>, %53, %cst_31 [1] : vector<128x64xf32> to vector<128xf32>
    %55 = vector.shape_cast %54 : vector<128xf32> to vector<128x1xf32>
    %56 = vector.broadcast %55 : vector<128x1xf32> to vector<128x64xf32>
    %57 = arith.divf %53, %56 : vector<128x64xf32>
    %cst_32 = arith.constant 0.000000e+00 : f32
    %58 = vector.broadcast %cst_32 : f32 to vector<128x64xf32>
    %59 = tpu.concatenate %57, %58 in 1 : vector<128x64xf32>, vector<128x64xf32> -> vector<128x128xf32>
    %c0_33 = arith.constant 0 : index
    %c0_34 = arith.constant 0 : index
    %60 = vector.load %arg13[%c0_33, %c0_34] : memref<128x128xf32, #tpu.memory_space<vmem>>, vector<128x128xf32>
    tpu.vector_store %arg13[%c0_33, %c0_34], %59 {strides = array<i32>} : memref<128x128xf32, #tpu.memory_space<vmem>>, vector<128x128xf32>,
    %61 = arith.truncf %57 : vector<128x64xf32> to vector<128x64xbf16>
    %c0_35 = arith.constant 0 : index
    %c0_36 = arith.constant 0 : index
    %62 = vector.load %arg10[%c0_35, %c0_36] : memref<64x512xbf16, #tpu.memory_space<vmem>>, vector<64x512xbf16>
    %cst_37 = arith.constant dense<0.000000e+00> : vector<128x512xf32>
    %63 = tpu.matmul %61, %62, %cst_37 {dimension_numbers = #tpu.dot_dimension_numbers<[1], [0], [0], [1], [0, 0, 1, 1], [], []>} : vector<128x64xbf16>, vector<64x512xbf16>, vector<128x512xf32> -> vector<128x512xf32>
    %c0_38 = arith.constant 0 : index
    %c0_39 = arith.constant 0 : index
    %64 = vector.load %arg11[%c0_38, %c0_39] : memref<1x512xf32, #tpu.memory_space<vmem>>, vector<1x512xf32>
    %65 = vector.broadcast %64 : vector<1x512xf32> to vector<128x512xf32>
    %66 = arith.addf %63, %65 : vector<128x512xf32>
    %cst_40 = arith.constant dense<0xFF800000> : vector<128xf32>
    %67 = vector.multi_reduction <maximumf>, %66, %cst_40 [1] : vector<128x512xf32> to vector<128xf32>
    %68 = vector.shape_cast %67 : vector<128xf32> to vector<128x1xf32>
    %69 = vector.broadcast %68 : vector<128x1xf32> to vector<128x512xf32>
    %70 = arith.subf %66, %69 : vector<128x512xf32>
    %71 = math.exp %70 : vector<128x512xf32>
    %cst_41 = arith.constant dense<0.000000e+00> : vector<128xf32>
    %72 = vector.multi_reduction <add>, %71, %cst_41 [1] : vector<128x512xf32> to vector<128xf32>
    %73 = vector.shape_cast %72 : vector<128xf32> to vector<128x1xf32>
    %74 = vector.broadcast %73 : vector<128x1xf32> to vector<128x512xf32>
    %75 = arith.divf %71, %74 : vector<128x512xf32>
    %76 = arith.truncf %75 : vector<128x512xf32> to vector<128x512xbf16>
    %c0_42 = arith.constant 0 : index
    %c0_43 = arith.constant 0 : index
    %77 = vector.load %arg12[%c0_42, %c0_43] : memref<128x512xbf16, #tpu.memory_space<vmem>>, vector<128x512xbf16>
    tpu.vector_store %arg12[%c0_42, %c0_43], %76 {strides = array<i32>} : memref<128x512xbf16, #tpu.memory_space<vmem>>, vector<128x512xbf16>,
    return
  }
  func.func @transform_0(%arg0: i32) -> (i32, i32) {
    %c0_i32 = arith.constant 0 : i32
    %c0_i32_0 = arith.constant 0 : i32
    return %arg0, %c0_i32 : i32, i32
  }
  func.func @transform_1(%arg0: i32) -> (i32, i32) {
    %c0_i32 = arith.constant 0 : i32
    %c0_i32_0 = arith.constant 0 : i32
    return %arg0, %c0_i32 : i32, i32
  }
  func.func @transform_2(%arg0: i32) -> (i32, i32) {
    %c0_i32 = arith.constant 0 : i32
    %c0_i32_0 = arith.constant 0 : i32
    %c0_i32_1 = arith.constant 0 : i32
    return %c0_i32, %c0_i32_0 : i32, i32
  }
  func.func @transform_3(%arg0: i32) -> (i32, i32) {
    %c0_i32 = arith.constant 0 : i32
    %c0_i32_0 = arith.constant 0 : i32
    %c0_i32_1 = arith.constant 0 : i32
    return %c0_i32, %c0_i32_0 : i32, i32
  }
  func.func @transform_4(%arg0: i32) -> (i32, i32) {
    %c0_i32 = arith.constant 0 : i32
    %c0_i32_0 = arith.constant 0 : i32
    %c0_i32_1 = arith.constant 0 : i32
    return %c0_i32, %c0_i32_0 : i32, i32
  }
  func.func @transform_5(%arg0: i32) -> (i32, i32) {
    %c0_i32 = arith.constant 0 : i32
    %c0_i32_0 = arith.constant 0 : i32
    %c0_i32_1 = arith.constant 0 : i32
    return %c0_i32, %c0_i32_0 : i32, i32
  }
  func.func @transform_6(%arg0: i32) -> (i32, i32) {
    %c0_i32 = arith.constant 0 : i32
    %c0_i32_0 = arith.constant 0 : i32
    %c0_i32_1 = arith.constant 0 : i32
    return %c0_i32, %c0_i32_0 : i32, i32
  }
  func.func @transform_7(%arg0: i32) -> (i32, i32) {
    %c0_i32 = arith.constant 0 : i32
    %c0_i32_0 = arith.constant 0 : i32
    %c0_i32_1 = arith.constant 0 : i32
    return %c0_i32, %c0_i32_0 : i32, i32
  }
  func.func @transform_8(%arg0: i32) -> (i32, i32) {
    %c0_i32 = arith.constant 0 : i32
    %c0_i32_0 = arith.constant 0 : i32
    %c0_i32_1 = arith.constant 0 : i32
    return %c0_i32, %c0_i32_0 : i32, i32
  }
  func.func @transform_9(%arg0: i32) -> (i32, i32) {
    %c0_i32 = arith.constant 0 : i32
    %c0_i32_0 = arith.constant 0 : i32
    %c0_i32_1 = arith.constant 0 : i32
    return %c0_i32, %c0_i32_0 : i32, i32
  }
  func.func @transform_10(%arg0: i32) -> (i32, i32) {
    %c0_i32 = arith.constant 0 : i32
    %c0_i32_0 = arith.constant 0 : i32
    %c0_i32_1 = arith.constant 0 : i32
    return %c0_i32, %c0_i32_0 : i32, i32
  }
  func.func @transform_11(%arg0: i32) -> (i32, i32) {
    %c0_i32 = arith.constant 0 : i32
    %c0_i32_0 = arith.constant 0 : i32
    return %arg0, %c0_i32 : i32, i32
  }
  func.func @transform_12(%arg0: i32) -> (i32, i32) {
    %c0_i32 = arith.constant 0 : i32
    %c0_i32_0 = arith.constant 0 : i32
    return %arg0, %c0_i32 : i32, i32
  }
  func.func @transform_13(%arg0: i32) -> (i32, i32) {
    %c0_i32 = arith.constant 0 : i32
    %c0_i32_0 = arith.constant 0 : i32
    return %arg0, %c0_i32 : i32, i32
  }
  func.func @transform_14(%arg0: i32) -> (i32, i32) {
    %c0_i32 = arith.constant 0 : i32
    %c0_i32_0 = arith.constant 0 : i32
    return %arg0, %c0_i32 : i32, i32
  }
}

module attributes {stable_mosaic.version = 11 : i64} {
  func.func @vae_kernel(%arg0: i32, %arg1: memref<128x512xbf16, #tpu.memory_space<vmem>>, %arg2: memref<128x64xf32, #tpu.memory_space<vmem>>, %arg3: memref<512x128xbf16, #tpu.memory_space<vmem>>, %arg4: memref<128x128xbf16, #tpu.memory_space<vmem>>, %arg5: memref<1x128xf32, #tpu.memory_space<vmem>>, %arg6: memref<128x128xbf16, #tpu.memory_space<vmem>>, %arg7: memref<1x128xf32, #tpu.memory_space<vmem>>, %arg8: memref<64x64xbf16, #tpu.memory_space<vmem>>, %arg9: memref<1x64xf32, #tpu.memory_space<vmem>>, %arg10: memref<64x512xbf16, #tpu.memory_space<vmem>>, %arg11: memref<1x512xf32, #tpu.memory_space<vmem>>, %arg12: memref<128x512xbf16, #tpu.memory_space<vmem>>, %arg13: memref<128x128xf32, #tpu.memory_space<vmem>>, %arg14: memref<128x128xf32, #tpu.memory_space<vmem>>, %arg15: memref<128x512xbf16, #tpu.memory_space<vmem>>) attributes {dimension_semantics = [#tpu.dimension_semantics<parallel>], iteration_bounds = array<i64: 2>, scalar_prefetch = 0 : i64, scratch_operands = 0 : i64, tpu.core_type = #tpu.core_type<tc>, window_params = [{transform_indices = @transform_0, window_bounds = array<i64: 128, 512>}, {transform_indices = @transform_1, window_bounds = array<i64: 128, 64>}, {pipeline_mode = #tpu.pipeline_mode<synchronous>, transform_indices = @transform_2, window_bounds = array<i64: 512, 128>}, {pipeline_mode = #tpu.pipeline_mode<synchronous>, transform_indices = @transform_3, window_bounds = array<i64: 128, 128>}, {pipeline_mode = #tpu.pipeline_mode<synchronous>, transform_indices = @transform_4, window_bounds = array<i64: 1, 128>}, {pipeline_mode = #tpu.pipeline_mode<synchronous>, transform_indices = @transform_5, window_bounds = array<i64: 128, 128>}, {pipeline_mode = #tpu.pipeline_mode<synchronous>, transform_indices = @transform_6, window_bounds = array<i64: 1, 128>}, {pipeline_mode = #tpu.pipeline_mode<synchronous>, transform_indices = @transform_7, window_bounds = array<i64: 64, 64>}, {pipeline_mode = #tpu.pipeline_mode<synchronous>, transform_indices = @transform_8, window_bounds = array<i64: 1, 64>}, {pipeline_mode = #tpu.pipeline_mode<synchronous>, transform_indices = @transform_9, window_bounds = array<i64: 64, 512>}, {pipeline_mode = #tpu.pipeline_mode<synchronous>, transform_indices = @transform_10, window_bounds = array<i64: 1, 512>}, {transform_indices = @transform_11, window_bounds = array<i64: 128, 512>}, {transform_indices = @transform_12, window_bounds = array<i64: 128, 128>}, {transform_indices = @transform_13, window_bounds = array<i64: 128, 128>}, {transform_indices = @transform_14, window_bounds = array<i64: 128, 512>}]} {
    %c0 = arith.constant 0 : index
    %c0_0 = arith.constant 0 : index
    %0 = vector.load %arg1[%c0, %c0_0] : memref<128x512xbf16, #tpu.memory_space<vmem>>, vector<128x512xbf16>
    %1 = arith.extf %0 : vector<128x512xbf16> to vector<128x512xf32>
    %cst = arith.constant dense<0xFF800000> : vector<128xf32>
    %2 = vector.multi_reduction <maximumf>, %1, %cst [1] : vector<128x512xf32> to vector<128xf32>
    %3 = vector.shape_cast %2 : vector<128xf32> to vector<128x1xf32>
    %4 = vector.broadcast %3 : vector<128x1xf32> to vector<128x512xf32>
    %5 = arith.subf %1, %4 : vector<128x512xf32>
    %6 = math.exp %5 : vector<128x512xf32>
    %cst_1 = arith.constant dense<0.000000e+00> : vector<128xf32>
    %7 = vector.multi_reduction <add>, %6, %cst_1 [1] : vector<128x512xf32> to vector<128xf32>
    %8 = vector.shape_cast %7 : vector<128xf32> to vector<128x1xf32>
    %9 = vector.broadcast %8 : vector<128x1xf32> to vector<128x512xf32>
    %10 = arith.divf %6, %9 : vector<128x512xf32>
    %11 = arith.truncf %10 : vector<128x512xf32> to vector<128x512xbf16>
    %c0_2 = arith.constant 0 : index
    %c0_3 = arith.constant 0 : index
    %12 = vector.load %arg15[%c0_2, %c0_3] : memref<128x512xbf16, #tpu.memory_space<vmem>>, vector<128x512xbf16>
    tpu.vector_store %arg15[%c0_2, %c0_3], %11 {strides = array<i32>} : memref<128x512xbf16, #tpu.memory_space<vmem>>, vector<128x512xbf16>,
    %13 = arith.truncf %10 : vector<128x512xf32> to vector<128x512xbf16>
    %c0_4 = arith.constant 0 : index
    %c0_5 = arith.constant 0 : index
    %14 = vector.load %arg3[%c0_4, %c0_5] : memref<512x128xbf16, #tpu.memory_space<vmem>>, vector<512x128xbf16>
    %cst_6 = arith.constant dense<0.000000e+00> : vector<128x128xf32>
    %15 = tpu.matmul %13, %14, %cst_6 {dimension_numbers = #tpu.dot_dimension_numbers<[1], [0], [0], [1], [0, 0, 1, 1], [], []>} : vector<128x512xbf16>, vector<512x128xbf16>, vector<128x128xf32> -> vector<128x128xf32>
    %cst_7 = arith.constant 0.000000e+00 : f32
    %16 = vector.broadcast %cst_7 : f32 to vector<128x128xf32>
    %17 = arith.maximumf %15, %16 : vector<128x128xf32>
    %18 = arith.truncf %17 : vector<128x128xf32> to vector<128x128xbf16>
    %c0_8 = arith.constant 0 : index
    %c0_9 = arith.constant 0 : index
    %19 = vector.load %arg4[%c0_8, %c0_9] : memref<128x128xbf16, #tpu.memory_space<vmem>>, vector<128x128xbf16>
    %cst_10 = arith.constant dense<0.000000e+00> : vector<128x128xf32>
    %20 = tpu.matmul %18, %19, %cst_10 {dimension_numbers = #tpu.dot_dimension_numbers<[1], [0], [0], [1], [0, 0, 1, 1], [], []>} : vector<128x128xbf16>, vector<128x128xbf16>, vector<128x128xf32> -> vector<128x128xf32>
    %c0_11 = arith.constant 0 : index
    %c0_12 = arith.constant 0 : index
    %21 = vector.load %arg5[%c0_11, %c0_12] : memref<1x128xf32, #tpu.memory_space<vmem>>, vector<1x128xf32>
    %22 = vector.broadcast %21 : vector<1x128xf32> to vector<128x128xf32>
    %23 = arith.addf %20, %22 : vector<128x128xf32>
    %cst_13 = arith.constant 0.000000e+00 : f32
    %24 = vector.broadcast %cst_13 : f32 to vector<128x128xf32>
    %25 = arith.maximumf %23, %24 : vector<128x128xf32>
    %26 = arith.truncf %25 : vector<128x128xf32> to vector<128x128xbf16>
    %c0_14 = arith.constant 0 : index
    %c0_15 = arith.constant 0 : index
    %27 = vector.load %arg6[%c0_14, %c0_15] : memref<128x128xbf16, #tpu.memory_space<vmem>>, vector<128x128xbf16>
    %cst_16 = arith.constant dense<0.000000e+00> : vector<128x128xf32>
    %28 = tpu.matmul %26, %27, %cst_16 {dimension_numbers = #tpu.dot_dimension_numbers<[1], [0], [0], [1], [0, 0, 1, 1], [], []>} : vector<128x128xbf16>, vector<128x128xbf16>, vector<128x128xf32> -> vector<128x128xf32>
    %c0_17 = arith.constant 0 : index
    %c0_18 = arith.constant 0 : index
    %29 = vector.load %arg7[%c0_17, %c0_18] : memref<1x128xf32, #tpu.memory_space<vmem>>, vector<1x128xf32>
    %30 = vector.broadcast %29 : vector<1x128xf32> to vector<128x128xf32>
    %31 = arith.addf %28, %30 : vector<128x128xf32>
    %c0_19 = arith.constant 0 : index
    %c0_20 = arith.constant 0 : index
    %32 = vector.load %arg14[%c0_19, %c0_20] : memref<128x128xf32, #tpu.memory_space<vmem>>, vector<128x128xf32>
    tpu.vector_store %arg14[%c0_19, %c0_20], %31 {strides = array<i32>} : memref<128x128xf32, #tpu.memory_space<vmem>>, vector<128x128xf32>,
    %33 = vector.extract_strided_slice %31 {offsets = [0, 0], sizes = [128, 64], strides = [1, 1]} : vector<128x128xf32> to vector<128x64xf32>
    %34 = vector.extract_strided_slice %31 {offsets = [0, 64], sizes = [128, 64], strides = [1, 1]} : vector<128x128xf32> to vector<128x64xf32>
    %cst_21 = arith.constant 5.000000e-01 : f32
    %35 = vector.broadcast %cst_21 : f32 to vector<128x64xf32>
    %36 = arith.mulf %35, %34 : vector<128x64xf32>
    %37 = math.exp %36 : vector<128x64xf32>
    %c0_22 = arith.constant 0 : index
    %c0_23 = arith.constant 0 : index
    %38 = vector.load %arg2[%c0_22, %c0_23] : memref<128x64xf32, #tpu.memory_space<vmem>>, vector<128x64xf32>
    %39 = arith.mulf %37, %38 : vector<128x64xf32>
    %40 = arith.addf %33, %39 : vector<128x64xf32>
    %41 = arith.truncf %40 : vector<128x64xf32> to vector<128x64xbf16>
    %c0_24 = arith.constant 0 : index
    %c0_25 = arith.constant 0 : index
    %42 = vector.load %arg8[%c0_24, %c0_25] : memref<64x64xbf16, #tpu.memory_space<vmem>>, vector<64x64xbf16>
    %cst_26 = arith.constant dense<0.000000e+00> : vector<128x64xf32>
    %43 = tpu.matmul %41, %42, %cst_26 {dimension_numbers = #tpu.dot_dimension_numbers<[1], [0], [0], [1], [0, 0, 1, 1], [], []>} : vector<128x64xbf16>, vector<64x64xbf16>, vector<128x64xf32> -> vector<128x64xf32>
    %c0_27 = arith.constant 0 : index
    %c0_28 = arith.constant 0 : index
    %44 = vector.load %arg9[%c0_27, %c0_28] : memref<1x64xf32, #tpu.memory_space<vmem>>, vector<1x64xf32>
    %45 = vector.broadcast %44 : vector<1x64xf32> to vector<128x64xf32>
    %46 = arith.addf %43, %45 : vector<128x64xf32>
    %cst_29 = arith.constant 0.000000e+00 : f32
    %47 = vector.broadcast %cst_29 : f32 to vector<128x64xf32>
    %48 = arith.maximumf %46, %47 : vector<128x64xf32>
    %cst_30 = arith.constant dense<0xFF800000> : vector<128xf32>
    %49 = vector.multi_reduction <maximumf>, %48, %cst_30 [1] : vector<128x64xf32> to vector<128xf32>
    %50 = vector.shape_cast %49 : vector<128xf32> to vector<128x1xf32>
    %51 = vector.broadcast %50 : vector<128x1xf32> to vector<128x64xf32>
    %52 = arith.subf %48, %51 : vector<128x64xf32>
    %53 = math.exp %52 : vector<128x64xf32>
    %cst_31 = arith.constant dense<0.000000e+00> : vector<128xf32>
    %54 = vector.multi_reduction <add>, %53, %cst_31 [1] : vector<128x64xf32> to vector<128xf32>
    %55 = vector.shape_cast %54 : vector<128xf32> to vector<128x1xf32>
    %56 = vector.broadcast %55 : vector<128x1xf32> to vector<128x64xf32>
    %57 = arith.divf %53, %56 : vector<128x64xf32>
    %cst_32 = arith.constant 0.000000e+00 : f32
    %58 = vector.broadcast %cst_32 : f32 to vector<128x64xf32>
    %59 = tpu.concatenate %57, %58 in 1 : vector<128x64xf32>, vector<128x64xf32> -> vector<128x128xf32>
    %c0_33 = arith.constant 0 : index
    %c0_34 = arith.constant 0 : index
    %60 = vector.load %arg13[%c0_33, %c0_34] : memref<128x128xf32, #tpu.memory_space<vmem>>, vector<128x128xf32>
    tpu.vector_store %arg13[%c0_33, %c0_34], %59 {strides = array<i32>} : memref<128x128xf32, #tpu.memory_space<vmem>>, vector<128x128xf32>,
    %61 = arith.truncf %57 : vector<128x64xf32> to vector<128x64xbf16>
    %c0_35 = arith.constant 0 : index
    %c0_36 = arith.constant 0 : index
    %62 = vector.load %arg10[%c0_35, %c0_36] : memref<64x512xbf16, #tpu.memory_space<vmem>>, vector<64x512xbf16>
    %cst_37 = arith.constant dense<0.000000e+00> : vector<128x512xf32>
    %63 = tpu.matmul %61, %62, %cst_37 {dimension_numbers = #tpu.dot_dimension_numbers<[1], [0], [0], [1], [0, 0, 1, 1], [], []>} : vector<128x64xbf16>, vector<64x512xbf16>, vector<128x512xf32> -> vector<128x512xf32>
    %c0_38 = arith.constant 0 : index
    %c0_39 = arith.constant 0 : index
    %64 = vector.load %arg11[%c0_38, %c0_39] : memref<1x512xf32, #tpu.memory_space<vmem>>, vector<1x512xf32>
    %65 = vector.broadcast %64 : vector<1x512xf32> to vector<128x512xf32>
    %66 = arith.addf %63, %65 : vector<128x512xf32>
    %cst_40 = arith.constant dense<0xFF800000> : vector<128xf32>
    %67 = vector.multi_reduction <maximumf>, %66, %cst_40 [1] : vector<128x512xf32> to vector<128xf32>
    %68 = vector.shape_cast %67 : vector<128xf32> to vector<128x1xf32>
    %69 = vector.broadcast %68 : vector<128x1xf32> to vector<128x512xf32>
    %70 = arith.subf %66, %69 : vector<128x512xf32>
    %71 = math.exp %70 : vector<128x512xf32>
    %cst_41 = arith.constant dense<0.000000e+00> : vector<128xf32>
    %72 = vector.multi_reduction <add>, %71, %cst_41 [1] : vector<128x512xf32> to vector<128xf32>
    %73 = vector.shape_cast %72 : vector<128xf32> to vector<128x1xf32>
    %74 = vector.broadcast %73 : vector<128x1xf32> to vector<128x512xf32>
    %75 = arith.divf %71, %74 : vector<128x512xf32>
    %76 = arith.truncf %75 : vector<128x512xf32> to vector<128x512xbf16>
    %c0_42 = arith.constant 0 : index
    %c0_43 = arith.constant 0 : index
    %77 = vector.load %arg12[%c0_42, %c0_43] : memref<128x512xbf16, #tpu.memory_space<vmem>>, vector<128x512xbf16>
    tpu.vector_store %arg12[%c0_42, %c0_43], %76 {strides = array<i32>} : memref<128x512xbf16, #tpu.memory_space<vmem>>, vector<128x512xbf16>,
    return
  }
  func.func @transform_0(%arg0: i32) -> (i32, i32) {
    %c0_i32 = arith.constant 0 : i32
    %c0_i32_0 = arith.constant 0 : i32
    return %arg0, %c0_i32 : i32, i32
  }
  func.func @transform_1(%arg0: i32) -> (i32, i32) {
    %c0_i32 = arith.constant 0 : i32
    %c0_i32_0 = arith.constant 0 : i32
    return %arg0, %c0_i32 : i32, i32
  }
  func.func @transform_2(%arg0: i32) -> (i32, i32) {
    %c0_i32 = arith.constant 0 : i32
    %c0_i32_0 = arith.constant 0 : i32
    %c0_i32_1 = arith.constant 0 : i32
    return %c0_i32, %c0_i32_0 : i32, i32
  }
  func.func @transform_3(%arg0: i32) -> (i32, i32) {
    %c0_i32 = arith.constant 0 : i32
    %c0_i32_0 = arith.constant 0 : i32
    %c0_i32_1 = arith.constant 0 : i32
    return %c0_i32, %c0_i32_0 : i32, i32
  }
  func.func @transform_4(%arg0: i32) -> (i32, i32) {
    %c0_i32 = arith.constant 0 : i32
    %c0_i32_0 = arith.constant 0 : i32
    %c0_i32_1 = arith.constant 0 : i32
    return %c0_i32, %c0_i32_0 : i32, i32
  }
  func.func @transform_5(%arg0: i32) -> (i32, i32) {
    %c0_i32 = arith.constant 0 : i32
    %c0_i32_0 = arith.constant 0 : i32
    %c0_i32_1 = arith.constant 0 : i32
    return %c0_i32, %c0_i32_0 : i32, i32
  }
  func.func @transform_6(%arg0: i32) -> (i32, i32) {
    %c0_i32 = arith.constant 0 : i32
    %c0_i32_0 = arith.constant 0 : i32
    %c0_i32_1 = arith.constant 0 : i32
    return %c0_i32, %c0_i32_0 : i32, i32
  }
  func.func @transform_7(%arg0: i32) -> (i32, i32) {
    %c0_i32 = arith.constant 0 : i32
    %c0_i32_0 = arith.constant 0 : i32
    %c0_i32_1 = arith.constant 0 : i32
    return %c0_i32, %c0_i32_0 : i32, i32
  }
  func.func @transform_8(%arg0: i32) -> (i32, i32) {
    %c0_i32 = arith.constant 0 : i32
    %c0_i32_0 = arith.constant 0 : i32
    %c0_i32_1 = arith.constant 0 : i32
    return %c0_i32, %c0_i32_0 : i32, i32
  }
  func.func @transform_9(%arg0: i32) -> (i32, i32) {
    %c0_i32 = arith.constant 0 : i32
    %c0_i32_0 = arith.constant 0 : i32
    %c0_i32_1 = arith.constant 0 : i32
    return %c0_i32, %c0_i32_0 : i32, i32
  }
  func.func @transform_10(%arg0: i32) -> (i32, i32) {
    %c0_i32 = arith.constant 0 : i32
    %c0_i32_0 = arith.constant 0 : i32
    %c0_i32_1 = arith.constant 0 : i32
    return %c0_i32, %c0_i32_0 : i32, i32
  }
  func.func @transform_11(%arg0: i32) -> (i32, i32) {
    %c0_i32 = arith.constant 0 : i32
    %c0_i32_0 = arith.constant 0 : i32
    return %arg0, %c0_i32 : i32, i32
  }
  func.func @transform_12(%arg0: i32) -> (i32, i32) {
    %c0_i32 = arith.constant 0 : i32
    %c0_i32_0 = arith.constant 0 : i32
    return %arg0, %c0_i32 : i32, i32
  }
  func.func @transform_13(%arg0: i32) -> (i32, i32) {
    %c0_i32 = arith.constant 0 : i32
    %c0_i32_0 = arith.constant 0 : i32
    return %arg0, %c0_i32 : i32, i32
  }
  func.func @transform_14(%arg0: i32) -> (i32, i32) {
    %c0_i32 = arith.constant 0 : i32
    %c0_i32_0 = arith.constant 0 : i32
    return %arg0, %c0_i32 : i32, i32
  }
}

</mosaic_0001>

<llo_original>
// kernel: tpu_custom_call.1
$region0: #{tpu_custom_call.1}
  #allocation0 [shape = 'u32[]', space=smem, size = 0x4, offset = 0x4, fixed_abs, tag = 'smem constant byte address 0x4 - core index']
  #allocation1 [shape = 'u32[144,128]{1,0:T(1,128)}', space=vmem, size = 0x12000, scoped, tag = 'internal scratch']
  %s0 = inlined_call_operand.hbm [shape: bf16[256,512], index: 0, kind: input, shape index: {}]
  %s1 = inlined_call_operand.vmem [shape: f32[256,64], index: 1, kind: input, shape index: {}]
  %s2 = inlined_call_operand.vmem [shape: bf16[512,128], index: 2, kind: input, shape index: {}]
  %s3 = inlined_call_operand.hbm [shape: bf16[128,128], index: 3, kind: input, shape index: {}]
  %s4 = inlined_call_operand.vmem [shape: f32[1,128], index: 4, kind: input, shape index: {}]
  %s5 = inlined_call_operand.hbm [shape: bf16[128,128], index: 5, kind: input, shape index: {}]
  %s6 = inlined_call_operand.vmem [shape: f32[1,128], index: 6, kind: input, shape index: {}]
  %s7 = inlined_call_operand.hbm [shape: bf16[64,64], index: 7, kind: input, shape index: {}]
  %s8 = inlined_call_operand.vmem [shape: f32[1,64], index: 8, kind: input, shape index: {}]
  %s9 = inlined_call_operand.vmem [shape: bf16[64,512], index: 9, kind: input, shape index: {}]
  %s10 = inlined_call_operand.vmem [shape: f32[1,512], index: 10, kind: input, shape index: {}]
  %s11 = inlined_call_operand.hbm [shape: bf16[256,512], index: 11, kind: output, shape index: {0}]
  %s12 = inlined_call_operand.hbm [shape: f32[256,128], index: 12, kind: output, shape index: {1}]
  %s13 = inlined_call_operand.hbm [shape: f32[256,128], index: 13, kind: output, shape index: {2}]
  %s14 = inlined_call_operand.hbm [shape: bf16[256,512], index: 14, kind: output, shape index: {3}]
  %15 = xla_tuple %s11, %s12, %s13, %s14
  %s16 = sld [smem:[#allocation0]]
  $region117: #{tpu_custom_call.1} parent=0
    _
  %s18 = ssub.s32 1, %s16
  %s19 = scalar_select 0, %s18, %s16
  $region1: #{tpu_custom_call.1} parent=0
    #allocation2 [shape = 'u8[262144]{0}', space=vmem, size = 0x40000, scoped, tag = 'input window, operand 0']
    #allocation3 [shape = 's32[2]{0}', space=sflag, size = 0x8, scoped, tag = 'scoped memory for tpu_custom_call.1']
    #allocation4 [shape = 's32[2]{0}', space=sflag, size = 0x8, scoped, tag = 'scoped memory for tpu_custom_call.1']
    #allocation5 [shape = 'u8[32768]{0}', space=vmem, size = 0x8000, scoped, tag = 'input window, operand 3, single buffered']
    #allocation6 [shape = 's32[1]{0}', space=sflag, size = 0x4, scoped, tag = 'scoped memory for tpu_custom_call.1']
    #allocation7 [shape = 'u8[32768]{0}', space=vmem, size = 0x8000, scoped, tag = 'input window, operand 5, single buffered']
    #allocation8 [shape = 'u8[16384]{0}', space=vmem, size = 0x4000, scoped, tag = 'input window, operand 7, single buffered']
    #allocation9 [shape = 's32[1]{0}', space=sflag, size = 0x4, scoped, tag = 'scoped memory for tpu_custom_call.1']
    #allocation10 [shape = 'u8[262144]{0}', space=vmem, size = 0x40000, scoped, tag = 'output window, operand 0']
    #allocation11 [shape = 'u8[131072]{0}', space=vmem, size = 0x20000, scoped, tag = 'output window, operand 1']
    #allocation12 [shape = 's32[2]{0}', space=sflag, size = 0x8, scoped, tag = 'scoped memory for tpu_custom_call.1']
    #allocation13 [shape = 'u8[131072]{0}', space=vmem, size = 0x20000, scoped, tag = 'output window, operand 2']
    #allocation14 [shape = 'u8[262144]{0}', space=vmem, size = 0x40000, scoped, tag = 'output window, operand 3']
    #allocation15 [shape = 's32[2]{0}', space=sflag, size = 0x8, scoped, tag = 'scoped memory for tpu_custom_call.1']
    %20 = vsyncpa [#allocation3], 0
    %s21 = scalar_lea.sflag [#allocation3], 1
    %22 = vsyncpa %s21, 0
    %23 = vsyncpa [#allocation6], 0
    %24 = vsyncpa [#allocation9], 0
    %25 = vsyncpa [#allocation4], 0
    %s26 = scalar_lea.sflag [#allocation4], 1
    %27 = vsyncpa %s26, 0
    %28 = vsyncpa [#allocation12], 0
    %s29 = scalar_lea.sflag [#allocation12], 1
    %30 = vsyncpa %s29, 0
    %31 = vsyncpa [#allocation15], 0
    %s32 = scalar_lea.sflag [#allocation15], 1
    %33 = vsyncpa %s32, 0
    loop: start=0, step=1, limit=4
    $region2: #{tpu_custom_call.1} parent=1 // loop_pre_header
      _
    $region3: #{tpu_custom_call.1} parent=1 // loop_header
      %s35 = sphi 0, %s39
      %p36 = scmp.ge.s32.totalorder %s35, 4
      %s45 = sphi 0, %s47
      %s48 = sphi 0, %s45
      %s49 = sphi 0, %s48
      %s65 = sphi 0, %s49
      %s71 = sphi 0, %s73
      %s74 = sphi 0, %s71
      %s75 = sphi 0, %s74
      %s91 = sphi 0, %s75
      %s95 = sphi 0, %s95
      %s97 = sphi 0, %s95
      %s98 = sphi 0, %s97
      %s112 = sphi 0, %s98
      %s116 = sphi 0, %s116
      %s118 = sphi 0, %s116
      %s119 = sphi 0, %s118
      %s133 = sphi 0, %s119
      %s137 = sphi 0, %s137
      %s139 = sphi 0, %s137
      %s140 = sphi 0, %s139
      %s154 = sphi 0, %s140
      %s158 = sphi 0, %s158
      %s160 = sphi 0, %s158
      %s161 = sphi 0, %s160
      %s175 = sphi 0, %s161
      %s179 = sphi 0, %s179
      %s181 = sphi 0, %s179
      %s182 = sphi 0, %s181
      %s196 = sphi 0, %s182
      %s200 = sphi 0, %s200
      %s202 = sphi 0, %s200
      %s203 = sphi 0, %s202
      %s217 = sphi 0, %s203
      %s221 = sphi 0, %s221
      %s223 = sphi 0, %s221
      %s224 = sphi 0, %s223
      %s238 = sphi 0, %s224
      %s242 = sphi 0, %s242
      %s244 = sphi 0, %s242
      %s245 = sphi 0, %s244
      %s259 = sphi 0, %s245
      %s263 = sphi 0, %s263
      %s265 = sphi 0, %s263
      %s266 = sphi 0, %s265
      %s280 = sphi 0, %s266
      %s286 = sphi 0, %s288
      %s289 = sphi 0, %s286
      %s290 = sphi 0, %s289
      %s306 = sphi 0, %s290
      %s312 = sphi 0, %s314
      %s315 = sphi 0, %s312
      %s316 = sphi 0, %s315
      %s332 = sphi 0, %s316
      %s338 = sphi 0, %s340
      %s341 = sphi 0, %s338
      %s342 = sphi 0, %s341
      %s358 = sphi 0, %s342
      %s364 = sphi 0, %s366
      %s367 = sphi 0, %s364
      %s368 = sphi 0, %s367
      %s384 = sphi 0, %s368
    $region4: #{tpu_custom_call.1} parent=1 // loop_header_branch
      %38 = sbr.rel (%p36) target = $region8
    $region5: #{tpu_custom_call.1} parent=1 // loop_body
      %s40 = ssub.s32 %s35, 1
      %s41 = ssub.s32 %s35, 2
      %s42 = sadd.s32 %s35, 1
      %s43 = ssub.s32 %s35, %s42
      %p44 = scmp.eq.s32.totalorder %s43, 0
      %s46 = sadd.s32 %s45, 1
      %s47 = scalar_select %p44, %s45, %s46
      %p50 = pneg %p44
      %p51 = scmp.eq.s32.totalorder %s35, 1
      %p52 = por %p50, %p51
      %p53 = scmp.ne.s32.totalorder %s45, %s48
      %p54 = scmp.eq.s32.totalorder %s35, 0
      %p55 = por %p53, %p54
      %p56 = scmp.ne.s32.totalorder %s45, %s48
      %p57 = scmp.eq.s32.totalorder %s40, 1
      %p58 = por %p56, %p57
      %p59 = scmp.ne.s32.totalorder %s48, %s49
      %p60 = scmp.eq.s32.totalorder %s40, 0
      %p61 = por %p59, %p60
      %p62 = scmp.ne.s32.totalorder %s48, %s49
      %p63 = scmp.eq.s32.totalorder %s41, 1
      %p64 = por %p62, %p63
      %p66 = scmp.ne.s32.totalorder %s49, %s65
      %p67 = scmp.eq.s32.totalorder %s41, 0
      %p68 = por %p66, %p67
      %s69 = ssub.s32 %s35, %s42
      %p70 = scmp.eq.s32.totalorder %s69, 0
      %s72 = sadd.s32 %s71, 1
      %s73 = scalar_select %p70, %s71, %s72
      %p76 = pneg %p70
      %p77 = scmp.eq.s32.totalorder %s35, 1
      %p78 = por %p76, %p77
      %p79 = scmp.ne.s32.totalorder %s71, %s74
      %p80 = scmp.eq.s32.totalorder %s35, 0
      %p81 = por %p79, %p80
      %p82 = scmp.ne.s32.totalorder %s71, %s74
      %p83 = scmp.eq.s32.totalorder %s40, 1
      %p84 = por %p82, %p83
      %p85 = scmp.ne.s32.totalorder %s74, %s75
      %p86 = scmp.eq.s32.totalorder %s40, 0
      %p87 = por %p85, %p86
      %p88 = scmp.ne.s32.totalorder %s74, %s75
      %p89 = scmp.eq.s32.totalorder %s41, 1
      %p90 = por %p88, %p89
      %p92 = scmp.ne.s32.totalorder %s75, %s91
      %p93 = scmp.eq.s32.totalorder %s41, 0
      %p94 = por %p92, %p93
      %s96 = sadd.s32 %s95, 1
      %p99 = scmp.eq.s32.totalorder %s35, 1
      %p100 = scmp.ne.s32.totalorder %s95, %s97
      %p101 = scmp.eq.s32.totalorder %s35, 0
      %p102 = por %p100, %p101
      %p103 = scmp.ne.s32.totalorder %s95, %s97
      %p104 = scmp.eq.s32.totalorder %s40, 1
      %p105 = por %p103, %p104
      %p106 = scmp.ne.s32.totalorder %s97, %s98
      %p107 = scmp.eq.s32.totalorder %s40, 0
      %p108 = por %p106, %p107
      %p109 = scmp.ne.s32.totalorder %s97, %s98
      %p110 = scmp.eq.s32.totalorder %s41, 1
      %p111 = por %p109, %p110
      %p113 = scmp.ne.s32.totalorder %s98, %s112
      %p114 = scmp.eq.s32.totalorder %s41, 0
      %p115 = por %p113, %p114
      %s117 = sadd.s32 %s116, 1
      %p120 = scmp.eq.s32.totalorder %s35, 1
      %p121 = scmp.ne.s32.totalorder %s116, %s118
      %p122 = scmp.eq.s32.totalorder %s35, 0
      %p123 = por %p121, %p122
      %p124 = scmp.ne.s32.totalorder %s116, %s118
      %p125 = scmp.eq.s32.totalorder %s40, 1
      %p126 = por %p124, %p125
      %p127 = scmp.ne.s32.totalorder %s118, %s119
      %p128 = scmp.eq.s32.totalorder %s40, 0
      %p129 = por %p127, %p128
      %p130 = scmp.ne.s32.totalorder %s118, %s119
      %p131 = scmp.eq.s32.totalorder %s41, 1
      %p132 = por %p130, %p131
      %p134 = scmp.ne.s32.totalorder %s119, %s133
      %p135 = scmp.eq.s32.totalorder %s41, 0
      %p136 = por %p134, %p135
      %s138 = sadd.s32 %s137, 1
      %p141 = scmp.eq.s32.totalorder %s35, 1
      %p142 = scmp.ne.s32.totalorder %s137, %s139
      %p143 = scmp.eq.s32.totalorder %s35, 0
      %p144 = por %p142, %p143
      %p145 = scmp.ne.s32.totalorder %s137, %s139
      %p146 = scmp.eq.s32.totalorder %s40, 1
      %p147 = por %p145, %p146
      %p148 = scmp.ne.s32.totalorder %s139, %s140
      %p149 = scmp.eq.s32.totalorder %s40, 0
      %p150 = por %p148, %p149
      %p151 = scmp.ne.s32.totalorder %s139, %s140
      %p152 = scmp.eq.s32.totalorder %s41, 1
      %p153 = por %p151, %p152
      %p155 = scmp.ne.s32.totalorder %s140, %s154
      %p156 = scmp.eq.s32.totalorder %s41, 0
      %p157 = por %p155, %p156
      %s159 = sadd.s32 %s158, 1
      %p162 = scmp.eq.s32.totalorder %s35, 1
      %p163 = scmp.ne.s32.totalorder %s158, %s160
      %p164 = scmp.eq.s32.totalorder %s35, 0
      %p165 = por %p163, %p164
      %p166 = scmp.ne.s32.totalorder %s158, %s160
      %p167 = scmp.eq.s32.totalorder %s40, 1
      %p168 = por %p166, %p167
      %p169 = scmp.ne.s32.totalorder %s160, %s161
      %p170 = scmp.eq.s32.totalorder %s40, 0
      %p171 = por %p169, %p170
      %p172 = scmp.ne.s32.totalorder %s160, %s161
      %p173 = scmp.eq.s32.totalorder %s41, 1
      %p174 = por %p172, %p173
      %p176 = scmp.ne.s32.totalorder %s161, %s175
      %p177 = scmp.eq.s32.totalorder %s41, 0
      %p178 = por %p176, %p177
      %s180 = sadd.s32 %s179, 1
      %p183 = scmp.eq.s32.totalorder %s35, 1
      %p184 = scmp.ne.s32.totalorder %s179, %s181
      %p185 = scmp.eq.s32.totalorder %s35, 0
      %p186 = por %p184, %p185
      %p187 = scmp.ne.s32.totalorder %s179, %s181
      %p188 = scmp.eq.s32.totalorder %s40, 1
      %p189 = por %p187, %p188
      %p190 = scmp.ne.s32.totalorder %s181, %s182
      %p191 = scmp.eq.s32.totalorder %s40, 0
      %p192 = por %p190, %p191
      %p193 = scmp.ne.s32.totalorder %s181, %s182
      %p194 = scmp.eq.s32.totalorder %s41, 1
      %p195 = por %p193, %p194
      %p197 = scmp.ne.s32.totalorder %s182, %s196
      %p198 = scmp.eq.s32.totalorder %s41, 0
      %p199 = por %p197, %p198
      %s201 = sadd.s32 %s200, 1
      %p204 = scmp.eq.s32.totalorder %s35, 1
      %p205 = scmp.ne.s32.totalorder %s200, %s202
      %p206 = scmp.eq.s32.totalorder %s35, 0
      %p207 = por %p205, %p206
      %p208 = scmp.ne.s32.totalorder %s200, %s202
      %p209 = scmp.eq.s32.totalorder %s40, 1
      %p210 = por %p208, %p209
      %p211 = scmp.ne.s32.totalorder %s202, %s203
      %p212 = scmp.eq.s32.totalorder %s40, 0
      %p213 = por %p211, %p212
      %p214 = scmp.ne.s32.totalorder %s202, %s203
      %p215 = scmp.eq.s32.totalorder %s41, 1
      %p216 = por %p214, %p215
      %p218 = scmp.ne.s32.totalorder %s203, %s217
      %p219 = scmp.eq.s32.totalorder %s41, 0
      %p220 = por %p218, %p219
      %s222 = sadd.s32 %s221, 1
      %p225 = scmp.eq.s32.totalorder %s35, 1
      %p226 = scmp.ne.s32.totalorder %s221, %s223
      %p227 = scmp.eq.s32.totalorder %s35, 0
      %p228 = por %p226, %p227
      %p229 = scmp.ne.s32.totalorder %s221, %s223
      %p230 = scmp.eq.s32.totalorder %s40, 1
      %p231 = por %p229, %p230
      %p232 = scmp.ne.s32.totalorder %s223, %s224
      %p233 = scmp.eq.s32.totalorder %s40, 0
      %p234 = por %p232, %p233
      %p235 = scmp.ne.s32.totalorder %s223, %s224
      %p236 = scmp.eq.s32.totalorder %s41, 1
      %p237 = por %p235, %p236
      %p239 = scmp.ne.s32.totalorder %s224, %s238
      %p240 = scmp.eq.s32.totalorder %s41, 0
      %p241 = por %p239, %p240
      %s243 = sadd.s32 %s242, 1
      %p246 = scmp.eq.s32.totalorder %s35, 1
      %p247 = scmp.ne.s32.totalorder %s242, %s244
      %p248 = scmp.eq.s32.totalorder %s35, 0
      %p249 = por %p247, %p248
      %p250 = scmp.ne.s32.totalorder %s242, %s244
      %p251 = scmp.eq.s32.totalorder %s40, 1
      %p252 = por %p250, %p251
      %p253 = scmp.ne.s32.totalorder %s244, %s245
      %p254 = scmp.eq.s32.totalorder %s40, 0
      %p255 = por %p253, %p254
      %p256 = scmp.ne.s32.totalorder %s244, %s245
      %p257 = scmp.eq.s32.totalorder %s41, 1
      %p258 = por %p256, %p257
      %p260 = scmp.ne.s32.totalorder %s245, %s259
      %p261 = scmp.eq.s32.totalorder %s41, 0
      %p262 = por %p260, %p261
      %s264 = sadd.s32 %s263, 1
      %p267 = scmp.eq.s32.totalorder %s35, 1
      %p268 = scmp.ne.s32.totalorder %s263, %s265
      %p269 = scmp.eq.s32.totalorder %s35, 0
      %p270 = por %p268, %p269
      %p271 = scmp.ne.s32.totalorder %s263, %s265
      %p272 = scmp.eq.s32.totalorder %s40, 1
      %p273 = por %p271, %p272
      %p274 = scmp.ne.s32.totalorder %s265, %s266
      %p275 = scmp.eq.s32.totalorder %s40, 0
      %p276 = por %p274, %p275
      %p277 = scmp.ne.s32.totalorder %s265, %s266
      %p278 = scmp.eq.s32.totalorder %s41, 1
      %p279 = por %p277, %p278
      %p281 = scmp.ne.s32.totalorder %s266, %s280
      %p282 = scmp.eq.s32.totalorder %s41, 0
      %p283 = por %p281, %p282
      %s284 = ssub.s32 %s35, %s42
      %p285 = scmp.eq.s32.totalorder %s284, 0
      %s287 = sadd.s32 %s286, 1
      %s288 = scalar_select %p285, %s286, %s287
      %p291 = pneg %p285
      %p292 = scmp.eq.s32.totalorder %s35, 1
      %p293 = por %p291, %p292
      %p294 = scmp.ne.s32.totalorder %s286, %s289
      %p295 = scmp.eq.s32.totalorder %s35, 0
      %p296 = por %p294, %p295
      %p297 = scmp.ne.s32.totalorder %s286, %s289
      %p298 = scmp.eq.s32.totalorder %s40, 1
      %p299 = por %p297, %p298
      %p300 = scmp.ne.s32.totalorder %s289, %s290
      %p301 = scmp.eq.s32.totalorder %s40, 0
      %p302 = por %p300, %p301
      %p303 = scmp.ne.s32.totalorder %s289, %s290
      %p304 = scmp.eq.s32.totalorder %s41, 1
      %p305 = por %p303, %p304
      %p307 = scmp.ne.s32.totalorder %s290, %s306
      %p308 = scmp.eq.s32.totalorder %s41, 0
      %p309 = por %p307, %p308
      %s310 = ssub.s32 %s35, %s42
      %p311 = scmp.eq.s32.totalorder %s310, 0
      %s313 = sadd.s32 %s312, 1
      %s314 = scalar_select %p311, %s312, %s313
      %p317 = pneg %p311
      %p318 = scmp.eq.s32.totalorder %s35, 1
      %p319 = por %p317, %p318
      %p320 = scmp.ne.s32.totalorder %s312, %s315
      %p321 = scmp.eq.s32.totalorder %s35, 0
      %p322 = por %p320, %p321
      %p323 = scmp.ne.s32.totalorder %s312, %s315
      %p324 = scmp.eq.s32.totalorder %s40, 1
      %p325 = por %p323, %p324
      %p326 = scmp.ne.s32.totalorder %s315, %s316
      %p327 = scmp.eq.s32.totalorder %s40, 0
      %p328 = por %p326, %p327
      %p329 = scmp.ne.s32.totalorder %s315, %s316
      %p330 = scmp.eq.s32.totalorder %s41, 1
      %p331 = por %p329, %p330
      %p333 = scmp.ne.s32.totalorder %s316, %s332
      %p334 = scmp.eq.s32.totalorder %s41, 0
      %p335 = por %p333, %p334
      %s336 = ssub.s32 %s35, %s42
      %p337 = scmp.eq.s32.totalorder %s336, 0
      %s339 = sadd.s32 %s338, 1
      %s340 = scalar_select %p337, %s338, %s339
      %p343 = pneg %p337
      %p344 = scmp.eq.s32.totalorder %s35, 1
      %p345 = por %p343, %p344
      %p346 = scmp.ne.s32.totalorder %s338, %s341
      %p347 = scmp.eq.s32.totalorder %s35, 0
      %p348 = por %p346, %p347
      %p349 = scmp.ne.s32.totalorder %s338, %s341
      %p350 = scmp.eq.s32.totalorder %s40, 1
      %p351 = por %p349, %p350
      %p352 = scmp.ne.s32.totalorder %s341, %s342
      %p353 = scmp.eq.s32.totalorder %s40, 0
      %p354 = por %p352, %p353
      %p355 = scmp.ne.s32.totalorder %s341, %s342
      %p356 = scmp.eq.s32.totalorder %s41, 1
      %p357 = por %p355, %p356
      %p359 = scmp.ne.s32.totalorder %s342, %s358
      %p360 = scmp.eq.s32.totalorder %s41, 0
      %p361 = por %p359, %p360
      %s362 = ssub.s32 %s35, %s42
      %p363 = scmp.eq.s32.totalorder %s362, 0
      %s365 = sadd.s32 %s364, 1
      %s366 = scalar_select %p363, %s364, %s365
      %p369 = pneg %p363
      %p370 = scmp.eq.s32.totalorder %s35, 1
      %p371 = por %p369, %p370
      %p372 = scmp.ne.s32.totalorder %s364, %s367
      %p373 = scmp.eq.s32.totalorder %s35, 0
      %p374 = por %p372, %p373
      %p375 = scmp.ne.s32.totalorder %s364, %s367
      %p376 = scmp.eq.s32.totalorder %s40, 1
      %p377 = por %p375, %p376
      %p378 = scmp.ne.s32.totalorder %s367, %s368
      %p379 = scmp.eq.s32.totalorder %s40, 0
      %p380 = por %p378, %p379
      %p381 = scmp.ne.s32.totalorder %s367, %s368
      %p382 = scmp.eq.s32.totalorder %s41, 1
      %p383 = por %p381, %p382
      %p385 = scmp.ne.s32.totalorder %s368, %s384
      %p386 = scmp.eq.s32.totalorder %s41, 0
      %p387 = por %p385, %p386
      %p388 = scmp.le.s32.totalorder 1, %s35
      %p389 = scmp.lt.s32.totalorder %s35, 3
      %p390 = pnand %p388, %p389
      %p391 = pneg %p390
      // Predicated region
      $region9: #{tpu_custom_call.1} parent=5 // pred_check
        _
      $region10: #{tpu_custom_call.1} parent=5 // pred_check_branch
        %393 = sbr.rel (%p390) target = $region12
      $region11: #{tpu_custom_call.1} parent=5 // pred_region
        %s394 = ssub.s32 %s35, 1
        // Predicated region
        $region13: #{tpu_custom_call.1} parent=11 // pred_check
          %p395 = pneg %p108
        $region14: #{tpu_custom_call.1} parent=11 // pred_check_branch
          %397 = sbr.rel (%p395) target = $region16
        $region15: #{tpu_custom_call.1} parent=11 // pred_region
          _
        $region16: #{tpu_custom_call.1} parent=11 // pred_fallthru
          _
        // Predicated region
        $region17: #{tpu_custom_call.1} parent=11 // pred_check
          %p398 = pneg %p129
        $region18: #{tpu_custom_call.1} parent=11 // pred_check_branch
          %400 = sbr.rel (%p398) target = $region20
        $region19: #{tpu_custom_call.1} parent=11 // pred_region
          %s402 = ssub.s32 1024, 1024
          %403 = vsyncadd [#allocation6], %s402
          %s404 = sshll.u32 [#allocation5], 4
          %s405 = int_to_ptr.vmem [resolvable:$true] %s404
          %410 = dma.hbm_to_vmem [thread:$0]  %s3, 1024, %s405, [#allocation6], 64, 64, 4
        $region20: #{tpu_custom_call.1} parent=11 // pred_fallthru
          _
        // Predicated region
        $region21: #{tpu_custom_call.1} parent=11 // pred_check
          %p411 = pneg %p150
        $region22: #{tpu_custom_call.1} parent=11 // pred_check_branch
          %413 = sbr.rel (%p411) target = $region24
        $region23: #{tpu_custom_call.1} parent=11 // pred_region
          _
        $region24: #{tpu_custom_call.1} parent=11 // pred_fallthru
          _
        // Predicated region
        $region25: #{tpu_custom_call.1} parent=11 // pred_check
          %p414 = pneg %p171
        $region26: #{tpu_custom_call.1} parent=11 // pred_check_branch
          %416 = sbr.rel (%p414) target = $region28
        $region27: #{tpu_custom_call.1} parent=11 // pred_region
          %s418 = ssub.s32 1024, 1024
          %419 = vsyncadd [#allocation6], %s418
          %s420 = sshll.u32 [#allocation7], 4
          %s421 = int_to_ptr.vmem [resolvable:$true] %s420
          %426 = dma.hbm_to_vmem [thread:$0]  %s5, 1024, %s421, [#allocation6], 64, 64, 4
        $region28: #{tpu_custom_call.1} parent=11 // pred_fallthru
          _
        // Predicated region
        $region29: #{tpu_custom_call.1} parent=11 // pred_check
          %p427 = pneg %p192
        $region30: #{tpu_custom_call.1} parent=11 // pred_check_branch
          %429 = sbr.rel (%p427) target = $region32
        $region31: #{tpu_custom_call.1} parent=11 // pred_region
          _
        $region32: #{tpu_custom_call.1} parent=11 // pred_fallthru
          _
        // Predicated region
        $region33: #{tpu_custom_call.1} parent=11 // pred_check
          %p430 = pneg %p213
        $region34: #{tpu_custom_call.1} parent=11 // pred_check_branch
          %432 = sbr.rel (%p430) target = $region36
        $region35: #{tpu_custom_call.1} parent=11 // pred_region
          %s434 = ssub.s32 512, 512
          %435 = vsyncadd [#allocation9], %s434
          %s436 = sshll.u32 [#allocation8], 4
          %s437 = int_to_ptr.vmem [resolvable:$true] %s436
          %442 = dma.hbm_to_vmem [thread:$0]  %s7, 512, %s437, [#allocation9], 64, 64, 4
        $region36: #{tpu_custom_call.1} parent=11 // pred_fallthru
          _
        // Predicated region
        $region37: #{tpu_custom_call.1} parent=11 // pred_check
          %p443 = pneg %p234
        $region38: #{tpu_custom_call.1} parent=11 // pred_check_branch
          %445 = sbr.rel (%p443) target = $region40
        $region39: #{tpu_custom_call.1} parent=11 // pred_region
          _
        $region40: #{tpu_custom_call.1} parent=11 // pred_fallthru
          _
        // Predicated region
        $region41: #{tpu_custom_call.1} parent=11 // pred_check
          %p446 = pneg %p255
        $region42: #{tpu_custom_call.1} parent=11 // pred_check_branch
          %448 = sbr.rel (%p446) target = $region44
        $region43: #{tpu_custom_call.1} parent=11 // pred_region
          _
        $region44: #{tpu_custom_call.1} parent=11 // pred_fallthru
          _
        // Predicated region
        $region45: #{tpu_custom_call.1} parent=11 // pred_check
          %p449 = pneg %p276
        $region46: #{tpu_custom_call.1} parent=11 // pred_check_branch
          %451 = sbr.rel (%p449) target = $region48
        $region47: #{tpu_custom_call.1} parent=11 // pred_region
          _
        $region48: #{tpu_custom_call.1} parent=11 // pred_fallthru
          _
      $region12: #{tpu_custom_call.1} parent=5 // pred_fallthru
        _
      %p452 = scmp.lt.s32.totalorder %s35, 2
      // Predicated region
      $region49: #{tpu_custom_call.1} parent=5 // pred_check
        %p453 = pneg %p452
      $region50: #{tpu_custom_call.1} parent=5 // pred_check_branch
        %455 = sbr.rel (%p453) target = $region52
      $region51: #{tpu_custom_call.1} parent=5 // pred_region
        // Predicated region
        $region53: #{tpu_custom_call.1} parent=51 // pred_check
          %p456 = pneg %p55
        $region54: #{tpu_custom_call.1} parent=51 // pred_check_branch
          %458 = sbr.rel (%p456) target = $region56
        $region55: #{tpu_custom_call.1} parent=51 // pred_region
          %s459 = sand.u32 %s45, 1
          %s460 = scalar_lea.sflag [#allocation3], %s459
          %s461 = sand.u32 %s45, 1
          %s462 = smul.addr %s461, 256
          %s463 = scalar_lea.vmem [#allocation2], %s462
          %s464 = smul.u32 16, %s35
          %s466 = ssub.s32 4096, 4096
          %467 = vsyncadd %s460, %s466
          %s468 = smul.addr %s464, 4
          %s469 = smul.addr %s468, 64
          %s470 = scalar_lea.hbm %s0, %s469
          %s471 = sshll.u32 %s463, 4
          %s472 = int_to_ptr.vmem [resolvable:$true] %s471
          %477 = dma.hbm_to_vmem [thread:$0]  %s470, 4096, %s472, %s460, 256, 256, 16
        $region56: #{tpu_custom_call.1} parent=51 // pred_fallthru
          _
        // Predicated region
        $region57: #{tpu_custom_call.1} parent=51 // pred_check
          %p478 = pneg %p81
        $region58: #{tpu_custom_call.1} parent=51 // pred_check_branch
          %480 = sbr.rel (%p478) target = $region60
        $region59: #{tpu_custom_call.1} parent=51 // pred_region
          %s481 = smul.u32 16, %s35
          %p482 = scmp.lt.s32.totalorder %s481, 31
          %s483 = scalar_select %p482, %s481, 31
          %s484 = smul.addr %s483, 8
          %s485 = scalar_lea.vmem %s1, %s484
          %s486 = smul.u32 16, %s35
        $region60: #{tpu_custom_call.1} parent=51 // pred_fallthru
          _
      $region52: #{tpu_custom_call.1} parent=5 // pred_fallthru
        _
      %p487 = scmp.le.s32.totalorder 1, %s35
      %p488 = scmp.lt.s32.totalorder %s35, 3
      %p489 = pnand %p487, %p488
      %p490 = pneg %p489
      // Predicated region
      $region61: #{tpu_custom_call.1} parent=5 // pred_check
        _
      $region62: #{tpu_custom_call.1} parent=5 // pred_check_branch
        %492 = sbr.rel (%p489) target = $region64
      $region63: #{tpu_custom_call.1} parent=5 // pred_region
        %s493 = ssub.s32 %s35, 1
        %s494 = sand.u32 %s48, 1
        %s495 = scalar_lea.sflag [#allocation3], %s494
        %s496 = sand.u32 %s48, 1
        %s497 = smul.addr %s496, 256
        %s498 = scalar_lea.vmem [#allocation2], %s497
        // Predicated region
        $region65: #{tpu_custom_call.1} parent=63 // pred_check
          %p499 = pneg %p61
        $region66: #{tpu_custom_call.1} parent=63 // pred_check_branch
          %501 = sbr.rel (%p499) target = $region68
        $region67: #{tpu_custom_call.1} parent=63 // pred_region
          %502 = dma.done %s495, 4096
        $region68: #{tpu_custom_call.1} parent=63 // pred_fallthru
          _
        // Predicated region
        $region69: #{tpu_custom_call.1} parent=63 // pred_check
          %p503 = pneg %p129
        $region70: #{tpu_custom_call.1} parent=63 // pred_check_branch
          %505 = sbr.rel (%p503) target = $region72
        $region71: #{tpu_custom_call.1} parent=63 // pred_region
          %506 = dma.done [#allocation6], 1024
        $region72: #{tpu_custom_call.1} parent=63 // pred_fallthru
          _
        // Predicated region
        $region73: #{tpu_custom_call.1} parent=63 // pred_check
          %p507 = pneg %p171
        $region74: #{tpu_custom_call.1} parent=63 // pred_check_branch
          %509 = sbr.rel (%p507) target = $region76
        $region75: #{tpu_custom_call.1} parent=63 // pred_region
          %510 = dma.done [#allocation6], 1024
        $region76: #{tpu_custom_call.1} parent=63 // pred_fallthru
          _
        // Predicated region
        $region77: #{tpu_custom_call.1} parent=63 // pred_check
          %p511 = pneg %p213
        $region78: #{tpu_custom_call.1} parent=63 // pred_check_branch
          %513 = sbr.rel (%p511) target = $region80
        $region79: #{tpu_custom_call.1} parent=63 // pred_region
          %514 = dma.done [#allocation9], 512
        $region80: #{tpu_custom_call.1} parent=63 // pred_fallthru
          _
        %s515 = sand.u32 %s48, 1
        %s516 = scalar_lea.sflag [#allocation3], %s515
        %s517 = sand.u32 %s48, 1
        %s518 = smul.addr %s517, 256
        %s519 = scalar_lea.vmem [#allocation2], %s518
        %p520 = pneg %p61
        %p521 = pneg %p58
        %s522 = smul.u32 16, %s40
        %p523 = scmp.lt.s32.totalorder %s522, 31
        %s524 = scalar_select %p523, %s522, 31
        %s525 = smul.addr %s524, 8
        %s526 = scalar_lea.vmem %s1, %s525
        %p527 = pneg %p87
        %p528 = pneg %p84
        %p529 = pneg %p108
        %p530 = pneg %p105
        %p531 = pneg %p129
        %p532 = pneg %p126
        %p533 = pneg %p150
        %p534 = pneg %p147
        %p535 = pneg %p171
        %p536 = pneg %p168
        %p537 = pneg %p192
        %p538 = pneg %p189
        %p539 = pneg %p213
        %p540 = pneg %p210
        %p541 = pneg %p234
        %p542 = pneg %p231
        %p543 = pneg %p255
        %p544 = pneg %p252
        %p545 = pneg %p276
        %p546 = pneg %p273
        %p547 = pneg %p302
        %p548 = pneg %p299
        %s549 = sand.u32 %s289, 1
        %s550 = scalar_lea.sflag [#allocation4], %s549
        %s551 = sand.u32 %s289, 1
        %s552 = smul.addr %s551, 256
        %s553 = scalar_lea.vmem [#allocation10], %s552
        %p554 = pneg %p328
        %p555 = pneg %p325
        %s556 = sand.u32 %s40, 1
        %s557 = scalar_lea.sflag [#allocation12], %s556
        %s558 = sand.u32 %s315, 1
        %s559 = smul.addr %s558, 128
        %s560 = scalar_lea.vmem [#allocation11], %s559
        %p561 = pneg %p354
        %p562 = pneg %p351
        %s563 = sand.u32 %s40, 1
        %s564 = scalar_lea.sflag [#allocation12], %s563
        %s565 = sand.u32 %s341, 1
        %s566 = smul.addr %s565, 128
        %s567 = scalar_lea.vmem [#allocation13], %s566
        %p568 = pneg %p380
        %p569 = pneg %p377
        %s570 = sand.u32 %s367, 1
        %s571 = scalar_lea.sflag [#allocation15], %s570
        %s572 = sand.u32 %s367, 1
        %s573 = smul.addr %s572, 256
        %s574 = scalar_lea.vmem [#allocation14], %s573
        %s575 = smul.u32 16, %s40
        %s576 = smul.u32 16, %s40
        %p577 = scmp.lt.s32.totalorder %s576, 31
        %s578 = scalar_select %p577, %s576, 31
        %s579 = smul.addr %s578, 8
        %s580 = scalar_lea.vmem %s1, %s579
        %s581 = smul.u32 16, %s40
        %s582 = smul.u32 16, %s40
        %s583 = smul.u32 16, %s40
        %s584 = smul.u32 16, %s40
        %s585 = smul.u32 16, %s40
        %v587 = vld [vmem:[%s498] sm:$0xff]
        %v588 = vld [vmem:[%s498 + $0x8] sm:$0xff]
        %v589 = vld [vmem:[%s498 + $0x10] sm:$0xff]
        %v590 = vld [vmem:[%s498 + $0x18] sm:$0xff]
        %v591 = vld [vmem:[%s498 + $0x20] sm:$0xff]
        %v592 = vld [vmem:[%s498 + $0x28] sm:$0xff]
        %v593 = vld [vmem:[%s498 + $0x30] sm:$0xff]
        %v594 = vld [vmem:[%s498 + $0x38] sm:$0xff]
        %v595 = vld [vmem:[%s498 + $0x40] sm:$0xff]
        %v596 = vld [vmem:[%s498 + $0x48] sm:$0xff]
        %v597 = vld [vmem:[%s498 + $0x50] sm:$0xff]
        %v598 = vld [vmem:[%s498 + $0x58] sm:$0xff]
        %v599 = vld [vmem:[%s498 + $0x60] sm:$0xff]
        %v600 = vld [vmem:[%s498 + $0x68] sm:$0xff]
        %v601 = vld [vmem:[%s498 + $0x70] sm:$0xff]
        %v602 = vld [vmem:[%s498 + $0x78] sm:$0xff]
        %v603 = vld [vmem:[%s498 + $0x80] sm:$0xff]
        %v604 = vld [vmem:[%s498 + $0x88] sm:$0xff]
        %v605 = vld [vmem:[%s498 + $0x90] sm:$0xff]
        %v606 = vld [vmem:[%s498 + $0x98] sm:$0xff]
        %v607 = vld [vmem:[%s498 + $0xa0] sm:$0xff]
        %v608 = vld [vmem:[%s498 + $0xa8] sm:$0xff]
        %v609 = vld [vmem:[%s498 + $0xb0] sm:$0xff]
        %v610 = vld [vmem:[%s498 + $0xb8] sm:$0xff]
        %v611 = vld [vmem:[%s498 + $0xc0] sm:$0xff]
        %v612 = vld [vmem:[%s498 + $0xc8] sm:$0xff]
        %v613 = vld [vmem:[%s498 + $0xd0] sm:$0xff]
        %v614 = vld [vmem:[%s498 + $0xd8] sm:$0xff]
        %v615 = vld [vmem:[%s498 + $0xe0] sm:$0xff]
        %v616 = vld [vmem:[%s498 + $0xe8] sm:$0xff]
        %v617 = vld [vmem:[%s498 + $0xf0] sm:$0xff]
        %v618 = vld [vmem:[%s498 + $0xf8] sm:$0xff]
        %v619 = vunpack.c.l.bf16 %v587
        %v620 = vunpack.c.h.bf16 %v587
        %v621 = vunpack.c.l.bf16 %v588
        %v622 = vunpack.c.h.bf16 %v588
        %v623 = vunpack.c.l.bf16 %v589
        %v624 = vunpack.c.h.bf16 %v589
        %v625 = vunpack.c.l.bf16 %v590
        %v626 = vunpack.c.h.bf16 %v590
        %v627 = vunpack.c.l.bf16 %v591
        %v628 = vunpack.c.h.bf16 %v591
        %v629 = vunpack.c.l.bf16 %v592
        %v630 = vunpack.c.h.bf16 %v592
        %v631 = vunpack.c.l.bf16 %v593
        %v632 = vunpack.c.h.bf16 %v593
        %v633 = vunpack.c.l.bf16 %v594
        %v634 = vunpack.c.h.bf16 %v594
        %v635 = vunpack.c.l.bf16 %v595
        %v636 = vunpack.c.h.bf16 %v595
        %v637 = vunpack.c.l.bf16 %v596
        %v638 = vunpack.c.h.bf16 %v596
        %v639 = vunpack.c.l.bf16 %v597
        %v640 = vunpack.c.h.bf16 %v597
        %v641 = vunpack.c.l.bf16 %v598
        %v642 = vunpack.c.h.bf16 %v598
        %v643 = vunpack.c.l.bf16 %v599
        %v644 = vunpack.c.h.bf16 %v599
        %v645 = vunpack.c.l.bf16 %v600
        %v646 = vunpack.c.h.bf16 %v600
        %v647 = vunpack.c.l.bf16 %v601
        %v648 = vunpack.c.h.bf16 %v601
        %v649 = vunpack.c.l.bf16 %v602
        %v650 = vunpack.c.h.bf16 %v602
        %v651 = vunpack.c.l.bf16 %v603
        %v652 = vunpack.c.h.bf16 %v603
        %v653 = vunpack.c.l.bf16 %v604
        %v654 = vunpack.c.h.bf16 %v604
        %v655 = vunpack.c.l.bf16 %v605
        %v656 = vunpack.c.h.bf16 %v605
        %v657 = vunpack.c.l.bf16 %v606
        %v658 = vunpack.c.h.bf16 %v606
        %v659 = vunpack.c.l.bf16 %v607
        %v660 = vunpack.c.h.bf16 %v607
        %v661 = vunpack.c.l.bf16 %v608
        %v662 = vunpack.c.h.bf16 %v608
        %v663 = vunpack.c.l.bf16 %v609
        %v664 = vunpack.c.h.bf16 %v609
        %v665 = vunpack.c.l.bf16 %v610
        %v666 = vunpack.c.h.bf16 %v610
        %v667 = vunpack.c.l.bf16 %v611
        %v668 = vunpack.c.h.bf16 %v611
        %v669 = vunpack.c.l.bf16 %v612
        %v670 = vunpack.c.h.bf16 %v612
        %v671 = vunpack.c.l.bf16 %v613
        %v672 = vunpack.c.h.bf16 %v613
        %v673 = vunpack.c.l.bf16 %v614
        %v674 = vunpack.c.h.bf16 %v614
        %v675 = vunpack.c.l.bf16 %v615
        %v676 = vunpack.c.h.bf16 %v615
        %v677 = vunpack.c.l.bf16 %v616
        %v678 = vunpack.c.h.bf16 %v616
        %v679 = vunpack.c.l.bf16 %v617
        %v680 = vunpack.c.h.bf16 %v617
        %v681 = vunpack.c.l.bf16 %v618
        %v682 = vunpack.c.h.bf16 %v618
        %v683 = vmax.f32 %v619, %v620
        %v684 = vmax.f32 %v683, %v621
        %v685 = vmax.f32 %v684, %v622
        %686 = vmax.xlane.f32.xlu0 %v685
        %v687 = vpop.xlane.xlu0 %686
        %v688 = vmax.f32 %v623, %v624
        %v689 = vmax.f32 %v688, %v625
        %v690 = vmax.f32 %v689, %v626
        %691 = vmax.xlane.f32.xlu0 %v690
        %v692 = vpop.xlane.xlu0 %691
        %v693 = vmax.f32 %v627, %v628
        %v694 = vmax.f32 %v693, %v629
        %v695 = vmax.f32 %v694, %v630
        %696 = vmax.xlane.f32.xlu0 %v695
        %v697 = vpop.xlane.xlu0 %696
        %v698 = vmax.f32 %v631, %v632
        %v699 = vmax.f32 %v698, %v633
        %v700 = vmax.f32 %v699, %v634
        %701 = vmax.xlane.f32.xlu0 %v700
        %v702 = vpop.xlane.xlu0 %701
        %v703 = vmax.f32 %v635, %v636
        %v704 = vmax.f32 %v703, %v637
        %v705 = vmax.f32 %v704, %v638
        %706 = vmax.xlane.f32.xlu0 %v705
        %v707 = vpop.xlane.xlu0 %706
        %v708 = vmax.f32 %v639, %v640
        %v709 = vmax.f32 %v708, %v641
        %v710 = vmax.f32 %v709, %v642
        %711 = vmax.xlane.f32.xlu0 %v710
        %v712 = vpop.xlane.xlu0 %711
        %v713 = vmax.f32 %v643, %v644
        %v714 = vmax.f32 %v713, %v645
        %v715 = vmax.f32 %v714, %v646
        %716 = vmax.xlane.f32.xlu0 %v715
        %v717 = vpop.xlane.xlu0 %716
        %v718 = vmax.f32 %v647, %v648
        %v719 = vmax.f32 %v718, %v649
        %v720 = vmax.f32 %v719, %v650
        %721 = vmax.xlane.f32.xlu0 %v720
        %v722 = vpop.xlane.xlu0 %721
        %v723 = vmax.f32 %v651, %v652
        %v724 = vmax.f32 %v723, %v653
        %v725 = vmax.f32 %v724, %v654
        %726 = vmax.xlane.f32.xlu0 %v725
        %v727 = vpop.xlane.xlu0 %726
        %v728 = vmax.f32 %v655, %v656
        %v729 = vmax.f32 %v728, %v657
        %v730 = vmax.f32 %v729, %v658
        %731 = vmax.xlane.f32.xlu0 %v730
        %v732 = vpop.xlane.xlu0 %731
        %v733 = vmax.f32 %v659, %v660
        %v734 = vmax.f32 %v733, %v661
        %v735 = vmax.f32 %v734, %v662
        %736 = vmax.xlane.f32.xlu0 %v735
        %v737 = vpop.xlane.xlu0 %736
        %v738 = vmax.f32 %v663, %v664
        %v739 = vmax.f32 %v738, %v665
        %v740 = vmax.f32 %v739, %v666
        %741 = vmax.xlane.f32.xlu0 %v740
        %v742 = vpop.xlane.xlu0 %741
        %v743 = vmax.f32 %v667, %v668
        %v744 = vmax.f32 %v743, %v669
        %v745 = vmax.f32 %v744, %v670
        %746 = vmax.xlane.f32.xlu0 %v745
        %v747 = vpop.xlane.xlu0 %746
        %v748 = vmax.f32 %v671, %v672
        %v749 = vmax.f32 %v748, %v673
        %v750 = vmax.f32 %v749, %v674
        %751 = vmax.xlane.f32.xlu0 %v750
        %v752 = vpop.xlane.xlu0 %751
        %v753 = vmax.f32 %v675, %v676
        %v754 = vmax.f32 %v753, %v677
        %v755 = vmax.f32 %v754, %v678
        %756 = vmax.xlane.f32.xlu0 %v755
        %v757 = vpop.xlane.xlu0 %756
        %v758 = vmax.f32 %v679, %v680
        %v759 = vmax.f32 %v758, %v681
        %v760 = vmax.f32 %v759, %v682
        %761 = vmax.xlane.f32.xlu0 %v760
        %v762 = vpop.xlane.xlu0 %761
        %v763 = vsub.f32 %v619, %v687
        %v764 = vsub.f32 %v620, %v687
        %v765 = vsub.f32 %v621, %v687
        %v766 = vsub.f32 %v622, %v687
        %v767 = vsub.f32 %v623, %v692
        %v768 = vsub.f32 %v624, %v692
        %v769 = vsub.f32 %v625, %v692
        %v770 = vsub.f32 %v626, %v692
        %v771 = vsub.f32 %v627, %v697
        %v772 = vsub.f32 %v628, %v697
        %v773 = vsub.f32 %v629, %v697
        %v774 = vsub.f32 %v630, %v697
        %v775 = vsub.f32 %v631, %v702
        %v776 = vsub.f32 %v632, %v702
        %v777 = vsub.f32 %v633, %v702
        %v778 = vsub.f32 %v634, %v702
        %v779 = vsub.f32 %v635, %v707
        %v780 = vsub.f32 %v636, %v707
        %v781 = vsub.f32 %v637, %v707
        %v782 = vsub.f32 %v638, %v707
        %v783 = vsub.f32 %v639, %v712
        %v784 = vsub.f32 %v640, %v712
        %v785 = vsub.f32 %v641, %v712
        %v786 = vsub.f32 %v642, %v712
        %v787 = vsub.f32 %v643, %v717
        %v788 = vsub.f32 %v644, %v717
        %v789 = vsub.f32 %v645, %v717
        %v790 = vsub.f32 %v646, %v717
        %v791 = vsub.f32 %v647, %v722
        %v792 = vsub.f32 %v648, %v722
        %v793 = vsub.f32 %v649, %v722
        %v794 = vsub.f32 %v650, %v722
        %v795 = vsub.f32 %v651, %v727
        %v796 = vsub.f32 %v652, %v727
        %v797 = vsub.f32 %v653, %v727
        %v798 = vsub.f32 %v654, %v727
        %v799 = vsub.f32 %v655, %v732
        %v800 = vsub.f32 %v656, %v732
        %v801 = vsub.f32 %v657, %v732
        %v802 = vsub.f32 %v658, %v732
        %v803 = vsub.f32 %v659, %v737
        %v804 = vsub.f32 %v660, %v737
        %v805 = vsub.f32 %v661, %v737
        %v806 = vsub.f32 %v662, %v737
        %v807 = vsub.f32 %v663, %v742
        %v808 = vsub.f32 %v664, %v742
        %v809 = vsub.f32 %v665, %v742
        %v810 = vsub.f32 %v666, %v742
        %v811 = vsub.f32 %v667, %v747
        %v812 = vsub.f32 %v668, %v747
        %v813 = vsub.f32 %v669, %v747
        %v814 = vsub.f32 %v670, %v747
        %v815 = vsub.f32 %v671, %v752
        %v816 = vsub.f32 %v672, %v752
        %v817 = vsub.f32 %v673, %v752
        %v818 = vsub.f32 %v674, %v752
        %v819 = vsub.f32 %v675, %v757
        %v820 = vsub.f32 %v676, %v757
        %v821 = vsub.f32 %v677, %v757
        %v822 = vsub.f32 %v678, %v757
        %v823 = vsub.f32 %v679, %v762
        %v824 = vsub.f32 %v680, %v762
        %v825 = vsub.f32 %v681, %v762
        %v826 = vsub.f32 %v682, %v762
        %v827 = vmul.f32 %v763, 1.442695
        %v828 = vpow.pop %v827
        %v829 = vmul.f32 %v764, 1.442695
        %v830 = vpow.pop %v829
        %v831 = vmul.f32 %v765, 1.442695
        %v832 = vpow.pop %v831
        %v833 = vmul.f32 %v766, 1.442695
        %v834 = vpow.pop %v833
        %v835 = vmul.f32 %v767, 1.442695
        %v836 = vpow.pop %v835
        %v837 = vmul.f32 %v768, 1.442695
        %v838 = vpow.pop %v837
        %v839 = vmul.f32 %v769, 1.442695
        %v840 = vpow.pop %v839
        %v841 = vmul.f32 %v770, 1.442695
        %v842 = vpow.pop %v841
        %v843 = vmul.f32 %v771, 1.442695
        %v844 = vpow.pop %v843
        %v845 = vmul.f32 %v772, 1.442695
        %v846 = vpow.pop %v845
        %v847 = vmul.f32 %v773, 1.442695
        %v848 = vpow.pop %v847
        %v849 = vmul.f32 %v774, 1.442695
        %v850 = vpow.pop %v849
        %v851 = vmul.f32 %v775, 1.442695
        %v852 = vpow.pop %v851
        %v853 = vmul.f32 %v776, 1.442695
        %v854 = vpow.pop %v853
        %v855 = vmul.f32 %v777, 1.442695
        %v856 = vpow.pop %v855
        %v857 = vmul.f32 %v778, 1.442695
        %v858 = vpow.pop %v857
        %v859 = vmul.f32 %v779, 1.442695
        %v860 = vpow.pop %v859
        %v861 = vmul.f32 %v780, 1.442695
        %v862 = vpow.pop %v861
        %v863 = vmul.f32 %v781, 1.442695
        %v864 = vpow.pop %v863
        %v865 = vmul.f32 %v782, 1.442695
        %v866 = vpow.pop %v865
        %v867 = vmul.f32 %v783, 1.442695
        %v868 = vpow.pop %v867
        %v869 = vmul.f32 %v784, 1.442695
        %v870 = vpow.pop %v869
        %v871 = vmul.f32 %v785, 1.442695
        %v872 = vpow.pop %v871
        %v873 = vmul.f32 %v786, 1.442695
        %v874 = vpow.pop %v873
        %v875 = vmul.f32 %v787, 1.442695
        %v876 = vpow.pop %v875
        %v877 = vmul.f32 %v788, 1.442695
        %v878 = vpow.pop %v877
        %v879 = vmul.f32 %v789, 1.442695
        %v880 = vpow.pop %v879
        %v881 = vmul.f32 %v790, 1.442695
        %v882 = vpow.pop %v881
        %v883 = vmul.f32 %v791, 1.442695
        %v884 = vpow.pop %v883
        %v885 = vmul.f32 %v792, 1.442695
        %v886 = vpow.pop %v885
        %v887 = vmul.f32 %v793, 1.442695
        %v888 = vpow.pop %v887
        %v889 = vmul.f32 %v794, 1.442695
        %v890 = vpow.pop %v889
        %v891 = vmul.f32 %v795, 1.442695
        %v892 = vpow.pop %v891
        %v893 = vmul.f32 %v796, 1.442695
        %v894 = vpow.pop %v893
        %v895 = vmul.f32 %v797, 1.442695
        %v896 = vpow.pop %v895
        %v897 = vmul.f32 %v798, 1.442695
        %v898 = vpow.pop %v897
        %v899 = vmul.f32 %v799, 1.442695
        %v900 = vpow.pop %v899
        %v901 = vmul.f32 %v800, 1.442695
        %v902 = vpow.pop %v901
        %v903 = vmul.f32 %v801, 1.442695
        %v904 = vpow.pop %v903
        %v905 = vmul.f32 %v802, 1.442695
        %v906 = vpow.pop %v905
        %v907 = vmul.f32 %v803, 1.442695
        %v908 = vpow.pop %v907
        %v909 = vmul.f32 %v804, 1.442695
        %v910 = vpow.pop %v909
        %v911 = vmul.f32 %v805, 1.442695
        %v912 = vpow.pop %v911
        %v913 = vmul.f32 %v806, 1.442695
        %v914 = vpow.pop %v913
        %v915 = vmul.f32 %v807, 1.442695
        %v916 = vpow.pop %v915
        %v917 = vmul.f32 %v808, 1.442695
        %v918 = vpow.pop %v917
        %v919 = vmul.f32 %v809, 1.442695
        %v920 = vpow.pop %v919
        %v921 = vmul.f32 %v810, 1.442695
        %v922 = vpow.pop %v921
        %v923 = vmul.f32 %v811, 1.442695
        %v924 = vpow.pop %v923
        %v925 = vmul.f32 %v812, 1.442695
        %v926 = vpow.pop %v925
        %v927 = vmul.f32 %v813, 1.442695
        %v928 = vpow.pop %v927
        %v929 = vmul.f32 %v814, 1.442695
        %v930 = vpow.pop %v929
        %v931 = vmul.f32 %v815, 1.442695
        %v932 = vpow.pop %v931
        %v933 = vmul.f32 %v816, 1.442695
        %v934 = vpow.pop %v933
        %v935 = vmul.f32 %v817, 1.442695
        %v936 = vpow.pop %v935
        %v937 = vmul.f32 %v818, 1.442695
        %v938 = vpow.pop %v937
        %v939 = vmul.f32 %v819, 1.442695
        %v940 = vpow.pop %v939
        %v941 = vmul.f32 %v820, 1.442695
        %v942 = vpow.pop %v941
        %v943 = vmul.f32 %v821, 1.442695
        %v944 = vpow.pop %v943
        %v945 = vmul.f32 %v822, 1.442695
        %v946 = vpow.pop %v945
        %v947 = vmul.f32 %v823, 1.442695
        %v948 = vpow.pop %v947
        %v949 = vmul.f32 %v824, 1.442695
        %v950 = vpow.pop %v949
        %v951 = vmul.f32 %v825, 1.442695
        %v952 = vpow.pop %v951
        %v953 = vmul.f32 %v826, 1.442695
        %v954 = vpow.pop %v953
        %v955 = vadd.f32 %v828, %v830
        %v956 = vadd.f32 %v955, %v832
        %v957 = vadd.f32 %v956, %v834
        %958 = vadd.xlane.f32.xlu0 %v957
        %v959 = vpop.xlane.xlu0 %958
        %v960 = vadd.f32 %v836, %v838
        %v961 = vadd.f32 %v960, %v840
        %v962 = vadd.f32 %v961, %v842
        %963 = vadd.xlane.f32.xlu0 %v962
        %v964 = vpop.xlane.xlu0 %963
        %v965 = vadd.f32 %v844, %v846
        %v966 = vadd.f32 %v965, %v848
        %v967 = vadd.f32 %v966, %v850
        %968 = vadd.xlane.f32.xlu0 %v967
        %v969 = vpop.xlane.xlu0 %968
        %v970 = vadd.f32 %v852, %v854
        %v971 = vadd.f32 %v970, %v856
        %v972 = vadd.f32 %v971, %v858
        %973 = vadd.xlane.f32.xlu0 %v972
        %v974 = vpop.xlane.xlu0 %973
        %v975 = vadd.f32 %v860, %v862
        %v976 = vadd.f32 %v975, %v864
        %v977 = vadd.f32 %v976, %v866
        %978 = vadd.xlane.f32.xlu0 %v977
        %v979 = vpop.xlane.xlu0 %978
        %v980 = vadd.f32 %v868, %v870
        %v981 = vadd.f32 %v980, %v872
        %v982 = vadd.f32 %v981, %v874
        %983 = vadd.xlane.f32.xlu0 %v982
        %v984 = vpop.xlane.xlu0 %983
        %v985 = vadd.f32 %v876, %v878
        %v986 = vadd.f32 %v985, %v880
        %v987 = vadd.f32 %v986, %v882
        %988 = vadd.xlane.f32.xlu0 %v987
        %v989 = vpop.xlane.xlu0 %988
        %v990 = vadd.f32 %v884, %v886
        %v991 = vadd.f32 %v990, %v888
        %v992 = vadd.f32 %v991, %v890
        %993 = vadd.xlane.f32.xlu0 %v992
        %v994 = vpop.xlane.xlu0 %993
        %v995 = vadd.f32 %v892, %v894
        %v996 = vadd.f32 %v995, %v896
        %v997 = vadd.f32 %v996, %v898
        %998 = vadd.xlane.f32.xlu0 %v997
        %v999 = vpop.xlane.xlu0 %998
        %v1000 = vadd.f32 %v900, %v902
        %v1001 = vadd.f32 %v1000, %v904
        %v1002 = vadd.f32 %v1001, %v906
        %1003 = vadd.xlane.f32.xlu0 %v1002
        %v1004 = vpop.xlane.xlu0 %1003
        %v1005 = vadd.f32 %v908, %v910
        %v1006 = vadd.f32 %v1005, %v912
        %v1007 = vadd.f32 %v1006, %v914
        %1008 = vadd.xlane.f32.xlu0 %v1007
        %v1009 = vpop.xlane.xlu0 %1008
        %v1010 = vadd.f32 %v916, %v918
        %v1011 = vadd.f32 %v1010, %v920
        %v1012 = vadd.f32 %v1011, %v922
        %1013 = vadd.xlane.f32.xlu0 %v1012
        %v1014 = vpop.xlane.xlu0 %1013
        %v1015 = vadd.f32 %v924, %v926
        %v1016 = vadd.f32 %v1015, %v928
        %v1017 = vadd.f32 %v1016, %v930
        %1018 = vadd.xlane.f32.xlu0 %v1017
        %v1019 = vpop.xlane.xlu0 %1018
        %v1020 = vadd.f32 %v932, %v934
        %v1021 = vadd.f32 %v1020, %v936
        %v1022 = vadd.f32 %v1021, %v938
        %1023 = vadd.xlane.f32.xlu0 %v1022
        %v1024 = vpop.xlane.xlu0 %1023
        %v1025 = vadd.f32 %v940, %v942
        %v1026 = vadd.f32 %v1025, %v944
        %v1027 = vadd.f32 %v1026, %v946
        %1028 = vadd.xlane.f32.xlu0 %v1027
        %v1029 = vpop.xlane.xlu0 %1028
        %v1030 = vadd.f32 %v948, %v950
        %v1031 = vadd.f32 %v1030, %v952
        %v1032 = vadd.f32 %v1031, %v954
        %1033 = vadd.xlane.f32.xlu0 %v1032
        %v1034 = vpop.xlane.xlu0 %1033
        %v1035 = vrcp.pop %v959
        %v1036 = vmul.f32 %v828, %v1035
        %v1037 = vmul.f32 %v830, %v1035
        %v1038 = vmul.f32 %v832, %v1035
        %v1039 = vmul.f32 %v834, %v1035
        %v1040 = vrcp.pop %v964
        %v1041 = vmul.f32 %v836, %v1040
        %v1042 = vmul.f32 %v838, %v1040
        %v1043 = vmul.f32 %v840, %v1040
        %v1044 = vmul.f32 %v842, %v1040
        %v1045 = vrcp.pop %v969
        %v1046 = vmul.f32 %v844, %v1045
        %v1047 = vmul.f32 %v846, %v1045
        %v1048 = vmul.f32 %v848, %v1045
        %v1049 = vmul.f32 %v850, %v1045
        %v1050 = vrcp.pop %v974
        %v1051 = vmul.f32 %v852, %v1050
        %v1052 = vmul.f32 %v854, %v1050
        %v1053 = vmul.f32 %v856, %v1050
        %v1054 = vmul.f32 %v858, %v1050
        %v1055 = vrcp.pop %v979
        %v1056 = vmul.f32 %v860, %v1055
        %v1057 = vmul.f32 %v862, %v1055
        %v1058 = vmul.f32 %v864, %v1055
        %v1059 = vmul.f32 %v866, %v1055
        %v1060 = vrcp.pop %v984
        %v1061 = vmul.f32 %v868, %v1060
        %v1062 = vmul.f32 %v870, %v1060
        %v1063 = vmul.f32 %v872, %v1060
        %v1064 = vmul.f32 %v874, %v1060
        %v1065 = vrcp.pop %v989
        %v1066 = vmul.f32 %v876, %v1065
        %v1067 = vmul.f32 %v878, %v1065
        %v1068 = vmul.f32 %v880, %v1065
        %v1069 = vmul.f32 %v882, %v1065
        %v1070 = vrcp.pop %v994
        %v1071 = vmul.f32 %v884, %v1070
        %v1072 = vmul.f32 %v886, %v1070
        %v1073 = vmul.f32 %v888, %v1070
        %v1074 = vmul.f32 %v890, %v1070
        %v1075 = vrcp.pop %v999
        %v1076 = vmul.f32 %v892, %v1075
        %v1077 = vmul.f32 %v894, %v1075
        %v1078 = vmul.f32 %v896, %v1075
        %v1079 = vmul.f32 %v898, %v1075
        %v1080 = vrcp.pop %v1004
        %v1081 = vmul.f32 %v900, %v1080
        %v1082 = vmul.f32 %v902, %v1080
        %v1083 = vmul.f32 %v904, %v1080
        %v1084 = vmul.f32 %v906, %v1080
        %v1085 = vrcp.pop %v1009
        %v1086 = vmul.f32 %v908, %v1085
        %v1087 = vmul.f32 %v910, %v1085
        %v1088 = vmul.f32 %v912, %v1085
        %v1089 = vmul.f32 %v914, %v1085
        %v1090 = vrcp.pop %v1014
        %v1091 = vmul.f32 %v916, %v1090
        %v1092 = vmul.f32 %v918, %v1090
        %v1093 = vmul.f32 %v920, %v1090
        %v1094 = vmul.f32 %v922, %v1090
        %v1095 = vrcp.pop %v1019
        %v1096 = vmul.f32 %v924, %v1095
        %v1097 = vmul.f32 %v926, %v1095
        %v1098 = vmul.f32 %v928, %v1095
        %v1099 = vmul.f32 %v930, %v1095
        %v1100 = vrcp.pop %v1024
        %v1101 = vmul.f32 %v932, %v1100
        %v1102 = vmul.f32 %v934, %v1100
        %v1103 = vmul.f32 %v936, %v1100
        %v1104 = vmul.f32 %v938, %v1100
        %v1105 = vrcp.pop %v1029
        %v1106 = vmul.f32 %v940, %v1105
        %v1107 = vmul.f32 %v942, %v1105
        %v1108 = vmul.f32 %v944, %v1105
        %v1109 = vmul.f32 %v946, %v1105
        %v1110 = vrcp.pop %v1034
        %v1111 = vmul.f32 %v948, %v1110
        %v1112 = vmul.f32 %v950, %v1110
        %v1113 = vmul.f32 %v952, %v1110
        %v1114 = vmul.f32 %v954, %v1110
        %v1115 = vpack.c.bf16 %v1041, %v1036
        %v1116 = vpack.c.bf16 %v1042, %v1037
        %v1117 = vpack.c.bf16 %v1043, %v1038
        %v1118 = vpack.c.bf16 %v1044, %v1039
        %v1119 = vpack.c.bf16 %v1051, %v1046
        %v1120 = vpack.c.bf16 %v1052, %v1047
        %v1121 = vpack.c.bf16 %v1053, %v1048
        %v1122 = vpack.c.bf16 %v1054, %v1049
        %v1123 = vpack.c.bf16 %v1061, %v1056
        %v1124 = vpack.c.bf16 %v1062, %v1057
        %v1125 = vpack.c.bf16 %v1063, %v1058
        %v1126 = vpack.c.bf16 %v1064, %v1059
        %v1127 = vpack.c.bf16 %v1071, %v1066
        %v1128 = vpack.c.bf16 %v1072, %v1067
        %v1129 = vpack.c.bf16 %v1073, %v1068
        %v1130 = vpack.c.bf16 %v1074, %v1069
        %v1131 = vpack.c.bf16 %v1081, %v1076
        %v1132 = vpack.c.bf16 %v1082, %v1077
        %v1133 = vpack.c.bf16 %v1083, %v1078
        %v1134 = vpack.c.bf16 %v1084, %v1079
        %v1135 = vpack.c.bf16 %v1091, %v1086
        %v1136 = vpack.c.bf16 %v1092, %v1087
        %v1137 = vpack.c.bf16 %v1093, %v1088
        %v1138 = vpack.c.bf16 %v1094, %v1089
        %v1139 = vpack.c.bf16 %v1101, %v1096
        %v1140 = vpack.c.bf16 %v1102, %v1097
        %v1141 = vpack.c.bf16 %v1103, %v1098
        %v1142 = vpack.c.bf16 %v1104, %v1099
        %v1143 = vpack.c.bf16 %v1111, %v1106
        %v1144 = vpack.c.bf16 %v1112, %v1107
        %v1145 = vpack.c.bf16 %v1113, %v1108
        %v1146 = vpack.c.bf16 %v1114, %v1109
        %v1179 = vunpack.c.l.b16 %v1115
        %v1180 = vunpack.c.l.b16 %v1116
        %v1181 = vunpack.c.l.b16 %v1117
        %v1182 = vunpack.c.l.b16 %v1118
        %v1183 = vunpack.c.h.b16 %v1115
        %v1184 = vunpack.c.h.b16 %v1116
        %v1185 = vunpack.c.h.b16 %v1117
        %v1186 = vunpack.c.h.b16 %v1118
        %v1187 = vunpack.c.l.b16 %v1119
        %v1188 = vunpack.c.l.b16 %v1120
        %v1189 = vunpack.c.l.b16 %v1121
        %v1190 = vunpack.c.l.b16 %v1122
        %v1191 = vunpack.c.h.b16 %v1119
        %v1192 = vunpack.c.h.b16 %v1120
        %v1193 = vunpack.c.h.b16 %v1121
        %v1194 = vunpack.c.h.b16 %v1122
        %v1195 = vunpack.c.l.b16 %v1123
        %v1196 = vunpack.c.l.b16 %v1124
        %v1197 = vunpack.c.l.b16 %v1125
        %v1198 = vunpack.c.l.b16 %v1126
        %v1199 = vunpack.c.h.b16 %v1123
        %v1200 = vunpack.c.h.b16 %v1124
        %v1201 = vunpack.c.h.b16 %v1125
        %v1202 = vunpack.c.h.b16 %v1126
        %v1203 = vunpack.c.l.b16 %v1127
        %v1204 = vunpack.c.l.b16 %v1128
        %v1205 = vunpack.c.l.b16 %v1129
        %v1206 = vunpack.c.l.b16 %v1130
        %v1207 = vunpack.c.h.b16 %v1127
        %v1208 = vunpack.c.h.b16 %v1128
        %v1209 = vunpack.c.h.b16 %v1129
        %v1210 = vunpack.c.h.b16 %v1130
        %v1211 = vunpack.c.l.b16 %v1131
        %v1212 = vunpack.c.l.b16 %v1132
        %v1213 = vunpack.c.l.b16 %v1133
        %v1214 = vunpack.c.l.b16 %v1134
        %v1215 = vunpack.c.h.b16 %v1131
        %v1216 = vunpack.c.h.b16 %v1132
        %v1217 = vunpack.c.h.b16 %v1133
        %v1218 = vunpack.c.h.b16 %v1134
        %v1219 = vunpack.c.l.b16 %v1135
        %v1220 = vunpack.c.l.b16 %v1136
        %v1221 = vunpack.c.l.b16 %v1137
        %v1222 = vunpack.c.l.b16 %v1138
        %v1223 = vunpack.c.h.b16 %v1135
        %v1224 = vunpack.c.h.b16 %v1136
        %v1225 = vunpack.c.h.b16 %v1137
        %v1226 = vunpack.c.h.b16 %v1138
        %v1227 = vunpack.c.l.b16 %v1139
        %v1228 = vunpack.c.l.b16 %v1140
        %v1229 = vunpack.c.l.b16 %v1141
        %v1230 = vunpack.c.l.b16 %v1142
        %v1231 = vunpack.c.h.b16 %v1139
        %v1232 = vunpack.c.h.b16 %v1140
        %v1233 = vunpack.c.h.b16 %v1141
        %v1234 = vunpack.c.h.b16 %v1142
        %v1235 = vunpack.c.l.b16 %v1143
        %v1236 = vunpack.c.l.b16 %v1144
        %v1237 = vunpack.c.l.b16 %v1145
        %v1238 = vunpack.c.l.b16 %v1146
        %v1239 = vunpack.c.h.b16 %v1143
        %v1240 = vunpack.c.h.b16 %v1144
        %v1241 = vunpack.c.h.b16 %v1145
        %v1242 = vunpack.c.h.b16 %v1146
        %v1243 = vpack.c.b16 %v1180, %v1179
        %v1244 = vpack.c.b16 %v1182, %v1181
        %v1245 = vpack.c.b16 %v1184, %v1183
        %v1246 = vpack.c.b16 %v1186, %v1185
        %v1247 = vpack.c.b16 %v1188, %v1187
        %v1248 = vpack.c.b16 %v1190, %v1189
        %v1249 = vpack.c.b16 %v1192, %v1191
        %v1250 = vpack.c.b16 %v1194, %v1193
        %v1251 = vpack.c.b16 %v1196, %v1195
        %v1252 = vpack.c.b16 %v1198, %v1197
        %v1253 = vpack.c.b16 %v1200, %v1199
        %v1254 = vpack.c.b16 %v1202, %v1201
        %v1255 = vpack.c.b16 %v1204, %v1203
        %v1256 = vpack.c.b16 %v1206, %v1205
        %v1257 = vpack.c.b16 %v1208, %v1207
        %v1258 = vpack.c.b16 %v1210, %v1209
        %v1259 = vpack.c.b16 %v1212, %v1211
        %v1260 = vpack.c.b16 %v1214, %v1213
        %v1261 = vpack.c.b16 %v1216, %v1215
        %v1262 = vpack.c.b16 %v1218, %v1217
        %v1263 = vpack.c.b16 %v1220, %v1219
        %v1264 = vpack.c.b16 %v1222, %v1221
        %v1265 = vpack.c.b16 %v1224, %v1223
        %v1266 = vpack.c.b16 %v1226, %v1225
        %v1267 = vpack.c.b16 %v1228, %v1227
        %v1268 = vpack.c.b16 %v1230, %v1229
        %v1269 = vpack.c.b16 %v1232, %v1231
        %v1270 = vpack.c.b16 %v1234, %v1233
        %v1271 = vpack.c.b16 %v1236, %v1235
        %v1272 = vpack.c.b16 %v1238, %v1237
        %v1273 = vpack.c.b16 %v1240, %v1239
        %v1274 = vpack.c.b16 %v1242, %v1241
        %1307 = vst [vmem:[%s574] sm:$0xff] %v1243
        %1308 = vst [vmem:[%s574 + $0x8] sm:$0xff] %v1244
        %1309 = vst [vmem:[%s574 + $0x10] sm:$0xff] %v1245
        %1310 = vst [vmem:[%s574 + $0x18] sm:$0xff] %v1246
        %1311 = vst [vmem:[%s574 + $0x20] sm:$0xff] %v1247
        %1312 = vst [vmem:[%s574 + $0x28] sm:$0xff] %v1248
        %1313 = vst [vmem:[%s574 + $0x30] sm:$0xff] %v1249
        %1314 = vst [vmem:[%s574 + $0x38] sm:$0xff] %v1250
        %1315 = vst [vmem:[%s574 + $0x40] sm:$0xff] %v1251
        %1316 = vst [vmem:[%s574 + $0x48] sm:$0xff] %v1252
        %1317 = vst [vmem:[%s574 + $0x50] sm:$0xff] %v1253
        %1318 = vst [vmem:[%s574 + $0x58] sm:$0xff] %v1254
        %1319 = vst [vmem:[%s574 + $0x60] sm:$0xff] %v1255
        %1320 = vst [vmem:[%s574 + $0x68] sm:$0xff] %v1256
        %1321 = vst [vmem:[%s574 + $0x70] sm:$0xff] %v1257
        %1322 = vst [vmem:[%s574 + $0x78] sm:$0xff] %v1258
        %1323 = vst [vmem:[%s574 + $0x80] sm:$0xff] %v1259
        %1324 = vst [vmem:[%s574 + $0x88] sm:$0xff] %v1260
        %1325 = vst [vmem:[%s574 + $0x90] sm:$0xff] %v1261
        %1326 = vst [vmem:[%s574 + $0x98] sm:$0xff] %v1262
        %1327 = vst [vmem:[%s574 + $0xa0] sm:$0xff] %v1263
        %1328 = vst [vmem:[%s574 + $0xa8] sm:$0xff] %v1264
        %1329 = vst [vmem:[%s574 + $0xb0] sm:$0xff] %v1265
        %1330 = vst [vmem:[%s574 + $0xb8] sm:$0xff] %v1266
        %1331 = vst [vmem:[%s574 + $0xc0] sm:$0xff] %v1267
        %1332 = vst [vmem:[%s574 + $0xc8] sm:$0xff] %v1268
        %1333 = vst [vmem:[%s574 + $0xd0] sm:$0xff] %v1269
        %1334 = vst [vmem:[%s574 + $0xd8] sm:$0xff] %v1270
        %1335 = vst [vmem:[%s574 + $0xe0] sm:$0xff] %v1271
        %1336 = vst [vmem:[%s574 + $0xe8] sm:$0xff] %v1272
        %1337 = vst [vmem:[%s574 + $0xf0] sm:$0xff] %v1273
        %1338 = vst [vmem:[%s574 + $0xf8] sm:$0xff] %v1274
        %v1339 = vld [vmem:[%s2] sm:$0xf]
        %v1340 = vld [vmem:[%s2 + $0x4] sm:$0xf]
        %v1341 = vld [vmem:[%s2 + $0x8] sm:$0xf]
        %v1342 = vld [vmem:[%s2 + $0xc] sm:$0xf]
        %v1343 = vld [vmem:[%s2 + $0x10] sm:$0xf]
        %v1344 = vld [vmem:[%s2 + $0x14] sm:$0xf]
        %v1345 = vld [vmem:[%s2 + $0x18] sm:$0xf]
        %v1346 = vld [vmem:[%s2 + $0x1c] sm:$0xf]
        %v1347 = vld [vmem:[%s2 + $0x20] sm:$0xf]
        %v1348 = vld [vmem:[%s2 + $0x24] sm:$0xf]
        %v1349 = vld [vmem:[%s2 + $0x28] sm:$0xf]
        %v1350 = vld [vmem:[%s2 + $0x2c] sm:$0xf]
        %v1351 = vld [vmem:[%s2 + $0x30] sm:$0xf]
        %v1352 = vld [vmem:[%s2 + $0x34] sm:$0xf]
        %v1353 = vld [vmem:[%s2 + $0x38] sm:$0xf]
        %v1354 = vld [vmem:[%s2 + $0x3c] sm:$0xf]
        %v1355 = vld [vmem:[%s2 + $0x40] sm:$0xf]
        %v1356 = vld [vmem:[%s2 + $0x44] sm:$0xf]
        %v1357 = vld [vmem:[%s2 + $0x48] sm:$0xf]
        %v1358 = vld [vmem:[%s2 + $0x4c] sm:$0xf]
        %v1359 = vld [vmem:[%s2 + $0x50] sm:$0xf]
        %v1360 = vld [vmem:[%s2 + $0x54] sm:$0xf]
        %v1361 = vld [vmem:[%s2 + $0x58] sm:$0xf]
        %v1362 = vld [vmem:[%s2 + $0x5c] sm:$0xf]
        %v1363 = vld [vmem:[%s2 + $0x60] sm:$0xf]
        %v1364 = vld [vmem:[%s2 + $0x64] sm:$0xf]
        %v1365 = vld [vmem:[%s2 + $0x68] sm:$0xf]
        %v1366 = vld [vmem:[%s2 + $0x6c] sm:$0xf]
        %v1367 = vld [vmem:[%s2 + $0x70] sm:$0xf]
        %v1368 = vld [vmem:[%s2 + $0x74] sm:$0xf]
        %v1369 = vld [vmem:[%s2 + $0x78] sm:$0xf]
        %v1370 = vld [vmem:[%s2 + $0x7c] sm:$0xf]
        %v1371 = vld [vmem:[%s2 + $0x80] sm:$0xf]
        %v1372 = vld [vmem:[%s2 + $0x84] sm:$0xf]
        %v1373 = vld [vmem:[%s2 + $0x88] sm:$0xf]
        %v1374 = vld [vmem:[%s2 + $0x8c] sm:$0xf]
        %v1375 = vld [vmem:[%s2 + $0x90] sm:$0xf]
        %v1376 = vld [vmem:[%s2 + $0x94] sm:$0xf]
        %v1377 = vld [vmem:[%s2 + $0x98] sm:$0xf]
        %v1378 = vld [vmem:[%s2 + $0x9c] sm:$0xf]
        %v1379 = vld [vmem:[%s2 + $0xa0] sm:$0xf]
        %v1380 = vld [vmem:[%s2 + $0xa4] sm:$0xf]
        %v1381 = vld [vmem:[%s2 + $0xa8] sm:$0xf]
        %v1382 = vld [vmem:[%s2 + $0xac] sm:$0xf]
        %v1383 = vld [vmem:[%s2 + $0xb0] sm:$0xf]
        %v1384 = vld [vmem:[%s2 + $0xb4] sm:$0xf]
        %v1385 = vld [vmem:[%s2 + $0xb8] sm:$0xf]
        %v1386 = vld [vmem:[%s2 + $0xbc] sm:$0xf]
        %v1387 = vld [vmem:[%s2 + $0xc0] sm:$0xf]
        %v1388 = vld [vmem:[%s2 + $0xc4] sm:$0xf]
        %v1389 = vld [vmem:[%s2 + $0xc8] sm:$0xf]
        %v1390 = vld [vmem:[%s2 + $0xcc] sm:$0xf]
        %v1391 = vld [vmem:[%s2 + $0xd0] sm:$0xf]
        %v1392 = vld [vmem:[%s2 + $0xd4] sm:$0xf]
        %v1393 = vld [vmem:[%s2 + $0xd8] sm:$0xf]
        %v1394 = vld [vmem:[%s2 + $0xdc] sm:$0xf]
        %v1395 = vld [vmem:[%s2 + $0xe0] sm:$0xf]
        %v1396 = vld [vmem:[%s2 + $0xe4] sm:$0xf]
        %v1397 = vld [vmem:[%s2 + $0xe8] sm:$0xf]
        %v1398 = vld [vmem:[%s2 + $0xec] sm:$0xf]
        %v1399 = vld [vmem:[%s2 + $0xf0] sm:$0xf]
        %v1400 = vld [vmem:[%s2 + $0xf4] sm:$0xf]
        %v1401 = vld [vmem:[%s2 + $0xf8] sm:$0xf]
        %v1402 = vld [vmem:[%s2 + $0xfc] sm:$0xf]
        %v1467 = vunpack.c.l.b16 %v1339
        %v1468 = vunpack.c.l.b16 %v1340
        %v1469 = vunpack.c.l.b16 %v1341
        %v1470 = vunpack.c.l.b16 %v1342
        %v1471 = vunpack.c.l.b16 %v1343
        %v1472 = vunpack.c.l.b16 %v1344
        %v1473 = vunpack.c.l.b16 %v1345
        %v1474 = vunpack.c.l.b16 %v1346
        %v1475 = vunpack.c.l.b16 %v1347
        %v1476 = vunpack.c.l.b16 %v1348
        %v1477 = vunpack.c.l.b16 %v1349
        %v1478 = vunpack.c.l.b16 %v1350
        %v1479 = vunpack.c.l.b16 %v1351
        %v1480 = vunpack.c.l.b16 %v1352
        %v1481 = vunpack.c.l.b16 %v1353
        %v1482 = vunpack.c.l.b16 %v1354
        %v1483 = vunpack.c.l.b16 %v1355
        %v1484 = vunpack.c.l.b16 %v1356
        %v1485 = vunpack.c.l.b16 %v1357
        %v1486 = vunpack.c.l.b16 %v1358
        %v1487 = vunpack.c.l.b16 %v1359
        %v1488 = vunpack.c.l.b16 %v1360
        %v1489 = vunpack.c.l.b16 %v1361
        %v1490 = vunpack.c.l.b16 %v1362
        %v1491 = vunpack.c.l.b16 %v1363
        %v1492 = vunpack.c.l.b16 %v1364
        %v1493 = vunpack.c.l.b16 %v1365
        %v1494 = vunpack.c.l.b16 %v1366
        %v1495 = vunpack.c.l.b16 %v1367
        %v1496 = vunpack.c.l.b16 %v1368
        %v1497 = vunpack.c.l.b16 %v1369
        %v1498 = vunpack.c.l.b16 %v1370
        %v1499 = vunpack.c.l.b16 %v1371
        %v1500 = vunpack.c.l.b16 %v1372
        %v1501 = vunpack.c.l.b16 %v1373
        %v1502 = vunpack.c.l.b16 %v1374
        %v1503 = vunpack.c.l.b16 %v1375
        %v1504 = vunpack.c.l.b16 %v1376
        %v1505 = vunpack.c.l.b16 %v1377
        %v1506 = vunpack.c.l.b16 %v1378
        %v1507 = vunpack.c.l.b16 %v1379
        %v1508 = vunpack.c.l.b16 %v1380
        %v1509 = vunpack.c.l.b16 %v1381
        %v1510 = vunpack.c.l.b16 %v1382
        %v1511 = vunpack.c.l.b16 %v1383
        %v1512 = vunpack.c.l.b16 %v1384
        %v1513 = vunpack.c.l.b16 %v1385
        %v1514 = vunpack.c.l.b16 %v1386
        %v1515 = vunpack.c.l.b16 %v1387
        %v1516 = vunpack.c.l.b16 %v1388
        %v1517 = vunpack.c.l.b16 %v1389
        %v1518 = vunpack.c.l.b16 %v1390
        %v1519 = vunpack.c.l.b16 %v1391
        %v1520 = vunpack.c.l.b16 %v1392
        %v1521 = vunpack.c.l.b16 %v1393
        %v1522 = vunpack.c.l.b16 %v1394
        %v1523 = vunpack.c.l.b16 %v1395
        %v1524 = vunpack.c.l.b16 %v1396
        %v1525 = vunpack.c.l.b16 %v1397
        %v1526 = vunpack.c.l.b16 %v1398
        %v1527 = vunpack.c.l.b16 %v1399
        %v1528 = vunpack.c.l.b16 %v1400
        %v1529 = vunpack.c.l.b16 %v1401
        %v1530 = vunpack.c.l.b16 %v1402
        %v1531 = vpack.c.b16 %v1468, %v1467
        %v1532 = vpack.c.b16 %v1470, %v1469
        %v1533 = vpack.c.b16 %v1472, %v1471
        %v1534 = vpack.c.b16 %v1474, %v1473
        %v1535 = vpack.c.b16 %v1476, %v1475
        %v1536 = vpack.c.b16 %v1478, %v1477
        %v1537 = vpack.c.b16 %v1480, %v1479
        %v1538 = vpack.c.b16 %v1482, %v1481
        %v1539 = vpack.c.b16 %v1484, %v1483
        %v1540 = vpack.c.b16 %v1486, %v1485
        %v1541 = vpack.c.b16 %v1488, %v1487
        %v1542 = vpack.c.b16 %v1490, %v1489
        %v1543 = vpack.c.b16 %v1492, %v1491
        %v1544 = vpack.c.b16 %v1494, %v1493
        %v1545 = vpack.c.b16 %v1496, %v1495
        %v1546 = vpack.c.b16 %v1498, %v1497
        %v1547 = vpack.c.b16 %v1500, %v1499
        %v1548 = vpack.c.b16 %v1502, %v1501
        %v1549 = vpack.c.b16 %v1504, %v1503
        %v1550 = vpack.c.b16 %v1506, %v1505
        %v1551 = vpack.c.b16 %v1508, %v1507
        %v1552 = vpack.c.b16 %v1510, %v1509
        %v1553 = vpack.c.b16 %v1512, %v1511
        %v1554 = vpack.c.b16 %v1514, %v1513
        %v1555 = vpack.c.b16 %v1516, %v1515
        %v1556 = vpack.c.b16 %v1518, %v1517
        %v1557 = vpack.c.b16 %v1520, %v1519
        %v1558 = vpack.c.b16 %v1522, %v1521
        %v1559 = vpack.c.b16 %v1524, %v1523
        %v1560 = vpack.c.b16 %v1526, %v1525
        %v1561 = vpack.c.b16 %v1528, %v1527
        %v1562 = vpack.c.b16 %v1530, %v1529
        %1595 = vmatprep.subr.bf16.mxu0 0
        %1596 = vmatpush1.bf16.msra.mxu0 %v1531
        %1597 = vmatprep.subr.bf16.mxu0 0
        %1598 = vmatpush1.bf16.msra.mxu0 %v1532
        %1599 = vmatprep.subr.bf16.mxu0 0
        %1600 = vmatpush1.bf16.msra.mxu0 %v1533
        %1601 = vmatprep.subr.bf16.mxu0 0
        %1602 = vmatpush1.bf16.msra.mxu0 %v1534
        %1603 = vmatprep.subr.bf16.mxu0 0
        %1604 = vmatpush1.bf16.msra.mxu0 %v1535
        %1605 = vmatprep.subr.bf16.mxu0 0
        %1606 = vmatpush1.bf16.msra.mxu0 %v1536
        %1607 = vmatprep.subr.bf16.mxu0 0
        %1608 = vmatpush1.bf16.msra.mxu0 %v1537
        %1609 = vmatprep.subr.bf16.mxu0 0
        %1610 = vmatpush1.bf16.msra.mxu0 %v1538
        %1611 = vmatprep.subr.bf16.mxu0 0
        %1612 = vmatpush1.bf16.msra.mxu0 %v1539
        %1613 = vmatprep.subr.bf16.mxu0 0
        %1614 = vmatpush1.bf16.msra.mxu0 %v1540
        %1615 = vmatprep.subr.bf16.mxu0 0
        %1616 = vmatpush1.bf16.msra.mxu0 %v1541
        %1617 = vmatprep.subr.bf16.mxu0 0
        %1618 = vmatpush1.bf16.msra.mxu0 %v1542
        %1619 = vmatprep.subr.bf16.mxu0 0
        %1620 = vmatpush1.bf16.msra.mxu0 %v1543
        %1621 = vmatprep.subr.bf16.mxu0 0
        %1622 = vmatpush1.bf16.msra.mxu0 %v1544
        %1623 = vmatprep.subr.bf16.mxu0 0
        %1624 = vmatpush1.bf16.msra.mxu0 %v1545
        %1625 = vmatprep.subr.bf16.mxu0 0
        %1626 = vmatpush1.bf16.msra.mxu0 %v1546
        %1627 = vmatprep.mubr.bf16.mxu0 %v1116
        %1628 = vmatmul.mubr.bf16.gmra.mrb[0].mxu0 %v1115
        %v1629 = vpop.f32.mrb[0].mxu0
        %v1630 = vadd.f32 0.0, %v1629
        %v1631 = vpop.f32.mrb[0].mxu0
        %v1632 = vpop.f32.mrb[0].mxu0
        %v1633 = vadd.f32 0.0, %v1632
        %v1634 = vpop.f32.mrb[0].mxu0
        %1635 = vmatprep.mubr.bf16.mxu0 %v1120
        %1636 = vmatmul.mubr.bf16.gmra.mrb[0].mxu0 %v1119
        %v1637 = vpop.f32.mrb[0].mxu0
        %v1638 = vadd.f32 0.0, %v1637
        %v1639 = vpop.f32.mrb[0].mxu0
        %v1640 = vpop.f32.mrb[0].mxu0
        %v1641 = vadd.f32 0.0, %v1640
        %v1642 = vpop.f32.mrb[0].mxu0
        %1643 = vmatprep.mubr.bf16.mxu0 %v1124
        %1644 = vmatmul.mubr.bf16.gmra.mrb[0].mxu0 %v1123
        %v1645 = vpop.f32.mrb[0].mxu0
        %v1646 = vadd.f32 0.0, %v1645
        %v1647 = vpop.f32.mrb[0].mxu0
        %v1648 = vpop.f32.mrb[0].mxu0
        %v1649 = vadd.f32 0.0, %v1648
        %v1650 = vpop.f32.mrb[0].mxu0
        %1651 = vmatprep.mubr.bf16.mxu0 %v1128
        %1652 = vmatmul.mubr.bf16.gmra.mrb[0].mxu0 %v1127
        %v1653 = vpop.f32.mrb[0].mxu0
        %v1654 = vadd.f32 0.0, %v1653
        %v1655 = vpop.f32.mrb[0].mxu0
        %v1656 = vpop.f32.mrb[0].mxu0
        %v1657 = vadd.f32 0.0, %v1656
        %v1658 = vpop.f32.mrb[0].mxu0
        %1659 = vmatprep.mubr.bf16.mxu0 %v1132
        %1660 = vmatmul.mubr.bf16.gmra.mrb[0].mxu0 %v1131
        %v1661 = vpop.f32.mrb[0].mxu0
        %v1662 = vadd.f32 0.0, %v1661
        %v1663 = vpop.f32.mrb[0].mxu0
        %v1664 = vpop.f32.mrb[0].mxu0
        %v1665 = vadd.f32 0.0, %v1664
        %v1666 = vpop.f32.mrb[0].mxu0
        %1667 = vmatprep.mubr.bf16.mxu0 %v1136
        %1668 = vmatmul.mubr.bf16.gmra.mrb[0].mxu0 %v1135
        %v1669 = vpop.f32.mrb[0].mxu0
        %v1670 = vadd.f32 0.0, %v1669
        %v1671 = vpop.f32.mrb[0].mxu0
        %v1672 = vpop.f32.mrb[0].mxu0
        %v1673 = vadd.f32 0.0, %v1672
        %v1674 = vpop.f32.mrb[0].mxu0
        %1675 = vmatprep.mubr.bf16.mxu0 %v1140
        %1676 = vmatmul.mubr.bf16.gmra.mrb[0].mxu0 %v1139
        %v1677 = vpop.f32.mrb[0].mxu0
        %v1678 = vadd.f32 0.0, %v1677
        %v1679 = vpop.f32.mrb[0].mxu0
        %v1680 = vpop.f32.mrb[0].mxu0
        %v1681 = vadd.f32 0.0, %v1680
        %v1682 = vpop.f32.mrb[0].mxu0
        %1683 = vmatprep.mubr.bf16.mxu0 %v1144
        %1684 = vmatmul.mubr.bf16.gmra.mrb[0].mxu0 %v1143
        %v1685 = vpop.f32.mrb[0].mxu0
        %v1686 = vadd.f32 0.0, %v1685
        %v1687 = vpop.f32.mrb[0].mxu0
        %v1688 = vpop.f32.mrb[0].mxu0
        %v1689 = vadd.f32 0.0, %v1688
        %v1690 = vpop.f32.mrb[0].mxu0
        %1691 = vdwg.mxu0
        %1692 = vmatprep.subr.bf16.mxu0 0
        %1693 = vmatpush1.bf16.msra.mxu0 %v1547
        %1694 = vmatprep.subr.bf16.mxu0 0
        %1695 = vmatpush1.bf16.msra.mxu0 %v1548
        %1696 = vmatprep.subr.bf16.mxu0 0
        %1697 = vmatpush1.bf16.msra.mxu0 %v1549
        %1698 = vmatprep.subr.bf16.mxu0 0
        %1699 = vmatpush1.bf16.msra.mxu0 %v1550
        %1700 = vmatprep.subr.bf16.mxu0 0
        %1701 = vmatpush1.bf16.msra.mxu0 %v1551
        %1702 = vmatprep.subr.bf16.mxu0 0
        %1703 = vmatpush1.bf16.msra.mxu0 %v1552
        %1704 = vmatprep.subr.bf16.mxu0 0
        %1705 = vmatpush1.bf16.msra.mxu0 %v1553
        %1706 = vmatprep.subr.bf16.mxu0 0
        %1707 = vmatpush1.bf16.msra.mxu0 %v1554
        %1708 = vmatprep.subr.bf16.mxu0 0
        %1709 = vmatpush1.bf16.msra.mxu0 %v1555
        %1710 = vmatprep.subr.bf16.mxu0 0
        %1711 = vmatpush1.bf16.msra.mxu0 %v1556
        %1712 = vmatprep.subr.bf16.mxu0 0
        %1713 = vmatpush1.bf16.msra.mxu0 %v1557
        %1714 = vmatprep.subr.bf16.mxu0 0
        %1715 = vmatpush1.bf16.msra.mxu0 %v1558
        %1716 = vmatprep.subr.bf16.mxu0 0
        %1717 = vmatpush1.bf16.msra.mxu0 %v1559
        %1718 = vmatprep.subr.bf16.mxu0 0
        %1719 = vmatpush1.bf16.msra.mxu0 %v1560
        %1720 = vmatprep.subr.bf16.mxu0 0
        %1721 = vmatpush1.bf16.msra.mxu0 %v1561
        %1722 = vmatprep.subr.bf16.mxu0 0
        %1723 = vmatpush1.bf16.msra.mxu0 %v1562
        %1724 = vmatprep.mubr.bf16.mxu0 %v1118
        %1725 = vmatmul.mubr.bf16.gmra.mrb[0].mxu0 %v1117
        %v1726 = vpop.f32.mrb[0].mxu0
        %v1727 = vadd.f32 %v1630, %v1726
        %v1728 = vpop.f32.mrb[0].mxu0
        %v1729 = vpop.f32.mrb[0].mxu0
        %v1730 = vadd.f32 %v1633, %v1729
        %v1731 = vpop.f32.mrb[0].mxu0
        %1732 = vmatprep.mubr.bf16.mxu0 %v1122
        %1733 = vmatmul.mubr.bf16.gmra.mrb[0].mxu0 %v1121
        %v1734 = vpop.f32.mrb[0].mxu0
        %v1735 = vadd.f32 %v1638, %v1734
        %v1736 = vpop.f32.mrb[0].mxu0
        %v1737 = vpop.f32.mrb[0].mxu0
        %v1738 = vadd.f32 %v1641, %v1737
        %v1739 = vpop.f32.mrb[0].mxu0
        %1740 = vmatprep.mubr.bf16.mxu0 %v1126
        %1741 = vmatmul.mubr.bf16.gmra.mrb[0].mxu0 %v1125
        %v1742 = vpop.f32.mrb[0].mxu0
        %v1743 = vadd.f32 %v1646, %v1742
        %v1744 = vpop.f32.mrb[0].mxu0
        %v1745 = vpop.f32.mrb[0].mxu0
        %v1746 = vadd.f32 %v1649, %v1745
        %v1747 = vpop.f32.mrb[0].mxu0
        %1748 = vmatprep.mubr.bf16.mxu0 %v1130
        %1749 = vmatmul.mubr.bf16.gmra.mrb[0].mxu0 %v1129
        %v1750 = vpop.f32.mrb[0].mxu0
        %v1751 = vadd.f32 %v1654, %v1750
        %v1752 = vpop.f32.mrb[0].mxu0
        %v1753 = vpop.f32.mrb[0].mxu0
        %v1754 = vadd.f32 %v1657, %v1753
        %v1755 = vpop.f32.mrb[0].mxu0
        %1756 = vmatprep.mubr.bf16.mxu0 %v1134
        %1757 = vmatmul.mubr.bf16.gmra.mrb[0].mxu0 %v1133
        %v1758 = vpop.f32.mrb[0].mxu0
        %v1759 = vadd.f32 %v1662, %v1758
        %v1760 = vpop.f32.mrb[0].mxu0
        %v1761 = vpop.f32.mrb[0].mxu0
        %v1762 = vadd.f32 %v1665, %v1761
        %v1763 = vpop.f32.mrb[0].mxu0
        %1764 = vmatprep.mubr.bf16.mxu0 %v1138
        %1765 = vmatmul.mubr.bf16.gmra.mrb[0].mxu0 %v1137
        %v1766 = vpop.f32.mrb[0].mxu0
        %v1767 = vadd.f32 %v1670, %v1766
        %v1768 = vpop.f32.mrb[0].mxu0
        %v1769 = vpop.f32.mrb[0].mxu0
        %v1770 = vadd.f32 %v1673, %v1769
        %v1771 = vpop.f32.mrb[0].mxu0
        %1772 = vmatprep.mubr.bf16.mxu0 %v1142
        %1773 = vmatmul.mubr.bf16.gmra.mrb[0].mxu0 %v1141
        %v1774 = vpop.f32.mrb[0].mxu0
        %v1775 = vadd.f32 %v1678, %v1774
        %v1776 = vpop.f32.mrb[0].mxu0
        %v1777 = vpop.f32.mrb[0].mxu0
        %v1778 = vadd.f32 %v1681, %v1777
        %v1779 = vpop.f32.mrb[0].mxu0
        %1780 = vmatprep.mubr.bf16.mxu0 %v1146
        %1781 = vmatmul.mubr.bf16.gmra.mrb[0].mxu0 %v1145
        %v1782 = vpop.f32.mrb[0].mxu0
        %v1783 = vadd.f32 %v1686, %v1782
        %v1784 = vpop.f32.mrb[0].mxu0
        %v1785 = vpop.f32.mrb[0].mxu0
        %v1786 = vadd.f32 %v1689, %v1785
        %v1787 = vpop.f32.mrb[0].mxu0
        %1788 = vdwg.mxu0
        %v1789 = vmax.f32 %v1727, 0.0
        %v1790 = vmax.f32 %v1730, 0.0
        %v1791 = vmax.f32 %v1735, 0.0
        %v1792 = vmax.f32 %v1738, 0.0
        %v1793 = vmax.f32 %v1743, 0.0
        %v1794 = vmax.f32 %v1746, 0.0
        %v1795 = vmax.f32 %v1751, 0.0
        %v1796 = vmax.f32 %v1754, 0.0
        %v1797 = vmax.f32 %v1759, 0.0
        %v1798 = vmax.f32 %v1762, 0.0
        %v1799 = vmax.f32 %v1767, 0.0
        %v1800 = vmax.f32 %v1770, 0.0
        %v1801 = vmax.f32 %v1775, 0.0
        %v1802 = vmax.f32 %v1778, 0.0
        %v1803 = vmax.f32 %v1783, 0.0
        %v1804 = vmax.f32 %v1786, 0.0
        %v1805 = vpack.c.bf16 %v1790, %v1789
        %v1806 = vpack.c.bf16 %v1792, %v1791
        %v1807 = vpack.c.bf16 %v1794, %v1793
        %v1808 = vpack.c.bf16 %v1796, %v1795
        %v1809 = vpack.c.bf16 %v1798, %v1797
        %v1810 = vpack.c.bf16 %v1800, %v1799
        %v1811 = vpack.c.bf16 %v1802, %v1801
        %v1812 = vpack.c.bf16 %v1804, %v1803
        %v1813 = vld [vmem:[#allocation5] sm:$0xf]
        %v1814 = vld [vmem:[#allocation5 + $0x4] sm:$0xf]
        %v1815 = vld [vmem:[#allocation5 + $0x8] sm:$0xf]
        %v1816 = vld [vmem:[#allocation5 + $0xc] sm:$0xf]
        %v1817 = vld [vmem:[#allocation5 + $0x10] sm:$0xf]
        %v1818 = vld [vmem:[#allocation5 + $0x14] sm:$0xf]
        %v1819 = vld [vmem:[#allocation5 + $0x18] sm:$0xf]
        %v1820 = vld [vmem:[#allocation5 + $0x1c] sm:$0xf]
        %v1821 = vld [vmem:[#allocation5 + $0x20] sm:$0xf]
        %v1822 = vld [vmem:[#allocation5 + $0x24] sm:$0xf]
        %v1823 = vld [vmem:[#allocation5 + $0x28] sm:$0xf]
        %v1824 = vld [vmem:[#allocation5 + $0x2c] sm:$0xf]
        %v1825 = vld [vmem:[#allocation5 + $0x30] sm:$0xf]
        %v1826 = vld [vmem:[#allocation5 + $0x34] sm:$0xf]
        %v1827 = vld [vmem:[#allocation5 + $0x38] sm:$0xf]
        %v1828 = vld [vmem:[#allocation5 + $0x3c] sm:$0xf]
        %v1829 = vld [vmem:[%s4] sm:$0x1]
        %v1831 = vlaneseq
        %v1832 = vshrl.u32 %v1831, 7
        %v1833 = vsub.s32 0, %v1832
        %v1834 = vrot.slane %v1829, %v1833
        %v1852 = vunpack.c.l.b16 %v1813
        %v1853 = vunpack.c.l.b16 %v1814
        %v1854 = vunpack.c.l.b16 %v1815
        %v1855 = vunpack.c.l.b16 %v1816
        %v1856 = vunpack.c.l.b16 %v1817
        %v1857 = vunpack.c.l.b16 %v1818
        %v1858 = vunpack.c.l.b16 %v1819
        %v1859 = vunpack.c.l.b16 %v1820
        %v1860 = vunpack.c.l.b16 %v1821
        %v1861 = vunpack.c.l.b16 %v1822
        %v1862 = vunpack.c.l.b16 %v1823
        %v1863 = vunpack.c.l.b16 %v1824
        %v1864 = vunpack.c.l.b16 %v1825
        %v1865 = vunpack.c.l.b16 %v1826
        %v1866 = vunpack.c.l.b16 %v1827
        %v1867 = vunpack.c.l.b16 %v1828
        %v1868 = vpack.c.b16 %v1853, %v1852
        %v1869 = vpack.c.b16 %v1855, %v1854
        %v1870 = vpack.c.b16 %v1857, %v1856
        %v1871 = vpack.c.b16 %v1859, %v1858
        %v1872 = vpack.c.b16 %v1861, %v1860
        %v1873 = vpack.c.b16 %v1863, %v1862
        %v1874 = vpack.c.b16 %v1865, %v1864
        %v1875 = vpack.c.b16 %v1867, %v1866
        %1884 = vmatprep.subr.bf16.mxu0 0
        %1885 = vmatpush1.bf16.msra.mxu0 %v1868
        %1886 = vmatprep.subr.bf16.mxu0 0
        %1887 = vmatpush1.bf16.msra.mxu0 %v1869
        %1888 = vmatprep.subr.bf16.mxu0 0
        %1889 = vmatpush1.bf16.msra.mxu0 %v1870
        %1890 = vmatprep.subr.bf16.mxu0 0
        %1891 = vmatpush1.bf16.msra.mxu0 %v1871
        %1892 = vmatprep.subr.bf16.mxu0 0
        %1893 = vmatpush1.bf16.msra.mxu0 %v1872
        %1894 = vmatprep.subr.bf16.mxu0 0
        %1895 = vmatpush1.bf16.msra.mxu0 %v1873
        %1896 = vmatprep.subr.bf16.mxu0 0
        %1897 = vmatpush1.bf16.msra.mxu0 %v1874
        %1898 = vmatprep.subr.bf16.mxu0 0
        %1899 = vmatpush1.bf16.msra.mxu0 %v1875
        %1900 = vmatprep.subr.bf16.mxu0 0
        %1901 = vmatpush1.bf16.msra.mxu0 0
        %1902 = vmatprep.subr.bf16.mxu0 0
        %1903 = vmatpush1.bf16.msra.mxu0 0
        %1904 = vmatprep.subr.bf16.mxu0 0
        %1905 = vmatpush1.bf16.msra.mxu0 0
        %1906 = vmatprep.subr.bf16.mxu0 0
        %1907 = vmatpush1.bf16.msra.mxu0 0
        %1908 = vmatprep.subr.bf16.mxu0 0
        %1909 = vmatpush1.bf16.msra.mxu0 0
        %1910 = vmatprep.subr.bf16.mxu0 0
        %1911 = vmatpush1.bf16.msra.mxu0 0
        %1912 = vmatprep.subr.bf16.mxu0 0
        %1913 = vmatpush1.bf16.msra.mxu0 0
        %1914 = vmatprep.subr.bf16.mxu0 0
        %1915 = vmatpush1.bf16.msra.mxu0 0
        %1916 = vmatprep.mubr.bf16.mxu0 0
        %1917 = vmatmul.mubr.bf16.gmra.mrb[0].mxu0 %v1805
        %v1918 = vpop.f32.mrb[0].mxu0
        %v1919 = vadd.f32 %v1834, %v1918
        %v1920 = vpop.f32.mrb[0].mxu0
        %v1921 = vpop.f32.mrb[0].mxu0
        %v1922 = vadd.f32 %v1834, %v1921
        %v1923 = vpop.f32.mrb[0].mxu0
        %1924 = vmatprep.mubr.bf16.mxu0 0
        %1925 = vmatmul.mubr.bf16.gmra.mrb[0].mxu0 %v1806
        %v1926 = vpop.f32.mrb[0].mxu0
        %v1927 = vadd.f32 %v1834, %v1926
        %v1928 = vpop.f32.mrb[0].mxu0
        %v1929 = vpop.f32.mrb[0].mxu0
        %v1930 = vadd.f32 %v1834, %v1929
        %v1931 = vpop.f32.mrb[0].mxu0
        %1932 = vmatprep.mubr.bf16.mxu0 0
        %1933 = vmatmul.mubr.bf16.gmra.mrb[0].mxu0 %v1807
        %v1934 = vpop.f32.mrb[0].mxu0
        %v1935 = vadd.f32 %v1834, %v1934
        %v1936 = vpop.f32.mrb[0].mxu0
        %v1937 = vpop.f32.mrb[0].mxu0
        %v1938 = vadd.f32 %v1834, %v1937
        %v1939 = vpop.f32.mrb[0].mxu0
        %1940 = vmatprep.mubr.bf16.mxu0 0
        %1941 = vmatmul.mubr.bf16.gmra.mrb[0].mxu0 %v1808
        %v1942 = vpop.f32.mrb[0].mxu0
        %v1943 = vadd.f32 %v1834, %v1942
        %v1944 = vpop.f32.mrb[0].mxu0
        %v1945 = vpop.f32.mrb[0].mxu0
        %v1946 = vadd.f32 %v1834, %v1945
        %v1947 = vpop.f32.mrb[0].mxu0
        %1948 = vmatprep.mubr.bf16.mxu0 0
        %1949 = vmatmul.mubr.bf16.gmra.mrb[0].mxu0 %v1809
        %v1950 = vpop.f32.mrb[0].mxu0
        %v1951 = vadd.f32 %v1834, %v1950
        %v1952 = vpop.f32.mrb[0].mxu0
        %v1953 = vpop.f32.mrb[0].mxu0
        %v1954 = vadd.f32 %v1834, %v1953
        %v1955 = vpop.f32.mrb[0].mxu0
        %1956 = vmatprep.mubr.bf16.mxu0 0
        %1957 = vmatmul.mubr.bf16.gmra.mrb[0].mxu0 %v1810
        %v1958 = vpop.f32.mrb[0].mxu0
        %v1959 = vadd.f32 %v1834, %v1958
        %v1960 = vpop.f32.mrb[0].mxu0
        %v1961 = vpop.f32.mrb[0].mxu0
        %v1962 = vadd.f32 %v1834, %v1961
        %v1963 = vpop.f32.mrb[0].mxu0
        %1964 = vmatprep.mubr.bf16.mxu0 0
        %1965 = vmatmul.mubr.bf16.gmra.mrb[0].mxu0 %v1811
        %v1966 = vpop.f32.mrb[0].mxu0
        %v1967 = vadd.f32 %v1834, %v1966
        %v1968 = vpop.f32.mrb[0].mxu0
        %v1969 = vpop.f32.mrb[0].mxu0
        %v1970 = vadd.f32 %v1834, %v1969
        %v1971 = vpop.f32.mrb[0].mxu0
        %1972 = vmatprep.mubr.bf16.mxu0 0
        %1973 = vmatmul.mubr.bf16.gmra.mrb[0].mxu0 %v1812
        %v1974 = vpop.f32.mrb[0].mxu0
        %v1975 = vadd.f32 %v1834, %v1974
        %v1976 = vpop.f32.mrb[0].mxu0
        %v1977 = vpop.f32.mrb[0].mxu0
        %v1978 = vadd.f32 %v1834, %v1977
        %v1979 = vpop.f32.mrb[0].mxu0
        %1980 = vdwg.mxu0
        %v1981 = vmax.f32 %v1919, 0.0
        %v1982 = vmax.f32 %v1922, 0.0
        %v1983 = vmax.f32 %v1927, 0.0
        %v1984 = vmax.f32 %v1930, 0.0
        %v1985 = vmax.f32 %v1935, 0.0
        %v1986 = vmax.f32 %v1938, 0.0
        %v1987 = vmax.f32 %v1943, 0.0
        %v1988 = vmax.f32 %v1946, 0.0
        %v1989 = vmax.f32 %v1951, 0.0
        %v1990 = vmax.f32 %v1954, 0.0
        %v1991 = vmax.f32 %v1959, 0.0
        %v1992 = vmax.f32 %v1962, 0.0
        %v1993 = vmax.f32 %v1967, 0.0
        %v1994 = vmax.f32 %v1970, 0.0
        %v1995 = vmax.f32 %v1975, 0.0
        %v1996 = vmax.f32 %v1978, 0.0
        %v1997 = vpack.c.bf16 %v1982, %v1981
        %v1998 = vpack.c.bf16 %v1984, %v1983
        %v1999 = vpack.c.bf16 %v1986, %v1985
        %v2000 = vpack.c.bf16 %v1988, %v1987
        %v2001 = vpack.c.bf16 %v1990, %v1989
        %v2002 = vpack.c.bf16 %v1992, %v1991
        %v2003 = vpack.c.bf16 %v1994, %v1993
        %v2004 = vpack.c.bf16 %v1996, %v1995
        %v2005 = vld [vmem:[#allocation7] sm:$0xf]
        %v2006 = vld [vmem:[#allocation7 + $0x4] sm:$0xf]
        %v2007 = vld [vmem:[#allocation7 + $0x8] sm:$0xf]
        %v2008 = vld [vmem:[#allocation7 + $0xc] sm:$0xf]
        %v2009 = vld [vmem:[#allocation7 + $0x10] sm:$0xf]
        %v2010 = vld [vmem:[#allocation7 + $0x14] sm:$0xf]
        %v2011 = vld [vmem:[#allocation7 + $0x18] sm:$0xf]
        %v2012 = vld [vmem:[#allocation7 + $0x1c] sm:$0xf]
        %v2013 = vld [vmem:[#allocation7 + $0x20] sm:$0xf]
        %v2014 = vld [vmem:[#allocation7 + $0x24] sm:$0xf]
        %v2015 = vld [vmem:[#allocation7 + $0x28] sm:$0xf]
        %v2016 = vld [vmem:[#allocation7 + $0x2c] sm:$0xf]
        %v2017 = vld [vmem:[#allocation7 + $0x30] sm:$0xf]
        %v2018 = vld [vmem:[#allocation7 + $0x34] sm:$0xf]
        %v2019 = vld [vmem:[#allocation7 + $0x38] sm:$0xf]
        %v2020 = vld [vmem:[#allocation7 + $0x3c] sm:$0xf]
        %v2021 = vld [vmem:[%s6] sm:$0x1]
        %v2023 = vlaneseq
        %v2024 = vshrl.u32 %v2023, 7
        %v2025 = vsub.s32 0, %v2024
        %v2026 = vrot.slane %v2021, %v2025
        %v2044 = vunpack.c.l.b16 %v2005
        %v2045 = vunpack.c.l.b16 %v2006
        %v2046 = vunpack.c.l.b16 %v2007
        %v2047 = vunpack.c.l.b16 %v2008
        %v2048 = vunpack.c.l.b16 %v2009
        %v2049 = vunpack.c.l.b16 %v2010
        %v2050 = vunpack.c.l.b16 %v2011
        %v2051 = vunpack.c.l.b16 %v2012
        %v2052 = vunpack.c.l.b16 %v2013
        %v2053 = vunpack.c.l.b16 %v2014
        %v2054 = vunpack.c.l.b16 %v2015
        %v2055 = vunpack.c.l.b16 %v2016
        %v2056 = vunpack.c.l.b16 %v2017
        %v2057 = vunpack.c.l.b16 %v2018
        %v2058 = vunpack.c.l.b16 %v2019
        %v2059 = vunpack.c.l.b16 %v2020
        %v2060 = vpack.c.b16 %v2045, %v2044
        %v2061 = vpack.c.b16 %v2047, %v2046
        %v2062 = vpack.c.b16 %v2049, %v2048
        %v2063 = vpack.c.b16 %v2051, %v2050
        %v2064 = vpack.c.b16 %v2053, %v2052
        %v2065 = vpack.c.b16 %v2055, %v2054
        %v2066 = vpack.c.b16 %v2057, %v2056
        %v2067 = vpack.c.b16 %v2059, %v2058
        %2076 = vmatprep.subr.bf16.mxu0 0
        %2077 = vmatpush1.bf16.msra.mxu0 %v2060
        %2078 = vmatprep.subr.bf16.mxu0 0
        %2079 = vmatpush1.bf16.msra.mxu0 %v2061
        %2080 = vmatprep.subr.bf16.mxu0 0
        %2081 = vmatpush1.bf16.msra.mxu0 %v2062
        %2082 = vmatprep.subr.bf16.mxu0 0
        %2083 = vmatpush1.bf16.msra.mxu0 %v2063
        %2084 = vmatprep.subr.bf16.mxu0 0
        %2085 = vmatpush1.bf16.msra.mxu0 %v2064
        %2086 = vmatprep.subr.bf16.mxu0 0
        %2087 = vmatpush1.bf16.msra.mxu0 %v2065
        %2088 = vmatprep.subr.bf16.mxu0 0
        %2089 = vmatpush1.bf16.msra.mxu0 %v2066
        %2090 = vmatprep.subr.bf16.mxu0 0
        %2091 = vmatpush1.bf16.msra.mxu0 %v2067
        %2092 = vmatprep.subr.bf16.mxu0 0
        %2093 = vmatpush1.bf16.msra.mxu0 0
        %2094 = vmatprep.subr.bf16.mxu0 0
        %2095 = vmatpush1.bf16.msra.mxu0 0
        %2096 = vmatprep.subr.bf16.mxu0 0
        %2097 = vmatpush1.bf16.msra.mxu0 0
        %2098 = vmatprep.subr.bf16.mxu0 0
        %2099 = vmatpush1.bf16.msra.mxu0 0
        %2100 = vmatprep.subr.bf16.mxu0 0
        %2101 = vmatpush1.bf16.msra.mxu0 0
        %2102 = vmatprep.subr.bf16.mxu0 0
        %2103 = vmatpush1.bf16.msra.mxu0 0
        %2104 = vmatprep.subr.bf16.mxu0 0
        %2105 = vmatpush1.bf16.msra.mxu0 0
        %2106 = vmatprep.subr.bf16.mxu0 0
        %2107 = vmatpush1.bf16.msra.mxu0 0
        %2108 = vmatprep.mubr.bf16.mxu0 0
        %2109 = vmatmul.mubr.bf16.gmra.mrb[0].mxu0 %v1997
        %v2110 = vpop.f32.mrb[0].mxu0
        %v2111 = vadd.f32 %v2026, %v2110
        %v2112 = vpop.f32.mrb[0].mxu0
        %v2113 = vpop.f32.mrb[0].mxu0
        %v2114 = vadd.f32 %v2026, %v2113
        %v2115 = vpop.f32.mrb[0].mxu0
        %2116 = vmatprep.mubr.bf16.mxu0 0
        %2117 = vmatmul.mubr.bf16.gmra.mrb[0].mxu0 %v1998
        %v2118 = vpop.f32.mrb[0].mxu0
        %v2119 = vadd.f32 %v2026, %v2118
        %v2120 = vpop.f32.mrb[0].mxu0
        %v2121 = vpop.f32.mrb[0].mxu0
        %v2122 = vadd.f32 %v2026, %v2121
        %v2123 = vpop.f32.mrb[0].mxu0
        %2124 = vmatprep.mubr.bf16.mxu0 0
        %2125 = vmatmul.mubr.bf16.gmra.mrb[0].mxu0 %v1999
        %v2126 = vpop.f32.mrb[0].mxu0
        %v2127 = vadd.f32 %v2026, %v2126
        %v2128 = vpop.f32.mrb[0].mxu0
        %v2129 = vpop.f32.mrb[0].mxu0
        %v2130 = vadd.f32 %v2026, %v2129
        %v2131 = vpop.f32.mrb[0].mxu0
        %2132 = vmatprep.mubr.bf16.mxu0 0
        %2133 = vmatmul.mubr.bf16.gmra.mrb[0].mxu0 %v2000
        %v2134 = vpop.f32.mrb[0].mxu0
        %v2135 = vadd.f32 %v2026, %v2134
        %v2136 = vpop.f32.mrb[0].mxu0
        %v2137 = vpop.f32.mrb[0].mxu0
        %v2138 = vadd.f32 %v2026, %v2137
        %v2139 = vpop.f32.mrb[0].mxu0
        %2140 = vmatprep.mubr.bf16.mxu0 0
        %2141 = vmatmul.mubr.bf16.gmra.mrb[0].mxu0 %v2001
        %v2142 = vpop.f32.mrb[0].mxu0
        %v2143 = vadd.f32 %v2026, %v2142
        %v2144 = vpop.f32.mrb[0].mxu0
        %v2145 = vpop.f32.mrb[0].mxu0
        %v2146 = vadd.f32 %v2026, %v2145
        %v2147 = vpop.f32.mrb[0].mxu0
        %2148 = vmatprep.mubr.bf16.mxu0 0
        %2149 = vmatmul.mubr.bf16.gmra.mrb[0].mxu0 %v2002
        %v2150 = vpop.f32.mrb[0].mxu0
        %v2151 = vadd.f32 %v2026, %v2150
        %v2152 = vpop.f32.mrb[0].mxu0
        %v2153 = vpop.f32.mrb[0].mxu0
        %v2154 = vadd.f32 %v2026, %v2153
        %v2155 = vpop.f32.mrb[0].mxu0
        %2156 = vmatprep.mubr.bf16.mxu0 0
        %2157 = vmatmul.mubr.bf16.gmra.mrb[0].mxu0 %v2003
        %v2158 = vpop.f32.mrb[0].mxu0
        %v2159 = vadd.f32 %v2026, %v2158
        %v2160 = vpop.f32.mrb[0].mxu0
        %v2161 = vpop.f32.mrb[0].mxu0
        %v2162 = vadd.f32 %v2026, %v2161
        %v2163 = vpop.f32.mrb[0].mxu0
        %2164 = vmatprep.mubr.bf16.mxu0 0
        %2165 = vmatmul.mubr.bf16.gmra.mrb[0].mxu0 %v2004
        %v2166 = vpop.f32.mrb[0].mxu0
        %v2167 = vadd.f32 %v2026, %v2166
        %v2168 = vpop.f32.mrb[0].mxu0
        %v2169 = vpop.f32.mrb[0].mxu0
        %v2170 = vadd.f32 %v2026, %v2169
        %v2171 = vpop.f32.mrb[0].mxu0
        %2172 = vdwg.mxu0
        %2173 = vst [vmem:[%s567] sm:$0xff] %v2111
        %2174 = vst [vmem:[%s567 + $0x8] sm:$0xff] %v2114
        %2175 = vst [vmem:[%s567 + $0x10] sm:$0xff] %v2119
        %2176 = vst [vmem:[%s567 + $0x18] sm:$0xff] %v2122
        %2177 = vst [vmem:[%s567 + $0x20] sm:$0xff] %v2127
        %2178 = vst [vmem:[%s567 + $0x28] sm:$0xff] %v2130
        %2179 = vst [vmem:[%s567 + $0x30] sm:$0xff] %v2135
        %2180 = vst [vmem:[%s567 + $0x38] sm:$0xff] %v2138
        %2181 = vst [vmem:[%s567 + $0x40] sm:$0xff] %v2143
        %2182 = vst [vmem:[%s567 + $0x48] sm:$0xff] %v2146
        %2183 = vst [vmem:[%s567 + $0x50] sm:$0xff] %v2151
        %2184 = vst [vmem:[%s567 + $0x58] sm:$0xff] %v2154
        %2185 = vst [vmem:[%s567 + $0x60] sm:$0xff] %v2159
        %2186 = vst [vmem:[%s567 + $0x68] sm:$0xff] %v2162
        %2187 = vst [vmem:[%s567 + $0x70] sm:$0xff] %v2167
        %2188 = vst [vmem:[%s567 + $0x78] sm:$0xff] %v2170
        %v2189 = vmul.f32 %v2111, 0.5
        %v2190 = vmul.f32 %v2114, 0.5
        %v2191 = vmul.f32 %v2119, 0.5
        %v2192 = vmul.f32 %v2122, 0.5
        %v2193 = vmul.f32 %v2127, 0.5
        %v2194 = vmul.f32 %v2130, 0.5
        %v2195 = vmul.f32 %v2135, 0.5
        %v2196 = vmul.f32 %v2138, 0.5
        %v2197 = vmul.f32 %v2143, 0.5
        %v2198 = vmul.f32 %v2146, 0.5
        %v2199 = vmul.f32 %v2151, 0.5
        %v2200 = vmul.f32 %v2154, 0.5
        %v2201 = vmul.f32 %v2159, 0.5
        %v2202 = vmul.f32 %v2162, 0.5
        %v2203 = vmul.f32 %v2167, 0.5
        %v2204 = vmul.f32 %v2170, 0.5
        %v2205 = vmul.f32 %v2189, 1.442695
        %v2206 = vpow.pop %v2205
        %v2207 = vmul.f32 %v2190, 1.442695
        %v2208 = vpow.pop %v2207
        %v2209 = vmul.f32 %v2191, 1.442695
        %v2210 = vpow.pop %v2209
        %v2211 = vmul.f32 %v2192, 1.442695
        %v2212 = vpow.pop %v2211
        %v2213 = vmul.f32 %v2193, 1.442695
        %v2214 = vpow.pop %v2213
        %v2215 = vmul.f32 %v2194, 1.442695
        %v2216 = vpow.pop %v2215
        %v2217 = vmul.f32 %v2195, 1.442695
        %v2218 = vpow.pop %v2217
        %v2219 = vmul.f32 %v2196, 1.442695
        %v2220 = vpow.pop %v2219
        %v2221 = vmul.f32 %v2197, 1.442695
        %v2222 = vpow.pop %v2221
        %v2223 = vmul.f32 %v2198, 1.442695
        %v2224 = vpow.pop %v2223
        %v2225 = vmul.f32 %v2199, 1.442695
        %v2226 = vpow.pop %v2225
        %v2227 = vmul.f32 %v2200, 1.442695
        %v2228 = vpow.pop %v2227
        %v2229 = vmul.f32 %v2201, 1.442695
        %v2230 = vpow.pop %v2229
        %v2231 = vmul.f32 %v2202, 1.442695
        %v2232 = vpow.pop %v2231
        %v2233 = vmul.f32 %v2203, 1.442695
        %v2234 = vpow.pop %v2233
        %v2235 = vmul.f32 %v2204, 1.442695
        %v2236 = vpow.pop %v2235
        %v2237 = vld [vmem:[%s580] sm:$0xff]
        %v2238 = vld [vmem:[%s580 + $0x8] sm:$0xff]
        %v2239 = vld [vmem:[%s580 + $0x10] sm:$0xff]
        %v2240 = vld [vmem:[%s580 + $0x18] sm:$0xff]
        %v2241 = vld [vmem:[%s580 + $0x20] sm:$0xff]
        %v2242 = vld [vmem:[%s580 + $0x28] sm:$0xff]
        %v2243 = vld [vmem:[%s580 + $0x30] sm:$0xff]
        %v2244 = vld [vmem:[%s580 + $0x38] sm:$0xff]
        %v2245 = vld [vmem:[%s580 + $0x40] sm:$0xff]
        %v2246 = vld [vmem:[%s580 + $0x48] sm:$0xff]
        %v2247 = vld [vmem:[%s580 + $0x50] sm:$0xff]
        %v2248 = vld [vmem:[%s580 + $0x58] sm:$0xff]
        %v2249 = vld [vmem:[%s580 + $0x60] sm:$0xff]
        %v2250 = vld [vmem:[%s580 + $0x68] sm:$0xff]
        %v2251 = vld [vmem:[%s580 + $0x70] sm:$0xff]
        %v2252 = vld [vmem:[%s580 + $0x78] sm:$0xff]
        %2269 = vrot.lane.b32.xlu0 %v2237, 64
        %v2270 = vpop.permute.xlu0 %2269
        %2271 = vrot.lane.b32.xlu0 %v2238, 64
        %v2272 = vpop.permute.xlu0 %2271
        %2273 = vrot.lane.b32.xlu0 %v2239, 64
        %v2274 = vpop.permute.xlu0 %2273
        %2275 = vrot.lane.b32.xlu0 %v2240, 64
        %v2276 = vpop.permute.xlu0 %2275
        %2277 = vrot.lane.b32.xlu0 %v2241, 64
        %v2278 = vpop.permute.xlu0 %2277
        %2279 = vrot.lane.b32.xlu0 %v2242, 64
        %v2280 = vpop.permute.xlu0 %2279
        %2281 = vrot.lane.b32.xlu0 %v2243, 64
        %v2282 = vpop.permute.xlu0 %2281
        %2283 = vrot.lane.b32.xlu0 %v2244, 64
        %v2284 = vpop.permute.xlu0 %2283
        %2285 = vrot.lane.b32.xlu0 %v2245, 64
        %v2286 = vpop.permute.xlu0 %2285
        %2287 = vrot.lane.b32.xlu0 %v2246, 64
        %v2288 = vpop.permute.xlu0 %2287
        %2289 = vrot.lane.b32.xlu0 %v2247, 64
        %v2290 = vpop.permute.xlu0 %2289
        %2291 = vrot.lane.b32.xlu0 %v2248, 64
        %v2292 = vpop.permute.xlu0 %2291
        %2293 = vrot.lane.b32.xlu0 %v2249, 64
        %v2294 = vpop.permute.xlu0 %2293
        %2295 = vrot.lane.b32.xlu0 %v2250, 64
        %v2296 = vpop.permute.xlu0 %2295
        %2297 = vrot.lane.b32.xlu0 %v2251, 64
        %v2298 = vpop.permute.xlu0 %2297
        %2299 = vrot.lane.b32.xlu0 %v2252, 64
        %v2300 = vpop.permute.xlu0 %2299
        %v2317 = vmul.f32 %v2206, %v2270
        %v2318 = vmul.f32 %v2208, %v2272
        %v2319 = vmul.f32 %v2210, %v2274
        %v2320 = vmul.f32 %v2212, %v2276
        %v2321 = vmul.f32 %v2214, %v2278
        %v2322 = vmul.f32 %v2216, %v2280
        %v2323 = vmul.f32 %v2218, %v2282
        %v2324 = vmul.f32 %v2220, %v2284
        %v2325 = vmul.f32 %v2222, %v2286
        %v2326 = vmul.f32 %v2224, %v2288
        %v2327 = vmul.f32 %v2226, %v2290
        %v2328 = vmul.f32 %v2228, %v2292
        %v2329 = vmul.f32 %v2230, %v2294
        %v2330 = vmul.f32 %v2232, %v2296
        %v2331 = vmul.f32 %v2234, %v2298
        %v2332 = vmul.f32 %v2236, %v2300
        %2349 = vrot.lane.b32.xlu0 %v2317, 64
        %v2350 = vpop.permute.xlu0 %2349
        %2351 = vrot.lane.b32.xlu0 %v2318, 64
        %v2352 = vpop.permute.xlu0 %2351
        %2353 = vrot.lane.b32.xlu0 %v2319, 64
        %v2354 = vpop.permute.xlu0 %2353
        %2355 = vrot.lane.b32.xlu0 %v2320, 64
        %v2356 = vpop.permute.xlu0 %2355
        %2357 = vrot.lane.b32.xlu0 %v2321, 64
        %v2358 = vpop.permute.xlu0 %2357
        %2359 = vrot.lane.b32.xlu0 %v2322, 64
        %v2360 = vpop.permute.xlu0 %2359
        %2361 = vrot.lane.b32.xlu0 %v2323, 64
        %v2362 = vpop.permute.xlu0 %2361
        %2363 = vrot.lane.b32.xlu0 %v2324, 64
        %v2364 = vpop.permute.xlu0 %2363
        %2365 = vrot.lane.b32.xlu0 %v2325, 64
        %v2366 = vpop.permute.xlu0 %2365
        %2367 = vrot.lane.b32.xlu0 %v2326, 64
        %v2368 = vpop.permute.xlu0 %2367
        %2369 = vrot.lane.b32.xlu0 %v2327, 64
        %v2370 = vpop.permute.xlu0 %2369
        %2371 = vrot.lane.b32.xlu0 %v2328, 64
        %v2372 = vpop.permute.xlu0 %2371
        %2373 = vrot.lane.b32.xlu0 %v2329, 64
        %v2374 = vpop.permute.xlu0 %2373
        %2375 = vrot.lane.b32.xlu0 %v2330, 64
        %v2376 = vpop.permute.xlu0 %2375
        %2377 = vrot.lane.b32.xlu0 %v2331, 64
        %v2378 = vpop.permute.xlu0 %2377
        %2379 = vrot.lane.b32.xlu0 %v2332, 64
        %v2380 = vpop.permute.xlu0 %2379
        %v2397 = vadd.f32 %v2111, %v2350
        %v2398 = vadd.f32 %v2114, %v2352
        %v2399 = vadd.f32 %v2119, %v2354
        %v2400 = vadd.f32 %v2122, %v2356
        %v2401 = vadd.f32 %v2127, %v2358
        %v2402 = vadd.f32 %v2130, %v2360
        %v2403 = vadd.f32 %v2135, %v2362
        %v2404 = vadd.f32 %v2138, %v2364
        %v2405 = vadd.f32 %v2143, %v2366
        %v2406 = vadd.f32 %v2146, %v2368
        %v2407 = vadd.f32 %v2151, %v2370
        %v2408 = vadd.f32 %v2154, %v2372
        %v2409 = vadd.f32 %v2159, %v2374
        %v2410 = vadd.f32 %v2162, %v2376
        %v2411 = vadd.f32 %v2167, %v2378
        %v2412 = vadd.f32 %v2170, %v2380
        %v2413 = vpack.c.bf16 %v2398, %v2397
        %v2414 = vpack.c.bf16 %v2400, %v2399
        %v2415 = vpack.c.bf16 %v2402, %v2401
        %v2416 = vpack.c.bf16 %v2404, %v2403
        %v2417 = vpack.c.bf16 %v2406, %v2405
        %v2418 = vpack.c.bf16 %v2408, %v2407
        %v2419 = vpack.c.bf16 %v2410, %v2409
        %v2420 = vpack.c.bf16 %v2412, %v2411
        %v2421 = vld [vmem:[#allocation8] sm:$0xf]
        %v2422 = vld [vmem:[#allocation8 + $0x4] sm:$0xf]
        %v2423 = vld [vmem:[#allocation8 + $0x8] sm:$0xf]
        %v2424 = vld [vmem:[#allocation8 + $0xc] sm:$0xf]
        %v2425 = vld [vmem:[#allocation8 + $0x10] sm:$0xf]
        %v2426 = vld [vmem:[#allocation8 + $0x14] sm:$0xf]
        %v2427 = vld [vmem:[#allocation8 + $0x18] sm:$0xf]
        %v2428 = vld [vmem:[#allocation8 + $0x1c] sm:$0xf]
        %v2429 = vld [vmem:[%s8] sm:$0x1]
        %v2431 = vlaneseq
        %v2432 = vshrl.u32 %v2431, 7
        %v2433 = vsub.s32 0, %v2432
        %v2434 = vrot.slane %v2429, %v2433
        %v2444 = vunpack.c.l.b16 %v2421
        %v2445 = vunpack.c.l.b16 %v2422
        %v2446 = vunpack.c.l.b16 %v2423
        %v2447 = vunpack.c.l.b16 %v2424
        %v2448 = vunpack.c.l.b16 %v2425
        %v2449 = vunpack.c.l.b16 %v2426
        %v2450 = vunpack.c.l.b16 %v2427
        %v2451 = vunpack.c.l.b16 %v2428
        %v2452 = vpack.c.b16 %v2445, %v2444
        %v2453 = vpack.c.b16 %v2447, %v2446
        %v2454 = vpack.c.b16 %v2449, %v2448
        %v2455 = vpack.c.b16 %v2451, %v2450
        %vm2460 = vcmask 523264
        %v2462 = vsel %vm2460, %v2413, 0
        %v2465 = vsel %vm2460, %v2414, 0
        %v2468 = vsel %vm2460, %v2415, 0
        %v2471 = vsel %vm2460, %v2416, 0
        %v2474 = vsel %vm2460, %v2417, 0
        %v2477 = vsel %vm2460, %v2418, 0
        %v2480 = vsel %vm2460, %v2419, 0
        %v2483 = vsel %vm2460, %v2420, 0
        %2485 = vmatprep.subr.bf16.mxu0 0
        %2486 = vmatpush1.bf16.msra.mxu0 %v2452
        %2487 = vmatprep.subr.bf16.mxu0 0
        %2488 = vmatpush1.bf16.msra.mxu0 %v2453
        %2489 = vmatprep.subr.bf16.mxu0 0
        %2490 = vmatpush1.bf16.msra.mxu0 %v2454
        %2491 = vmatprep.subr.bf16.mxu0 0
        %2492 = vmatpush1.bf16.msra.mxu0 %v2455
        %2493 = vmatprep.subr.bf16.mxu0 0
        %2494 = vmatpush1.bf16.msra.mxu0 0
        %2495 = vmatprep.subr.bf16.mxu0 0
        %2496 = vmatpush1.bf16.msra.mxu0 0
        %2497 = vmatprep.subr.bf16.mxu0 0
        %2498 = vmatpush1.bf16.msra.mxu0 0
        %2499 = vmatprep.subr.bf16.mxu0 0
        %2500 = vmatpush1.bf16.msra.mxu0 0
        %2501 = vmatprep.subr.bf16.mxu0 0
        %2502 = vmatpush1.bf16.msra.mxu0 0
        %2503 = vmatprep.subr.bf16.mxu0 0
        %2504 = vmatpush1.bf16.msra.mxu0 0
        %2505 = vmatprep.subr.bf16.mxu0 0
        %2506 = vmatpush1.bf16.msra.mxu0 0
        %2507 = vmatprep.subr.bf16.mxu0 0
        %2508 = vmatpush1.bf16.msra.mxu0 0
        %2509 = vmatprep.subr.bf16.mxu0 0
        %2510 = vmatpush1.bf16.msra.mxu0 0
        %2511 = vmatprep.subr.bf16.mxu0 0
        %2512 = vmatpush1.bf16.msra.mxu0 0
        %2513 = vmatprep.subr.bf16.mxu0 0
        %2514 = vmatpush1.bf16.msra.mxu0 0
        %2515 = vmatprep.subr.bf16.mxu0 0
        %2516 = vmatpush1.bf16.msra.mxu0 0
        %2517 = vmatprep.mubr.bf16.mxu0 0
        %2518 = vmatmul.mubr.bf16.gmra.mrb[0].mxu0 %v2462
        %v2519 = vpop.f32.mrb[0].mxu0
        %v2520 = vadd.f32 %v2434, %v2519
        %v2521 = vpop.f32.mrb[0].mxu0
        %v2522 = vpop.f32.mrb[0].mxu0
        %v2523 = vadd.f32 %v2434, %v2522
        %v2524 = vpop.f32.mrb[0].mxu0
        %2525 = vmatprep.mubr.bf16.mxu0 0
        %2526 = vmatmul.mubr.bf16.gmra.mrb[0].mxu0 %v2465
        %v2527 = vpop.f32.mrb[0].mxu0
        %v2528 = vadd.f32 %v2434, %v2527
        %v2529 = vpop.f32.mrb[0].mxu0
        %v2530 = vpop.f32.mrb[0].mxu0
        %v2531 = vadd.f32 %v2434, %v2530
        %v2532 = vpop.f32.mrb[0].mxu0
        %2533 = vmatprep.mubr.bf16.mxu0 0
        %2534 = vmatmul.mubr.bf16.gmra.mrb[0].mxu0 %v2468
        %v2535 = vpop.f32.mrb[0].mxu0
        %v2536 = vadd.f32 %v2434, %v2535
        %v2537 = vpop.f32.mrb[0].mxu0
        %v2538 = vpop.f32.mrb[0].mxu0
        %v2539 = vadd.f32 %v2434, %v2538
        %v2540 = vpop.f32.mrb[0].mxu0
        %2541 = vmatprep.mubr.bf16.mxu0 0
        %2542 = vmatmul.mubr.bf16.gmra.mrb[0].mxu0 %v2471
        %v2543 = vpop.f32.mrb[0].mxu0
        %v2544 = vadd.f32 %v2434, %v2543
        %v2545 = vpop.f32.mrb[0].mxu0
        %v2546 = vpop.f32.mrb[0].mxu0
        %v2547 = vadd.f32 %v2434, %v2546
        %v2548 = vpop.f32.mrb[0].mxu0
        %2549 = vmatprep.mubr.bf16.mxu0 0
        %2550 = vmatmul.mubr.bf16.gmra.mrb[0].mxu0 %v2474
        %v2551 = vpop.f32.mrb[0].mxu0
        %v2552 = vadd.f32 %v2434, %v2551
        %v2553 = vpop.f32.mrb[0].mxu0
        %v2554 = vpop.f32.mrb[0].mxu0
        %v2555 = vadd.f32 %v2434, %v2554
        %v2556 = vpop.f32.mrb[0].mxu0
        %2557 = vmatprep.mubr.bf16.mxu0 0
        %2558 = vmatmul.mubr.bf16.gmra.mrb[0].mxu0 %v2477
        %v2559 = vpop.f32.mrb[0].mxu0
        %v2560 = vadd.f32 %v2434, %v2559
        %v2561 = vpop.f32.mrb[0].mxu0
        %v2562 = vpop.f32.mrb[0].mxu0
        %v2563 = vadd.f32 %v2434, %v2562
        %v2564 = vpop.f32.mrb[0].mxu0
        %2565 = vmatprep.mubr.bf16.mxu0 0
        %2566 = vmatmul.mubr.bf16.gmra.mrb[0].mxu0 %v2480
        %v2567 = vpop.f32.mrb[0].mxu0
        %v2568 = vadd.f32 %v2434, %v2567
        %v2569 = vpop.f32.mrb[0].mxu0
        %v2570 = vpop.f32.mrb[0].mxu0
        %v2571 = vadd.f32 %v2434, %v2570
        %v2572 = vpop.f32.mrb[0].mxu0
        %2573 = vmatprep.mubr.bf16.mxu0 0
        %2574 = vmatmul.mubr.bf16.gmra.mrb[0].mxu0 %v2483
        %v2575 = vpop.f32.mrb[0].mxu0
        %v2576 = vadd.f32 %v2434, %v2575
        %v2577 = vpop.f32.mrb[0].mxu0
        %v2578 = vpop.f32.mrb[0].mxu0
        %v2579 = vadd.f32 %v2434, %v2578
        %v2580 = vpop.f32.mrb[0].mxu0
        %2581 = vdwg.mxu0
        %v2582 = vmax.f32 %v2520, 0.0
        %v2583 = vmax.f32 %v2523, 0.0
        %v2584 = vmax.f32 %v2528, 0.0
        %v2585 = vmax.f32 %v2531, 0.0
        %v2586 = vmax.f32 %v2536, 0.0
        %v2587 = vmax.f32 %v2539, 0.0
        %v2588 = vmax.f32 %v2544, 0.0
        %v2589 = vmax.f32 %v2547, 0.0
        %v2590 = vmax.f32 %v2552, 0.0
        %v2591 = vmax.f32 %v2555, 0.0
        %v2592 = vmax.f32 %v2560, 0.0
        %v2593 = vmax.f32 %v2563, 0.0
        %v2594 = vmax.f32 %v2568, 0.0
        %v2595 = vmax.f32 %v2571, 0.0
        %v2596 = vmax.f32 %v2576, 0.0
        %v2597 = vmax.f32 %v2579, 0.0
        %v2598 = vsel %vm2460, %v2582, -inf
        %2599 = vmax.xlane.f32.xlu0 %v2598
        %v2600 = vpop.xlane.xlu0 %2599
        %v2601 = vsel %vm2460, %v2583, -inf
        %2602 = vmax.xlane.f32.xlu0 %v2601
        %v2603 = vpop.xlane.xlu0 %2602
        %v2604 = vsel %vm2460, %v2584, -inf
        %2605 = vmax.xlane.f32.xlu0 %v2604
        %v2606 = vpop.xlane.xlu0 %2605
        %v2607 = vsel %vm2460, %v2585, -inf
        %2608 = vmax.xlane.f32.xlu0 %v2607
        %v2609 = vpop.xlane.xlu0 %2608
        %v2610 = vsel %vm2460, %v2586, -inf
        %2611 = vmax.xlane.f32.xlu0 %v2610
        %v2612 = vpop.xlane.xlu0 %2611
        %v2613 = vsel %vm2460, %v2587, -inf
        %2614 = vmax.xlane.f32.xlu0 %v2613
        %v2615 = vpop.xlane.xlu0 %2614
        %v2616 = vsel %vm2460, %v2588, -inf
        %2617 = vmax.xlane.f32.xlu0 %v2616
        %v2618 = vpop.xlane.xlu0 %2617
        %v2619 = vsel %vm2460, %v2589, -inf
        %2620 = vmax.xlane.f32.xlu0 %v2619
        %v2621 = vpop.xlane.xlu0 %2620
        %v2622 = vsel %vm2460, %v2590, -inf
        %2623 = vmax.xlane.f32.xlu0 %v2622
        %v2624 = vpop.xlane.xlu0 %2623
        %v2625 = vsel %vm2460, %v2591, -inf
        %2626 = vmax.xlane.f32.xlu0 %v2625
        %v2627 = vpop.xlane.xlu0 %2626
        %v2628 = vsel %vm2460, %v2592, -inf
        %2629 = vmax.xlane.f32.xlu0 %v2628
        %v2630 = vpop.xlane.xlu0 %2629
        %v2631 = vsel %vm2460, %v2593, -inf
        %2632 = vmax.xlane.f32.xlu0 %v2631
        %v2633 = vpop.xlane.xlu0 %2632
        %v2634 = vsel %vm2460, %v2594, -inf
        %2635 = vmax.xlane.f32.xlu0 %v2634
        %v2636 = vpop.xlane.xlu0 %2635
        %v2637 = vsel %vm2460, %v2595, -inf
        %2638 = vmax.xlane.f32.xlu0 %v2637
        %v2639 = vpop.xlane.xlu0 %2638
        %v2640 = vsel %vm2460, %v2596, -inf
        %2641 = vmax.xlane.f32.xlu0 %v2640
        %v2642 = vpop.xlane.xlu0 %2641
        %v2643 = vsel %vm2460, %v2597, -inf
        %2644 = vmax.xlane.f32.xlu0 %v2643
        %v2645 = vpop.xlane.xlu0 %2644
        %v2646 = vsub.f32 %v2582, %v2600
        %v2647 = vsub.f32 %v2583, %v2603
        %v2648 = vsub.f32 %v2584, %v2606
        %v2649 = vsub.f32 %v2585, %v2609
        %v2650 = vsub.f32 %v2586, %v2612
        %v2651 = vsub.f32 %v2587, %v2615
        %v2652 = vsub.f32 %v2588, %v2618
        %v2653 = vsub.f32 %v2589, %v2621
        %v2654 = vsub.f32 %v2590, %v2624
        %v2655 = vsub.f32 %v2591, %v2627
        %v2656 = vsub.f32 %v2592, %v2630
        %v2657 = vsub.f32 %v2593, %v2633
        %v2658 = vsub.f32 %v2594, %v2636
        %v2659 = vsub.f32 %v2595, %v2639
        %v2660 = vsub.f32 %v2596, %v2642
        %v2661 = vsub.f32 %v2597, %v2645
        %v2662 = vmul.f32 %v2646, 1.442695
        %v2663 = vpow.pop %v2662
        %v2664 = vmul.f32 %v2647, 1.442695
        %v2665 = vpow.pop %v2664
        %v2666 = vmul.f32 %v2648, 1.442695
        %v2667 = vpow.pop %v2666
        %v2668 = vmul.f32 %v2649, 1.442695
        %v2669 = vpow.pop %v2668
        %v2670 = vmul.f32 %v2650, 1.442695
        %v2671 = vpow.pop %v2670
        %v2672 = vmul.f32 %v2651, 1.442695
        %v2673 = vpow.pop %v2672
        %v2674 = vmul.f32 %v2652, 1.442695
        %v2675 = vpow.pop %v2674
        %v2676 = vmul.f32 %v2653, 1.442695
        %v2677 = vpow.pop %v2676
        %v2678 = vmul.f32 %v2654, 1.442695
        %v2679 = vpow.pop %v2678
        %v2680 = vmul.f32 %v2655, 1.442695
        %v2681 = vpow.pop %v2680
        %v2682 = vmul.f32 %v2656, 1.442695
        %v2683 = vpow.pop %v2682
        %v2684 = vmul.f32 %v2657, 1.442695
        %v2685 = vpow.pop %v2684
        %v2686 = vmul.f32 %v2658, 1.442695
        %v2687 = vpow.pop %v2686
        %v2688 = vmul.f32 %v2659, 1.442695
        %v2689 = vpow.pop %v2688
        %v2690 = vmul.f32 %v2660, 1.442695
        %v2691 = vpow.pop %v2690
        %v2692 = vmul.f32 %v2661, 1.442695
        %v2693 = vpow.pop %v2692
        %v2694 = vsel %vm2460, %v2663, 0.0
        %2695 = vadd.xlane.f32.xlu0 %v2694
        %v2696 = vpop.xlane.xlu0 %2695
        %v2697 = vsel %vm2460, %v2665, 0.0
        %2698 = vadd.xlane.f32.xlu0 %v2697
        %v2699 = vpop.xlane.xlu0 %2698
        %v2700 = vsel %vm2460, %v2667, 0.0
        %2701 = vadd.xlane.f32.xlu0 %v2700
        %v2702 = vpop.xlane.xlu0 %2701
        %v2703 = vsel %vm2460, %v2669, 0.0
        %2704 = vadd.xlane.f32.xlu0 %v2703
        %v2705 = vpop.xlane.xlu0 %2704
        %v2706 = vsel %vm2460, %v2671, 0.0
        %2707 = vadd.xlane.f32.xlu0 %v2706
        %v2708 = vpop.xlane.xlu0 %2707
        %v2709 = vsel %vm2460, %v2673, 0.0
        %2710 = vadd.xlane.f32.xlu0 %v2709
        %v2711 = vpop.xlane.xlu0 %2710
        %v2712 = vsel %vm2460, %v2675, 0.0
        %2713 = vadd.xlane.f32.xlu0 %v2712
        %v2714 = vpop.xlane.xlu0 %2713
        %v2715 = vsel %vm2460, %v2677, 0.0
        %2716 = vadd.xlane.f32.xlu0 %v2715
        %v2717 = vpop.xlane.xlu0 %2716
        %v2718 = vsel %vm2460, %v2679, 0.0
        %2719 = vadd.xlane.f32.xlu0 %v2718
        %v2720 = vpop.xlane.xlu0 %2719
        %v2721 = vsel %vm2460, %v2681, 0.0
        %2722 = vadd.xlane.f32.xlu0 %v2721
        %v2723 = vpop.xlane.xlu0 %2722
        %v2724 = vsel %vm2460, %v2683, 0.0
        %2725 = vadd.xlane.f32.xlu0 %v2724
        %v2726 = vpop.xlane.xlu0 %2725
        %v2727 = vsel %vm2460, %v2685, 0.0
        %2728 = vadd.xlane.f32.xlu0 %v2727
        %v2729 = vpop.xlane.xlu0 %2728
        %v2730 = vsel %vm2460, %v2687, 0.0
        %2731 = vadd.xlane.f32.xlu0 %v2730
        %v2732 = vpop.xlane.xlu0 %2731
        %v2733 = vsel %vm2460, %v2689, 0.0
        %2734 = vadd.xlane.f32.xlu0 %v2733
        %v2735 = vpop.xlane.xlu0 %2734
        %v2736 = vsel %vm2460, %v2691, 0.0
        %2737 = vadd.xlane.f32.xlu0 %v2736
        %v2738 = vpop.xlane.xlu0 %2737
        %v2739 = vsel %vm2460, %v2693, 0.0
        %2740 = vadd.xlane.f32.xlu0 %v2739
        %v2741 = vpop.xlane.xlu0 %2740
        %v2742 = vrcp.pop %v2696
        %v2743 = vmul.f32 %v2663, %v2742
        %v2744 = vrcp.pop %v2699
        %v2745 = vmul.f32 %v2665, %v2744
        %v2746 = vrcp.pop %v2702
        %v2747 = vmul.f32 %v2667, %v2746
        %v2748 = vrcp.pop %v2705
        %v2749 = vmul.f32 %v2669, %v2748
        %v2750 = vrcp.pop %v2708
        %v2751 = vmul.f32 %v2671, %v2750
        %v2752 = vrcp.pop %v2711
        %v2753 = vmul.f32 %v2673, %v2752
        %v2754 = vrcp.pop %v2714
        %v2755 = vmul.f32 %v2675, %v2754
        %v2756 = vrcp.pop %v2717
        %v2757 = vmul.f32 %v2677, %v2756
        %v2758 = vrcp.pop %v2720
        %v2759 = vmul.f32 %v2679, %v2758
        %v2760 = vrcp.pop %v2723
        %v2761 = vmul.f32 %v2681, %v2760
        %v2762 = vrcp.pop %v2726
        %v2763 = vmul.f32 %v2683, %v2762
        %v2764 = vrcp.pop %v2729
        %v2765 = vmul.f32 %v2685, %v2764
        %v2766 = vrcp.pop %v2732
        %v2767 = vmul.f32 %v2687, %v2766
        %v2768 = vrcp.pop %v2735
        %v2769 = vmul.f32 %v2689, %v2768
        %v2770 = vrcp.pop %v2738
        %v2771 = vmul.f32 %v2691, %v2770
        %v2772 = vrcp.pop %v2741
        %v2773 = vmul.f32 %v2693, %v2772
        %v2774 = vsel %vm2460, %v2743, 0.0
        %v2775 = vsel %vm2460, %v2745, 0.0
        %v2776 = vsel %vm2460, %v2747, 0.0
        %v2777 = vsel %vm2460, %v2749, 0.0
        %v2778 = vsel %vm2460, %v2751, 0.0
        %v2779 = vsel %vm2460, %v2753, 0.0
        %v2780 = vsel %vm2460, %v2755, 0.0
        %v2781 = vsel %vm2460, %v2757, 0.0
        %v2782 = vsel %vm2460, %v2759, 0.0
        %v2783 = vsel %vm2460, %v2761, 0.0
        %v2784 = vsel %vm2460, %v2763, 0.0
        %v2785 = vsel %vm2460, %v2765, 0.0
        %v2786 = vsel %vm2460, %v2767, 0.0
        %v2787 = vsel %vm2460, %v2769, 0.0
        %v2788 = vsel %vm2460, %v2771, 0.0
        %v2789 = vsel %vm2460, %v2773, 0.0
        %2790 = vst [vmem:[%s560] sm:$0xff] %v2774
        %2791 = vst [vmem:[%s560 + $0x8] sm:$0xff] %v2775
        %2792 = vst [vmem:[%s560 + $0x10] sm:$0xff] %v2776
        %2793 = vst [vmem:[%s560 + $0x18] sm:$0xff] %v2777
        %2794 = vst [vmem:[%s560 + $0x20] sm:$0xff] %v2778
        %2795 = vst [vmem:[%s560 + $0x28] sm:$0xff] %v2779
        %2796 = vst [vmem:[%s560 + $0x30] sm:$0xff] %v2780
        %2797 = vst [vmem:[%s560 + $0x38] sm:$0xff] %v2781
        %2798 = vst [vmem:[%s560 + $0x40] sm:$0xff] %v2782
        %2799 = vst [vmem:[%s560 + $0x48] sm:$0xff] %v2783
        %2800 = vst [vmem:[%s560 + $0x50] sm:$0xff] %v2784
        %2801 = vst [vmem:[%s560 + $0x58] sm:$0xff] %v2785
        %2802 = vst [vmem:[%s560 + $0x60] sm:$0xff] %v2786
        %2803 = vst [vmem:[%s560 + $0x68] sm:$0xff] %v2787
        %2804 = vst [vmem:[%s560 + $0x70] sm:$0xff] %v2788
        %2805 = vst [vmem:[%s560 + $0x78] sm:$0xff] %v2789
        %v2806 = vpack.c.bf16 %v2745, %v2743
        %v2807 = vpack.c.bf16 %v2749, %v2747
        %v2808 = vpack.c.bf16 %v2753, %v2751
        %v2809 = vpack.c.bf16 %v2757, %v2755
        %v2810 = vpack.c.bf16 %v2761, %v2759
        %v2811 = vpack.c.bf16 %v2765, %v2763
        %v2812 = vpack.c.bf16 %v2769, %v2767
        %v2813 = vpack.c.bf16 %v2773, %v2771
        %v2814 = vld [vmem:[%s9] sm:$0xff]
        %v2815 = vld [vmem:[%s9 + $0x8] sm:$0xff]
        %v2816 = vld [vmem:[%s9 + $0x10] sm:$0xff]
        %v2817 = vld [vmem:[%s9 + $0x18] sm:$0xff]
        %v2818 = vld [vmem:[%s9 + $0x20] sm:$0xff]
        %v2819 = vld [vmem:[%s9 + $0x28] sm:$0xff]
        %v2820 = vld [vmem:[%s9 + $0x30] sm:$0xff]
        %v2821 = vld [vmem:[%s9 + $0x38] sm:$0xff]
        %v2822 = vld [vmem:[%s9 + $0x40] sm:$0xff]
        %v2823 = vld [vmem:[%s9 + $0x48] sm:$0xff]
        %v2824 = vld [vmem:[%s9 + $0x50] sm:$0xff]
        %v2825 = vld [vmem:[%s9 + $0x58] sm:$0xff]
        %v2826 = vld [vmem:[%s9 + $0x60] sm:$0xff]
        %v2827 = vld [vmem:[%s9 + $0x68] sm:$0xff]
        %v2828 = vld [vmem:[%s9 + $0x70] sm:$0xff]
        %v2829 = vld [vmem:[%s9 + $0x78] sm:$0xff]
        %v2830 = vld [vmem:[%s10] sm:$0xf]
        %v2832 = vlaneseq
        %v2833 = vshrl.u32 %v2832, 7
        %v2834 = vsub.s32 0, %v2833
        %v2835 = vrot.slane %v2830, %v2834
        %v2836 = vlaneseq
        %v2837 = vshrl.u32 %v2836, 7
        %v2838 = vsub.s32 1, %v2837
        %v2839 = vrot.slane %v2830, %v2838
        %v2840 = vlaneseq
        %v2841 = vshrl.u32 %v2840, 7
        %v2842 = vsub.s32 2, %v2841
        %v2843 = vrot.slane %v2830, %v2842
        %v2844 = vlaneseq
        %v2845 = vshrl.u32 %v2844, 7
        %v2846 = vsub.s32 3, %v2845
        %v2847 = vrot.slane %v2830, %v2846
        %v2868 = vunpack.c.l.b16 %v2814
        %v2869 = vunpack.c.h.b16 %v2814
        %v2870 = vunpack.c.l.b16 %v2815
        %v2871 = vunpack.c.h.b16 %v2815
        %v2872 = vunpack.c.l.b16 %v2816
        %v2873 = vunpack.c.h.b16 %v2816
        %v2874 = vunpack.c.l.b16 %v2817
        %v2875 = vunpack.c.h.b16 %v2817
        %v2876 = vunpack.c.l.b16 %v2818
        %v2877 = vunpack.c.h.b16 %v2818
        %v2878 = vunpack.c.l.b16 %v2819
        %v2879 = vunpack.c.h.b16 %v2819
        %v2880 = vunpack.c.l.b16 %v2820
        %v2881 = vunpack.c.h.b16 %v2820
        %v2882 = vunpack.c.l.b16 %v2821
        %v2883 = vunpack.c.h.b16 %v2821
        %v2884 = vunpack.c.l.b16 %v2822
        %v2885 = vunpack.c.h.b16 %v2822
        %v2886 = vunpack.c.l.b16 %v2823
        %v2887 = vunpack.c.h.b16 %v2823
        %v2888 = vunpack.c.l.b16 %v2824
        %v2889 = vunpack.c.h.b16 %v2824
        %v2890 = vunpack.c.l.b16 %v2825
        %v2891 = vunpack.c.h.b16 %v2825
        %v2892 = vunpack.c.l.b16 %v2826
        %v2893 = vunpack.c.h.b16 %v2826
        %v2894 = vunpack.c.l.b16 %v2827
        %v2895 = vunpack.c.h.b16 %v2827
        %v2896 = vunpack.c.l.b16 %v2828
        %v2897 = vunpack.c.h.b16 %v2828
        %v2898 = vunpack.c.l.b16 %v2829
        %v2899 = vunpack.c.h.b16 %v2829
        %v2900 = vpack.c.b16 %v2872, %v2868
        %v2901 = vpack.c.b16 %v2873, %v2869
        %v2902 = vpack.c.b16 %v2874, %v2870
        %v2903 = vpack.c.b16 %v2875, %v2871
        %v2904 = vpack.c.b16 %v2880, %v2876
        %v2905 = vpack.c.b16 %v2881, %v2877
        %v2906 = vpack.c.b16 %v2882, %v2878
        %v2907 = vpack.c.b16 %v2883, %v2879
        %v2908 = vpack.c.b16 %v2888, %v2884
        %v2909 = vpack.c.b16 %v2889, %v2885
        %v2910 = vpack.c.b16 %v2890, %v2886
        %v2911 = vpack.c.b16 %v2891, %v2887
        %v2912 = vpack.c.b16 %v2896, %v2892
        %v2913 = vpack.c.b16 %v2897, %v2893
        %v2914 = vpack.c.b16 %v2898, %v2894
        %v2915 = vpack.c.b16 %v2899, %v2895
        %v2933 = vsel %vm2460, %v2806, 0
        %v2936 = vsel %vm2460, %v2807, 0
        %v2939 = vsel %vm2460, %v2808, 0
        %v2942 = vsel %vm2460, %v2809, 0
        %v2945 = vsel %vm2460, %v2810, 0
        %v2948 = vsel %vm2460, %v2811, 0
        %v2951 = vsel %vm2460, %v2812, 0
        %v2954 = vsel %vm2460, %v2813, 0
        %2956 = vmatprep.subr.bf16.mxu0 %v2901
        %2957 = vmatpush1.bf16.msra.mxu0 %v2900
        %2958 = vmatprep.subr.bf16.mxu0 %v2905
        %2959 = vmatpush1.bf16.msra.mxu0 %v2904
        %2960 = vmatprep.subr.bf16.mxu0 %v2909
        %2961 = vmatpush1.bf16.msra.mxu0 %v2908
        %2962 = vmatprep.subr.bf16.mxu0 %v2913
        %2963 = vmatpush1.bf16.msra.mxu0 %v2912
        %2964 = vmatprep.subr.bf16.mxu0 0
        %2965 = vmatpush1.bf16.msra.mxu0 0
        %2966 = vmatprep.subr.bf16.mxu0 0
        %2967 = vmatpush1.bf16.msra.mxu0 0
        %2968 = vmatprep.subr.bf16.mxu0 0
        %2969 = vmatpush1.bf16.msra.mxu0 0
        %2970 = vmatprep.subr.bf16.mxu0 0
        %2971 = vmatpush1.bf16.msra.mxu0 0
        %2972 = vmatprep.subr.bf16.mxu0 0
        %2973 = vmatpush1.bf16.msra.mxu0 0
        %2974 = vmatprep.subr.bf16.mxu0 0
        %2975 = vmatpush1.bf16.msra.mxu0 0
        %2976 = vmatprep.subr.bf16.mxu0 0
        %2977 = vmatpush1.bf16.msra.mxu0 0
        %2978 = vmatprep.subr.bf16.mxu0 0
        %2979 = vmatpush1.bf16.msra.mxu0 0
        %2980 = vmatprep.subr.bf16.mxu0 0
        %2981 = vmatpush1.bf16.msra.mxu0 0
        %2982 = vmatprep.subr.bf16.mxu0 0
        %2983 = vmatpush1.bf16.msra.mxu0 0
        %2984 = vmatprep.subr.bf16.mxu0 0
        %2985 = vmatpush1.bf16.msra.mxu0 0
        %2986 = vmatprep.subr.bf16.mxu0 0
        %2987 = vmatpush1.bf16.msra.mxu0 0
        %2988 = vmatprep.mubr.bf16.mxu0 0
        %2989 = vmatmul.mubr.bf16.gmra.mrb[0].mxu0 %v2933
        %v2990 = vpop.f32.mrb[0].mxu0
        %v2991 = vadd.f32 %v2835, %v2990
        %v2992 = vpop.f32.mrb[0].mxu0
        %v2993 = vadd.f32 %v2839, %v2992
        %v2994 = vpop.f32.mrb[0].mxu0
        %v2995 = vadd.f32 %v2835, %v2994
        %v2996 = vpop.f32.mrb[0].mxu0
        %v2997 = vadd.f32 %v2839, %v2996
        %2998 = vmatprep.mubr.bf16.mxu0 0
        %2999 = vmatmul.mubr.bf16.gmra.mrb[0].mxu0 %v2936
        %v3000 = vpop.f32.mrb[0].mxu0
        %v3001 = vadd.f32 %v2835, %v3000
        %v3002 = vpop.f32.mrb[0].mxu0
        %v3003 = vadd.f32 %v2839, %v3002
        %v3004 = vpop.f32.mrb[0].mxu0
        %v3005 = vadd.f32 %v2835, %v3004
        %v3006 = vpop.f32.mrb[0].mxu0
        %v3007 = vadd.f32 %v2839, %v3006
        %3008 = vmatprep.mubr.bf16.mxu0 0
        %3009 = vmatmul.mubr.bf16.gmra.mrb[0].mxu0 %v2939
        %v3010 = vpop.f32.mrb[0].mxu0
        %v3011 = vadd.f32 %v2835, %v3010
        %v3012 = vpop.f32.mrb[0].mxu0
        %v3013 = vadd.f32 %v2839, %v3012
        %v3014 = vpop.f32.mrb[0].mxu0
        %v3015 = vadd.f32 %v2835, %v3014
        %v3016 = vpop.f32.mrb[0].mxu0
        %v3017 = vadd.f32 %v2839, %v3016
        %3018 = vmatprep.mubr.bf16.mxu0 0
        %3019 = vmatmul.mubr.bf16.gmra.mrb[0].mxu0 %v2942
        %v3020 = vpop.f32.mrb[0].mxu0
        %v3021 = vadd.f32 %v2835, %v3020
        %v3022 = vpop.f32.mrb[0].mxu0
        %v3023 = vadd.f32 %v2839, %v3022
        %v3024 = vpop.f32.mrb[0].mxu0
        %v3025 = vadd.f32 %v2835, %v3024
        %v3026 = vpop.f32.mrb[0].mxu0
        %v3027 = vadd.f32 %v2839, %v3026
        %3028 = vmatprep.mubr.bf16.mxu0 0
        %3029 = vmatmul.mubr.bf16.gmra.mrb[0].mxu0 %v2945
        %v3030 = vpop.f32.mrb[0].mxu0
        %v3031 = vadd.f32 %v2835, %v3030
        %v3032 = vpop.f32.mrb[0].mxu0
        %v3033 = vadd.f32 %v2839, %v3032
        %v3034 = vpop.f32.mrb[0].mxu0
        %v3035 = vadd.f32 %v2835, %v3034
        %v3036 = vpop.f32.mrb[0].mxu0
        %v3037 = vadd.f32 %v2839, %v3036
        %3038 = vmatprep.mubr.bf16.mxu0 0
        %3039 = vmatmul.mubr.bf16.gmra.mrb[0].mxu0 %v2948
        %v3040 = vpop.f32.mrb[0].mxu0
        %v3041 = vadd.f32 %v2835, %v3040
        %v3042 = vpop.f32.mrb[0].mxu0
        %v3043 = vadd.f32 %v2839, %v3042
        %v3044 = vpop.f32.mrb[0].mxu0
        %v3045 = vadd.f32 %v2835, %v3044
        %v3046 = vpop.f32.mrb[0].mxu0
        %v3047 = vadd.f32 %v2839, %v3046
        %3048 = vmatprep.mubr.bf16.mxu0 0
        %3049 = vmatmul.mubr.bf16.gmra.mrb[0].mxu0 %v2951
        %v3050 = vpop.f32.mrb[0].mxu0
        %v3051 = vadd.f32 %v2835, %v3050
        %v3052 = vpop.f32.mrb[0].mxu0
        %v3053 = vadd.f32 %v2839, %v3052
        %v3054 = vpop.f32.mrb[0].mxu0
        %v3055 = vadd.f32 %v2835, %v3054
        %v3056 = vpop.f32.mrb[0].mxu0
        %v3057 = vadd.f32 %v2839, %v3056
        %3058 = vmatprep.mubr.bf16.mxu0 0
        %3059 = vmatmul.mubr.bf16.gmra.mrb[0].mxu0 %v2954
        %v3060 = vpop.f32.mrb[0].mxu0
        %v3061 = vadd.f32 %v2835, %v3060
        %v3062 = vpop.f32.mrb[0].mxu0
        %v3063 = vadd.f32 %v2839, %v3062
        %v3064 = vpop.f32.mrb[0].mxu0
        %v3065 = vadd.f32 %v2835, %v3064
        %v3066 = vpop.f32.mrb[0].mxu0
        %v3067 = vadd.f32 %v2839, %v3066
        %3068 = vdwg.mxu0
        %3069 = vmatprep.subr.bf16.mxu0 %v2903
        %3070 = vmatpush1.bf16.msra.mxu0 %v2902
        %3071 = vmatprep.subr.bf16.mxu0 %v2907
        %3072 = vmatpush1.bf16.msra.mxu0 %v2906
        %3073 = vmatprep.subr.bf16.mxu0 %v2911
        %3074 = vmatpush1.bf16.msra.mxu0 %v2910
        %3075 = vmatprep.subr.bf16.mxu0 %v2915
        %3076 = vmatpush1.bf16.msra.mxu0 %v2914
        %3077 = vmatprep.subr.bf16.mxu0 0
        %3078 = vmatpush1.bf16.msra.mxu0 0
        %3079 = vmatprep.subr.bf16.mxu0 0
        %3080 = vmatpush1.bf16.msra.mxu0 0
        %3081 = vmatprep.subr.bf16.mxu0 0
        %3082 = vmatpush1.bf16.msra.mxu0 0
        %3083 = vmatprep.subr.bf16.mxu0 0
        %3084 = vmatpush1.bf16.msra.mxu0 0
        %3085 = vmatprep.subr.bf16.mxu0 0
        %3086 = vmatpush1.bf16.msra.mxu0 0
        %3087 = vmatprep.subr.bf16.mxu0 0
        %3088 = vmatpush1.bf16.msra.mxu0 0
        %3089 = vmatprep.subr.bf16.mxu0 0
        %3090 = vmatpush1.bf16.msra.mxu0 0
        %3091 = vmatprep.subr.bf16.mxu0 0
        %3092 = vmatpush1.bf16.msra.mxu0 0
        %3093 = vmatprep.subr.bf16.mxu0 0
        %3094 = vmatpush1.bf16.msra.mxu0 0
        %3095 = vmatprep.subr.bf16.mxu0 0
        %3096 = vmatpush1.bf16.msra.mxu0 0
        %3097 = vmatprep.subr.bf16.mxu0 0
        %3098 = vmatpush1.bf16.msra.mxu0 0
        %3099 = vmatprep.subr.bf16.mxu0 0
        %3100 = vmatpush1.bf16.msra.mxu0 0
        %3101 = vmatprep.mubr.bf16.mxu0 0
        %3102 = vmatmul.mubr.bf16.gmra.mrb[0].mxu0 %v2933
        %v3103 = vpop.f32.mrb[0].mxu0
        %v3104 = vadd.f32 %v2843, %v3103
        %v3105 = vpop.f32.mrb[0].mxu0
        %v3106 = vadd.f32 %v2847, %v3105
        %v3107 = vpop.f32.mrb[0].mxu0
        %v3108 = vadd.f32 %v2843, %v3107
        %v3109 = vpop.f32.mrb[0].mxu0
        %v3110 = vadd.f32 %v2847, %v3109
        %3111 = vmatprep.mubr.bf16.mxu0 0
        %3112 = vmatmul.mubr.bf16.gmra.mrb[0].mxu0 %v2936
        %v3113 = vpop.f32.mrb[0].mxu0
        %v3114 = vadd.f32 %v2843, %v3113
        %v3115 = vpop.f32.mrb[0].mxu0
        %v3116 = vadd.f32 %v2847, %v3115
        %v3117 = vpop.f32.mrb[0].mxu0
        %v3118 = vadd.f32 %v2843, %v3117
        %v3119 = vpop.f32.mrb[0].mxu0
        %v3120 = vadd.f32 %v2847, %v3119
        %3121 = vmatprep.mubr.bf16.mxu0 0
        %3122 = vmatmul.mubr.bf16.gmra.mrb[0].mxu0 %v2939
        %v3123 = vpop.f32.mrb[0].mxu0
        %v3124 = vadd.f32 %v2843, %v3123
        %v3125 = vpop.f32.mrb[0].mxu0
        %v3126 = vadd.f32 %v2847, %v3125
        %v3127 = vpop.f32.mrb[0].mxu0
        %v3128 = vadd.f32 %v2843, %v3127
        %v3129 = vpop.f32.mrb[0].mxu0
        %v3130 = vadd.f32 %v2847, %v3129
        %3131 = vmatprep.mubr.bf16.mxu0 0
        %3132 = vmatmul.mubr.bf16.gmra.mrb[0].mxu0 %v2942
        %v3133 = vpop.f32.mrb[0].mxu0
        %v3134 = vadd.f32 %v2843, %v3133
        %v3135 = vpop.f32.mrb[0].mxu0
        %v3136 = vadd.f32 %v2847, %v3135
        %v3137 = vpop.f32.mrb[0].mxu0
        %v3138 = vadd.f32 %v2843, %v3137
        %v3139 = vpop.f32.mrb[0].mxu0
        %v3140 = vadd.f32 %v2847, %v3139
        %3141 = vmatprep.mubr.bf16.mxu0 0
        %3142 = vmatmul.mubr.bf16.gmra.mrb[0].mxu0 %v2945
        %v3143 = vpop.f32.mrb[0].mxu0
        %v3144 = vadd.f32 %v2843, %v3143
        %v3145 = vpop.f32.mrb[0].mxu0
        %v3146 = vadd.f32 %v2847, %v3145
        %v3147 = vpop.f32.mrb[0].mxu0
        %v3148 = vadd.f32 %v2843, %v3147
        %v3149 = vpop.f32.mrb[0].mxu0
        %v3150 = vadd.f32 %v2847, %v3149
        %3151 = vmatprep.mubr.bf16.mxu0 0
        %3152 = vmatmul.mubr.bf16.gmra.mrb[0].mxu0 %v2948
        %v3153 = vpop.f32.mrb[0].mxu0
        %v3154 = vadd.f32 %v2843, %v3153
        %v3155 = vpop.f32.mrb[0].mxu0
        %v3156 = vadd.f32 %v2847, %v3155
        %v3157 = vpop.f32.mrb[0].mxu0
        %v3158 = vadd.f32 %v2843, %v3157
        %v3159 = vpop.f32.mrb[0].mxu0
        %v3160 = vadd.f32 %v2847, %v3159
        %3161 = vmatprep.mubr.bf16.mxu0 0
        %3162 = vmatmul.mubr.bf16.gmra.mrb[0].mxu0 %v2951
        %v3163 = vpop.f32.mrb[0].mxu0
        %v3164 = vadd.f32 %v2843, %v3163
        %v3165 = vpop.f32.mrb[0].mxu0
        %v3166 = vadd.f32 %v2847, %v3165
        %v3167 = vpop.f32.mrb[0].mxu0
        %v3168 = vadd.f32 %v2843, %v3167
        %v3169 = vpop.f32.mrb[0].mxu0
        %v3170 = vadd.f32 %v2847, %v3169
        %3171 = vmatprep.mubr.bf16.mxu0 0
        %3172 = vmatmul.mubr.bf16.gmra.mrb[0].mxu0 %v2954
        %v3173 = vpop.f32.mrb[0].mxu0
        %v3174 = vadd.f32 %v2843, %v3173
        %v3175 = vpop.f32.mrb[0].mxu0
        %v3176 = vadd.f32 %v2847, %v3175
        %v3177 = vpop.f32.mrb[0].mxu0
        %v3178 = vadd.f32 %v2843, %v3177
        %v3179 = vpop.f32.mrb[0].mxu0
        %v3180 = vadd.f32 %v2847, %v3179
        %3181 = vdwg.mxu0
        %v3182 = vmax.f32 %v2991, %v2993
        %v3183 = vmax.f32 %v3182, %v3104
        %v3184 = vmax.f32 %v3183, %v3106
        %3185 = vmax.xlane.f32.xlu0 %v3184
        %v3186 = vpop.xlane.xlu0 %3185
        %v3187 = vmax.f32 %v2995, %v2997
        %v3188 = vmax.f32 %v3187, %v3108
        %v3189 = vmax.f32 %v3188, %v3110
        %3190 = vmax.xlane.f32.xlu0 %v3189
        %v3191 = vpop.xlane.xlu0 %3190
        %v3192 = vmax.f32 %v3001, %v3003
        %v3193 = vmax.f32 %v3192, %v3114
        %v3194 = vmax.f32 %v3193, %v3116
        %3195 = vmax.xlane.f32.xlu0 %v3194
        %v3196 = vpop.xlane.xlu0 %3195
        %v3197 = vmax.f32 %v3005, %v3007
        %v3198 = vmax.f32 %v3197, %v3118
        %v3199 = vmax.f32 %v3198, %v3120
        %3200 = vmax.xlane.f32.xlu0 %v3199
        %v3201 = vpop.xlane.xlu0 %3200
        %v3202 = vmax.f32 %v3011, %v3013
        %v3203 = vmax.f32 %v3202, %v3124
        %v3204 = vmax.f32 %v3203, %v3126
        %3205 = vmax.xlane.f32.xlu0 %v3204
        %v3206 = vpop.xlane.xlu0 %3205
        %v3207 = vmax.f32 %v3015, %v3017
        %v3208 = vmax.f32 %v3207, %v3128
        %v3209 = vmax.f32 %v3208, %v3130
        %3210 = vmax.xlane.f32.xlu0 %v3209
        %v3211 = vpop.xlane.xlu0 %3210
        %v3212 = vmax.f32 %v3021, %v3023
        %v3213 = vmax.f32 %v3212, %v3134
        %v3214 = vmax.f32 %v3213, %v3136
        %3215 = vmax.xlane.f32.xlu0 %v3214
        %v3216 = vpop.xlane.xlu0 %3215
        %v3217 = vmax.f32 %v3025, %v3027
        %v3218 = vmax.f32 %v3217, %v3138
        %v3219 = vmax.f32 %v3218, %v3140
        %3220 = vmax.xlane.f32.xlu0 %v3219
        %v3221 = vpop.xlane.xlu0 %3220
        %v3222 = vmax.f32 %v3031, %v3033
        %v3223 = vmax.f32 %v3222, %v3144
        %v3224 = vmax.f32 %v3223, %v3146
        %3225 = vmax.xlane.f32.xlu0 %v3224
        %v3226 = vpop.xlane.xlu0 %3225
        %v3227 = vmax.f32 %v3035, %v3037
        %v3228 = vmax.f32 %v3227, %v3148
        %v3229 = vmax.f32 %v3228, %v3150
        %3230 = vmax.xlane.f32.xlu0 %v3229
        %v3231 = vpop.xlane.xlu0 %3230
        %v3232 = vmax.f32 %v3041, %v3043
        %v3233 = vmax.f32 %v3232, %v3154
        %v3234 = vmax.f32 %v3233, %v3156
        %3235 = vmax.xlane.f32.xlu0 %v3234
        %v3236 = vpop.xlane.xlu0 %3235
        %v3237 = vmax.f32 %v3045, %v3047
        %v3238 = vmax.f32 %v3237, %v3158
        %v3239 = vmax.f32 %v3238, %v3160
        %3240 = vmax.xlane.f32.xlu0 %v3239
        %v3241 = vpop.xlane.xlu0 %3240
        %v3242 = vmax.f32 %v3051, %v3053
        %v3243 = vmax.f32 %v3242, %v3164
        %v3244 = vmax.f32 %v3243, %v3166
        %3245 = vmax.xlane.f32.xlu0 %v3244
        %v3246 = vpop.xlane.xlu0 %3245
        %v3247 = vmax.f32 %v3055, %v3057
        %v3248 = vmax.f32 %v3247, %v3168
        %v3249 = vmax.f32 %v3248, %v3170
        %3250 = vmax.xlane.f32.xlu0 %v3249
        %v3251 = vpop.xlane.xlu0 %3250
        %v3252 = vmax.f32 %v3061, %v3063
        %v3253 = vmax.f32 %v3252, %v3174
        %v3254 = vmax.f32 %v3253, %v3176
        %3255 = vmax.xlane.f32.xlu0 %v3254
        %v3256 = vpop.xlane.xlu0 %3255
        %v3257 = vmax.f32 %v3065, %v3067
        %v3258 = vmax.f32 %v3257, %v3178
        %v3259 = vmax.f32 %v3258, %v3180
        %3260 = vmax.xlane.f32.xlu0 %v3259
        %v3261 = vpop.xlane.xlu0 %3260
        %v3262 = vsub.f32 %v2991, %v3186
        %v3263 = vsub.f32 %v2993, %v3186
        %v3264 = vsub.f32 %v3104, %v3186
        %v3265 = vsub.f32 %v3106, %v3186
        %v3266 = vsub.f32 %v2995, %v3191
        %v3267 = vsub.f32 %v2997, %v3191
        %v3268 = vsub.f32 %v3108, %v3191
        %v3269 = vsub.f32 %v3110, %v3191
        %v3270 = vsub.f32 %v3001, %v3196
        %v3271 = vsub.f32 %v3003, %v3196
        %v3272 = vsub.f32 %v3114, %v3196
        %v3273 = vsub.f32 %v3116, %v3196
        %v3274 = vsub.f32 %v3005, %v3201
        %v3275 = vsub.f32 %v3007, %v3201
        %v3276 = vsub.f32 %v3118, %v3201
        %v3277 = vsub.f32 %v3120, %v3201
        %v3278 = vsub.f32 %v3011, %v3206
        %v3279 = vsub.f32 %v3013, %v3206
        %v3280 = vsub.f32 %v3124, %v3206
        %v3281 = vsub.f32 %v3126, %v3206
        %v3282 = vsub.f32 %v3015, %v3211
        %v3283 = vsub.f32 %v3017, %v3211
        %v3284 = vsub.f32 %v3128, %v3211
        %v3285 = vsub.f32 %v3130, %v3211
        %v3286 = vsub.f32 %v3021, %v3216
        %v3287 = vsub.f32 %v3023, %v3216
        %v3288 = vsub.f32 %v3134, %v3216
        %v3289 = vsub.f32 %v3136, %v3216
        %v3290 = vsub.f32 %v3025, %v3221
        %v3291 = vsub.f32 %v3027, %v3221
        %v3292 = vsub.f32 %v3138, %v3221
        %v3293 = vsub.f32 %v3140, %v3221
        %v3294 = vsub.f32 %v3031, %v3226
        %v3295 = vsub.f32 %v3033, %v3226
        %v3296 = vsub.f32 %v3144, %v3226
        %v3297 = vsub.f32 %v3146, %v3226
        %v3298 = vsub.f32 %v3035, %v3231
        %v3299 = vsub.f32 %v3037, %v3231
        %v3300 = vsub.f32 %v3148, %v3231
        %v3301 = vsub.f32 %v3150, %v3231
        %v3302 = vsub.f32 %v3041, %v3236
        %v3303 = vsub.f32 %v3043, %v3236
        %v3304 = vsub.f32 %v3154, %v3236
        %v3305 = vsub.f32 %v3156, %v3236
        %v3306 = vsub.f32 %v3045, %v3241
        %v3307 = vsub.f32 %v3047, %v3241
        %v3308 = vsub.f32 %v3158, %v3241
        %v3309 = vsub.f32 %v3160, %v3241
        %v3310 = vsub.f32 %v3051, %v3246
        %v3311 = vsub.f32 %v3053, %v3246
        %v3312 = vsub.f32 %v3164, %v3246
        %v3313 = vsub.f32 %v3166, %v3246
        %v3314 = vsub.f32 %v3055, %v3251
        %v3315 = vsub.f32 %v3057, %v3251
        %v3316 = vsub.f32 %v3168, %v3251
        %v3317 = vsub.f32 %v3170, %v3251
        %v3318 = vsub.f32 %v3061, %v3256
        %v3319 = vsub.f32 %v3063, %v3256
        %v3320 = vsub.f32 %v3174, %v3256
        %v3321 = vsub.f32 %v3176, %v3256
        %v3322 = vsub.f32 %v3065, %v3261
        %v3323 = vsub.f32 %v3067, %v3261
        %v3324 = vsub.f32 %v3178, %v3261
        %v3325 = vsub.f32 %v3180, %v3261
        %v3326 = vmul.f32 %v3262, 1.442695
        %v3327 = vpow.pop %v3326
        %v3328 = vmul.f32 %v3263, 1.442695
        %v3329 = vpow.pop %v3328
        %v3330 = vmul.f32 %v3264, 1.442695
        %v3331 = vpow.pop %v3330
        %v3332 = vmul.f32 %v3265, 1.442695
        %v3333 = vpow.pop %v3332
        %v3334 = vmul.f32 %v3266, 1.442695
        %v3335 = vpow.pop %v3334
        %v3336 = vmul.f32 %v3267, 1.442695
        %v3337 = vpow.pop %v3336
        %v3338 = vmul.f32 %v3268, 1.442695
        %v3339 = vpow.pop %v3338
        %v3340 = vmul.f32 %v3269, 1.442695
        %v3341 = vpow.pop %v3340
        %v3342 = vmul.f32 %v3270, 1.442695
        %v3343 = vpow.pop %v3342
        %v3344 = vmul.f32 %v3271, 1.442695
        %v3345 = vpow.pop %v3344
        %v3346 = vmul.f32 %v3272, 1.442695
        %v3347 = vpow.pop %v3346
        %v3348 = vmul.f32 %v3273, 1.442695
        %v3349 = vpow.pop %v3348
        %v3350 = vmul.f32 %v3274, 1.442695
        %v3351 = vpow.pop %v3350
        %v3352 = vmul.f32 %v3275, 1.442695
        %v3353 = vpow.pop %v3352
        %v3354 = vmul.f32 %v3276, 1.442695
        %v3355 = vpow.pop %v3354
        %v3356 = vmul.f32 %v3277, 1.442695
        %v3357 = vpow.pop %v3356
        %v3358 = vmul.f32 %v3278, 1.442695
        %v3359 = vpow.pop %v3358
        %v3360 = vmul.f32 %v3279, 1.442695
        %v3361 = vpow.pop %v3360
        %v3362 = vmul.f32 %v3280, 1.442695
        %v3363 = vpow.pop %v3362
        %v3364 = vmul.f32 %v3281, 1.442695
        %v3365 = vpow.pop %v3364
        %v3366 = vmul.f32 %v3282, 1.442695
        %v3367 = vpow.pop %v3366
        %v3368 = vmul.f32 %v3283, 1.442695
        %v3369 = vpow.pop %v3368
        %v3370 = vmul.f32 %v3284, 1.442695
        %v3371 = vpow.pop %v3370
        %v3372 = vmul.f32 %v3285, 1.442695
        %v3373 = vpow.pop %v3372
        %v3374 = vmul.f32 %v3286, 1.442695
        %v3375 = vpow.pop %v3374
        %v3376 = vmul.f32 %v3287, 1.442695
        %v3377 = vpow.pop %v3376
        %v3378 = vmul.f32 %v3288, 1.442695
        %v3379 = vpow.pop %v3378
        %v3380 = vmul.f32 %v3289, 1.442695
        %v3381 = vpow.pop %v3380
        %v3382 = vmul.f32 %v3290, 1.442695
        %v3383 = vpow.pop %v3382
        %v3384 = vmul.f32 %v3291, 1.442695
        %v3385 = vpow.pop %v3384
        %v3386 = vmul.f32 %v3292, 1.442695
        %v3387 = vpow.pop %v3386
        %v3388 = vmul.f32 %v3293, 1.442695
        %v3389 = vpow.pop %v3388
        %v3390 = vmul.f32 %v3294, 1.442695
        %v3391 = vpow.pop %v3390
        %v3392 = vmul.f32 %v3295, 1.442695
        %v3393 = vpow.pop %v3392
        %v3394 = vmul.f32 %v3296, 1.442695
        %v3395 = vpow.pop %v3394
        %v3396 = vmul.f32 %v3297, 1.442695
        %v3397 = vpow.pop %v3396
        %v3398 = vmul.f32 %v3298, 1.442695
        %v3399 = vpow.pop %v3398
        %v3400 = vmul.f32 %v3299, 1.442695
        %v3401 = vpow.pop %v3400
        %v3402 = vmul.f32 %v3300, 1.442695
        %v3403 = vpow.pop %v3402
        %v3404 = vmul.f32 %v3301, 1.442695
        %v3405 = vpow.pop %v3404
        %v3406 = vmul.f32 %v3302, 1.442695
        %v3407 = vpow.pop %v3406
        %v3408 = vmul.f32 %v3303, 1.442695
        %v3409 = vpow.pop %v3408
        %v3410 = vmul.f32 %v3304, 1.442695
        %v3411 = vpow.pop %v3410
        %v3412 = vmul.f32 %v3305, 1.442695
        %v3413 = vpow.pop %v3412
        %v3414 = vmul.f32 %v3306, 1.442695
        %v3415 = vpow.pop %v3414
        %v3416 = vmul.f32 %v3307, 1.442695
        %v3417 = vpow.pop %v3416
        %v3418 = vmul.f32 %v3308, 1.442695
        %v3419 = vpow.pop %v3418
        %v3420 = vmul.f32 %v3309, 1.442695
        %v3421 = vpow.pop %v3420
        %v3422 = vmul.f32 %v3310, 1.442695
        %v3423 = vpow.pop %v3422
        %v3424 = vmul.f32 %v3311, 1.442695
        %v3425 = vpow.pop %v3424
        %v3426 = vmul.f32 %v3312, 1.442695
        %v3427 = vpow.pop %v3426
        %v3428 = vmul.f32 %v3313, 1.442695
        %v3429 = vpow.pop %v3428
        %v3430 = vmul.f32 %v3314, 1.442695
        %v3431 = vpow.pop %v3430
        %v3432 = vmul.f32 %v3315, 1.442695
        %v3433 = vpow.pop %v3432
        %v3434 = vmul.f32 %v3316, 1.442695
        %v3435 = vpow.pop %v3434
        %v3436 = vmul.f32 %v3317, 1.442695
        %v3437 = vpow.pop %v3436
        %v3438 = vmul.f32 %v3318, 1.442695
        %v3439 = vpow.pop %v3438
        %v3440 = vmul.f32 %v3319, 1.442695
        %v3441 = vpow.pop %v3440
        %v3442 = vmul.f32 %v3320, 1.442695
        %v3443 = vpow.pop %v3442
        %v3444 = vmul.f32 %v3321, 1.442695
        %v3445 = vpow.pop %v3444
        %v3446 = vmul.f32 %v3322, 1.442695
        %v3447 = vpow.pop %v3446
        %v3448 = vmul.f32 %v3323, 1.442695
        %v3449 = vpow.pop %v3448
        %v3450 = vmul.f32 %v3324, 1.442695
        %v3451 = vpow.pop %v3450
        %v3452 = vmul.f32 %v3325, 1.442695
        %v3453 = vpow.pop %v3452
        %v3454 = vadd.f32 %v3327, %v3329
        %v3455 = vadd.f32 %v3454, %v3331
        %v3456 = vadd.f32 %v3455, %v3333
        %3457 = vadd.xlane.f32.xlu0 %v3456
        %v3458 = vpop.xlane.xlu0 %3457
        %v3459 = vadd.f32 %v3335, %v3337
        %v3460 = vadd.f32 %v3459, %v3339
        %v3461 = vadd.f32 %v3460, %v3341
        %3462 = vadd.xlane.f32.xlu0 %v3461
        %v3463 = vpop.xlane.xlu0 %3462
        %v3464 = vadd.f32 %v3343, %v3345
        %v3465 = vadd.f32 %v3464, %v3347
        %v3466 = vadd.f32 %v3465, %v3349
        %3467 = vadd.xlane.f32.xlu0 %v3466
        %v3468 = vpop.xlane.xlu0 %3467
        %v3469 = vadd.f32 %v3351, %v3353
        %v3470 = vadd.f32 %v3469, %v3355
        %v3471 = vadd.f32 %v3470, %v3357
        %3472 = vadd.xlane.f32.xlu0 %v3471
        %v3473 = vpop.xlane.xlu0 %3472
        %v3474 = vadd.f32 %v3359, %v3361
        %v3475 = vadd.f32 %v3474, %v3363
        %v3476 = vadd.f32 %v3475, %v3365
        %3477 = vadd.xlane.f32.xlu0 %v3476
        %v3478 = vpop.xlane.xlu0 %3477
        %v3479 = vadd.f32 %v3367, %v3369
        %v3480 = vadd.f32 %v3479, %v3371
        %v3481 = vadd.f32 %v3480, %v3373
        %3482 = vadd.xlane.f32.xlu0 %v3481
        %v3483 = vpop.xlane.xlu0 %3482
        %v3484 = vadd.f32 %v3375, %v3377
        %v3485 = vadd.f32 %v3484, %v3379
        %v3486 = vadd.f32 %v3485, %v3381
        %3487 = vadd.xlane.f32.xlu0 %v3486
        %v3488 = vpop.xlane.xlu0 %3487
        %v3489 = vadd.f32 %v3383, %v3385
        %v3490 = vadd.f32 %v3489, %v3387
        %v3491 = vadd.f32 %v3490, %v3389
        %3492 = vadd.xlane.f32.xlu0 %v3491
        %v3493 = vpop.xlane.xlu0 %3492
        %v3494 = vadd.f32 %v3391, %v3393
        %v3495 = vadd.f32 %v3494, %v3395
        %v3496 = vadd.f32 %v3495, %v3397
        %3497 = vadd.xlane.f32.xlu0 %v3496
        %v3498 = vpop.xlane.xlu0 %3497
        %v3499 = vadd.f32 %v3399, %v3401
        %v3500 = vadd.f32 %v3499, %v3403
        %v3501 = vadd.f32 %v3500, %v3405
        %3502 = vadd.xlane.f32.xlu0 %v3501
        %v3503 = vpop.xlane.xlu0 %3502
        %v3504 = vadd.f32 %v3407, %v3409
        %v3505 = vadd.f32 %v3504, %v3411
        %v3506 = vadd.f32 %v3505, %v3413
        %3507 = vadd.xlane.f32.xlu0 %v3506
        %v3508 = vpop.xlane.xlu0 %3507
        %v3509 = vadd.f32 %v3415, %v3417
        %v3510 = vadd.f32 %v3509, %v3419
        %v3511 = vadd.f32 %v3510, %v3421
        %3512 = vadd.xlane.f32.xlu0 %v3511
        %v3513 = vpop.xlane.xlu0 %3512
        %v3514 = vadd.f32 %v3423, %v3425
        %v3515 = vadd.f32 %v3514, %v3427
        %v3516 = vadd.f32 %v3515, %v3429
        %3517 = vadd.xlane.f32.xlu0 %v3516
        %v3518 = vpop.xlane.xlu0 %3517
        %v3519 = vadd.f32 %v3431, %v3433
        %v3520 = vadd.f32 %v3519, %v3435
        %v3521 = vadd.f32 %v3520, %v3437
        %3522 = vadd.xlane.f32.xlu0 %v3521
        %v3523 = vpop.xlane.xlu0 %3522
        %v3524 = vadd.f32 %v3439, %v3441
        %v3525 = vadd.f32 %v3524, %v3443
        %v3526 = vadd.f32 %v3525, %v3445
        %3527 = vadd.xlane.f32.xlu0 %v3526
        %v3528 = vpop.xlane.xlu0 %3527
        %v3529 = vadd.f32 %v3447, %v3449
        %v3530 = vadd.f32 %v3529, %v3451
        %v3531 = vadd.f32 %v3530, %v3453
        %3532 = vadd.xlane.f32.xlu0 %v3531
        %v3533 = vpop.xlane.xlu0 %3532
        %v3534 = vrcp.pop %v3458
        %v3535 = vmul.f32 %v3327, %v3534
        %v3536 = vmul.f32 %v3329, %v3534
        %v3537 = vmul.f32 %v3331, %v3534
        %v3538 = vmul.f32 %v3333, %v3534
        %v3539 = vrcp.pop %v3463
        %v3540 = vmul.f32 %v3335, %v3539
        %v3541 = vmul.f32 %v3337, %v3539
        %v3542 = vmul.f32 %v3339, %v3539
        %v3543 = vmul.f32 %v3341, %v3539
        %v3544 = vrcp.pop %v3468
        %v3545 = vmul.f32 %v3343, %v3544
        %v3546 = vmul.f32 %v3345, %v3544
        %v3547 = vmul.f32 %v3347, %v3544
        %v3548 = vmul.f32 %v3349, %v3544
        %v3549 = vrcp.pop %v3473
        %v3550 = vmul.f32 %v3351, %v3549
        %v3551 = vmul.f32 %v3353, %v3549
        %v3552 = vmul.f32 %v3355, %v3549
        %v3553 = vmul.f32 %v3357, %v3549
        %v3554 = vrcp.pop %v3478
        %v3555 = vmul.f32 %v3359, %v3554
        %v3556 = vmul.f32 %v3361, %v3554
        %v3557 = vmul.f32 %v3363, %v3554
        %v3558 = vmul.f32 %v3365, %v3554
        %v3559 = vrcp.pop %v3483
        %v3560 = vmul.f32 %v3367, %v3559
        %v3561 = vmul.f32 %v3369, %v3559
        %v3562 = vmul.f32 %v3371, %v3559
        %v3563 = vmul.f32 %v3373, %v3559
        %v3564 = vrcp.pop %v3488
        %v3565 = vmul.f32 %v3375, %v3564
        %v3566 = vmul.f32 %v3377, %v3564
        %v3567 = vmul.f32 %v3379, %v3564
        %v3568 = vmul.f32 %v3381, %v3564
        %v3569 = vrcp.pop %v3493
        %v3570 = vmul.f32 %v3383, %v3569
        %v3571 = vmul.f32 %v3385, %v3569
        %v3572 = vmul.f32 %v3387, %v3569
        %v3573 = vmul.f32 %v3389, %v3569
        %v3574 = vrcp.pop %v3498
        %v3575 = vmul.f32 %v3391, %v3574
        %v3576 = vmul.f32 %v3393, %v3574
        %v3577 = vmul.f32 %v3395, %v3574
        %v3578 = vmul.f32 %v3397, %v3574
        %v3579 = vrcp.pop %v3503
        %v3580 = vmul.f32 %v3399, %v3579
        %v3581 = vmul.f32 %v3401, %v3579
        %v3582 = vmul.f32 %v3403, %v3579
        %v3583 = vmul.f32 %v3405, %v3579
        %v3584 = vrcp.pop %v3508
        %v3585 = vmul.f32 %v3407, %v3584
        %v3586 = vmul.f32 %v3409, %v3584
        %v3587 = vmul.f32 %v3411, %v3584
        %v3588 = vmul.f32 %v3413, %v3584
        %v3589 = vrcp.pop %v3513
        %v3590 = vmul.f32 %v3415, %v3589
        %v3591 = vmul.f32 %v3417, %v3589
        %v3592 = vmul.f32 %v3419, %v3589
        %v3593 = vmul.f32 %v3421, %v3589
        %v3594 = vrcp.pop %v3518
        %v3595 = vmul.f32 %v3423, %v3594
        %v3596 = vmul.f32 %v3425, %v3594
        %v3597 = vmul.f32 %v3427, %v3594
        %v3598 = vmul.f32 %v3429, %v3594
        %v3599 = vrcp.pop %v3523
        %v3600 = vmul.f32 %v3431, %v3599
        %v3601 = vmul.f32 %v3433, %v3599
        %v3602 = vmul.f32 %v3435, %v3599
        %v3603 = vmul.f32 %v3437, %v3599
        %v3604 = vrcp.pop %v3528
        %v3605 = vmul.f32 %v3439, %v3604
        %v3606 = vmul.f32 %v3441, %v3604
        %v3607 = vmul.f32 %v3443, %v3604
        %v3608 = vmul.f32 %v3445, %v3604
        %v3609 = vrcp.pop %v3533
        %v3610 = vmul.f32 %v3447, %v3609
        %v3611 = vmul.f32 %v3449, %v3609
        %v3612 = vmul.f32 %v3451, %v3609
        %v3613 = vmul.f32 %v3453, %v3609
        %v3614 = vpack.c.bf16 %v3540, %v3535
        %v3615 = vpack.c.bf16 %v3541, %v3536
        %v3616 = vpack.c.bf16 %v3542, %v3537
        %v3617 = vpack.c.bf16 %v3543, %v3538
        %v3618 = vpack.c.bf16 %v3550, %v3545
        %v3619 = vpack.c.bf16 %v3551, %v3546
        %v3620 = vpack.c.bf16 %v3552, %v3547
        %v3621 = vpack.c.bf16 %v3553, %v3548
        %v3622 = vpack.c.bf16 %v3560, %v3555
        %v3623 = vpack.c.bf16 %v3561, %v3556
        %v3624 = vpack.c.bf16 %v3562, %v3557
        %v3625 = vpack.c.bf16 %v3563, %v3558
        %v3626 = vpack.c.bf16 %v3570, %v3565
        %v3627 = vpack.c.bf16 %v3571, %v3566
        %v3628 = vpack.c.bf16 %v3572, %v3567
        %v3629 = vpack.c.bf16 %v3573, %v3568
        %v3630 = vpack.c.bf16 %v3580, %v3575
        %v3631 = vpack.c.bf16 %v3581, %v3576
        %v3632 = vpack.c.bf16 %v3582, %v3577
        %v3633 = vpack.c.bf16 %v3583, %v3578
        %v3634 = vpack.c.bf16 %v3590, %v3585
        %v3635 = vpack.c.bf16 %v3591, %v3586
        %v3636 = vpack.c.bf16 %v3592, %v3587
        %v3637 = vpack.c.bf16 %v3593, %v3588
        %v3638 = vpack.c.bf16 %v3600, %v3595
        %v3639 = vpack.c.bf16 %v3601, %v3596
        %v3640 = vpack.c.bf16 %v3602, %v3597
        %v3641 = vpack.c.bf16 %v3603, %v3598
        %v3642 = vpack.c.bf16 %v3610, %v3605
        %v3643 = vpack.c.bf16 %v3611, %v3606
        %v3644 = vpack.c.bf16 %v3612, %v3607
        %v3645 = vpack.c.bf16 %v3613, %v3608
        %v3678 = vunpack.c.l.b16 %v3614
        %v3679 = vunpack.c.l.b16 %v3615
        %v3680 = vunpack.c.l.b16 %v3616
        %v3681 = vunpack.c.l.b16 %v3617
        %v3682 = vunpack.c.h.b16 %v3614
        %v3683 = vunpack.c.h.b16 %v3615
        %v3684 = vunpack.c.h.b16 %v3616
        %v3685 = vunpack.c.h.b16 %v3617
        %v3686 = vunpack.c.l.b16 %v3618
        %v3687 = vunpack.c.l.b16 %v3619
        %v3688 = vunpack.c.l.b16 %v3620
        %v3689 = vunpack.c.l.b16 %v3621
        %v3690 = vunpack.c.h.b16 %v3618
        %v3691 = vunpack.c.h.b16 %v3619
        %v3692 = vunpack.c.h.b16 %v3620
        %v3693 = vunpack.c.h.b16 %v3621
        %v3694 = vunpack.c.l.b16 %v3622
        %v3695 = vunpack.c.l.b16 %v3623
        %v3696 = vunpack.c.l.b16 %v3624
        %v3697 = vunpack.c.l.b16 %v3625
        %v3698 = vunpack.c.h.b16 %v3622
        %v3699 = vunpack.c.h.b16 %v3623
        %v3700 = vunpack.c.h.b16 %v3624
        %v3701 = vunpack.c.h.b16 %v3625
        %v3702 = vunpack.c.l.b16 %v3626
        %v3703 = vunpack.c.l.b16 %v3627
        %v3704 = vunpack.c.l.b16 %v3628
        %v3705 = vunpack.c.l.b16 %v3629
        %v3706 = vunpack.c.h.b16 %v3626
        %v3707 = vunpack.c.h.b16 %v3627
        %v3708 = vunpack.c.h.b16 %v3628
        %v3709 = vunpack.c.h.b16 %v3629
        %v3710 = vunpack.c.l.b16 %v3630
        %v3711 = vunpack.c.l.b16 %v3631
        %v3712 = vunpack.c.l.b16 %v3632
        %v3713 = vunpack.c.l.b16 %v3633
        %v3714 = vunpack.c.h.b16 %v3630
        %v3715 = vunpack.c.h.b16 %v3631
        %v3716 = vunpack.c.h.b16 %v3632
        %v3717 = vunpack.c.h.b16 %v3633
        %v3718 = vunpack.c.l.b16 %v3634
        %v3719 = vunpack.c.l.b16 %v3635
        %v3720 = vunpack.c.l.b16 %v3636
        %v3721 = vunpack.c.l.b16 %v3637
        %v3722 = vunpack.c.h.b16 %v3634
        %v3723 = vunpack.c.h.b16 %v3635
        %v3724 = vunpack.c.h.b16 %v3636
        %v3725 = vunpack.c.h.b16 %v3637
        %v3726 = vunpack.c.l.b16 %v3638
        %v3727 = vunpack.c.l.b16 %v3639
        %v3728 = vunpack.c.l.b16 %v3640
        %v3729 = vunpack.c.l.b16 %v3641
        %v3730 = vunpack.c.h.b16 %v3638
        %v3731 = vunpack.c.h.b16 %v3639
        %v3732 = vunpack.c.h.b16 %v3640
        %v3733 = vunpack.c.h.b16 %v3641
        %v3734 = vunpack.c.l.b16 %v3642
        %v3735 = vunpack.c.l.b16 %v3643
        %v3736 = vunpack.c.l.b16 %v3644
        %v3737 = vunpack.c.l.b16 %v3645
        %v3738 = vunpack.c.h.b16 %v3642
        %v3739 = vunpack.c.h.b16 %v3643
        %v3740 = vunpack.c.h.b16 %v3644
        %v3741 = vunpack.c.h.b16 %v3645
        %v3742 = vpack.c.b16 %v3679, %v3678
        %v3743 = vpack.c.b16 %v3681, %v3680
        %v3744 = vpack.c.b16 %v3683, %v3682
        %v3745 = vpack.c.b16 %v3685, %v3684
        %v3746 = vpack.c.b16 %v3687, %v3686
        %v3747 = vpack.c.b16 %v3689, %v3688
        %v3748 = vpack.c.b16 %v3691, %v3690
        %v3749 = vpack.c.b16 %v3693, %v3692
        %v3750 = vpack.c.b16 %v3695, %v3694
        %v3751 = vpack.c.b16 %v3697, %v3696
        %v3752 = vpack.c.b16 %v3699, %v3698
        %v3753 = vpack.c.b16 %v3701, %v3700
        %v3754 = vpack.c.b16 %v3703, %v3702
        %v3755 = vpack.c.b16 %v3705, %v3704
        %v3756 = vpack.c.b16 %v3707, %v3706
        %v3757 = vpack.c.b16 %v3709, %v3708
        %v3758 = vpack.c.b16 %v3711, %v3710
        %v3759 = vpack.c.b16 %v3713, %v3712
        %v3760 = vpack.c.b16 %v3715, %v3714
        %v3761 = vpack.c.b16 %v3717, %v3716
        %v3762 = vpack.c.b16 %v3719, %v3718
        %v3763 = vpack.c.b16 %v3721, %v3720
        %v3764 = vpack.c.b16 %v3723, %v3722
        %v3765 = vpack.c.b16 %v3725, %v3724
        %v3766 = vpack.c.b16 %v3727, %v3726
        %v3767 = vpack.c.b16 %v3729, %v3728
        %v3768 = vpack.c.b16 %v3731, %v3730
        %v3769 = vpack.c.b16 %v3733, %v3732
        %v3770 = vpack.c.b16 %v3735, %v3734
        %v3771 = vpack.c.b16 %v3737, %v3736
        %v3772 = vpack.c.b16 %v3739, %v3738
        %v3773 = vpack.c.b16 %v3741, %v3740
        %3806 = vst [vmem:[%s553] sm:$0xff] %v3742
        %3807 = vst [vmem:[%s553 + $0x8] sm:$0xff] %v3743
        %3808 = vst [vmem:[%s553 + $0x10] sm:$0xff] %v3744
        %3809 = vst [vmem:[%s553 + $0x18] sm:$0xff] %v3745
        %3810 = vst [vmem:[%s553 + $0x20] sm:$0xff] %v3746
        %3811 = vst [vmem:[%s553 + $0x28] sm:$0xff] %v3747
        %3812 = vst [vmem:[%s553 + $0x30] sm:$0xff] %v3748
        %3813 = vst [vmem:[%s553 + $0x38] sm:$0xff] %v3749
        %3814 = vst [vmem:[%s553 + $0x40] sm:$0xff] %v3750
        %3815 = vst [vmem:[%s553 + $0x48] sm:$0xff] %v3751
        %3816 = vst [vmem:[%s553 + $0x50] sm:$0xff] %v3752
        %3817 = vst [vmem:[%s553 + $0x58] sm:$0xff] %v3753
        %3818 = vst [vmem:[%s553 + $0x60] sm:$0xff] %v3754
        %3819 = vst [vmem:[%s553 + $0x68] sm:$0xff] %v3755
        %3820 = vst [vmem:[%s553 + $0x70] sm:$0xff] %v3756
        %3821 = vst [vmem:[%s553 + $0x78] sm:$0xff] %v3757
        %3822 = vst [vmem:[%s553 + $0x80] sm:$0xff] %v3758
        %3823 = vst [vmem:[%s553 + $0x88] sm:$0xff] %v3759
        %3824 = vst [vmem:[%s553 + $0x90] sm:$0xff] %v3760
        %3825 = vst [vmem:[%s553 + $0x98] sm:$0xff] %v3761
        %3826 = vst [vmem:[%s553 + $0xa0] sm:$0xff] %v3762
        %3827 = vst [vmem:[%s553 + $0xa8] sm:$0xff] %v3763
        %3828 = vst [vmem:[%s553 + $0xb0] sm:$0xff] %v3764
        %3829 = vst [vmem:[%s553 + $0xb8] sm:$0xff] %v3765
        %3830 = vst [vmem:[%s553 + $0xc0] sm:$0xff] %v3766
        %3831 = vst [vmem:[%s553 + $0xc8] sm:$0xff] %v3767
        %3832 = vst [vmem:[%s553 + $0xd0] sm:$0xff] %v3768
        %3833 = vst [vmem:[%s553 + $0xd8] sm:$0xff] %v3769
        %3834 = vst [vmem:[%s553 + $0xe0] sm:$0xff] %v3770
        %3835 = vst [vmem:[%s553 + $0xe8] sm:$0xff] %v3771
        %3836 = vst [vmem:[%s553 + $0xf0] sm:$0xff] %v3772
        %3837 = vst [vmem:[%s553 + $0xf8] sm:$0xff] %v3773
        %s3838 = sand.u32 %s289, 1
        %s3839 = scalar_lea.sflag [#allocation4], %s3838
        %s3840 = sand.u32 %s289, 1
        %s3841 = smul.addr %s3840, 256
        %s3842 = scalar_lea.vmem [#allocation10], %s3841
        %s3843 = sand.u32 %s40, 1
        %s3844 = scalar_lea.sflag [#allocation12], %s3843
        %s3845 = sand.u32 %s315, 1
        %s3846 = smul.addr %s3845, 128
        %s3847 = scalar_lea.vmem [#allocation11], %s3846
        %s3848 = sand.u32 %s40, 1
        %s3849 = scalar_lea.sflag [#allocation12], %s3848
        %s3850 = sand.u32 %s341, 1
        %s3851 = smul.addr %s3850, 128
        %s3852 = scalar_lea.vmem [#allocation13], %s3851
        %s3853 = sand.u32 %s367, 1
        %s3854 = scalar_lea.sflag [#allocation15], %s3853
        %s3855 = sand.u32 %s367, 1
        %s3856 = smul.addr %s3855, 256
        %s3857 = scalar_lea.vmem [#allocation14], %s3856
        // Predicated region
        $region81: #{tpu_custom_call.1} parent=63 // pred_check
          %p3858 = pneg %p299
        $region82: #{tpu_custom_call.1} parent=63 // pred_check_branch
          %3860 = sbr.rel (%p3858) target = $region84
        $region83: #{tpu_custom_call.1} parent=63 // pred_region
          %s3861 = smul.u32 16, %s40
          %s3863 = ssub.s32 4096, 4096
          %3864 = vsyncadd %s3839, %s3863
          %s3865 = smul.addr %s3861, 4
          %s3866 = smul.addr %s3865, 64
          %s3867 = scalar_lea.hbm %s11, %s3866
          %s3868 = sshll.u32 %s3842, 4
          %s3869 = int_to_ptr.vmem [resolvable:$true] %s3868
          %3874 = dma.vmem_to_hbm [thread:$0]  %s3869, 4096, %s3867, %s3839, 256, 256, 16
        $region84: #{tpu_custom_call.1} parent=63 // pred_fallthru
          _
        // Predicated region
        $region85: #{tpu_custom_call.1} parent=63 // pred_check
          %p3875 = pneg %p325
        $region86: #{tpu_custom_call.1} parent=63 // pred_check_branch
          %3877 = sbr.rel (%p3875) target = $region88
        $region87: #{tpu_custom_call.1} parent=63 // pred_region
          %s3878 = smul.u32 16, %s40
          %s3880 = ssub.s32 2048, 2048
          %3881 = vsyncadd %s3844, %s3880
          %s3882 = smul.addr %s3878, 128
          %s3883 = scalar_lea.hbm %s12, %s3882
          %s3884 = sshll.u32 %s3847, 4
          %s3885 = int_to_ptr.vmem [resolvable:$true] %s3884
          %3890 = dma.vmem_to_hbm [thread:$0]  %s3885, 2048, %s3883, %s3844, 128, 128, 8
        $region88: #{tpu_custom_call.1} parent=63 // pred_fallthru
          _
        // Predicated region
        $region89: #{tpu_custom_call.1} parent=63 // pred_check
          %p3891 = pneg %p351
        $region90: #{tpu_custom_call.1} parent=63 // pred_check_branch
          %3893 = sbr.rel (%p3891) target = $region92
        $region91: #{tpu_custom_call.1} parent=63 // pred_region
          %s3894 = smul.u32 16, %s40
          %s3896 = ssub.s32 2048, 2048
          %3897 = vsyncadd %s3849, %s3896
          %s3898 = smul.addr %s3894, 128
          %s3899 = scalar_lea.hbm %s13, %s3898
          %s3900 = sshll.u32 %s3852, 4
          %s3901 = int_to_ptr.vmem [resolvable:$true] %s3900
          %3906 = dma.vmem_to_hbm [thread:$0]  %s3901, 2048, %s3899, %s3849, 128, 128, 8
        $region92: #{tpu_custom_call.1} parent=63 // pred_fallthru
          _
        // Predicated region
        $region93: #{tpu_custom_call.1} parent=63 // pred_check
          %p3907 = pneg %p377
        $region94: #{tpu_custom_call.1} parent=63 // pred_check_branch
          %3909 = sbr.rel (%p3907) target = $region96
        $region95: #{tpu_custom_call.1} parent=63 // pred_region
          %s3910 = smul.u32 16, %s40
          %s3912 = ssub.s32 4096, 4096
          %3913 = vsyncadd %s3854, %s3912
          %s3914 = smul.addr %s3910, 4
          %s3915 = smul.addr %s3914, 64
          %s3916 = scalar_lea.hbm %s14, %s3915
          %s3917 = sshll.u32 %s3857, 4
          %s3918 = int_to_ptr.vmem [resolvable:$true] %s3917
          %3923 = dma.vmem_to_hbm [thread:$0]  %s3918, 4096, %s3916, %s3854, 256, 256, 16
        $region96: #{tpu_custom_call.1} parent=63 // pred_fallthru
          _
      $region64: #{tpu_custom_call.1} parent=5 // pred_fallthru
        _
      %p3924 = scmp.le.s32.totalorder 2, %s35
      // Predicated region
      $region97: #{tpu_custom_call.1} parent=5 // pred_check
        %p3925 = pneg %p3924
      $region98: #{tpu_custom_call.1} parent=5 // pred_check_branch
        %3927 = sbr.rel (%p3925) target = $region100
      $region99: #{tpu_custom_call.1} parent=5 // pred_region
        %s3928 = ssub.s32 %s35, 2
        // Predicated region
        $region101: #{tpu_custom_call.1} parent=99 // pred_check
          %p3929 = pneg %p305
        $region102: #{tpu_custom_call.1} parent=99 // pred_check_branch
          %3931 = sbr.rel (%p3929) target = $region104
        $region103: #{tpu_custom_call.1} parent=99 // pred_region
          %s3932 = sand.u32 %s290, 1
          %s3933 = scalar_lea.sflag [#allocation4], %s3932
          %s3934 = sand.u32 %s290, 1
          %s3935 = smul.addr %s3934, 256
          %s3936 = scalar_lea.vmem [#allocation10], %s3935
          %3937 = dma.done %s3933, 4096
        $region104: #{tpu_custom_call.1} parent=99 // pred_fallthru
          _
        // Predicated region
        $region105: #{tpu_custom_call.1} parent=99 // pred_check
          %p3938 = pneg %p331
        $region106: #{tpu_custom_call.1} parent=99 // pred_check_branch
          %3940 = sbr.rel (%p3938) target = $region108
        $region107: #{tpu_custom_call.1} parent=99 // pred_region
          %s3941 = sand.u32 %s41, 1
          %s3942 = scalar_lea.sflag [#allocation12], %s3941
          %s3943 = sand.u32 %s316, 1
          %s3944 = smul.addr %s3943, 128
          %s3945 = scalar_lea.vmem [#allocation11], %s3944
          %3946 = dma.done %s3942, 2048
        $region108: #{tpu_custom_call.1} parent=99 // pred_fallthru
          _
        // Predicated region
        $region109: #{tpu_custom_call.1} parent=99 // pred_check
          %p3947 = pneg %p357
        $region110: #{tpu_custom_call.1} parent=99 // pred_check_branch
          %3949 = sbr.rel (%p3947) target = $region112
        $region111: #{tpu_custom_call.1} parent=99 // pred_region
          %s3950 = sand.u32 %s41, 1
          %s3951 = scalar_lea.sflag [#allocation12], %s3950
          %s3952 = sand.u32 %s342, 1
          %s3953 = smul.addr %s3952, 128
          %s3954 = scalar_lea.vmem [#allocation13], %s3953
          %3955 = dma.done %s3951, 2048
        $region112: #{tpu_custom_call.1} parent=99 // pred_fallthru
          _
        // Predicated region
        $region113: #{tpu_custom_call.1} parent=99 // pred_check
          %p3956 = pneg %p383
        $region114: #{tpu_custom_call.1} parent=99 // pred_check_branch
          %3958 = sbr.rel (%p3956) target = $region116
        $region115: #{tpu_custom_call.1} parent=99 // pred_region
          %s3959 = sand.u32 %s368, 1
          %s3960 = scalar_lea.sflag [#allocation15], %s3959
          %s3961 = sand.u32 %s368, 1
          %s3962 = smul.addr %s3961, 256
          %s3963 = scalar_lea.vmem [#allocation14], %s3962
          %3964 = dma.done %s3960, 4096
        $region116: #{tpu_custom_call.1} parent=99 // pred_fallthru
          _
      $region100: #{tpu_custom_call.1} parent=5 // pred_fallthru
        _
    $region6: #{tpu_custom_call.1} parent=1 // loop_footer
      %s39 = sadd.s32 1, %s35
    $region7: #{tpu_custom_call.1} parent=1 // loop_footer_branch
      %34 = sbr.rel target = $region3
    $region8: #{tpu_custom_call.1} parent=1 // loop_exit
      _
    %3965 = vsyncpa [#allocation3], 1
    %s3966 = scalar_lea.sflag [#allocation3], 1
    %3967 = vsyncpa %s3966, 1
    %3968 = vsyncpa [#allocation6], 1
    %3969 = vsyncpa [#allocation9], 1
    %3970 = vsyncpa [#allocation4], 1
    %s3971 = scalar_lea.sflag [#allocation4], 1
    %3972 = vsyncpa %s3971, 1
    %3973 = vsyncpa [#allocation12], 1
    %s3974 = scalar_lea.sflag [#allocation12], 1
    %3975 = vsyncpa %s3974, 1
    %3976 = vsyncpa [#allocation15], 1
    %s3977 = scalar_lea.sflag [#allocation15], 1
    %3978 = vsyncpa %s3977, 1

// kernel: tpu_custom_call.1
$region0: #{tpu_custom_call.1}
  #allocation0 [shape = 'u32[]', space=smem, size = 0x4, offset = 0x4, fixed_abs, tag = 'smem constant byte address 0x4 - core index']
  #allocation1 [shape = 'u32[144,128]{1,0:T(1,128)}', space=vmem, size = 0x12000, scoped, tag = 'internal scratch']
  %s0 = inlined_call_operand.hbm [shape: bf16[256,512], index: 0, kind: input, shape index: {}]
  %s1 = inlined_call_operand.vmem [shape: f32[256,64], index: 1, kind: input, shape index: {}]
  %s2 = inlined_call_operand.vmem [shape: bf16[512,128], index: 2, kind: input, shape index: {}]
  %s3 = inlined_call_operand.hbm [shape: bf16[128,128], index: 3, kind: input, shape index: {}]
  %s4 = inlined_call_operand.vmem [shape: f32[1,128], index: 4, kind: input, shape index: {}]
  %s5 = inlined_call_operand.hbm [shape: bf16[128,128], index: 5, kind: input, shape index: {}]
  %s6 = inlined_call_operand.vmem [shape: f32[1,128], index: 6, kind: input, shape index: {}]
  %s7 = inlined_call_operand.hbm [shape: bf16[64,64], index: 7, kind: input, shape index: {}]
  %s8 = inlined_call_operand.vmem [shape: f32[1,64], index: 8, kind: input, shape index: {}]
  %s9 = inlined_call_operand.vmem [shape: bf16[64,512], index: 9, kind: input, shape index: {}]
  %s10 = inlined_call_operand.vmem [shape: f32[1,512], index: 10, kind: input, shape index: {}]
  %s11 = inlined_call_operand.hbm [shape: bf16[256,512], index: 11, kind: output, shape index: {0}]
  %s12 = inlined_call_operand.hbm [shape: f32[256,128], index: 12, kind: output, shape index: {1}]
  %s13 = inlined_call_operand.hbm [shape: f32[256,128], index: 13, kind: output, shape index: {2}]
  %s14 = inlined_call_operand.hbm [shape: bf16[256,512], index: 14, kind: output, shape index: {3}]
  %15 = xla_tuple %s11, %s12, %s13, %s14
  %s16 = sld [smem:[#allocation0]]
  $region117: #{tpu_custom_call.1} parent=0
    _
  %s18 = ssub.s32 1, %s16
  %s19 = scalar_select 0, %s18, %s16
  $region1: #{tpu_custom_call.1} parent=0
    #allocation2 [shape = 'u8[262144]{0}', space=vmem, size = 0x40000, scoped, tag = 'input window, operand 0']
    #allocation3 [shape = 's32[2]{0}', space=sflag, size = 0x8, scoped, tag = 'scoped memory for tpu_custom_call.1']
    #allocation4 [shape = 's32[2]{0}', space=sflag, size = 0x8, scoped, tag = 'scoped memory for tpu_custom_call.1']
    #allocation5 [shape = 'u8[32768]{0}', space=vmem, size = 0x8000, scoped, tag = 'input window, operand 3, single buffered']
    #allocation6 [shape = 's32[1]{0}', space=sflag, size = 0x4, scoped, tag = 'scoped memory for tpu_custom_call.1']
    #allocation7 [shape = 'u8[32768]{0}', space=vmem, size = 0x8000, scoped, tag = 'input window, operand 5, single buffered']
    #allocation8 [shape = 'u8[16384]{0}', space=vmem, size = 0x4000, scoped, tag = 'input window, operand 7, single buffered']
    #allocation9 [shape = 's32[1]{0}', space=sflag, size = 0x4, scoped, tag = 'scoped memory for tpu_custom_call.1']
    #allocation10 [shape = 'u8[262144]{0}', space=vmem, size = 0x40000, scoped, tag = 'output window, operand 0']
    #allocation11 [shape = 'u8[131072]{0}', space=vmem, size = 0x20000, scoped, tag = 'output window, operand 1']
    #allocation12 [shape = 's32[2]{0}', space=sflag, size = 0x8, scoped, tag = 'scoped memory for tpu_custom_call.1']
    #allocation13 [shape = 'u8[131072]{0}', space=vmem, size = 0x20000, scoped, tag = 'output window, operand 2']
    #allocation14 [shape = 'u8[262144]{0}', space=vmem, size = 0x40000, scoped, tag = 'output window, operand 3']
    #allocation15 [shape = 's32[2]{0}', space=sflag, size = 0x8, scoped, tag = 'scoped memory for tpu_custom_call.1']
    %20 = vsyncpa [#allocation3], 0
    %s21 = scalar_lea.sflag [#allocation3], 1
    %22 = vsyncpa %s21, 0
    %23 = vsyncpa [#allocation6], 0
    %24 = vsyncpa [#allocation9], 0
    %25 = vsyncpa [#allocation4], 0
    %s26 = scalar_lea.sflag [#allocation4], 1
    %27 = vsyncpa %s26, 0
    %28 = vsyncpa [#allocation12], 0
    %s29 = scalar_lea.sflag [#allocation12], 1
    %30 = vsyncpa %s29, 0
    %31 = vsyncpa [#allocation15], 0
    %s32 = scalar_lea.sflag [#allocation15], 1
    %33 = vsyncpa %s32, 0
    loop: start=0, step=1, limit=4
    $region2: #{tpu_custom_call.1} parent=1 // loop_pre_header
      _
    $region3: #{tpu_custom_call.1} parent=1 // loop_header
      %s35 = sphi 0, %s39
      %p36 = scmp.ge.s32.totalorder %s35, 4
      %s45 = sphi 0, %s47
      %s48 = sphi 0, %s45
      %s49 = sphi 0, %s48
      %s65 = sphi 0, %s49
      %s71 = sphi 0, %s73
      %s74 = sphi 0, %s71
      %s75 = sphi 0, %s74
      %s91 = sphi 0, %s75
      %s95 = sphi 0, %s95
      %s97 = sphi 0, %s95
      %s98 = sphi 0, %s97
      %s112 = sphi 0, %s98
      %s116 = sphi 0, %s116
      %s118 = sphi 0, %s116
      %s119 = sphi 0, %s118
      %s133 = sphi 0, %s119
      %s137 = sphi 0, %s137
      %s139 = sphi 0, %s137
      %s140 = sphi 0, %s139
      %s154 = sphi 0, %s140
      %s158 = sphi 0, %s158
      %s160 = sphi 0, %s158
      %s161 = sphi 0, %s160
      %s175 = sphi 0, %s161
      %s179 = sphi 0, %s179
      %s181 = sphi 0, %s179
      %s182 = sphi 0, %s181
      %s196 = sphi 0, %s182
      %s200 = sphi 0, %s200
      %s202 = sphi 0, %s200
      %s203 = sphi 0, %s202
      %s217 = sphi 0, %s203
      %s221 = sphi 0, %s221
      %s223 = sphi 0, %s221
      %s224 = sphi 0, %s223
      %s238 = sphi 0, %s224
      %s242 = sphi 0, %s242
      %s244 = sphi 0, %s242
      %s245 = sphi 0, %s244
      %s259 = sphi 0, %s245
      %s263 = sphi 0, %s263
      %s265 = sphi 0, %s263
      %s266 = sphi 0, %s265
      %s280 = sphi 0, %s266
      %s286 = sphi 0, %s288
      %s289 = sphi 0, %s286
      %s290 = sphi 0, %s289
      %s306 = sphi 0, %s290
      %s312 = sphi 0, %s314
      %s315 = sphi 0, %s312
      %s316 = sphi 0, %s315
      %s332 = sphi 0, %s316
      %s338 = sphi 0, %s340
      %s341 = sphi 0, %s338
      %s342 = sphi 0, %s341
      %s358 = sphi 0, %s342
      %s364 = sphi 0, %s366
      %s367 = sphi 0, %s364
      %s368 = sphi 0, %s367
      %s384 = sphi 0, %s368
    $region4: #{tpu_custom_call.1} parent=1 // loop_header_branch
      %38 = sbr.rel (%p36) target = $region8
    $region5: #{tpu_custom_call.1} parent=1 // loop_body
      %s40 = ssub.s32 %s35, 1
      %s41 = ssub.s32 %s35, 2
      %s42 = sadd.s32 %s35, 1
      %s43 = ssub.s32 %s35, %s42
      %p44 = scmp.eq.s32.totalorder %s43, 0
      %s46 = sadd.s32 %s45, 1
      %s47 = scalar_select %p44, %s45, %s46
      %p50 = pneg %p44
      %p51 = scmp.eq.s32.totalorder %s35, 1
      %p52 = por %p50, %p51
      %p53 = scmp.ne.s32.totalorder %s45, %s48
      %p54 = scmp.eq.s32.totalorder %s35, 0
      %p55 = por %p53, %p54
      %p56 = scmp.ne.s32.totalorder %s45, %s48
      %p57 = scmp.eq.s32.totalorder %s40, 1
      %p58 = por %p56, %p57
      %p59 = scmp.ne.s32.totalorder %s48, %s49
      %p60 = scmp.eq.s32.totalorder %s40, 0
      %p61 = por %p59, %p60
      %p62 = scmp.ne.s32.totalorder %s48, %s49
      %p63 = scmp.eq.s32.totalorder %s41, 1
      %p64 = por %p62, %p63
      %p66 = scmp.ne.s32.totalorder %s49, %s65
      %p67 = scmp.eq.s32.totalorder %s41, 0
      %p68 = por %p66, %p67
      %s69 = ssub.s32 %s35, %s42
      %p70 = scmp.eq.s32.totalorder %s69, 0
      %s72 = sadd.s32 %s71, 1
      %s73 = scalar_select %p70, %s71, %s72
      %p76 = pneg %p70
      %p77 = scmp.eq.s32.totalorder %s35, 1
      %p78 = por %p76, %p77
      %p79 = scmp.ne.s32.totalorder %s71, %s74
      %p80 = scmp.eq.s32.totalorder %s35, 0
      %p81 = por %p79, %p80
      %p82 = scmp.ne.s32.totalorder %s71, %s74
      %p83 = scmp.eq.s32.totalorder %s40, 1
      %p84 = por %p82, %p83
      %p85 = scmp.ne.s32.totalorder %s74, %s75
      %p86 = scmp.eq.s32.totalorder %s40, 0
      %p87 = por %p85, %p86
      %p88 = scmp.ne.s32.totalorder %s74, %s75
      %p89 = scmp.eq.s32.totalorder %s41, 1
      %p90 = por %p88, %p89
      %p92 = scmp.ne.s32.totalorder %s75, %s91
      %p93 = scmp.eq.s32.totalorder %s41, 0
      %p94 = por %p92, %p93
      %s96 = sadd.s32 %s95, 1
      %p99 = scmp.eq.s32.totalorder %s35, 1
      %p100 = scmp.ne.s32.totalorder %s95, %s97
      %p101 = scmp.eq.s32.totalorder %s35, 0
      %p102 = por %p100, %p101
      %p103 = scmp.ne.s32.totalorder %s95, %s97
      %p104 = scmp.eq.s32.totalorder %s40, 1
      %p105 = por %p103, %p104
      %p106 = scmp.ne.s32.totalorder %s97, %s98
      %p107 = scmp.eq.s32.totalorder %s40, 0
      %p108 = por %p106, %p107
      %p109 = scmp.ne.s32.totalorder %s97, %s98
      %p110 = scmp.eq.s32.totalorder %s41, 1
      %p111 = por %p109, %p110
      %p113 = scmp.ne.s32.totalorder %s98, %s112
      %p114 = scmp.eq.s32.totalorder %s41, 0
      %p115 = por %p113, %p114
      %s117 = sadd.s32 %s116, 1
      %p120 = scmp.eq.s32.totalorder %s35, 1
      %p121 = scmp.ne.s32.totalorder %s116, %s118
      %p122 = scmp.eq.s32.totalorder %s35, 0
      %p123 = por %p121, %p122
      %p124 = scmp.ne.s32.totalorder %s116, %s118
      %p125 = scmp.eq.s32.totalorder %s40, 1
      %p126 = por %p124, %p125
      %p127 = scmp.ne.s32.totalorder %s118, %s119
      %p128 = scmp.eq.s32.totalorder %s40, 0
      %p129 = por %p127, %p128
      %p130 = scmp.ne.s32.totalorder %s118, %s119
      %p131 = scmp.eq.s32.totalorder %s41, 1
      %p132 = por %p130, %p131
      %p134 = scmp.ne.s32.totalorder %s119, %s133
      %p135 = scmp.eq.s32.totalorder %s41, 0
      %p136 = por %p134, %p135
      %s138 = sadd.s32 %s137, 1
      %p141 = scmp.eq.s32.totalorder %s35, 1
      %p142 = scmp.ne.s32.totalorder %s137, %s139
      %p143 = scmp.eq.s32.totalorder %s35, 0
      %p144 = por %p142, %p143
      %p145 = scmp.ne.s32.totalorder %s137, %s139
      %p146 = scmp.eq.s32.totalorder %s40, 1
      %p147 = por %p145, %p146
      %p148 = scmp.ne.s32.totalorder %s139, %s140
      %p149 = scmp.eq.s32.totalorder %s40, 0
      %p150 = por %p148, %p149
      %p151 = scmp.ne.s32.totalorder %s139, %s140
      %p152 = scmp.eq.s32.totalorder %s41, 1
      %p153 = por %p151, %p152
      %p155 = scmp.ne.s32.totalorder %s140, %s154
      %p156 = scmp.eq.s32.totalorder %s41, 0
      %p157 = por %p155, %p156
      %s159 = sadd.s32 %s158, 1
      %p162 = scmp.eq.s32.totalorder %s35, 1
      %p163 = scmp.ne.s32.totalorder %s158, %s160
      %p164 = scmp.eq.s32.totalorder %s35, 0
      %p165 = por %p163, %p164
      %p166 = scmp.ne.s32.totalorder %s158, %s160
      %p167 = scmp.eq.s32.totalorder %s40, 1
      %p168 = por %p166, %p167
      %p169 = scmp.ne.s32.totalorder %s160, %s161
      %p170 = scmp.eq.s32.totalorder %s40, 0
      %p171 = por %p169, %p170
      %p172 = scmp.ne.s32.totalorder %s160, %s161
      %p173 = scmp.eq.s32.totalorder %s41, 1
      %p174 = por %p172, %p173
      %p176 = scmp.ne.s32.totalorder %s161, %s175
      %p177 = scmp.eq.s32.totalorder %s41, 0
      %p178 = por %p176, %p177
      %s180 = sadd.s32 %s179, 1
      %p183 = scmp.eq.s32.totalorder %s35, 1
      %p184 = scmp.ne.s32.totalorder %s179, %s181
      %p185 = scmp.eq.s32.totalorder %s35, 0
      %p186 = por %p184, %p185
      %p187 = scmp.ne.s32.totalorder %s179, %s181
      %p188 = scmp.eq.s32.totalorder %s40, 1
      %p189 = por %p187, %p188
      %p190 = scmp.ne.s32.totalorder %s181, %s182
      %p191 = scmp.eq.s32.totalorder %s40, 0
      %p192 = por %p190, %p191
      %p193 = scmp.ne.s32.totalorder %s181, %s182
      %p194 = scmp.eq.s32.totalorder %s41, 1
      %p195 = por %p193, %p194
      %p197 = scmp.ne.s32.totalorder %s182, %s196
      %p198 = scmp.eq.s32.totalorder %s41, 0
      %p199 = por %p197, %p198
      %s201 = sadd.s32 %s200, 1
      %p204 = scmp.eq.s32.totalorder %s35, 1
      %p205 = scmp.ne.s32.totalorder %s200, %s202
      %p206 = scmp.eq.s32.totalorder %s35, 0
      %p207 = por %p205, %p206
      %p208 = scmp.ne.s32.totalorder %s200, %s202
      %p209 = scmp.eq.s32.totalorder %s40, 1
      %p210 = por %p208, %p209
      %p211 = scmp.ne.s32.totalorder %s202, %s203
      %p212 = scmp.eq.s32.totalorder %s40, 0
      %p213 = por %p211, %p212
      %p214 = scmp.ne.s32.totalorder %s202, %s203
      %p215 = scmp.eq.s32.totalorder %s41, 1
      %p216 = por %p214, %p215
      %p218 = scmp.ne.s32.totalorder %s203, %s217
      %p219 = scmp.eq.s32.totalorder %s41, 0
      %p220 = por %p218, %p219
      %s222 = sadd.s32 %s221, 1
      %p225 = scmp.eq.s32.totalorder %s35, 1
      %p226 = scmp.ne.s32.totalorder %s221, %s223
      %p227 = scmp.eq.s32.totalorder %s35, 0
      %p228 = por %p226, %p227
      %p229 = scmp.ne.s32.totalorder %s221, %s223
      %p230 = scmp.eq.s32.totalorder %s40, 1
      %p231 = por %p229, %p230
      %p232 = scmp.ne.s32.totalorder %s223, %s224
      %p233 = scmp.eq.s32.totalorder %s40, 0
      %p234 = por %p232, %p233
      %p235 = scmp.ne.s32.totalorder %s223, %s224
      %p236 = scmp.eq.s32.totalorder %s41, 1
      %p237 = por %p235, %p236
      %p239 = scmp.ne.s32.totalorder %s224, %s238
      %p240 = scmp.eq.s32.totalorder %s41, 0
      %p241 = por %p239, %p240
      %s243 = sadd.s32 %s242, 1
      %p246 = scmp.eq.s32.totalorder %s35, 1
      %p247 = scmp.ne.s32.totalorder %s242, %s244
      %p248 = scmp.eq.s32.totalorder %s35, 0
      %p249 = por %p247, %p248
      %p250 = scmp.ne.s32.totalorder %s242, %s244
      %p251 = scmp.eq.s32.totalorder %s40, 1
      %p252 = por %p250, %p251
      %p253 = scmp.ne.s32.totalorder %s244, %s245
      %p254 = scmp.eq.s32.totalorder %s40, 0
      %p255 = por %p253, %p254
      %p256 = scmp.ne.s32.totalorder %s244, %s245
      %p257 = scmp.eq.s32.totalorder %s41, 1
      %p258 = por %p256, %p257
      %p260 = scmp.ne.s32.totalorder %s245, %s259
      %p261 = scmp.eq.s32.totalorder %s41, 0
      %p262 = por %p260, %p261
      %s264 = sadd.s32 %s263, 1
      %p267 = scmp.eq.s32.totalorder %s35, 1
      %p268 = scmp.ne.s32.totalorder %s263, %s265
      %p269 = scmp.eq.s32.totalorder %s35, 0
      %p270 = por %p268, %p269
      %p271 = scmp.ne.s32.totalorder %s263, %s265
      %p272 = scmp.eq.s32.totalorder %s40, 1
      %p273 = por %p271, %p272
      %p274 = scmp.ne.s32.totalorder %s265, %s266
      %p275 = scmp.eq.s32.totalorder %s40, 0
      %p276 = por %p274, %p275
      %p277 = scmp.ne.s32.totalorder %s265, %s266
      %p278 = scmp.eq.s32.totalorder %s41, 1
      %p279 = por %p277, %p278
      %p281 = scmp.ne.s32.totalorder %s266, %s280
      %p282 = scmp.eq.s32.totalorder %s41, 0
      %p283 = por %p281, %p282
      %s284 = ssub.s32 %s35, %s42
      %p285 = scmp.eq.s32.totalorder %s284, 0
      %s287 = sadd.s32 %s286, 1
      %s288 = scalar_select %p285, %s286, %s287
      %p291 = pneg %p285
      %p292 = scmp.eq.s32.totalorder %s35, 1
      %p293 = por %p291, %p292
      %p294 = scmp.ne.s32.totalorder %s286, %s289
      %p295 = scmp.eq.s32.totalorder %s35, 0
      %p296 = por %p294, %p295
      %p297 = scmp.ne.s32.totalorder %s286, %s289
      %p298 = scmp.eq.s32.totalorder %s40, 1
      %p299 = por %p297, %p298
      %p300 = scmp.ne.s32.totalorder %s289, %s290
      %p301 = scmp.eq.s32.totalorder %s40, 0
      %p302 = por %p300, %p301
      %p303 = scmp.ne.s32.totalorder %s289, %s290
      %p304 = scmp.eq.s32.totalorder %s41, 1
      %p305 = por %p303, %p304
      %p307 = scmp.ne.s32.totalorder %s290, %s306
      %p308 = scmp.eq.s32.totalorder %s41, 0
      %p309 = por %p307, %p308
      %s310 = ssub.s32 %s35, %s42
      %p311 = scmp.eq.s32.totalorder %s310, 0
      %s313 = sadd.s32 %s312, 1
      %s314 = scalar_select %p311, %s312, %s313
      %p317 = pneg %p311
      %p318 = scmp.eq.s32.totalorder %s35, 1
      %p319 = por %p317, %p318
      %p320 = scmp.ne.s32.totalorder %s312, %s315
      %p321 = scmp.eq.s32.totalorder %s35, 0
      %p322 = por %p320, %p321
      %p323 = scmp.ne.s32.totalorder %s312, %s315
      %p324 = scmp.eq.s32.totalorder %s40, 1
      %p325 = por %p323, %p324
      %p326 = scmp.ne.s32.totalorder %s315, %s316
      %p327 = scmp.eq.s32.totalorder %s40, 0
      %p328 = por %p326, %p327
      %p329 = scmp.ne.s32.totalorder %s315, %s316
      %p330 = scmp.eq.s32.totalorder %s41, 1
      %p331 = por %p329, %p330
      %p333 = scmp.ne.s32.totalorder %s316, %s332
      %p334 = scmp.eq.s32.totalorder %s41, 0
      %p335 = por %p333, %p334
      %s336 = ssub.s32 %s35, %s42
      %p337 = scmp.eq.s32.totalorder %s336, 0
      %s339 = sadd.s32 %s338, 1
      %s340 = scalar_select %p337, %s338, %s339
      %p343 = pneg %p337
      %p344 = scmp.eq.s32.totalorder %s35, 1
      %p345 = por %p343, %p344
      %p346 = scmp.ne.s32.totalorder %s338, %s341
      %p347 = scmp.eq.s32.totalorder %s35, 0
      %p348 = por %p346, %p347
      %p349 = scmp.ne.s32.totalorder %s338, %s341
      %p350 = scmp.eq.s32.totalorder %s40, 1
      %p351 = por %p349, %p350
      %p352 = scmp.ne.s32.totalorder %s341, %s342
      %p353 = scmp.eq.s32.totalorder %s40, 0
      %p354 = por %p352, %p353
      %p355 = scmp.ne.s32.totalorder %s341, %s342
      %p356 = scmp.eq.s32.totalorder %s41, 1
      %p357 = por %p355, %p356
      %p359 = scmp.ne.s32.totalorder %s342, %s358
      %p360 = scmp.eq.s32.totalorder %s41, 0
      %p361 = por %p359, %p360
      %s362 = ssub.s32 %s35, %s42
      %p363 = scmp.eq.s32.totalorder %s362, 0
      %s365 = sadd.s32 %s364, 1
      %s366 = scalar_select %p363, %s364, %s365
      %p369 = pneg %p363
      %p370 = scmp.eq.s32.totalorder %s35, 1
      %p371 = por %p369, %p370
      %p372 = scmp.ne.s32.totalorder %s364, %s367
      %p373 = scmp.eq.s32.totalorder %s35, 0
      %p374 = por %p372, %p373
      %p375 = scmp.ne.s32.totalorder %s364, %s367
      %p376 = scmp.eq.s32.totalorder %s40, 1
      %p377 = por %p375, %p376
      %p378 = scmp.ne.s32.totalorder %s367, %s368
      %p379 = scmp.eq.s32.totalorder %s40, 0
      %p380 = por %p378, %p379
      %p381 = scmp.ne.s32.totalorder %s367, %s368
      %p382 = scmp.eq.s32.totalorder %s41, 1
      %p383 = por %p381, %p382
      %p385 = scmp.ne.s32.totalorder %s368, %s384
      %p386 = scmp.eq.s32.totalorder %s41, 0
      %p387 = por %p385, %p386
      %p388 = scmp.le.s32.totalorder 1, %s35
      %p389 = scmp.lt.s32.totalorder %s35, 3
      %p390 = pnand %p388, %p389
      %p391 = pneg %p390
      // Predicated region
      $region9: #{tpu_custom_call.1} parent=5 // pred_check
        _
      $region10: #{tpu_custom_call.1} parent=5 // pred_check_branch
        %393 = sbr.rel (%p390) target = $region12
      $region11: #{tpu_custom_call.1} parent=5 // pred_region
        %s394 = ssub.s32 %s35, 1
        // Predicated region
        $region13: #{tpu_custom_call.1} parent=11 // pred_check
          %p395 = pneg %p108
        $region14: #{tpu_custom_call.1} parent=11 // pred_check_branch
          %397 = sbr.rel (%p395) target = $region16
        $region15: #{tpu_custom_call.1} parent=11 // pred_region
          _
        $region16: #{tpu_custom_call.1} parent=11 // pred_fallthru
          _
        // Predicated region
        $region17: #{tpu_custom_call.1} parent=11 // pred_check
          %p398 = pneg %p129
        $region18: #{tpu_custom_call.1} parent=11 // pred_check_branch
          %400 = sbr.rel (%p398) target = $region20
        $region19: #{tpu_custom_call.1} parent=11 // pred_region
          %s402 = ssub.s32 1024, 1024
          %403 = vsyncadd [#allocation6], %s402
          %s404 = sshll.u32 [#allocation5], 4
          %s405 = int_to_ptr.vmem [resolvable:$true] %s404
          %410 = dma.hbm_to_vmem [thread:$0]  %s3, 1024, %s405, [#allocation6], 64, 64, 4
        $region20: #{tpu_custom_call.1} parent=11 // pred_fallthru
          _
        // Predicated region
        $region21: #{tpu_custom_call.1} parent=11 // pred_check
          %p411 = pneg %p150
        $region22: #{tpu_custom_call.1} parent=11 // pred_check_branch
          %413 = sbr.rel (%p411) target = $region24
        $region23: #{tpu_custom_call.1} parent=11 // pred_region
          _
        $region24: #{tpu_custom_call.1} parent=11 // pred_fallthru
          _
        // Predicated region
        $region25: #{tpu_custom_call.1} parent=11 // pred_check
          %p414 = pneg %p171
        $region26: #{tpu_custom_call.1} parent=11 // pred_check_branch
          %416 = sbr.rel (%p414) target = $region28
        $region27: #{tpu_custom_call.1} parent=11 // pred_region
          %s418 = ssub.s32 1024, 1024
          %419 = vsyncadd [#allocation6], %s418
          %s420 = sshll.u32 [#allocation7], 4
          %s421 = int_to_ptr.vmem [resolvable:$true] %s420
          %426 = dma.hbm_to_vmem [thread:$0]  %s5, 1024, %s421, [#allocation6], 64, 64, 4
        $region28: #{tpu_custom_call.1} parent=11 // pred_fallthru
          _
        // Predicated region
        $region29: #{tpu_custom_call.1} parent=11 // pred_check
          %p427 = pneg %p192
        $region30: #{tpu_custom_call.1} parent=11 // pred_check_branch
          %429 = sbr.rel (%p427) target = $region32
        $region31: #{tpu_custom_call.1} parent=11 // pred_region
          _
        $region32: #{tpu_custom_call.1} parent=11 // pred_fallthru
          _
        // Predicated region
        $region33: #{tpu_custom_call.1} parent=11 // pred_check
          %p430 = pneg %p213
        $region34: #{tpu_custom_call.1} parent=11 // pred_check_branch
          %432 = sbr.rel (%p430) target = $region36
        $region35: #{tpu_custom_call.1} parent=11 // pred_region
          %s434 = ssub.s32 512, 512
          %435 = vsyncadd [#allocation9], %s434
          %s436 = sshll.u32 [#allocation8], 4
          %s437 = int_to_ptr.vmem [resolvable:$true] %s436
          %442 = dma.hbm_to_vmem [thread:$0]  %s7, 512, %s437, [#allocation9], 64, 64, 4
        $region36: #{tpu_custom_call.1} parent=11 // pred_fallthru
          _
        // Predicated region
        $region37: #{tpu_custom_call.1} parent=11 // pred_check
          %p443 = pneg %p234
        $region38: #{tpu_custom_call.1} parent=11 // pred_check_branch
          %445 = sbr.rel (%p443) target = $region40
        $region39: #{tpu_custom_call.1} parent=11 // pred_region
          _
        $region40: #{tpu_custom_call.1} parent=11 // pred_fallthru
          _
        // Predicated region
        $region41: #{tpu_custom_call.1} parent=11 // pred_check
          %p446 = pneg %p255
        $region42: #{tpu_custom_call.1} parent=11 // pred_check_branch
          %448 = sbr.rel (%p446) target = $region44
        $region43: #{tpu_custom_call.1} parent=11 // pred_region
          _
        $region44: #{tpu_custom_call.1} parent=11 // pred_fallthru
          _
        // Predicated region
        $region45: #{tpu_custom_call.1} parent=11 // pred_check
          %p449 = pneg %p276
        $region46: #{tpu_custom_call.1} parent=11 // pred_check_branch
          %451 = sbr.rel (%p449) target = $region48
        $region47: #{tpu_custom_call.1} parent=11 // pred_region
          _
        $region48: #{tpu_custom_call.1} parent=11 // pred_fallthru
          _
      $region12: #{tpu_custom_call.1} parent=5 // pred_fallthru
        _
      %p452 = scmp.lt.s32.totalorder %s35, 2
      // Predicated region
      $region49: #{tpu_custom_call.1} parent=5 // pred_check
        %p453 = pneg %p452
      $region50: #{tpu_custom_call.1} parent=5 // pred_check_branch
        %455 = sbr.rel (%p453) target = $region52
      $region51: #{tpu_custom_call.1} parent=5 // pred_region
        // Predicated region
        $region53: #{tpu_custom_call.1} parent=51 // pred_check
          %p456 = pneg %p55
        $region54: #{tpu_custom_call.1} parent=51 // pred_check_branch
          %458 = sbr.rel (%p456) target = $region56
        $region55: #{tpu_custom_call.1} parent=51 // pred_region
          %s459 = sand.u32 %s45, 1
          %s460 = scalar_lea.sflag [#allocation3], %s459
          %s461 = sand.u32 %s45, 1
          %s462 = smul.addr %s461, 256
          %s463 = scalar_lea.vmem [#allocation2], %s462
          %s464 = smul.u32 16, %s35
          %s466 = ssub.s32 4096, 4096
          %467 = vsyncadd %s460, %s466
          %s468 = smul.addr %s464, 4
          %s469 = smul.addr %s468, 64
          %s470 = scalar_lea.hbm %s0, %s469
          %s471 = sshll.u32 %s463, 4
          %s472 = int_to_ptr.vmem [resolvable:$true] %s471
          %477 = dma.hbm_to_vmem [thread:$0]  %s470, 4096, %s472, %s460, 256, 256, 16
        $region56: #{tpu_custom_call.1} parent=51 // pred_fallthru
          _
        // Predicated region
        $region57: #{tpu_custom_call.1} parent=51 // pred_check
          %p478 = pneg %p81
        $region58: #{tpu_custom_call.1} parent=51 // pred_check_branch
          %480 = sbr.rel (%p478) target = $region60
        $region59: #{tpu_custom_call.1} parent=51 // pred_region
          %s481 = smul.u32 16, %s35
          %p482 = scmp.lt.s32.totalorder %s481, 31
          %s483 = scalar_select %p482, %s481, 31
          %s484 = smul.addr %s483, 8
          %s485 = scalar_lea.vmem %s1, %s484
          %s486 = smul.u32 16, %s35
        $region60: #{tpu_custom_call.1} parent=51 // pred_fallthru
          _
      $region52: #{tpu_custom_call.1} parent=5 // pred_fallthru
        _
      %p487 = scmp.le.s32.totalorder 1, %s35
      %p488 = scmp.lt.s32.totalorder %s35, 3
      %p489 = pnand %p487, %p488
      %p490 = pneg %p489
      // Predicated region
      $region61: #{tpu_custom_call.1} parent=5 // pred_check
        _
      $region62: #{tpu_custom_call.1} parent=5 // pred_check_branch
        %492 = sbr.rel (%p489) target = $region64
      $region63: #{tpu_custom_call.1} parent=5 // pred_region
        %s493 = ssub.s32 %s35, 1
        %s494 = sand.u32 %s48, 1
        %s495 = scalar_lea.sflag [#allocation3], %s494
        %s496 = sand.u32 %s48, 1
        %s497 = smul.addr %s496, 256
        %s498 = scalar_lea.vmem [#allocation2], %s497
        // Predicated region
        $region65: #{tpu_custom_call.1} parent=63 // pred_check
          %p499 = pneg %p61
        $region66: #{tpu_custom_call.1} parent=63 // pred_check_branch
          %501 = sbr.rel (%p499) target = $region68
        $region67: #{tpu_custom_call.1} parent=63 // pred_region
          %502 = dma.done %s495, 4096
        $region68: #{tpu_custom_call.1} parent=63 // pred_fallthru
          _
        // Predicated region
        $region69: #{tpu_custom_call.1} parent=63 // pred_check
          %p503 = pneg %p129
        $region70: #{tpu_custom_call.1} parent=63 // pred_check_branch
          %505 = sbr.rel (%p503) target = $region72
        $region71: #{tpu_custom_call.1} parent=63 // pred_region
          %506 = dma.done [#allocation6], 1024
        $region72: #{tpu_custom_call.1} parent=63 // pred_fallthru
          _
        // Predicated region
        $region73: #{tpu_custom_call.1} parent=63 // pred_check
          %p507 = pneg %p171
        $region74: #{tpu_custom_call.1} parent=63 // pred_check_branch
          %509 = sbr.rel (%p507) target = $region76
        $region75: #{tpu_custom_call.1} parent=63 // pred_region
          %510 = dma.done [#allocation6], 1024
        $region76: #{tpu_custom_call.1} parent=63 // pred_fallthru
          _
        // Predicated region
        $region77: #{tpu_custom_call.1} parent=63 // pred_check
          %p511 = pneg %p213
        $region78: #{tpu_custom_call.1} parent=63 // pred_check_branch
          %513 = sbr.rel (%p511) target = $region80
        $region79: #{tpu_custom_call.1} parent=63 // pred_region
          %514 = dma.done [#allocation9], 512
        $region80: #{tpu_custom_call.1} parent=63 // pred_fallthru
          _
        %s515 = sand.u32 %s48, 1
        %s516 = scalar_lea.sflag [#allocation3], %s515
        %s517 = sand.u32 %s48, 1
        %s518 = smul.addr %s517, 256
        %s519 = scalar_lea.vmem [#allocation2], %s518
        %p520 = pneg %p61
        %p521 = pneg %p58
        %s522 = smul.u32 16, %s40
        %p523 = scmp.lt.s32.totalorder %s522, 31
        %s524 = scalar_select %p523, %s522, 31
        %s525 = smul.addr %s524, 8
        %s526 = scalar_lea.vmem %s1, %s525
        %p527 = pneg %p87
        %p528 = pneg %p84
        %p529 = pneg %p108
        %p530 = pneg %p105
        %p531 = pneg %p129
        %p532 = pneg %p126
        %p533 = pneg %p150
        %p534 = pneg %p147
        %p535 = pneg %p171
        %p536 = pneg %p168
        %p537 = pneg %p192
        %p538 = pneg %p189
        %p539 = pneg %p213
        %p540 = pneg %p210
        %p541 = pneg %p234
        %p542 = pneg %p231
        %p543 = pneg %p255
        %p544 = pneg %p252
        %p545 = pneg %p276
        %p546 = pneg %p273
        %p547 = pneg %p302
        %p548 = pneg %p299
        %s549 = sand.u32 %s289, 1
        %s550 = scalar_lea.sflag [#allocation4], %s549
        %s551 = sand.u32 %s289, 1
        %s552 = smul.addr %s551, 256
        %s553 = scalar_lea.vmem [#allocation10], %s552
        %p554 = pneg %p328
        %p555 = pneg %p325
        %s556 = sand.u32 %s40, 1
        %s557 = scalar_lea.sflag [#allocation12], %s556
        %s558 = sand.u32 %s315, 1
        %s559 = smul.addr %s558, 128
        %s560 = scalar_lea.vmem [#allocation11], %s559
        %p561 = pneg %p354
        %p562 = pneg %p351
        %s563 = sand.u32 %s40, 1
        %s564 = scalar_lea.sflag [#allocation12], %s563
        %s565 = sand.u32 %s341, 1
        %s566 = smul.addr %s565, 128
        %s567 = scalar_lea.vmem [#allocation13], %s566
        %p568 = pneg %p380
        %p569 = pneg %p377
        %s570 = sand.u32 %s367, 1
        %s571 = scalar_lea.sflag [#allocation15], %s570
        %s572 = sand.u32 %s367, 1
        %s573 = smul.addr %s572, 256
        %s574 = scalar_lea.vmem [#allocation14], %s573
        %s575 = smul.u32 16, %s40
        %s576 = smul.u32 16, %s40
        %p577 = scmp.lt.s32.totalorder %s576, 31
        %s578 = scalar_select %p577, %s576, 31
        %s579 = smul.addr %s578, 8
        %s580 = scalar_lea.vmem %s1, %s579
        %s581 = smul.u32 16, %s40
        %s582 = smul.u32 16, %s40
        %s583 = smul.u32 16, %s40
        %s584 = smul.u32 16, %s40
        %s585 = smul.u32 16, %s40
        %v587 = vld [vmem:[%s498] sm:$0xff]
        %v588 = vld [vmem:[%s498 + $0x8] sm:$0xff]
        %v589 = vld [vmem:[%s498 + $0x10] sm:$0xff]
        %v590 = vld [vmem:[%s498 + $0x18] sm:$0xff]
        %v591 = vld [vmem:[%s498 + $0x20] sm:$0xff]
        %v592 = vld [vmem:[%s498 + $0x28] sm:$0xff]
        %v593 = vld [vmem:[%s498 + $0x30] sm:$0xff]
        %v594 = vld [vmem:[%s498 + $0x38] sm:$0xff]
        %v595 = vld [vmem:[%s498 + $0x40] sm:$0xff]
        %v596 = vld [vmem:[%s498 + $0x48] sm:$0xff]
        %v597 = vld [vmem:[%s498 + $0x50] sm:$0xff]
        %v598 = vld [vmem:[%s498 + $0x58] sm:$0xff]
        %v599 = vld [vmem:[%s498 + $0x60] sm:$0xff]
        %v600 = vld [vmem:[%s498 + $0x68] sm:$0xff]
        %v601 = vld [vmem:[%s498 + $0x70] sm:$0xff]
        %v602 = vld [vmem:[%s498 + $0x78] sm:$0xff]
        %v603 = vld [vmem:[%s498 + $0x80] sm:$0xff]
        %v604 = vld [vmem:[%s498 + $0x88] sm:$0xff]
        %v605 = vld [vmem:[%s498 + $0x90] sm:$0xff]
        %v606 = vld [vmem:[%s498 + $0x98] sm:$0xff]
        %v607 = vld [vmem:[%s498 + $0xa0] sm:$0xff]
        %v608 = vld [vmem:[%s498 + $0xa8] sm:$0xff]
        %v609 = vld [vmem:[%s498 + $0xb0] sm:$0xff]
        %v610 = vld [vmem:[%s498 + $0xb8] sm:$0xff]
        %v611 = vld [vmem:[%s498 + $0xc0] sm:$0xff]
        %v612 = vld [vmem:[%s498 + $0xc8] sm:$0xff]
        %v613 = vld [vmem:[%s498 + $0xd0] sm:$0xff]
        %v614 = vld [vmem:[%s498 + $0xd8] sm:$0xff]
        %v615 = vld [vmem:[%s498 + $0xe0] sm:$0xff]
        %v616 = vld [vmem:[%s498 + $0xe8] sm:$0xff]
        %v617 = vld [vmem:[%s498 + $0xf0] sm:$0xff]
        %v618 = vld [vmem:[%s498 + $0xf8] sm:$0xff]
        %v619 = vunpack.c.l.bf16 %v587
        %v620 = vunpack.c.h.bf16 %v587
        %v621 = vunpack.c.l.bf16 %v588
        %v622 = vunpack.c.h.bf16 %v588
        %v623 = vunpack.c.l.bf16 %v589
        %v624 = vunpack.c.h.bf16 %v589
        %v625 = vunpack.c.l.bf16 %v590
        %v626 = vunpack.c.h.bf16 %v590
        %v627 = vunpack.c.l.bf16 %v591
        %v628 = vunpack.c.h.bf16 %v591
        %v629 = vunpack.c.l.bf16 %v592
        %v630 = vunpack.c.h.bf16 %v592
        %v631 = vunpack.c.l.bf16 %v593
        %v632 = vunpack.c.h.bf16 %v593
        %v633 = vunpack.c.l.bf16 %v594
        %v634 = vunpack.c.h.bf16 %v594
        %v635 = vunpack.c.l.bf16 %v595
        %v636 = vunpack.c.h.bf16 %v595
        %v637 = vunpack.c.l.bf16 %v596
        %v638 = vunpack.c.h.bf16 %v596
        %v639 = vunpack.c.l.bf16 %v597
        %v640 = vunpack.c.h.bf16 %v597
        %v641 = vunpack.c.l.bf16 %v598
        %v642 = vunpack.c.h.bf16 %v598
        %v643 = vunpack.c.l.bf16 %v599
        %v644 = vunpack.c.h.bf16 %v599
        %v645 = vunpack.c.l.bf16 %v600
        %v646 = vunpack.c.h.bf16 %v600
        %v647 = vunpack.c.l.bf16 %v601
        %v648 = vunpack.c.h.bf16 %v601
        %v649 = vunpack.c.l.bf16 %v602
        %v650 = vunpack.c.h.bf16 %v602
        %v651 = vunpack.c.l.bf16 %v603
        %v652 = vunpack.c.h.bf16 %v603
        %v653 = vunpack.c.l.bf16 %v604
        %v654 = vunpack.c.h.bf16 %v604
        %v655 = vunpack.c.l.bf16 %v605
        %v656 = vunpack.c.h.bf16 %v605
        %v657 = vunpack.c.l.bf16 %v606
        %v658 = vunpack.c.h.bf16 %v606
        %v659 = vunpack.c.l.bf16 %v607
        %v660 = vunpack.c.h.bf16 %v607
        %v661 = vunpack.c.l.bf16 %v608
        %v662 = vunpack.c.h.bf16 %v608
        %v663 = vunpack.c.l.bf16 %v609
        %v664 = vunpack.c.h.bf16 %v609
        %v665 = vunpack.c.l.bf16 %v610
        %v666 = vunpack.c.h.bf16 %v610
        %v667 = vunpack.c.l.bf16 %v611
        %v668 = vunpack.c.h.bf16 %v611
        %v669 = vunpack.c.l.bf16 %v612
        %v670 = vunpack.c.h.bf16 %v612
        %v671 = vunpack.c.l.bf16 %v613
        %v672 = vunpack.c.h.bf16 %v613
        %v673 = vunpack.c.l.bf16 %v614
        %v674 = vunpack.c.h.bf16 %v614
        %v675 = vunpack.c.l.bf16 %v615
        %v676 = vunpack.c.h.bf16 %v615
        %v677 = vunpack.c.l.bf16 %v616
        %v678 = vunpack.c.h.bf16 %v616
        %v679 = vunpack.c.l.bf16 %v617
        %v680 = vunpack.c.h.bf16 %v617
        %v681 = vunpack.c.l.bf16 %v618
        %v682 = vunpack.c.h.bf16 %v618
        %v683 = vmax.f32 %v619, %v620
        %v684 = vmax.f32 %v683, %v621
        %v685 = vmax.f32 %v684, %v622
        %686 = vmax.xlane.f32.xlu0 %v685
        %v687 = vpop.xlane.xlu0 %686
        %v688 = vmax.f32 %v623, %v624
        %v689 = vmax.f32 %v688, %v625
        %v690 = vmax.f32 %v689, %v626
        %691 = vmax.xlane.f32.xlu0 %v690
        %v692 = vpop.xlane.xlu0 %691
        %v693 = vmax.f32 %v627, %v628
        %v694 = vmax.f32 %v693, %v629
        %v695 = vmax.f32 %v694, %v630
        %696 = vmax.xlane.f32.xlu0 %v695
        %v697 = vpop.xlane.xlu0 %696
        %v698 = vmax.f32 %v631, %v632
        %v699 = vmax.f32 %v698, %v633
        %v700 = vmax.f32 %v699, %v634
        %701 = vmax.xlane.f32.xlu0 %v700
        %v702 = vpop.xlane.xlu0 %701
        %v703 = vmax.f32 %v635, %v636
        %v704 = vmax.f32 %v703, %v637
        %v705 = vmax.f32 %v704, %v638
        %706 = vmax.xlane.f32.xlu0 %v705
        %v707 = vpop.xlane.xlu0 %706
        %v708 = vmax.f32 %v639, %v640
        %v709 = vmax.f32 %v708, %v641
        %v710 = vmax.f32 %v709, %v642
        %711 = vmax.xlane.f32.xlu0 %v710
        %v712 = vpop.xlane.xlu0 %711
        %v713 = vmax.f32 %v643, %v644
        %v714 = vmax.f32 %v713, %v645
        %v715 = vmax.f32 %v714, %v646
        %716 = vmax.xlane.f32.xlu0 %v715
        %v717 = vpop.xlane.xlu0 %716
        %v718 = vmax.f32 %v647, %v648
        %v719 = vmax.f32 %v718, %v649
        %v720 = vmax.f32 %v719, %v650
        %721 = vmax.xlane.f32.xlu0 %v720
        %v722 = vpop.xlane.xlu0 %721
        %v723 = vmax.f32 %v651, %v652
        %v724 = vmax.f32 %v723, %v653
        %v725 = vmax.f32 %v724, %v654
        %726 = vmax.xlane.f32.xlu0 %v725
        %v727 = vpop.xlane.xlu0 %726
        %v728 = vmax.f32 %v655, %v656
        %v729 = vmax.f32 %v728, %v657
        %v730 = vmax.f32 %v729, %v658
        %731 = vmax.xlane.f32.xlu0 %v730
        %v732 = vpop.xlane.xlu0 %731
        %v733 = vmax.f32 %v659, %v660
        %v734 = vmax.f32 %v733, %v661
        %v735 = vmax.f32 %v734, %v662
        %736 = vmax.xlane.f32.xlu0 %v735
        %v737 = vpop.xlane.xlu0 %736
        %v738 = vmax.f32 %v663, %v664
        %v739 = vmax.f32 %v738, %v665
        %v740 = vmax.f32 %v739, %v666
        %741 = vmax.xlane.f32.xlu0 %v740
        %v742 = vpop.xlane.xlu0 %741
        %v743 = vmax.f32 %v667, %v668
        %v744 = vmax.f32 %v743, %v669
        %v745 = vmax.f32 %v744, %v670
        %746 = vmax.xlane.f32.xlu0 %v745
        %v747 = vpop.xlane.xlu0 %746
        %v748 = vmax.f32 %v671, %v672
        %v749 = vmax.f32 %v748, %v673
        %v750 = vmax.f32 %v749, %v674
        %751 = vmax.xlane.f32.xlu0 %v750
        %v752 = vpop.xlane.xlu0 %751
        %v753 = vmax.f32 %v675, %v676
        %v754 = vmax.f32 %v753, %v677
        %v755 = vmax.f32 %v754, %v678
        %756 = vmax.xlane.f32.xlu0 %v755
        %v757 = vpop.xlane.xlu0 %756
        %v758 = vmax.f32 %v679, %v680
        %v759 = vmax.f32 %v758, %v681
        %v760 = vmax.f32 %v759, %v682
        %761 = vmax.xlane.f32.xlu0 %v760
        %v762 = vpop.xlane.xlu0 %761
        %v763 = vsub.f32 %v619, %v687
        %v764 = vsub.f32 %v620, %v687
        %v765 = vsub.f32 %v621, %v687
        %v766 = vsub.f32 %v622, %v687
        %v767 = vsub.f32 %v623, %v692
        %v768 = vsub.f32 %v624, %v692
        %v769 = vsub.f32 %v625, %v692
        %v770 = vsub.f32 %v626, %v692
        %v771 = vsub.f32 %v627, %v697
        %v772 = vsub.f32 %v628, %v697
        %v773 = vsub.f32 %v629, %v697
        %v774 = vsub.f32 %v630, %v697
        %v775 = vsub.f32 %v631, %v702
        %v776 = vsub.f32 %v632, %v702
        %v777 = vsub.f32 %v633, %v702
        %v778 = vsub.f32 %v634, %v702
        %v779 = vsub.f32 %v635, %v707
        %v780 = vsub.f32 %v636, %v707
        %v781 = vsub.f32 %v637, %v707
        %v782 = vsub.f32 %v638, %v707
        %v783 = vsub.f32 %v639, %v712
        %v784 = vsub.f32 %v640, %v712
        %v785 = vsub.f32 %v641, %v712
        %v786 = vsub.f32 %v642, %v712
        %v787 = vsub.f32 %v643, %v717
        %v788 = vsub.f32 %v644, %v717
        %v789 = vsub.f32 %v645, %v717
        %v790 = vsub.f32 %v646, %v717
        %v791 = vsub.f32 %v647, %v722
        %v792 = vsub.f32 %v648, %v722
        %v793 = vsub.f32 %v649, %v722
        %v794 = vsub.f32 %v650, %v722
        %v795 = vsub.f32 %v651, %v727
        %v796 = vsub.f32 %v652, %v727
        %v797 = vsub.f32 %v653, %v727
        %v798 = vsub.f32 %v654, %v727
        %v799 = vsub.f32 %v655, %v732
        %v800 = vsub.f32 %v656, %v732
        %v801 = vsub.f32 %v657, %v732
        %v802 = vsub.f32 %v658, %v732
        %v803 = vsub.f32 %v659, %v737
        %v804 = vsub.f32 %v660, %v737
        %v805 = vsub.f32 %v661, %v737
        %v806 = vsub.f32 %v662, %v737
        %v807 = vsub.f32 %v663, %v742
        %v808 = vsub.f32 %v664, %v742
        %v809 = vsub.f32 %v665, %v742
        %v810 = vsub.f32 %v666, %v742
        %v811 = vsub.f32 %v667, %v747
        %v812 = vsub.f32 %v668, %v747
        %v813 = vsub.f32 %v669, %v747
        %v814 = vsub.f32 %v670, %v747
        %v815 = vsub.f32 %v671, %v752
        %v816 = vsub.f32 %v672, %v752
        %v817 = vsub.f32 %v673, %v752
        %v818 = vsub.f32 %v674, %v752
        %v819 = vsub.f32 %v675, %v757
        %v820 = vsub.f32 %v676, %v757
        %v821 = vsub.f32 %v677, %v757
        %v822 = vsub.f32 %v678, %v757
        %v823 = vsub.f32 %v679, %v762
        %v824 = vsub.f32 %v680, %v762
        %v825 = vsub.f32 %v681, %v762
        %v826 = vsub.f32 %v682, %v762
        %v827 = vmul.f32 %v763, 1.442695
        %v828 = vpow.pop %v827
        %v829 = vmul.f32 %v764, 1.442695
        %v830 = vpow.pop %v829
        %v831 = vmul.f32 %v765, 1.442695
        %v832 = vpow.pop %v831
        %v833 = vmul.f32 %v766, 1.442695
        %v834 = vpow.pop %v833
        %v835 = vmul.f32 %v767, 1.442695
        %v836 = vpow.pop %v835
        %v837 = vmul.f32 %v768, 1.442695
        %v838 = vpow.pop %v837
        %v839 = vmul.f32 %v769, 1.442695
        %v840 = vpow.pop %v839
        %v841 = vmul.f32 %v770, 1.442695
        %v842 = vpow.pop %v841
        %v843 = vmul.f32 %v771, 1.442695
        %v844 = vpow.pop %v843
        %v845 = vmul.f32 %v772, 1.442695
        %v846 = vpow.pop %v845
        %v847 = vmul.f32 %v773, 1.442695
        %v848 = vpow.pop %v847
        %v849 = vmul.f32 %v774, 1.442695
        %v850 = vpow.pop %v849
        %v851 = vmul.f32 %v775, 1.442695
        %v852 = vpow.pop %v851
        %v853 = vmul.f32 %v776, 1.442695
        %v854 = vpow.pop %v853
        %v855 = vmul.f32 %v777, 1.442695
        %v856 = vpow.pop %v855
        %v857 = vmul.f32 %v778, 1.442695
        %v858 = vpow.pop %v857
        %v859 = vmul.f32 %v779, 1.442695
        %v860 = vpow.pop %v859
        %v861 = vmul.f32 %v780, 1.442695
        %v862 = vpow.pop %v861
        %v863 = vmul.f32 %v781, 1.442695
        %v864 = vpow.pop %v863
        %v865 = vmul.f32 %v782, 1.442695
        %v866 = vpow.pop %v865
        %v867 = vmul.f32 %v783, 1.442695
        %v868 = vpow.pop %v867
        %v869 = vmul.f32 %v784, 1.442695
        %v870 = vpow.pop %v869
        %v871 = vmul.f32 %v785, 1.442695
        %v872 = vpow.pop %v871
        %v873 = vmul.f32 %v786, 1.442695
        %v874 = vpow.pop %v873
        %v875 = vmul.f32 %v787, 1.442695
        %v876 = vpow.pop %v875
        %v877 = vmul.f32 %v788, 1.442695
        %v878 = vpow.pop %v877
        %v879 = vmul.f32 %v789, 1.442695
        %v880 = vpow.pop %v879
        %v881 = vmul.f32 %v790, 1.442695
        %v882 = vpow.pop %v881
        %v883 = vmul.f32 %v791, 1.442695
        %v884 = vpow.pop %v883
        %v885 = vmul.f32 %v792, 1.442695
        %v886 = vpow.pop %v885
        %v887 = vmul.f32 %v793, 1.442695
        %v888 = vpow.pop %v887
        %v889 = vmul.f32 %v794, 1.442695
        %v890 = vpow.pop %v889
        %v891 = vmul.f32 %v795, 1.442695
        %v892 = vpow.pop %v891
        %v893 = vmul.f32 %v796, 1.442695
        %v894 = vpow.pop %v893
        %v895 = vmul.f32 %v797, 1.442695
        %v896 = vpow.pop %v895
        %v897 = vmul.f32 %v798, 1.442695
        %v898 = vpow.pop %v897
        %v899 = vmul.f32 %v799, 1.442695
        %v900 = vpow.pop %v899
        %v901 = vmul.f32 %v800, 1.442695
        %v902 = vpow.pop %v901
        %v903 = vmul.f32 %v801, 1.442695
        %v904 = vpow.pop %v903
        %v905 = vmul.f32 %v802, 1.442695
        %v906 = vpow.pop %v905
        %v907 = vmul.f32 %v803, 1.442695
        %v908 = vpow.pop %v907
        %v909 = vmul.f32 %v804, 1.442695
        %v910 = vpow.pop %v909
        %v911 = vmul.f32 %v805, 1.442695
        %v912 = vpow.pop %v911
        %v913 = vmul.f32 %v806, 1.442695
        %v914 = vpow.pop %v913
        %v915 = vmul.f32 %v807, 1.442695
        %v916 = vpow.pop %v915
        %v917 = vmul.f32 %v808, 1.442695
        %v918 = vpow.pop %v917
        %v919 = vmul.f32 %v809, 1.442695
        %v920 = vpow.pop %v919
        %v921 = vmul.f32 %v810, 1.442695
        %v922 = vpow.pop %v921
        %v923 = vmul.f32 %v811, 1.442695
        %v924 = vpow.pop %v923
        %v925 = vmul.f32 %v812, 1.442695
        %v926 = vpow.pop %v925
        %v927 = vmul.f32 %v813, 1.442695
        %v928 = vpow.pop %v927
        %v929 = vmul.f32 %v814, 1.442695
        %v930 = vpow.pop %v929
        %v931 = vmul.f32 %v815, 1.442695
        %v932 = vpow.pop %v931
        %v933 = vmul.f32 %v816, 1.442695
        %v934 = vpow.pop %v933
        %v935 = vmul.f32 %v817, 1.442695
        %v936 = vpow.pop %v935
        %v937 = vmul.f32 %v818, 1.442695
        %v938 = vpow.pop %v937
        %v939 = vmul.f32 %v819, 1.442695
        %v940 = vpow.pop %v939
        %v941 = vmul.f32 %v820, 1.442695
        %v942 = vpow.pop %v941
        %v943 = vmul.f32 %v821, 1.442695
        %v944 = vpow.pop %v943
        %v945 = vmul.f32 %v822, 1.442695
        %v946 = vpow.pop %v945
        %v947 = vmul.f32 %v823, 1.442695
        %v948 = vpow.pop %v947
        %v949 = vmul.f32 %v824, 1.442695
        %v950 = vpow.pop %v949
        %v951 = vmul.f32 %v825, 1.442695
        %v952 = vpow.pop %v951
        %v953 = vmul.f32 %v826, 1.442695
        %v954 = vpow.pop %v953
        %v955 = vadd.f32 %v828, %v830
        %v956 = vadd.f32 %v955, %v832
        %v957 = vadd.f32 %v956, %v834
        %958 = vadd.xlane.f32.xlu0 %v957
        %v959 = vpop.xlane.xlu0 %958
        %v960 = vadd.f32 %v836, %v838
        %v961 = vadd.f32 %v960, %v840
        %v962 = vadd.f32 %v961, %v842
        %963 = vadd.xlane.f32.xlu0 %v962
        %v964 = vpop.xlane.xlu0 %963
        %v965 = vadd.f32 %v844, %v846
        %v966 = vadd.f32 %v965, %v848
        %v967 = vadd.f32 %v966, %v850
        %968 = vadd.xlane.f32.xlu0 %v967
        %v969 = vpop.xlane.xlu0 %968
        %v970 = vadd.f32 %v852, %v854
        %v971 = vadd.f32 %v970, %v856
        %v972 = vadd.f32 %v971, %v858
        %973 = vadd.xlane.f32.xlu0 %v972
        %v974 = vpop.xlane.xlu0 %973
        %v975 = vadd.f32 %v860, %v862
        %v976 = vadd.f32 %v975, %v864
        %v977 = vadd.f32 %v976, %v866
        %978 = vadd.xlane.f32.xlu0 %v977
        %v979 = vpop.xlane.xlu0 %978
        %v980 = vadd.f32 %v868, %v870
        %v981 = vadd.f32 %v980, %v872
        %v982 = vadd.f32 %v981, %v874
        %983 = vadd.xlane.f32.xlu0 %v982
        %v984 = vpop.xlane.xlu0 %983
        %v985 = vadd.f32 %v876, %v878
        %v986 = vadd.f32 %v985, %v880
        %v987 = vadd.f32 %v986, %v882
        %988 = vadd.xlane.f32.xlu0 %v987
        %v989 = vpop.xlane.xlu0 %988
        %v990 = vadd.f32 %v884, %v886
        %v991 = vadd.f32 %v990, %v888
        %v992 = vadd.f32 %v991, %v890
        %993 = vadd.xlane.f32.xlu0 %v992
        %v994 = vpop.xlane.xlu0 %993
        %v995 = vadd.f32 %v892, %v894
        %v996 = vadd.f32 %v995, %v896
        %v997 = vadd.f32 %v996, %v898
        %998 = vadd.xlane.f32.xlu0 %v997
        %v999 = vpop.xlane.xlu0 %998
        %v1000 = vadd.f32 %v900, %v902
        %v1001 = vadd.f32 %v1000, %v904
        %v1002 = vadd.f32 %v1001, %v906
        %1003 = vadd.xlane.f32.xlu0 %v1002
        %v1004 = vpop.xlane.xlu0 %1003
        %v1005 = vadd.f32 %v908, %v910
        %v1006 = vadd.f32 %v1005, %v912
        %v1007 = vadd.f32 %v1006, %v914
        %1008 = vadd.xlane.f32.xlu0 %v1007
        %v1009 = vpop.xlane.xlu0 %1008
        %v1010 = vadd.f32 %v916, %v918
        %v1011 = vadd.f32 %v1010, %v920
        %v1012 = vadd.f32 %v1011, %v922
        %1013 = vadd.xlane.f32.xlu0 %v1012
        %v1014 = vpop.xlane.xlu0 %1013
        %v1015 = vadd.f32 %v924, %v926
        %v1016 = vadd.f32 %v1015, %v928
        %v1017 = vadd.f32 %v1016, %v930
        %1018 = vadd.xlane.f32.xlu0 %v1017
        %v1019 = vpop.xlane.xlu0 %1018
        %v1020 = vadd.f32 %v932, %v934
        %v1021 = vadd.f32 %v1020, %v936
        %v1022 = vadd.f32 %v1021, %v938
        %1023 = vadd.xlane.f32.xlu0 %v1022
        %v1024 = vpop.xlane.xlu0 %1023
        %v1025 = vadd.f32 %v940, %v942
        %v1026 = vadd.f32 %v1025, %v944
        %v1027 = vadd.f32 %v1026, %v946
        %1028 = vadd.xlane.f32.xlu0 %v1027
        %v1029 = vpop.xlane.xlu0 %1028
        %v1030 = vadd.f32 %v948, %v950
        %v1031 = vadd.f32 %v1030, %v952
        %v1032 = vadd.f32 %v1031, %v954
        %1033 = vadd.xlane.f32.xlu0 %v1032
        %v1034 = vpop.xlane.xlu0 %1033
        %v1035 = vrcp.pop %v959
        %v1036 = vmul.f32 %v828, %v1035
        %v1037 = vmul.f32 %v830, %v1035
        %v1038 = vmul.f32 %v832, %v1035
        %v1039 = vmul.f32 %v834, %v1035
        %v1040 = vrcp.pop %v964
        %v1041 = vmul.f32 %v836, %v1040
        %v1042 = vmul.f32 %v838, %v1040
        %v1043 = vmul.f32 %v840, %v1040
        %v1044 = vmul.f32 %v842, %v1040
        %v1045 = vrcp.pop %v969
        %v1046 = vmul.f32 %v844, %v1045
        %v1047 = vmul.f32 %v846, %v1045
        %v1048 = vmul.f32 %v848, %v1045
        %v1049 = vmul.f32 %v850, %v1045
        %v1050 = vrcp.pop %v974
        %v1051 = vmul.f32 %v852, %v1050
        %v1052 = vmul.f32 %v854, %v1050
        %v1053 = vmul.f32 %v856, %v1050
        %v1054 = vmul.f32 %v858, %v1050
        %v1055 = vrcp.pop %v979
        %v1056 = vmul.f32 %v860, %v1055
        %v1057 = vmul.f32 %v862, %v1055
        %v1058 = vmul.f32 %v864, %v1055
        %v1059 = vmul.f32 %v866, %v1055
        %v1060 = vrcp.pop %v984
        %v1061 = vmul.f32 %v868, %v1060
        %v1062 = vmul.f32 %v870, %v1060
        %v1063 = vmul.f32 %v872, %v1060
        %v1064 = vmul.f32 %v874, %v1060
        %v1065 = vrcp.pop %v989
        %v1066 = vmul.f32 %v876, %v1065
        %v1067 = vmul.f32 %v878, %v1065
        %v1068 = vmul.f32 %v880, %v1065
        %v1069 = vmul.f32 %v882, %v1065
        %v1070 = vrcp.pop %v994
        %v1071 = vmul.f32 %v884, %v1070
        %v1072 = vmul.f32 %v886, %v1070
        %v1073 = vmul.f32 %v888, %v1070
        %v1074 = vmul.f32 %v890, %v1070
        %v1075 = vrcp.pop %v999
        %v1076 = vmul.f32 %v892, %v1075
        %v1077 = vmul.f32 %v894, %v1075
        %v1078 = vmul.f32 %v896, %v1075
        %v1079 = vmul.f32 %v898, %v1075
        %v1080 = vrcp.pop %v1004
        %v1081 = vmul.f32 %v900, %v1080
        %v1082 = vmul.f32 %v902, %v1080
        %v1083 = vmul.f32 %v904, %v1080
        %v1084 = vmul.f32 %v906, %v1080
        %v1085 = vrcp.pop %v1009
        %v1086 = vmul.f32 %v908, %v1085
        %v1087 = vmul.f32 %v910, %v1085
        %v1088 = vmul.f32 %v912, %v1085
        %v1089 = vmul.f32 %v914, %v1085
        %v1090 = vrcp.pop %v1014
        %v1091 = vmul.f32 %v916, %v1090
        %v1092 = vmul.f32 %v918, %v1090
        %v1093 = vmul.f32 %v920, %v1090
        %v1094 = vmul.f32 %v922, %v1090
        %v1095 = vrcp.pop %v1019
        %v1096 = vmul.f32 %v924, %v1095
        %v1097 = vmul.f32 %v926, %v1095
        %v1098 = vmul.f32 %v928, %v1095
        %v1099 = vmul.f32 %v930, %v1095
        %v1100 = vrcp.pop %v1024
        %v1101 = vmul.f32 %v932, %v1100
        %v1102 = vmul.f32 %v934, %v1100
        %v1103 = vmul.f32 %v936, %v1100
        %v1104 = vmul.f32 %v938, %v1100
        %v1105 = vrcp.pop %v1029
        %v1106 = vmul.f32 %v940, %v1105
        %v1107 = vmul.f32 %v942, %v1105
        %v1108 = vmul.f32 %v944, %v1105
        %v1109 = vmul.f32 %v946, %v1105
        %v1110 = vrcp.pop %v1034
        %v1111 = vmul.f32 %v948, %v1110
        %v1112 = vmul.f32 %v950, %v1110
        %v1113 = vmul.f32 %v952, %v1110
        %v1114 = vmul.f32 %v954, %v1110
        %v1115 = vpack.c.bf16 %v1041, %v1036
        %v1116 = vpack.c.bf16 %v1042, %v1037
        %v1117 = vpack.c.bf16 %v1043, %v1038
        %v1118 = vpack.c.bf16 %v1044, %v1039
        %v1119 = vpack.c.bf16 %v1051, %v1046
        %v1120 = vpack.c.bf16 %v1052, %v1047
        %v1121 = vpack.c.bf16 %v1053, %v1048
        %v1122 = vpack.c.bf16 %v1054, %v1049
        %v1123 = vpack.c.bf16 %v1061, %v1056
        %v1124 = vpack.c.bf16 %v1062, %v1057
        %v1125 = vpack.c.bf16 %v1063, %v1058
        %v1126 = vpack.c.bf16 %v1064, %v1059
        %v1127 = vpack.c.bf16 %v1071, %v1066
        %v1128 = vpack.c.bf16 %v1072, %v1067
        %v1129 = vpack.c.bf16 %v1073, %v1068
        %v1130 = vpack.c.bf16 %v1074, %v1069
        %v1131 = vpack.c.bf16 %v1081, %v1076
        %v1132 = vpack.c.bf16 %v1082, %v1077
        %v1133 = vpack.c.bf16 %v1083, %v1078
        %v1134 = vpack.c.bf16 %v1084, %v1079
        %v1135 = vpack.c.bf16 %v1091, %v1086
        %v1136 = vpack.c.bf16 %v1092, %v1087
        %v1137 = vpack.c.bf16 %v1093, %v1088
        %v1138 = vpack.c.bf16 %v1094, %v1089
        %v1139 = vpack.c.bf16 %v1101, %v1096
        %v1140 = vpack.c.bf16 %v1102, %v1097
        %v1141 = vpack.c.bf16 %v1103, %v1098
        %v1142 = vpack.c.bf16 %v1104, %v1099
        %v1143 = vpack.c.bf16 %v1111, %v1106
        %v1144 = vpack.c.bf16 %v1112, %v1107
        %v1145 = vpack.c.bf16 %v1113, %v1108
        %v1146 = vpack.c.bf16 %v1114, %v1109
        %v1179 = vunpack.c.l.b16 %v1115
        %v1180 = vunpack.c.l.b16 %v1116
        %v1181 = vunpack.c.l.b16 %v1117
        %v1182 = vunpack.c.l.b16 %v1118
        %v1183 = vunpack.c.h.b16 %v1115
        %v1184 = vunpack.c.h.b16 %v1116
        %v1185 = vunpack.c.h.b16 %v1117
        %v1186 = vunpack.c.h.b16 %v1118
        %v1187 = vunpack.c.l.b16 %v1119
        %v1188 = vunpack.c.l.b16 %v1120
        %v1189 = vunpack.c.l.b16 %v1121
        %v1190 = vunpack.c.l.b16 %v1122
        %v1191 = vunpack.c.h.b16 %v1119
        %v1192 = vunpack.c.h.b16 %v1120
        %v1193 = vunpack.c.h.b16 %v1121
        %v1194 = vunpack.c.h.b16 %v1122
        %v1195 = vunpack.c.l.b16 %v1123
        %v1196 = vunpack.c.l.b16 %v1124
        %v1197 = vunpack.c.l.b16 %v1125
        %v1198 = vunpack.c.l.b16 %v1126
        %v1199 = vunpack.c.h.b16 %v1123
        %v1200 = vunpack.c.h.b16 %v1124
        %v1201 = vunpack.c.h.b16 %v1125
        %v1202 = vunpack.c.h.b16 %v1126
        %v1203 = vunpack.c.l.b16 %v1127
        %v1204 = vunpack.c.l.b16 %v1128
        %v1205 = vunpack.c.l.b16 %v1129
        %v1206 = vunpack.c.l.b16 %v1130
        %v1207 = vunpack.c.h.b16 %v1127
        %v1208 = vunpack.c.h.b16 %v1128
        %v1209 = vunpack.c.h.b16 %v1129
        %v1210 = vunpack.c.h.b16 %v1130
        %v1211 = vunpack.c.l.b16 %v1131
        %v1212 = vunpack.c.l.b16 %v1132
        %v1213 = vunpack.c.l.b16 %v1133
        %v1214 = vunpack.c.l.b16 %v1134
        %v1215 = vunpack.c.h.b16 %v1131
        %v1216 = vunpack.c.h.b16 %v1132
        %v1217 = vunpack.c.h.b16 %v1133
        %v1218 = vunpack.c.h.b16 %v1134
        %v1219 = vunpack.c.l.b16 %v1135
        %v1220 = vunpack.c.l.b16 %v1136
        %v1221 = vunpack.c.l.b16 %v1137
        %v1222 = vunpack.c.l.b16 %v1138
        %v1223 = vunpack.c.h.b16 %v1135
        %v1224 = vunpack.c.h.b16 %v1136
        %v1225 = vunpack.c.h.b16 %v1137
        %v1226 = vunpack.c.h.b16 %v1138
        %v1227 = vunpack.c.l.b16 %v1139
        %v1228 = vunpack.c.l.b16 %v1140
        %v1229 = vunpack.c.l.b16 %v1141
        %v1230 = vunpack.c.l.b16 %v1142
        %v1231 = vunpack.c.h.b16 %v1139
        %v1232 = vunpack.c.h.b16 %v1140
        %v1233 = vunpack.c.h.b16 %v1141
        %v1234 = vunpack.c.h.b16 %v1142
        %v1235 = vunpack.c.l.b16 %v1143
        %v1236 = vunpack.c.l.b16 %v1144
        %v1237 = vunpack.c.l.b16 %v1145
        %v1238 = vunpack.c.l.b16 %v1146
        %v1239 = vunpack.c.h.b16 %v1143
        %v1240 = vunpack.c.h.b16 %v1144
        %v1241 = vunpack.c.h.b16 %v1145
        %v1242 = vunpack.c.h.b16 %v1146
        %v1243 = vpack.c.b16 %v1180, %v1179
        %v1244 = vpack.c.b16 %v1182, %v1181
        %v1245 = vpack.c.b16 %v1184, %v1183
        %v1246 = vpack.c.b16 %v1186, %v1185
        %v1247 = vpack.c.b16 %v1188, %v1187
        %v1248 = vpack.c.b16 %v1190, %v1189
        %v1249 = vpack.c.b16 %v1192, %v1191
        %v1250 = vpack.c.b16 %v1194, %v1193
        %v1251 = vpack.c.b16 %v1196, %v1195
        %v1252 = vpack.c.b16 %v1198, %v1197
        %v1253 = vpack.c.b16 %v1200, %v1199
        %v1254 = vpack.c.b16 %v1202, %v1201
        %v1255 = vpack.c.b16 %v1204, %v1203
        %v1256 = vpack.c.b16 %v1206, %v1205
        %v1257 = vpack.c.b16 %v1208, %v1207
        %v1258 = vpack.c.b16 %v1210, %v1209
        %v1259 = vpack.c.b16 %v1212, %v1211
        %v1260 = vpack.c.b16 %v1214, %v1213
        %v1261 = vpack.c.b16 %v1216, %v1215
        %v1262 = vpack.c.b16 %v1218, %v1217
        %v1263 = vpack.c.b16 %v1220, %v1219
        %v1264 = vpack.c.b16 %v1222, %v1221
        %v1265 = vpack.c.b16 %v1224, %v1223
        %v1266 = vpack.c.b16 %v1226, %v1225
        %v1267 = vpack.c.b16 %v1228, %v1227
        %v1268 = vpack.c.b16 %v1230, %v1229
        %v1269 = vpack.c.b16 %v1232, %v1231
        %v1270 = vpack.c.b16 %v1234, %v1233
        %v1271 = vpack.c.b16 %v1236, %v1235
        %v1272 = vpack.c.b16 %v1238, %v1237
        %v1273 = vpack.c.b16 %v1240, %v1239
        %v1274 = vpack.c.b16 %v1242, %v1241
        %1307 = vst [vmem:[%s574] sm:$0xff] %v1243
        %1308 = vst [vmem:[%s574 + $0x8] sm:$0xff] %v1244
        %1309 = vst [vmem:[%s574 + $0x10] sm:$0xff] %v1245
        %1310 = vst [vmem:[%s574 + $0x18] sm:$0xff] %v1246
        %1311 = vst [vmem:[%s574 + $0x20] sm:$0xff] %v1247
        %1312 = vst [vmem:[%s574 + $0x28] sm:$0xff] %v1248
        %1313 = vst [vmem:[%s574 + $0x30] sm:$0xff] %v1249
        %1314 = vst [vmem:[%s574 + $0x38] sm:$0xff] %v1250
        %1315 = vst [vmem:[%s574 + $0x40] sm:$0xff] %v1251
        %1316 = vst [vmem:[%s574 + $0x48] sm:$0xff] %v1252
        %1317 = vst [vmem:[%s574 + $0x50] sm:$0xff] %v1253
        %1318 = vst [vmem:[%s574 + $0x58] sm:$0xff] %v1254
        %1319 = vst [vmem:[%s574 + $0x60] sm:$0xff] %v1255
        %1320 = vst [vmem:[%s574 + $0x68] sm:$0xff] %v1256
        %1321 = vst [vmem:[%s574 + $0x70] sm:$0xff] %v1257
        %1322 = vst [vmem:[%s574 + $0x78] sm:$0xff] %v1258
        %1323 = vst [vmem:[%s574 + $0x80] sm:$0xff] %v1259
        %1324 = vst [vmem:[%s574 + $0x88] sm:$0xff] %v1260
        %1325 = vst [vmem:[%s574 + $0x90] sm:$0xff] %v1261
        %1326 = vst [vmem:[%s574 + $0x98] sm:$0xff] %v1262
        %1327 = vst [vmem:[%s574 + $0xa0] sm:$0xff] %v1263
        %1328 = vst [vmem:[%s574 + $0xa8] sm:$0xff] %v1264
        %1329 = vst [vmem:[%s574 + $0xb0] sm:$0xff] %v1265
        %1330 = vst [vmem:[%s574 + $0xb8] sm:$0xff] %v1266
        %1331 = vst [vmem:[%s574 + $0xc0] sm:$0xff] %v1267
        %1332 = vst [vmem:[%s574 + $0xc8] sm:$0xff] %v1268
        %1333 = vst [vmem:[%s574 + $0xd0] sm:$0xff] %v1269
        %1334 = vst [vmem:[%s574 + $0xd8] sm:$0xff] %v1270
        %1335 = vst [vmem:[%s574 + $0xe0] sm:$0xff] %v1271
        %1336 = vst [vmem:[%s574 + $0xe8] sm:$0xff] %v1272
        %1337 = vst [vmem:[%s574 + $0xf0] sm:$0xff] %v1273
        %1338 = vst [vmem:[%s574 + $0xf8] sm:$0xff] %v1274
        %v1339 = vld [vmem:[%s2] sm:$0xf]
        %v1340 = vld [vmem:[%s2 + $0x4] sm:$0xf]
        %v1341 = vld [vmem:[%s2 + $0x8] sm:$0xf]
        %v1342 = vld [vmem:[%s2 + $0xc] sm:$0xf]
        %v1343 = vld [vmem:[%s2 + $0x10] sm:$0xf]
        %v1344 = vld [vmem:[%s2 + $0x14] sm:$0xf]
        %v1345 = vld [vmem:[%s2 + $0x18] sm:$0xf]
        %v1346 = vld [vmem:[%s2 + $0x1c] sm:$0xf]
        %v1347 = vld [vmem:[%s2 + $0x20] sm:$0xf]
        %v1348 = vld [vmem:[%s2 + $0x24] sm:$0xf]
        %v1349 = vld [vmem:[%s2 + $0x28] sm:$0xf]
        %v1350 = vld [vmem:[%s2 + $0x2c] sm:$0xf]
        %v1351 = vld [vmem:[%s2 + $0x30] sm:$0xf]
        %v1352 = vld [vmem:[%s2 + $0x34] sm:$0xf]
        %v1353 = vld [vmem:[%s2 + $0x38] sm:$0xf]
        %v1354 = vld [vmem:[%s2 + $0x3c] sm:$0xf]
        %v1355 = vld [vmem:[%s2 + $0x40] sm:$0xf]
        %v1356 = vld [vmem:[%s2 + $0x44] sm:$0xf]
        %v1357 = vld [vmem:[%s2 + $0x48] sm:$0xf]
        %v1358 = vld [vmem:[%s2 + $0x4c] sm:$0xf]
        %v1359 = vld [vmem:[%s2 + $0x50] sm:$0xf]
        %v1360 = vld [vmem:[%s2 + $0x54] sm:$0xf]
        %v1361 = vld [vmem:[%s2 + $0x58] sm:$0xf]
        %v1362 = vld [vmem:[%s2 + $0x5c] sm:$0xf]
        %v1363 = vld [vmem:[%s2 + $0x60] sm:$0xf]
        %v1364 = vld [vmem:[%s2 + $0x64] sm:$0xf]
        %v1365 = vld [vmem:[%s2 + $0x68] sm:$0xf]
        %v1366 = vld [vmem:[%s2 + $0x6c] sm:$0xf]
        %v1367 = vld [vmem:[%s2 + $0x70] sm:$0xf]
        %v1368 = vld [vmem:[%s2 + $0x74] sm:$0xf]
        %v1369 = vld [vmem:[%s2 + $0x78] sm:$0xf]
        %v1370 = vld [vmem:[%s2 + $0x7c] sm:$0xf]
        %v1371 = vld [vmem:[%s2 + $0x80] sm:$0xf]
        %v1372 = vld [vmem:[%s2 + $0x84] sm:$0xf]
        %v1373 = vld [vmem:[%s2 + $0x88] sm:$0xf]
        %v1374 = vld [vmem:[%s2 + $0x8c] sm:$0xf]
        %v1375 = vld [vmem:[%s2 + $0x90] sm:$0xf]
        %v1376 = vld [vmem:[%s2 + $0x94] sm:$0xf]
        %v1377 = vld [vmem:[%s2 + $0x98] sm:$0xf]
        %v1378 = vld [vmem:[%s2 + $0x9c] sm:$0xf]
        %v1379 = vld [vmem:[%s2 + $0xa0] sm:$0xf]
        %v1380 = vld [vmem:[%s2 + $0xa4] sm:$0xf]
        %v1381 = vld [vmem:[%s2 + $0xa8] sm:$0xf]
        %v1382 = vld [vmem:[%s2 + $0xac] sm:$0xf]
        %v1383 = vld [vmem:[%s2 + $0xb0] sm:$0xf]
        %v1384 = vld [vmem:[%s2 + $0xb4] sm:$0xf]
        %v1385 = vld [vmem:[%s2 + $0xb8] sm:$0xf]
        %v1386 = vld [vmem:[%s2 + $0xbc] sm:$0xf]
        %v1387 = vld [vmem:[%s2 + $0xc0] sm:$0xf]
        %v1388 = vld [vmem:[%s2 + $0xc4] sm:$0xf]
        %v1389 = vld [vmem:[%s2 + $0xc8] sm:$0xf]
        %v1390 = vld [vmem:[%s2 + $0xcc] sm:$0xf]
        %v1391 = vld [vmem:[%s2 + $0xd0] sm:$0xf]
        %v1392 = vld [vmem:[%s2 + $0xd4] sm:$0xf]
        %v1393 = vld [vmem:[%s2 + $0xd8] sm:$0xf]
        %v1394 = vld [vmem:[%s2 + $0xdc] sm:$0xf]
        %v1395 = vld [vmem:[%s2 + $0xe0] sm:$0xf]
        %v1396 = vld [vmem:[%s2 + $0xe4] sm:$0xf]
        %v1397 = vld [vmem:[%s2 + $0xe8] sm:$0xf]
        %v1398 = vld [vmem:[%s2 + $0xec] sm:$0xf]
        %v1399 = vld [vmem:[%s2 + $0xf0] sm:$0xf]
        %v1400 = vld [vmem:[%s2 + $0xf4] sm:$0xf]
        %v1401 = vld [vmem:[%s2 + $0xf8] sm:$0xf]
        %v1402 = vld [vmem:[%s2 + $0xfc] sm:$0xf]
        %v1467 = vunpack.c.l.b16 %v1339
        %v1468 = vunpack.c.l.b16 %v1340
        %v1469 = vunpack.c.l.b16 %v1341
        %v1470 = vunpack.c.l.b16 %v1342
        %v1471 = vunpack.c.l.b16 %v1343
        %v1472 = vunpack.c.l.b16 %v1344
        %v1473 = vunpack.c.l.b16 %v1345
        %v1474 = vunpack.c.l.b16 %v1346
        %v1475 = vunpack.c.l.b16 %v1347
        %v1476 = vunpack.c.l.b16 %v1348
        %v1477 = vunpack.c.l.b16 %v1349
        %v1478 = vunpack.c.l.b16 %v1350
        %v1479 = vunpack.c.l.b16 %v1351
        %v1480 = vunpack.c.l.b16 %v1352
        %v1481 = vunpack.c.l.b16 %v1353
        %v1482 = vunpack.c.l.b16 %v1354
        %v1483 = vunpack.c.l.b16 %v1355
        %v1484 = vunpack.c.l.b16 %v1356
        %v1485 = vunpack.c.l.b16 %v1357
        %v1486 = vunpack.c.l.b16 %v1358
        %v1487 = vunpack.c.l.b16 %v1359
        %v1488 = vunpack.c.l.b16 %v1360
        %v1489 = vunpack.c.l.b16 %v1361
        %v1490 = vunpack.c.l.b16 %v1362
        %v1491 = vunpack.c.l.b16 %v1363
        %v1492 = vunpack.c.l.b16 %v1364
        %v1493 = vunpack.c.l.b16 %v1365
        %v1494 = vunpack.c.l.b16 %v1366
        %v1495 = vunpack.c.l.b16 %v1367
        %v1496 = vunpack.c.l.b16 %v1368
        %v1497 = vunpack.c.l.b16 %v1369
        %v1498 = vunpack.c.l.b16 %v1370
        %v1499 = vunpack.c.l.b16 %v1371
        %v1500 = vunpack.c.l.b16 %v1372
        %v1501 = vunpack.c.l.b16 %v1373
        %v1502 = vunpack.c.l.b16 %v1374
        %v1503 = vunpack.c.l.b16 %v1375
        %v1504 = vunpack.c.l.b16 %v1376
        %v1505 = vunpack.c.l.b16 %v1377
        %v1506 = vunpack.c.l.b16 %v1378
        %v1507 = vunpack.c.l.b16 %v1379
        %v1508 = vunpack.c.l.b16 %v1380
        %v1509 = vunpack.c.l.b16 %v1381
        %v1510 = vunpack.c.l.b16 %v1382
        %v1511 = vunpack.c.l.b16 %v1383
        %v1512 = vunpack.c.l.b16 %v1384
        %v1513 = vunpack.c.l.b16 %v1385
        %v1514 = vunpack.c.l.b16 %v1386
        %v1515 = vunpack.c.l.b16 %v1387
        %v1516 = vunpack.c.l.b16 %v1388
        %v1517 = vunpack.c.l.b16 %v1389
        %v1518 = vunpack.c.l.b16 %v1390
        %v1519 = vunpack.c.l.b16 %v1391
        %v1520 = vunpack.c.l.b16 %v1392
        %v1521 = vunpack.c.l.b16 %v1393
        %v1522 = vunpack.c.l.b16 %v1394
        %v1523 = vunpack.c.l.b16 %v1395
        %v1524 = vunpack.c.l.b16 %v1396
        %v1525 = vunpack.c.l.b16 %v1397
        %v1526 = vunpack.c.l.b16 %v1398
        %v1527 = vunpack.c.l.b16 %v1399
        %v1528 = vunpack.c.l.b16 %v1400
        %v1529 = vunpack.c.l.b16 %v1401
        %v1530 = vunpack.c.l.b16 %v1402
        %v1531 = vpack.c.b16 %v1468, %v1467
        %v1532 = vpack.c.b16 %v1470, %v1469
        %v1533 = vpack.c.b16 %v1472, %v1471
        %v1534 = vpack.c.b16 %v1474, %v1473
        %v1535 = vpack.c.b16 %v1476, %v1475
        %v1536 = vpack.c.b16 %v1478, %v1477
        %v1537 = vpack.c.b16 %v1480, %v1479
        %v1538 = vpack.c.b16 %v1482, %v1481
        %v1539 = vpack.c.b16 %v1484, %v1483
        %v1540 = vpack.c.b16 %v1486, %v1485
        %v1541 = vpack.c.b16 %v1488, %v1487
        %v1542 = vpack.c.b16 %v1490, %v1489
        %v1543 = vpack.c.b16 %v1492, %v1491
        %v1544 = vpack.c.b16 %v1494, %v1493
        %v1545 = vpack.c.b16 %v1496, %v1495
        %v1546 = vpack.c.b16 %v1498, %v1497
        %v1547 = vpack.c.b16 %v1500, %v1499
        %v1548 = vpack.c.b16 %v1502, %v1501
        %v1549 = vpack.c.b16 %v1504, %v1503
        %v1550 = vpack.c.b16 %v1506, %v1505
        %v1551 = vpack.c.b16 %v1508, %v1507
        %v1552 = vpack.c.b16 %v1510, %v1509
        %v1553 = vpack.c.b16 %v1512, %v1511
        %v1554 = vpack.c.b16 %v1514, %v1513
        %v1555 = vpack.c.b16 %v1516, %v1515
        %v1556 = vpack.c.b16 %v1518, %v1517
        %v1557 = vpack.c.b16 %v1520, %v1519
        %v1558 = vpack.c.b16 %v1522, %v1521
        %v1559 = vpack.c.b16 %v1524, %v1523
        %v1560 = vpack.c.b16 %v1526, %v1525
        %v1561 = vpack.c.b16 %v1528, %v1527
        %v1562 = vpack.c.b16 %v1530, %v1529
        %1595 = vmatprep.subr.bf16.mxu0 0
        %1596 = vmatpush1.bf16.msra.mxu0 %v1531
        %1597 = vmatprep.subr.bf16.mxu0 0
        %1598 = vmatpush1.bf16.msra.mxu0 %v1532
        %1599 = vmatprep.subr.bf16.mxu0 0
        %1600 = vmatpush1.bf16.msra.mxu0 %v1533
        %1601 = vmatprep.subr.bf16.mxu0 0
        %1602 = vmatpush1.bf16.msra.mxu0 %v1534
        %1603 = vmatprep.subr.bf16.mxu0 0
        %1604 = vmatpush1.bf16.msra.mxu0 %v1535
        %1605 = vmatprep.subr.bf16.mxu0 0
        %1606 = vmatpush1.bf16.msra.mxu0 %v1536
        %1607 = vmatprep.subr.bf16.mxu0 0
        %1608 = vmatpush1.bf16.msra.mxu0 %v1537
        %1609 = vmatprep.subr.bf16.mxu0 0
        %1610 = vmatpush1.bf16.msra.mxu0 %v1538
        %1611 = vmatprep.subr.bf16.mxu0 0
        %1612 = vmatpush1.bf16.msra.mxu0 %v1539
        %1613 = vmatprep.subr.bf16.mxu0 0
        %1614 = vmatpush1.bf16.msra.mxu0 %v1540
        %1615 = vmatprep.subr.bf16.mxu0 0
        %1616 = vmatpush1.bf16.msra.mxu0 %v1541
        %1617 = vmatprep.subr.bf16.mxu0 0
        %1618 = vmatpush1.bf16.msra.mxu0 %v1542
        %1619 = vmatprep.subr.bf16.mxu0 0
        %1620 = vmatpush1.bf16.msra.mxu0 %v1543
        %1621 = vmatprep.subr.bf16.mxu0 0
        %1622 = vmatpush1.bf16.msra.mxu0 %v1544
        %1623 = vmatprep.subr.bf16.mxu0 0
        %1624 = vmatpush1.bf16.msra.mxu0 %v1545
        %1625 = vmatprep.subr.bf16.mxu0 0
        %1626 = vmatpush1.bf16.msra.mxu0 %v1546
        %1627 = vmatprep.mubr.bf16.mxu0 %v1116
        %1628 = vmatmul.mubr.bf16.gmra.mrb[0].mxu0 %v1115
        %v1629 = vpop.f32.mrb[0].mxu0
        %v1630 = vadd.f32 0.0, %v1629
        %v1631 = vpop.f32.mrb[0].mxu0
        %v1632 = vpop.f32.mrb[0].mxu0
        %v1633 = vadd.f32 0.0, %v1632
        %v1634 = vpop.f32.mrb[0].mxu0
        %1635 = vmatprep.mubr.bf16.mxu0 %v1120
        %1636 = vmatmul.mubr.bf16.gmra.mrb[0].mxu0 %v1119
        %v1637 = vpop.f32.mrb[0].mxu0
        %v1638 = vadd.f32 0.0, %v1637
        %v1639 = vpop.f32.mrb[0].mxu0
        %v1640 = vpop.f32.mrb[0].mxu0
        %v1641 = vadd.f32 0.0, %v1640
        %v1642 = vpop.f32.mrb[0].mxu0
        %1643 = vmatprep.mubr.bf16.mxu0 %v1124
        %1644 = vmatmul.mubr.bf16.gmra.mrb[0].mxu0 %v1123
        %v1645 = vpop.f32.mrb[0].mxu0
        %v1646 = vadd.f32 0.0, %v1645
        %v1647 = vpop.f32.mrb[0].mxu0
        %v1648 = vpop.f32.mrb[0].mxu0
        %v1649 = vadd.f32 0.0, %v1648
        %v1650 = vpop.f32.mrb[0].mxu0
        %1651 = vmatprep.mubr.bf16.mxu0 %v1128
        %1652 = vmatmul.mubr.bf16.gmra.mrb[0].mxu0 %v1127
        %v1653 = vpop.f32.mrb[0].mxu0
        %v1654 = vadd.f32 0.0, %v1653
        %v1655 = vpop.f32.mrb[0].mxu0
        %v1656 = vpop.f32.mrb[0].mxu0
        %v1657 = vadd.f32 0.0, %v1656
        %v1658 = vpop.f32.mrb[0].mxu0
        %1659 = vmatprep.mubr.bf16.mxu0 %v1132
        %1660 = vmatmul.mubr.bf16.gmra.mrb[0].mxu0 %v1131
        %v1661 = vpop.f32.mrb[0].mxu0
        %v1662 = vadd.f32 0.0, %v1661
        %v1663 = vpop.f32.mrb[0].mxu0
        %v1664 = vpop.f32.mrb[0].mxu0
        %v1665 = vadd.f32 0.0, %v1664
        %v1666 = vpop.f32.mrb[0].mxu0
        %1667 = vmatprep.mubr.bf16.mxu0 %v1136
        %1668 = vmatmul.mubr.bf16.gmra.mrb[0].mxu0 %v1135
        %v1669 = vpop.f32.mrb[0].mxu0
        %v1670 = vadd.f32 0.0, %v1669
        %v1671 = vpop.f32.mrb[0].mxu0
        %v1672 = vpop.f32.mrb[0].mxu0
        %v1673 = vadd.f32 0.0, %v1672
        %v1674 = vpop.f32.mrb[0].mxu0
        %1675 = vmatprep.mubr.bf16.mxu0 %v1140
        %1676 = vmatmul.mubr.bf16.gmra.mrb[0].mxu0 %v1139
        %v1677 = vpop.f32.mrb[0].mxu0
        %v1678 = vadd.f32 0.0, %v1677
        %v1679 = vpop.f32.mrb[0].mxu0
        %v1680 = vpop.f32.mrb[0].mxu0
        %v1681 = vadd.f32 0.0, %v1680
        %v1682 = vpop.f32.mrb[0].mxu0
        %1683 = vmatprep.mubr.bf16.mxu0 %v1144
        %1684 = vmatmul.mubr.bf16.gmra.mrb[0].mxu0 %v1143
        %v1685 = vpop.f32.mrb[0].mxu0
        %v1686 = vadd.f32 0.0, %v1685
        %v1687 = vpop.f32.mrb[0].mxu0
        %v1688 = vpop.f32.mrb[0].mxu0
        %v1689 = vadd.f32 0.0, %v1688
        %v1690 = vpop.f32.mrb[0].mxu0
        %1691 = vdwg.mxu0
        %1692 = vmatprep.subr.bf16.mxu0 0
        %1693 = vmatpush1.bf16.msra.mxu0 %v1547
        %1694 = vmatprep.subr.bf16.mxu0 0
        %1695 = vmatpush1.bf16.msra.mxu0 %v1548
        %1696 = vmatprep.subr.bf16.mxu0 0
        %1697 = vmatpush1.bf16.msra.mxu0 %v1549
        %1698 = vmatprep.subr.bf16.mxu0 0
        %1699 = vmatpush1.bf16.msra.mxu0 %v1550
        %1700 = vmatprep.subr.bf16.mxu0 0
        %1701 = vmatpush1.bf16.msra.mxu0 %v1551
        %1702 = vmatprep.subr.bf16.mxu0 0
        %1703 = vmatpush1.bf16.msra.mxu0 %v1552
        %1704 = vmatprep.subr.bf16.mxu0 0
        %1705 = vmatpush1.bf16.msra.mxu0 %v1553
        %1706 = vmatprep.subr.bf16.mxu0 0
        %1707 = vmatpush1.bf16.msra.mxu0 %v1554
        %1708 = vmatprep.subr.bf16.mxu0 0
        %1709 = vmatpush1.bf16.msra.mxu0 %v1555
        %1710 = vmatprep.subr.bf16.mxu0 0
        %1711 = vmatpush1.bf16.msra.mxu0 %v1556
        %1712 = vmatprep.subr.bf16.mxu0 0
        %1713 = vmatpush1.bf16.msra.mxu0 %v1557
        %1714 = vmatprep.subr.bf16.mxu0 0
        %1715 = vmatpush1.bf16.msra.mxu0 %v1558
        %1716 = vmatprep.subr.bf16.mxu0 0
        %1717 = vmatpush1.bf16.msra.mxu0 %v1559
        %1718 = vmatprep.subr.bf16.mxu0 0
        %1719 = vmatpush1.bf16.msra.mxu0 %v1560
        %1720 = vmatprep.subr.bf16.mxu0 0
        %1721 = vmatpush1.bf16.msra.mxu0 %v1561
        %1722 = vmatprep.subr.bf16.mxu0 0
        %1723 = vmatpush1.bf16.msra.mxu0 %v1562
        %1724 = vmatprep.mubr.bf16.mxu0 %v1118
        %1725 = vmatmul.mubr.bf16.gmra.mrb[0].mxu0 %v1117
        %v1726 = vpop.f32.mrb[0].mxu0
        %v1727 = vadd.f32 %v1630, %v1726
        %v1728 = vpop.f32.mrb[0].mxu0
        %v1729 = vpop.f32.mrb[0].mxu0
        %v1730 = vadd.f32 %v1633, %v1729
        %v1731 = vpop.f32.mrb[0].mxu0
        %1732 = vmatprep.mubr.bf16.mxu0 %v1122
        %1733 = vmatmul.mubr.bf16.gmra.mrb[0].mxu0 %v1121
        %v1734 = vpop.f32.mrb[0].mxu0
        %v1735 = vadd.f32 %v1638, %v1734
        %v1736 = vpop.f32.mrb[0].mxu0
        %v1737 = vpop.f32.mrb[0].mxu0
        %v1738 = vadd.f32 %v1641, %v1737
        %v1739 = vpop.f32.mrb[0].mxu0
        %1740 = vmatprep.mubr.bf16.mxu0 %v1126
        %1741 = vmatmul.mubr.bf16.gmra.mrb[0].mxu0 %v1125
        %v1742 = vpop.f32.mrb[0].mxu0
        %v1743 = vadd.f32 %v1646, %v1742
        %v1744 = vpop.f32.mrb[0].mxu0
        %v1745 = vpop.f32.mrb[0].mxu0
        %v1746 = vadd.f32 %v1649, %v1745
        %v1747 = vpop.f32.mrb[0].mxu0
        %1748 = vmatprep.mubr.bf16.mxu0 %v1130
        %1749 = vmatmul.mubr.bf16.gmra.mrb[0].mxu0 %v1129
        %v1750 = vpop.f32.mrb[0].mxu0
        %v1751 = vadd.f32 %v1654, %v1750
        %v1752 = vpop.f32.mrb[0].mxu0
        %v1753 = vpop.f32.mrb[0].mxu0
        %v1754 = vadd.f32 %v1657, %v1753
        %v1755 = vpop.f32.mrb[0].mxu0
        %1756 = vmatprep.mubr.bf16.mxu0 %v1134
        %1757 = vmatmul.mubr.bf16.gmra.mrb[0].mxu0 %v1133
        %v1758 = vpop.f32.mrb[0].mxu0
        %v1759 = vadd.f32 %v1662, %v1758
        %v1760 = vpop.f32.mrb[0].mxu0
        %v1761 = vpop.f32.mrb[0].mxu0
        %v1762 = vadd.f32 %v1665, %v1761
        %v1763 = vpop.f32.mrb[0].mxu0
        %1764 = vmatprep.mubr.bf16.mxu0 %v1138
        %1765 = vmatmul.mubr.bf16.gmra.mrb[0].mxu0 %v1137
        %v1766 = vpop.f32.mrb[0].mxu0
        %v1767 = vadd.f32 %v1670, %v1766
        %v1768 = vpop.f32.mrb[0].mxu0
        %v1769 = vpop.f32.mrb[0].mxu0
        %v1770 = vadd.f32 %v1673, %v1769
        %v1771 = vpop.f32.mrb[0].mxu0
        %1772 = vmatprep.mubr.bf16.mxu0 %v1142
        %1773 = vmatmul.mubr.bf16.gmra.mrb[0].mxu0 %v1141
        %v1774 = vpop.f32.mrb[0].mxu0
        %v1775 = vadd.f32 %v1678, %v1774
        %v1776 = vpop.f32.mrb[0].mxu0
        %v1777 = vpop.f32.mrb[0].mxu0
        %v1778 = vadd.f32 %v1681, %v1777
        %v1779 = vpop.f32.mrb[0].mxu0
        %1780 = vmatprep.mubr.bf16.mxu0 %v1146
        %1781 = vmatmul.mubr.bf16.gmra.mrb[0].mxu0 %v1145
        %v1782 = vpop.f32.mrb[0].mxu0
        %v1783 = vadd.f32 %v1686, %v1782
        %v1784 = vpop.f32.mrb[0].mxu0
        %v1785 = vpop.f32.mrb[0].mxu0
        %v1786 = vadd.f32 %v1689, %v1785
        %v1787 = vpop.f32.mrb[0].mxu0
        %1788 = vdwg.mxu0
        %v1789 = vmax.f32 %v1727, 0.0
        %v1790 = vmax.f32 %v1730, 0.0
        %v1791 = vmax.f32 %v1735, 0.0
        %v1792 = vmax.f32 %v1738, 0.0
        %v1793 = vmax.f32 %v1743, 0.0
        %v1794 = vmax.f32 %v1746, 0.0
        %v1795 = vmax.f32 %v1751, 0.0
        %v1796 = vmax.f32 %v1754, 0.0
        %v1797 = vmax.f32 %v1759, 0.0
        %v1798 = vmax.f32 %v1762, 0.0
        %v1799 = vmax.f32 %v1767, 0.0
        %v1800 = vmax.f32 %v1770, 0.0
        %v1801 = vmax.f32 %v1775, 0.0
        %v1802 = vmax.f32 %v1778, 0.0
        %v1803 = vmax.f32 %v1783, 0.0
        %v1804 = vmax.f32 %v1786, 0.0
        %v1805 = vpack.c.bf16 %v1790, %v1789
        %v1806 = vpack.c.bf16 %v1792, %v1791
        %v1807 = vpack.c.bf16 %v1794, %v1793
        %v1808 = vpack.c.bf16 %v1796, %v1795
        %v1809 = vpack.c.bf16 %v1798, %v1797
        %v1810 = vpack.c.bf16 %v1800, %v1799
        %v1811 = vpack.c.bf16 %v1802, %v1801
        %v1812 = vpack.c.bf16 %v1804, %v1803
        %v1813 = vld [vmem:[#allocation5] sm:$0xf]
        %v1814 = vld [vmem:[#allocation5 + $0x4] sm:$0xf]
        %v1815 = vld [vmem:[#allocation5 + $0x8] sm:$0xf]
        %v1816 = vld [vmem:[#allocation5 + $0xc] sm:$0xf]
        %v1817 = vld [vmem:[#allocation5 + $0x10] sm:$0xf]
        %v1818 = vld [vmem:[#allocation5 + $0x14] sm:$0xf]
        %v1819 = vld [vmem:[#allocation5 + $0x18] sm:$0xf]
        %v1820 = vld [vmem:[#allocation5 + $0x1c] sm:$0xf]
        %v1821 = vld [vmem:[#allocation5 + $0x20] sm:$0xf]
        %v1822 = vld [vmem:[#allocation5 + $0x24] sm:$0xf]
        %v1823 = vld [vmem:[#allocation5 + $0x28] sm:$0xf]
        %v1824 = vld [vmem:[#allocation5 + $0x2c] sm:$0xf]
        %v1825 = vld [vmem:[#allocation5 + $0x30] sm:$0xf]
        %v1826 = vld [vmem:[#allocation5 + $0x34] sm:$0xf]
        %v1827 = vld [vmem:[#allocation5 + $0x38] sm:$0xf]
        %v1828 = vld [vmem:[#allocation5 + $0x3c] sm:$0xf]
        %v1829 = vld [vmem:[%s4] sm:$0x1]
        %v1831 = vlaneseq
        %v1832 = vshrl.u32 %v1831, 7
        %v1833 = vsub.s32 0, %v1832
        %v1834 = vrot.slane %v1829, %v1833
        %v1852 = vunpack.c.l.b16 %v1813
        %v1853 = vunpack.c.l.b16 %v1814
        %v1854 = vunpack.c.l.b16 %v1815
        %v1855 = vunpack.c.l.b16 %v1816
        %v1856 = vunpack.c.l.b16 %v1817
        %v1857 = vunpack.c.l.b16 %v1818
        %v1858 = vunpack.c.l.b16 %v1819
        %v1859 = vunpack.c.l.b16 %v1820
        %v1860 = vunpack.c.l.b16 %v1821
        %v1861 = vunpack.c.l.b16 %v1822
        %v1862 = vunpack.c.l.b16 %v1823
        %v1863 = vunpack.c.l.b16 %v1824
        %v1864 = vunpack.c.l.b16 %v1825
        %v1865 = vunpack.c.l.b16 %v1826
        %v1866 = vunpack.c.l.b16 %v1827
        %v1867 = vunpack.c.l.b16 %v1828
        %v1868 = vpack.c.b16 %v1853, %v1852
        %v1869 = vpack.c.b16 %v1855, %v1854
        %v1870 = vpack.c.b16 %v1857, %v1856
        %v1871 = vpack.c.b16 %v1859, %v1858
        %v1872 = vpack.c.b16 %v1861, %v1860
        %v1873 = vpack.c.b16 %v1863, %v1862
        %v1874 = vpack.c.b16 %v1865, %v1864
        %v1875 = vpack.c.b16 %v1867, %v1866
        %1884 = vmatprep.subr.bf16.mxu0 0
        %1885 = vmatpush1.bf16.msra.mxu0 %v1868
        %1886 = vmatprep.subr.bf16.mxu0 0
        %1887 = vmatpush1.bf16.msra.mxu0 %v1869
        %1888 = vmatprep.subr.bf16.mxu0 0
        %1889 = vmatpush1.bf16.msra.mxu0 %v1870
        %1890 = vmatprep.subr.bf16.mxu0 0
        %1891 = vmatpush1.bf16.msra.mxu0 %v1871
        %1892 = vmatprep.subr.bf16.mxu0 0
        %1893 = vmatpush1.bf16.msra.mxu0 %v1872
        %1894 = vmatprep.subr.bf16.mxu0 0
        %1895 = vmatpush1.bf16.msra.mxu0 %v1873
        %1896 = vmatprep.subr.bf16.mxu0 0
        %1897 = vmatpush1.bf16.msra.mxu0 %v1874
        %1898 = vmatprep.subr.bf16.mxu0 0
        %1899 = vmatpush1.bf16.msra.mxu0 %v1875
        %1900 = vmatprep.subr.bf16.mxu0 0
        %1901 = vmatpush1.bf16.msra.mxu0 0
        %1902 = vmatprep.subr.bf16.mxu0 0
        %1903 = vmatpush1.bf16.msra.mxu0 0
        %1904 = vmatprep.subr.bf16.mxu0 0
        %1905 = vmatpush1.bf16.msra.mxu0 0
        %1906 = vmatprep.subr.bf16.mxu0 0
        %1907 = vmatpush1.bf16.msra.mxu0 0
        %1908 = vmatprep.subr.bf16.mxu0 0
        %1909 = vmatpush1.bf16.msra.mxu0 0
        %1910 = vmatprep.subr.bf16.mxu0 0
        %1911 = vmatpush1.bf16.msra.mxu0 0
        %1912 = vmatprep.subr.bf16.mxu0 0
        %1913 = vmatpush1.bf16.msra.mxu0 0
        %1914 = vmatprep.subr.bf16.mxu0 0
        %1915 = vmatpush1.bf16.msra.mxu0 0
        %1916 = vmatprep.mubr.bf16.mxu0 0
        %1917 = vmatmul.mubr.bf16.gmra.mrb[0].mxu0 %v1805
        %v1918 = vpop.f32.mrb[0].mxu0
        %v1919 = vadd.f32 %v1834, %v1918
        %v1920 = vpop.f32.mrb[0].mxu0
        %v1921 = vpop.f32.mrb[0].mxu0
        %v1922 = vadd.f32 %v1834, %v1921
        %v1923 = vpop.f32.mrb[0].mxu0
        %1924 = vmatprep.mubr.bf16.mxu0 0
        %1925 = vmatmul.mubr.bf16.gmra.mrb[0].mxu0 %v1806
        %v1926 = vpop.f32.mrb[0].mxu0
        %v1927 = vadd.f32 %v1834, %v1926
        %v1928 = vpop.f32.mrb[0].mxu0
        %v1929 = vpop.f32.mrb[0].mxu0
        %v1930 = vadd.f32 %v1834, %v1929
        %v1931 = vpop.f32.mrb[0].mxu0
        %1932 = vmatprep.mubr.bf16.mxu0 0
        %1933 = vmatmul.mubr.bf16.gmra.mrb[0].mxu0 %v1807
        %v1934 = vpop.f32.mrb[0].mxu0
        %v1935 = vadd.f32 %v1834, %v1934
        %v1936 = vpop.f32.mrb[0].mxu0
        %v1937 = vpop.f32.mrb[0].mxu0
        %v1938 = vadd.f32 %v1834, %v1937
        %v1939 = vpop.f32.mrb[0].mxu0
        %1940 = vmatprep.mubr.bf16.mxu0 0
        %1941 = vmatmul.mubr.bf16.gmra.mrb[0].mxu0 %v1808
        %v1942 = vpop.f32.mrb[0].mxu0
        %v1943 = vadd.f32 %v1834, %v1942
        %v1944 = vpop.f32.mrb[0].mxu0
        %v1945 = vpop.f32.mrb[0].mxu0
        %v1946 = vadd.f32 %v1834, %v1945
        %v1947 = vpop.f32.mrb[0].mxu0
        %1948 = vmatprep.mubr.bf16.mxu0 0
        %1949 = vmatmul.mubr.bf16.gmra.mrb[0].mxu0 %v1809
        %v1950 = vpop.f32.mrb[0].mxu0
        %v1951 = vadd.f32 %v1834, %v1950
        %v1952 = vpop.f32.mrb[0].mxu0
        %v1953 = vpop.f32.mrb[0].mxu0
        %v1954 = vadd.f32 %v1834, %v1953
        %v1955 = vpop.f32.mrb[0].mxu0
        %1956 = vmatprep.mubr.bf16.mxu0 0
        %1957 = vmatmul.mubr.bf16.gmra.mrb[0].mxu0 %v1810
        %v1958 = vpop.f32.mrb[0].mxu0
        %v1959 = vadd.f32 %v1834, %v1958
        %v1960 = vpop.f32.mrb[0].mxu0
        %v1961 = vpop.f32.mrb[0].mxu0
        %v1962 = vadd.f32 %v1834, %v1961
        %v1963 = vpop.f32.mrb[0].mxu0
        %1964 = vmatprep.mubr.bf16.mxu0 0
        %1965 = vmatmul.mubr.bf16.gmra.mrb[0].mxu0 %v1811
        %v1966 = vpop.f32.mrb[0].mxu0
        %v1967 = vadd.f32 %v1834, %v1966
        %v1968 = vpop.f32.mrb[0].mxu0
        %v1969 = vpop.f32.mrb[0].mxu0
        %v1970 = vadd.f32 %v1834, %v1969
        %v1971 = vpop.f32.mrb[0].mxu0
        %1972 = vmatprep.mubr.bf16.mxu0 0
        %1973 = vmatmul.mubr.bf16.gmra.mrb[0].mxu0 %v1812
        %v1974 = vpop.f32.mrb[0].mxu0
        %v1975 = vadd.f32 %v1834, %v1974
        %v1976 = vpop.f32.mrb[0].mxu0
        %v1977 = vpop.f32.mrb[0].mxu0
        %v1978 = vadd.f32 %v1834, %v1977
        %v1979 = vpop.f32.mrb[0].mxu0
        %1980 = vdwg.mxu0
        %v1981 = vmax.f32 %v1919, 0.0
        %v1982 = vmax.f32 %v1922, 0.0
        %v1983 = vmax.f32 %v1927, 0.0
        %v1984 = vmax.f32 %v1930, 0.0
        %v1985 = vmax.f32 %v1935, 0.0
        %v1986 = vmax.f32 %v1938, 0.0
        %v1987 = vmax.f32 %v1943, 0.0
        %v1988 = vmax.f32 %v1946, 0.0
        %v1989 = vmax.f32 %v1951, 0.0
        %v1990 = vmax.f32 %v1954, 0.0
        %v1991 = vmax.f32 %v1959, 0.0
        %v1992 = vmax.f32 %v1962, 0.0
        %v1993 = vmax.f32 %v1967, 0.0
        %v1994 = vmax.f32 %v1970, 0.0
        %v1995 = vmax.f32 %v1975, 0.0
        %v1996 = vmax.f32 %v1978, 0.0
        %v1997 = vpack.c.bf16 %v1982, %v1981
        %v1998 = vpack.c.bf16 %v1984, %v1983
        %v1999 = vpack.c.bf16 %v1986, %v1985
        %v2000 = vpack.c.bf16 %v1988, %v1987
        %v2001 = vpack.c.bf16 %v1990, %v1989
        %v2002 = vpack.c.bf16 %v1992, %v1991
        %v2003 = vpack.c.bf16 %v1994, %v1993
        %v2004 = vpack.c.bf16 %v1996, %v1995
        %v2005 = vld [vmem:[#allocation7] sm:$0xf]
        %v2006 = vld [vmem:[#allocation7 + $0x4] sm:$0xf]
        %v2007 = vld [vmem:[#allocation7 + $0x8] sm:$0xf]
        %v2008 = vld [vmem:[#allocation7 + $0xc] sm:$0xf]
        %v2009 = vld [vmem:[#allocation7 + $0x10] sm:$0xf]
        %v2010 = vld [vmem:[#allocation7 + $0x14] sm:$0xf]
        %v2011 = vld [vmem:[#allocation7 + $0x18] sm:$0xf]
        %v2012 = vld [vmem:[#allocation7 + $0x1c] sm:$0xf]
        %v2013 = vld [vmem:[#allocation7 + $0x20] sm:$0xf]
        %v2014 = vld [vmem:[#allocation7 + $0x24] sm:$0xf]
        %v2015 = vld [vmem:[#allocation7 + $0x28] sm:$0xf]
        %v2016 = vld [vmem:[#allocation7 + $0x2c] sm:$0xf]
        %v2017 = vld [vmem:[#allocation7 + $0x30] sm:$0xf]
        %v2018 = vld [vmem:[#allocation7 + $0x34] sm:$0xf]
        %v2019 = vld [vmem:[#allocation7 + $0x38] sm:$0xf]
        %v2020 = vld [vmem:[#allocation7 + $0x3c] sm:$0xf]
        %v2021 = vld [vmem:[%s6] sm:$0x1]
        %v2023 = vlaneseq
        %v2024 = vshrl.u32 %v2023, 7
        %v2025 = vsub.s32 0, %v2024
        %v2026 = vrot.slane %v2021, %v2025
        %v2044 = vunpack.c.l.b16 %v2005
        %v2045 = vunpack.c.l.b16 %v2006
        %v2046 = vunpack.c.l.b16 %v2007
        %v2047 = vunpack.c.l.b16 %v2008
        %v2048 = vunpack.c.l.b16 %v2009
        %v2049 = vunpack.c.l.b16 %v2010
        %v2050 = vunpack.c.l.b16 %v2011
        %v2051 = vunpack.c.l.b16 %v2012
        %v2052 = vunpack.c.l.b16 %v2013
        %v2053 = vunpack.c.l.b16 %v2014
        %v2054 = vunpack.c.l.b16 %v2015
        %v2055 = vunpack.c.l.b16 %v2016
        %v2056 = vunpack.c.l.b16 %v2017
        %v2057 = vunpack.c.l.b16 %v2018
        %v2058 = vunpack.c.l.b16 %v2019
        %v2059 = vunpack.c.l.b16 %v2020
        %v2060 = vpack.c.b16 %v2045, %v2044
        %v2061 = vpack.c.b16 %v2047, %v2046
        %v2062 = vpack.c.b16 %v2049, %v2048
        %v2063 = vpack.c.b16 %v2051, %v2050
        %v2064 = vpack.c.b16 %v2053, %v2052
        %v2065 = vpack.c.b16 %v2055, %v2054
        %v2066 = vpack.c.b16 %v2057, %v2056
        %v2067 = vpack.c.b16 %v2059, %v2058
        %2076 = vmatprep.subr.bf16.mxu0 0
        %2077 = vmatpush1.bf16.msra.mxu0 %v2060
        %2078 = vmatprep.subr.bf16.mxu0 0
        %2079 = vmatpush1.bf16.msra.mxu0 %v2061
        %2080 = vmatprep.subr.bf16.mxu0 0
        %2081 = vmatpush1.bf16.msra.mxu0 %v2062
        %2082 = vmatprep.subr.bf16.mxu0 0
        %2083 = vmatpush1.bf16.msra.mxu0 %v2063
        %2084 = vmatprep.subr.bf16.mxu0 0
        %2085 = vmatpush1.bf16.msra.mxu0 %v2064
        %2086 = vmatprep.subr.bf16.mxu0 0
        %2087 = vmatpush1.bf16.msra.mxu0 %v2065
        %2088 = vmatprep.subr.bf16.mxu0 0
        %2089 = vmatpush1.bf16.msra.mxu0 %v2066
        %2090 = vmatprep.subr.bf16.mxu0 0
        %2091 = vmatpush1.bf16.msra.mxu0 %v2067
        %2092 = vmatprep.subr.bf16.mxu0 0
        %2093 = vmatpush1.bf16.msra.mxu0 0
        %2094 = vmatprep.subr.bf16.mxu0 0
        %2095 = vmatpush1.bf16.msra.mxu0 0
        %2096 = vmatprep.subr.bf16.mxu0 0
        %2097 = vmatpush1.bf16.msra.mxu0 0
        %2098 = vmatprep.subr.bf16.mxu0 0
        %2099 = vmatpush1.bf16.msra.mxu0 0
        %2100 = vmatprep.subr.bf16.mxu0 0
        %2101 = vmatpush1.bf16.msra.mxu0 0
        %2102 = vmatprep.subr.bf16.mxu0 0
        %2103 = vmatpush1.bf16.msra.mxu0 0
        %2104 = vmatprep.subr.bf16.mxu0 0
        %2105 = vmatpush1.bf16.msra.mxu0 0
        %2106 = vmatprep.subr.bf16.mxu0 0
        %2107 = vmatpush1.bf16.msra.mxu0 0
        %2108 = vmatprep.mubr.bf16.mxu0 0
        %2109 = vmatmul.mubr.bf16.gmra.mrb[0].mxu0 %v1997
        %v2110 = vpop.f32.mrb[0].mxu0
        %v2111 = vadd.f32 %v2026, %v2110
        %v2112 = vpop.f32.mrb[0].mxu0
        %v2113 = vpop.f32.mrb[0].mxu0
        %v2114 = vadd.f32 %v2026, %v2113
        %v2115 = vpop.f32.mrb[0].mxu0
        %2116 = vmatprep.mubr.bf16.mxu0 0
        %2117 = vmatmul.mubr.bf16.gmra.mrb[0].mxu0 %v1998
        %v2118 = vpop.f32.mrb[0].mxu0
        %v2119 = vadd.f32 %v2026, %v2118
        %v2120 = vpop.f32.mrb[0].mxu0
        %v2121 = vpop.f32.mrb[0].mxu0
        %v2122 = vadd.f32 %v2026, %v2121
        %v2123 = vpop.f32.mrb[0].mxu0
        %2124 = vmatprep.mubr.bf16.mxu0 0
        %2125 = vmatmul.mubr.bf16.gmra.mrb[0].mxu0 %v1999
        %v2126 = vpop.f32.mrb[0].mxu0
        %v2127 = vadd.f32 %v2026, %v2126
        %v2128 = vpop.f32.mrb[0].mxu0
        %v2129 = vpop.f32.mrb[0].mxu0
        %v2130 = vadd.f32 %v2026, %v2129
        %v2131 = vpop.f32.mrb[0].mxu0
        %2132 = vmatprep.mubr.bf16.mxu0 0
        %2133 = vmatmul.mubr.bf16.gmra.mrb[0].mxu0 %v2000
        %v2134 = vpop.f32.mrb[0].mxu0
        %v2135 = vadd.f32 %v2026, %v2134
        %v2136 = vpop.f32.mrb[0].mxu0
        %v2137 = vpop.f32.mrb[0].mxu0
        %v2138 = vadd.f32 %v2026, %v2137
        %v2139 = vpop.f32.mrb[0].mxu0
        %2140 = vmatprep.mubr.bf16.mxu0 0
        %2141 = vmatmul.mubr.bf16.gmra.mrb[0].mxu0 %v2001
        %v2142 = vpop.f32.mrb[0].mxu0
        %v2143 = vadd.f32 %v2026, %v2142
        %v2144 = vpop.f32.mrb[0].mxu0
        %v2145 = vpop.f32.mrb[0].mxu0
        %v2146 = vadd.f32 %v2026, %v2145
        %v2147 = vpop.f32.mrb[0].mxu0
        %2148 = vmatprep.mubr.bf16.mxu0 0
        %2149 = vmatmul.mubr.bf16.gmra.mrb[0].mxu0 %v2002
        %v2150 = vpop.f32.mrb[0].mxu0
        %v2151 = vadd.f32 %v2026, %v2150
        %v2152 = vpop.f32.mrb[0].mxu0
        %v2153 = vpop.f32.mrb[0].mxu0
        %v2154 = vadd.f32 %v2026, %v2153
        %v2155 = vpop.f32.mrb[0].mxu0
        %2156 = vmatprep.mubr.bf16.mxu0 0
        %2157 = vmatmul.mubr.bf16.gmra.mrb[0].mxu0 %v2003
        %v2158 = vpop.f32.mrb[0].mxu0
        %v2159 = vadd.f32 %v2026, %v2158
        %v2160 = vpop.f32.mrb[0].mxu0
        %v2161 = vpop.f32.mrb[0].mxu0
        %v2162 = vadd.f32 %v2026, %v2161
        %v2163 = vpop.f32.mrb[0].mxu0
        %2164 = vmatprep.mubr.bf16.mxu0 0
        %2165 = vmatmul.mubr.bf16.gmra.mrb[0].mxu0 %v2004
        %v2166 = vpop.f32.mrb[0].mxu0
        %v2167 = vadd.f32 %v2026, %v2166
        %v2168 = vpop.f32.mrb[0].mxu0
        %v2169 = vpop.f32.mrb[0].mxu0
        %v2170 = vadd.f32 %v2026, %v2169
        %v2171 = vpop.f32.mrb[0].mxu0
        %2172 = vdwg.mxu0
        %2173 = vst [vmem:[%s567] sm:$0xff] %v2111
        %2174 = vst [vmem:[%s567 + $0x8] sm:$0xff] %v2114
        %2175 = vst [vmem:[%s567 + $0x10] sm:$0xff] %v2119
        %2176 = vst [vmem:[%s567 + $0x18] sm:$0xff] %v2122
        %2177 = vst [vmem:[%s567 + $0x20] sm:$0xff] %v2127
        %2178 = vst [vmem:[%s567 + $0x28] sm:$0xff] %v2130
        %2179 = vst [vmem:[%s567 + $0x30] sm:$0xff] %v2135
        %2180 = vst [vmem:[%s567 + $0x38] sm:$0xff] %v2138
        %2181 = vst [vmem:[%s567 + $0x40] sm:$0xff] %v2143
        %2182 = vst [vmem:[%s567 + $0x48] sm:$0xff] %v2146
        %2183 = vst [vmem:[%s567 + $0x50] sm:$0xff] %v2151
        %2184 = vst [vmem:[%s567 + $0x58] sm:$0xff] %v2154
        %2185 = vst [vmem:[%s567 + $0x60] sm:$0xff] %v2159
        %2186 = vst [vmem:[%s567 + $0x68] sm:$0xff] %v2162
        %2187 = vst [vmem:[%s567 + $0x70] sm:$0xff] %v2167
        %2188 = vst [vmem:[%s567 + $0x78] sm:$0xff] %v2170
        %v2189 = vmul.f32 %v2111, 0.5
        %v2190 = vmul.f32 %v2114, 0.5
        %v2191 = vmul.f32 %v2119, 0.5
        %v2192 = vmul.f32 %v2122, 0.5
        %v2193 = vmul.f32 %v2127, 0.5
        %v2194 = vmul.f32 %v2130, 0.5
        %v2195 = vmul.f32 %v2135, 0.5
        %v2196 = vmul.f32 %v2138, 0.5
        %v2197 = vmul.f32 %v2143, 0.5
        %v2198 = vmul.f32 %v2146, 0.5
        %v2199 = vmul.f32 %v2151, 0.5
        %v2200 = vmul.f32 %v2154, 0.5
        %v2201 = vmul.f32 %v2159, 0.5
        %v2202 = vmul.f32 %v2162, 0.5
        %v2203 = vmul.f32 %v2167, 0.5
        %v2204 = vmul.f32 %v2170, 0.5
        %v2205 = vmul.f32 %v2189, 1.442695
        %v2206 = vpow.pop %v2205
        %v2207 = vmul.f32 %v2190, 1.442695
        %v2208 = vpow.pop %v2207
        %v2209 = vmul.f32 %v2191, 1.442695
        %v2210 = vpow.pop %v2209
        %v2211 = vmul.f32 %v2192, 1.442695
        %v2212 = vpow.pop %v2211
        %v2213 = vmul.f32 %v2193, 1.442695
        %v2214 = vpow.pop %v2213
        %v2215 = vmul.f32 %v2194, 1.442695
        %v2216 = vpow.pop %v2215
        %v2217 = vmul.f32 %v2195, 1.442695
        %v2218 = vpow.pop %v2217
        %v2219 = vmul.f32 %v2196, 1.442695
        %v2220 = vpow.pop %v2219
        %v2221 = vmul.f32 %v2197, 1.442695
        %v2222 = vpow.pop %v2221
        %v2223 = vmul.f32 %v2198, 1.442695
        %v2224 = vpow.pop %v2223
        %v2225 = vmul.f32 %v2199, 1.442695
        %v2226 = vpow.pop %v2225
        %v2227 = vmul.f32 %v2200, 1.442695
        %v2228 = vpow.pop %v2227
        %v2229 = vmul.f32 %v2201, 1.442695
        %v2230 = vpow.pop %v2229
        %v2231 = vmul.f32 %v2202, 1.442695
        %v2232 = vpow.pop %v2231
        %v2233 = vmul.f32 %v2203, 1.442695
        %v2234 = vpow.pop %v2233
        %v2235 = vmul.f32 %v2204, 1.442695
        %v2236 = vpow.pop %v2235
        %v2237 = vld [vmem:[%s580] sm:$0xff]
        %v2238 = vld [vmem:[%s580 + $0x8] sm:$0xff]
        %v2239 = vld [vmem:[%s580 + $0x10] sm:$0xff]
        %v2240 = vld [vmem:[%s580 + $0x18] sm:$0xff]
        %v2241 = vld [vmem:[%s580 + $0x20] sm:$0xff]
        %v2242 = vld [vmem:[%s580 + $0x28] sm:$0xff]
        %v2243 = vld [vmem:[%s580 + $0x30] sm:$0xff]
        %v2244 = vld [vmem:[%s580 + $0x38] sm:$0xff]
        %v2245 = vld [vmem:[%s580 + $0x40] sm:$0xff]
        %v2246 = vld [vmem:[%s580 + $0x48] sm:$0xff]
        %v2247 = vld [vmem:[%s580 + $0x50] sm:$0xff]
        %v2248 = vld [vmem:[%s580 + $0x58] sm:$0xff]
        %v2249 = vld [vmem:[%s580 + $0x60] sm:$0xff]
        %v2250 = vld [vmem:[%s580 + $0x68] sm:$0xff]
        %v2251 = vld [vmem:[%s580 + $0x70] sm:$0xff]
        %v2252 = vld [vmem:[%s580 + $0x78] sm:$0xff]
        %2269 = vrot.lane.b32.xlu0 %v2237, 64
        %v2270 = vpop.permute.xlu0 %2269
        %2271 = vrot.lane.b32.xlu0 %v2238, 64
        %v2272 = vpop.permute.xlu0 %2271
        %2273 = vrot.lane.b32.xlu0 %v2239, 64
        %v2274 = vpop.permute.xlu0 %2273
        %2275 = vrot.lane.b32.xlu0 %v2240, 64
        %v2276 = vpop.permute.xlu0 %2275
        %2277 = vrot.lane.b32.xlu0 %v2241, 64
        %v2278 = vpop.permute.xlu0 %2277
        %2279 = vrot.lane.b32.xlu0 %v2242, 64
        %v2280 = vpop.permute.xlu0 %2279
        %2281 = vrot.lane.b32.xlu0 %v2243, 64
        %v2282 = vpop.permute.xlu0 %2281
        %2283 = vrot.lane.b32.xlu0 %v2244, 64
        %v2284 = vpop.permute.xlu0 %2283
        %2285 = vrot.lane.b32.xlu0 %v2245, 64
        %v2286 = vpop.permute.xlu0 %2285
        %2287 = vrot.lane.b32.xlu0 %v2246, 64
        %v2288 = vpop.permute.xlu0 %2287
        %2289 = vrot.lane.b32.xlu0 %v2247, 64
        %v2290 = vpop.permute.xlu0 %2289
        %2291 = vrot.lane.b32.xlu0 %v2248, 64
        %v2292 = vpop.permute.xlu0 %2291
        %2293 = vrot.lane.b32.xlu0 %v2249, 64
        %v2294 = vpop.permute.xlu0 %2293
        %2295 = vrot.lane.b32.xlu0 %v2250, 64
        %v2296 = vpop.permute.xlu0 %2295
        %2297 = vrot.lane.b32.xlu0 %v2251, 64
        %v2298 = vpop.permute.xlu0 %2297
        %2299 = vrot.lane.b32.xlu0 %v2252, 64
        %v2300 = vpop.permute.xlu0 %2299
        %v2317 = vmul.f32 %v2206, %v2270
        %v2318 = vmul.f32 %v2208, %v2272
        %v2319 = vmul.f32 %v2210, %v2274
        %v2320 = vmul.f32 %v2212, %v2276
        %v2321 = vmul.f32 %v2214, %v2278
        %v2322 = vmul.f32 %v2216, %v2280
        %v2323 = vmul.f32 %v2218, %v2282
        %v2324 = vmul.f32 %v2220, %v2284
        %v2325 = vmul.f32 %v2222, %v2286
        %v2326 = vmul.f32 %v2224, %v2288
        %v2327 = vmul.f32 %v2226, %v2290
        %v2328 = vmul.f32 %v2228, %v2292
        %v2329 = vmul.f32 %v2230, %v2294
        %v2330 = vmul.f32 %v2232, %v2296
        %v2331 = vmul.f32 %v2234, %v2298
        %v2332 = vmul.f32 %v2236, %v2300
        %2349 = vrot.lane.b32.xlu0 %v2317, 64
        %v2350 = vpop.permute.xlu0 %2349
        %2351 = vrot.lane.b32.xlu0 %v2318, 64
        %v2352 = vpop.permute.xlu0 %2351
        %2353 = vrot.lane.b32.xlu0 %v2319, 64
        %v2354 = vpop.permute.xlu0 %2353
        %2355 = vrot.lane.b32.xlu0 %v2320, 64
        %v2356 = vpop.permute.xlu0 %2355
        %2357 = vrot.lane.b32.xlu0 %v2321, 64
        %v2358 = vpop.permute.xlu0 %2357
        %2359 = vrot.lane.b32.xlu0 %v2322, 64
        %v2360 = vpop.permute.xlu0 %2359
        %2361 = vrot.lane.b32.xlu0 %v2323, 64
        %v2362 = vpop.permute.xlu0 %2361
        %2363 = vrot.lane.b32.xlu0 %v2324, 64
        %v2364 = vpop.permute.xlu0 %2363
        %2365 = vrot.lane.b32.xlu0 %v2325, 64
        %v2366 = vpop.permute.xlu0 %2365
        %2367 = vrot.lane.b32.xlu0 %v2326, 64
        %v2368 = vpop.permute.xlu0 %2367
        %2369 = vrot.lane.b32.xlu0 %v2327, 64
        %v2370 = vpop.permute.xlu0 %2369
        %2371 = vrot.lane.b32.xlu0 %v2328, 64
        %v2372 = vpop.permute.xlu0 %2371
        %2373 = vrot.lane.b32.xlu0 %v2329, 64
        %v2374 = vpop.permute.xlu0 %2373
        %2375 = vrot.lane.b32.xlu0 %v2330, 64
        %v2376 = vpop.permute.xlu0 %2375
        %2377 = vrot.lane.b32.xlu0 %v2331, 64
        %v2378 = vpop.permute.xlu0 %2377
        %2379 = vrot.lane.b32.xlu0 %v2332, 64
        %v2380 = vpop.permute.xlu0 %2379
        %v2397 = vadd.f32 %v2111, %v2350
        %v2398 = vadd.f32 %v2114, %v2352
        %v2399 = vadd.f32 %v2119, %v2354
        %v2400 = vadd.f32 %v2122, %v2356
        %v2401 = vadd.f32 %v2127, %v2358
        %v2402 = vadd.f32 %v2130, %v2360
        %v2403 = vadd.f32 %v2135, %v2362
        %v2404 = vadd.f32 %v2138, %v2364
        %v2405 = vadd.f32 %v2143, %v2366
        %v2406 = vadd.f32 %v2146, %v2368
        %v2407 = vadd.f32 %v2151, %v2370
        %v2408 = vadd.f32 %v2154, %v2372
        %v2409 = vadd.f32 %v2159, %v2374
        %v2410 = vadd.f32 %v2162, %v2376
        %v2411 = vadd.f32 %v2167, %v2378
        %v2412 = vadd.f32 %v2170, %v2380
        %v2413 = vpack.c.bf16 %v2398, %v2397
        %v2414 = vpack.c.bf16 %v2400, %v2399
        %v2415 = vpack.c.bf16 %v2402, %v2401
        %v2416 = vpack.c.bf16 %v2404, %v2403
        %v2417 = vpack.c.bf16 %v2406, %v2405
        %v2418 = vpack.c.bf16 %v2408, %v2407
        %v2419 = vpack.c.bf16 %v2410, %v2409
        %v2420 = vpack.c.bf16 %v2412, %v2411
        %v2421 = vld [vmem:[#allocation8] sm:$0xf]
        %v2422 = vld [vmem:[#allocation8 + $0x4] sm:$0xf]
        %v2423 = vld [vmem:[#allocation8 + $0x8] sm:$0xf]
        %v2424 = vld [vmem:[#allocation8 + $0xc] sm:$0xf]
        %v2425 = vld [vmem:[#allocation8 + $0x10] sm:$0xf]
        %v2426 = vld [vmem:[#allocation8 + $0x14] sm:$0xf]
        %v2427 = vld [vmem:[#allocation8 + $0x18] sm:$0xf]
        %v2428 = vld [vmem:[#allocation8 + $0x1c] sm:$0xf]
        %v2429 = vld [vmem:[%s8] sm:$0x1]
        %v2431 = vlaneseq
        %v2432 = vshrl.u32 %v2431, 7
        %v2433 = vsub.s32 0, %v2432
        %v2434 = vrot.slane %v2429, %v2433
        %v2444 = vunpack.c.l.b16 %v2421
        %v2445 = vunpack.c.l.b16 %v2422
        %v2446 = vunpack.c.l.b16 %v2423
        %v2447 = vunpack.c.l.b16 %v2424
        %v2448 = vunpack.c.l.b16 %v2425
        %v2449 = vunpack.c.l.b16 %v2426
        %v2450 = vunpack.c.l.b16 %v2427
        %v2451 = vunpack.c.l.b16 %v2428
        %v2452 = vpack.c.b16 %v2445, %v2444
        %v2453 = vpack.c.b16 %v2447, %v2446
        %v2454 = vpack.c.b16 %v2449, %v2448
        %v2455 = vpack.c.b16 %v2451, %v2450
        %vm2460 = vcmask 523264
        %v2462 = vsel %vm2460, %v2413, 0
        %v2465 = vsel %vm2460, %v2414, 0
        %v2468 = vsel %vm2460, %v2415, 0
        %v2471 = vsel %vm2460, %v2416, 0
        %v2474 = vsel %vm2460, %v2417, 0
        %v2477 = vsel %vm2460, %v2418, 0
        %v2480 = vsel %vm2460, %v2419, 0
        %v2483 = vsel %vm2460, %v2420, 0
        %2485 = vmatprep.subr.bf16.mxu0 0
        %2486 = vmatpush1.bf16.msra.mxu0 %v2452
        %2487 = vmatprep.subr.bf16.mxu0 0
        %2488 = vmatpush1.bf16.msra.mxu0 %v2453
        %2489 = vmatprep.subr.bf16.mxu0 0
        %2490 = vmatpush1.bf16.msra.mxu0 %v2454
        %2491 = vmatprep.subr.bf16.mxu0 0
        %2492 = vmatpush1.bf16.msra.mxu0 %v2455
        %2493 = vmatprep.subr.bf16.mxu0 0
        %2494 = vmatpush1.bf16.msra.mxu0 0
        %2495 = vmatprep.subr.bf16.mxu0 0
        %2496 = vmatpush1.bf16.msra.mxu0 0
        %2497 = vmatprep.subr.bf16.mxu0 0
        %2498 = vmatpush1.bf16.msra.mxu0 0
        %2499 = vmatprep.subr.bf16.mxu0 0
        %2500 = vmatpush1.bf16.msra.mxu0 0
        %2501 = vmatprep.subr.bf16.mxu0 0
        %2502 = vmatpush1.bf16.msra.mxu0 0
        %2503 = vmatprep.subr.bf16.mxu0 0
        %2504 = vmatpush1.bf16.msra.mxu0 0
        %2505 = vmatprep.subr.bf16.mxu0 0
        %2506 = vmatpush1.bf16.msra.mxu0 0
        %2507 = vmatprep.subr.bf16.mxu0 0
        %2508 = vmatpush1.bf16.msra.mxu0 0
        %2509 = vmatprep.subr.bf16.mxu0 0
        %2510 = vmatpush1.bf16.msra.mxu0 0
        %2511 = vmatprep.subr.bf16.mxu0 0
        %2512 = vmatpush1.bf16.msra.mxu0 0
        %2513 = vmatprep.subr.bf16.mxu0 0
        %2514 = vmatpush1.bf16.msra.mxu0 0
        %2515 = vmatprep.subr.bf16.mxu0 0
        %2516 = vmatpush1.bf16.msra.mxu0 0
        %2517 = vmatprep.mubr.bf16.mxu0 0
        %2518 = vmatmul.mubr.bf16.gmra.mrb[0].mxu0 %v2462
        %v2519 = vpop.f32.mrb[0].mxu0
        %v2520 = vadd.f32 %v2434, %v2519
        %v2521 = vpop.f32.mrb[0].mxu0
        %v2522 = vpop.f32.mrb[0].mxu0
        %v2523 = vadd.f32 %v2434, %v2522
        %v2524 = vpop.f32.mrb[0].mxu0
        %2525 = vmatprep.mubr.bf16.mxu0 0
        %2526 = vmatmul.mubr.bf16.gmra.mrb[0].mxu0 %v2465
        %v2527 = vpop.f32.mrb[0].mxu0
        %v2528 = vadd.f32 %v2434, %v2527
        %v2529 = vpop.f32.mrb[0].mxu0
        %v2530 = vpop.f32.mrb[0].mxu0
        %v2531 = vadd.f32 %v2434, %v2530
        %v2532 = vpop.f32.mrb[0].mxu0
        %2533 = vmatprep.mubr.bf16.mxu0 0
        %2534 = vmatmul.mubr.bf16.gmra.mrb[0].mxu0 %v2468
        %v2535 = vpop.f32.mrb[0].mxu0
        %v2536 = vadd.f32 %v2434, %v2535
        %v2537 = vpop.f32.mrb[0].mxu0
        %v2538 = vpop.f32.mrb[0].mxu0
        %v2539 = vadd.f32 %v2434, %v2538
        %v2540 = vpop.f32.mrb[0].mxu0
        %2541 = vmatprep.mubr.bf16.mxu0 0
        %2542 = vmatmul.mubr.bf16.gmra.mrb[0].mxu0 %v2471
        %v2543 = vpop.f32.mrb[0].mxu0
        %v2544 = vadd.f32 %v2434, %v2543
        %v2545 = vpop.f32.mrb[0].mxu0
        %v2546 = vpop.f32.mrb[0].mxu0
        %v2547 = vadd.f32 %v2434, %v2546
        %v2548 = vpop.f32.mrb[0].mxu0
        %2549 = vmatprep.mubr.bf16.mxu0 0
        %2550 = vmatmul.mubr.bf16.gmra.mrb[0].mxu0 %v2474
        %v2551 = vpop.f32.mrb[0].mxu0
        %v2552 = vadd.f32 %v2434, %v2551
        %v2553 = vpop.f32.mrb[0].mxu0
        %v2554 = vpop.f32.mrb[0].mxu0
        %v2555 = vadd.f32 %v2434, %v2554
        %v2556 = vpop.f32.mrb[0].mxu0
        %2557 = vmatprep.mubr.bf16.mxu0 0
        %2558 = vmatmul.mubr.bf16.gmra.mrb[0].mxu0 %v2477
        %v2559 = vpop.f32.mrb[0].mxu0
        %v2560 = vadd.f32 %v2434, %v2559
        %v2561 = vpop.f32.mrb[0].mxu0
        %v2562 = vpop.f32.mrb[0].mxu0
        %v2563 = vadd.f32 %v2434, %v2562
        %v2564 = vpop.f32.mrb[0].mxu0
        %2565 = vmatprep.mubr.bf16.mxu0 0
        %2566 = vmatmul.mubr.bf16.gmra.mrb[0].mxu0 %v2480
        %v2567 = vpop.f32.mrb[0].mxu0
        %v2568 = vadd.f32 %v2434, %v2567
        %v2569 = vpop.f32.mrb[0].mxu0
        %v2570 = vpop.f32.mrb[0].mxu0
        %v2571 = vadd.f32 %v2434, %v2570
        %v2572 = vpop.f32.mrb[0].mxu0
        %2573 = vmatprep.mubr.bf16.mxu0 0
        %2574 = vmatmul.mubr.bf16.gmra.mrb[0].mxu0 %v2483
        %v2575 = vpop.f32.mrb[0].mxu0
        %v2576 = vadd.f32 %v2434, %v2575
        %v2577 = vpop.f32.mrb[0].mxu0
        %v2578 = vpop.f32.mrb[0].mxu0
        %v2579 = vadd.f32 %v2434, %v2578
        %v2580 = vpop.f32.mrb[0].mxu0
        %2581 = vdwg.mxu0
        %v2582 = vmax.f32 %v2520, 0.0
        %v2583 = vmax.f32 %v2523, 0.0
        %v2584 = vmax.f32 %v2528, 0.0
        %v2585 = vmax.f32 %v2531, 0.0
        %v2586 = vmax.f32 %v2536, 0.0
        %v2587 = vmax.f32 %v2539, 0.0
        %v2588 = vmax.f32 %v2544, 0.0
        %v2589 = vmax.f32 %v2547, 0.0
        %v2590 = vmax.f32 %v2552, 0.0
        %v2591 = vmax.f32 %v2555, 0.0
        %v2592 = vmax.f32 %v2560, 0.0
        %v2593 = vmax.f32 %v2563, 0.0
        %v2594 = vmax.f32 %v2568, 0.0
        %v2595 = vmax.f32 %v2571, 0.0
        %v2596 = vmax.f32 %v2576, 0.0
        %v2597 = vmax.f32 %v2579, 0.0
        %v2598 = vsel %vm2460, %v2582, -inf
        %2599 = vmax.xlane.f32.xlu0 %v2598
        %v2600 = vpop.xlane.xlu0 %2599
        %v2601 = vsel %vm2460, %v2583, -inf
        %2602 = vmax.xlane.f32.xlu0 %v2601
        %v2603 = vpop.xlane.xlu0 %2602
        %v2604 = vsel %vm2460, %v2584, -inf
        %2605 = vmax.xlane.f32.xlu0 %v2604
        %v2606 = vpop.xlane.xlu0 %2605
        %v2607 = vsel %vm2460, %v2585, -inf
        %2608 = vmax.xlane.f32.xlu0 %v2607
        %v2609 = vpop.xlane.xlu0 %2608
        %v2610 = vsel %vm2460, %v2586, -inf
        %2611 = vmax.xlane.f32.xlu0 %v2610
        %v2612 = vpop.xlane.xlu0 %2611
        %v2613 = vsel %vm2460, %v2587, -inf
        %2614 = vmax.xlane.f32.xlu0 %v2613
        %v2615 = vpop.xlane.xlu0 %2614
        %v2616 = vsel %vm2460, %v2588, -inf
        %2617 = vmax.xlane.f32.xlu0 %v2616
        %v2618 = vpop.xlane.xlu0 %2617
        %v2619 = vsel %vm2460, %v2589, -inf
        %2620 = vmax.xlane.f32.xlu0 %v2619
        %v2621 = vpop.xlane.xlu0 %2620
        %v2622 = vsel %vm2460, %v2590, -inf
        %2623 = vmax.xlane.f32.xlu0 %v2622
        %v2624 = vpop.xlane.xlu0 %2623
        %v2625 = vsel %vm2460, %v2591, -inf
        %2626 = vmax.xlane.f32.xlu0 %v2625
        %v2627 = vpop.xlane.xlu0 %2626
        %v2628 = vsel %vm2460, %v2592, -inf
        %2629 = vmax.xlane.f32.xlu0 %v2628
        %v2630 = vpop.xlane.xlu0 %2629
        %v2631 = vsel %vm2460, %v2593, -inf
        %2632 = vmax.xlane.f32.xlu0 %v2631
        %v2633 = vpop.xlane.xlu0 %2632
        %v2634 = vsel %vm2460, %v2594, -inf
        %2635 = vmax.xlane.f32.xlu0 %v2634
        %v2636 = vpop.xlane.xlu0 %2635
        %v2637 = vsel %vm2460, %v2595, -inf
        %2638 = vmax.xlane.f32.xlu0 %v2637
        %v2639 = vpop.xlane.xlu0 %2638
        %v2640 = vsel %vm2460, %v2596, -inf
        %2641 = vmax.xlane.f32.xlu0 %v2640
        %v2642 = vpop.xlane.xlu0 %2641
        %v2643 = vsel %vm2460, %v2597, -inf
        %2644 = vmax.xlane.f32.xlu0 %v2643
        %v2645 = vpop.xlane.xlu0 %2644
        %v2646 = vsub.f32 %v2582, %v2600
        %v2647 = vsub.f32 %v2583, %v2603
        %v2648 = vsub.f32 %v2584, %v2606
        %v2649 = vsub.f32 %v2585, %v2609
        %v2650 = vsub.f32 %v2586, %v2612
        %v2651 = vsub.f32 %v2587, %v2615
        %v2652 = vsub.f32 %v2588, %v2618
        %v2653 = vsub.f32 %v2589, %v2621
        %v2654 = vsub.f32 %v2590, %v2624
        %v2655 = vsub.f32 %v2591, %v2627
        %v2656 = vsub.f32 %v2592, %v2630
        %v2657 = vsub.f32 %v2593, %v2633
        %v2658 = vsub.f32 %v2594, %v2636
        %v2659 = vsub.f32 %v2595, %v2639
        %v2660 = vsub.f32 %v2596, %v2642
        %v2661 = vsub.f32 %v2597, %v2645
        %v2662 = vmul.f32 %v2646, 1.442695
        %v2663 = vpow.pop %v2662
        %v2664 = vmul.f32 %v2647, 1.442695
        %v2665 = vpow.pop %v2664
        %v2666 = vmul.f32 %v2648, 1.442695
        %v2667 = vpow.pop %v2666
        %v2668 = vmul.f32 %v2649, 1.442695
        %v2669 = vpow.pop %v2668
        %v2670 = vmul.f32 %v2650, 1.442695
        %v2671 = vpow.pop %v2670
        %v2672 = vmul.f32 %v2651, 1.442695
        %v2673 = vpow.pop %v2672
        %v2674 = vmul.f32 %v2652, 1.442695
        %v2675 = vpow.pop %v2674
        %v2676 = vmul.f32 %v2653, 1.442695
        %v2677 = vpow.pop %v2676
        %v2678 = vmul.f32 %v2654, 1.442695
        %v2679 = vpow.pop %v2678
        %v2680 = vmul.f32 %v2655, 1.442695
        %v2681 = vpow.pop %v2680
        %v2682 = vmul.f32 %v2656, 1.442695
        %v2683 = vpow.pop %v2682
        %v2684 = vmul.f32 %v2657, 1.442695
        %v2685 = vpow.pop %v2684
        %v2686 = vmul.f32 %v2658, 1.442695
        %v2687 = vpow.pop %v2686
        %v2688 = vmul.f32 %v2659, 1.442695
        %v2689 = vpow.pop %v2688
        %v2690 = vmul.f32 %v2660, 1.442695
        %v2691 = vpow.pop %v2690
        %v2692 = vmul.f32 %v2661, 1.442695
        %v2693 = vpow.pop %v2692
        %v2694 = vsel %vm2460, %v2663, 0.0
        %2695 = vadd.xlane.f32.xlu0 %v2694
        %v2696 = vpop.xlane.xlu0 %2695
        %v2697 = vsel %vm2460, %v2665, 0.0
        %2698 = vadd.xlane.f32.xlu0 %v2697
        %v2699 = vpop.xlane.xlu0 %2698
        %v2700 = vsel %vm2460, %v2667, 0.0
        %2701 = vadd.xlane.f32.xlu0 %v2700
        %v2702 = vpop.xlane.xlu0 %2701
        %v2703 = vsel %vm2460, %v2669, 0.0
        %2704 = vadd.xlane.f32.xlu0 %v2703
        %v2705 = vpop.xlane.xlu0 %2704
        %v2706 = vsel %vm2460, %v2671, 0.0
        %2707 = vadd.xlane.f32.xlu0 %v2706
        %v2708 = vpop.xlane.xlu0 %2707
        %v2709 = vsel %vm2460, %v2673, 0.0
        %2710 = vadd.xlane.f32.xlu0 %v2709
        %v2711 = vpop.xlane.xlu0 %2710
        %v2712 = vsel %vm2460, %v2675, 0.0
        %2713 = vadd.xlane.f32.xlu0 %v2712
        %v2714 = vpop.xlane.xlu0 %2713
        %v2715 = vsel %vm2460, %v2677, 0.0
        %2716 = vadd.xlane.f32.xlu0 %v2715
        %v2717 = vpop.xlane.xlu0 %2716
        %v2718 = vsel %vm2460, %v2679, 0.0
        %2719 = vadd.xlane.f32.xlu0 %v2718
        %v2720 = vpop.xlane.xlu0 %2719
        %v2721 = vsel %vm2460, %v2681, 0.0
        %2722 = vadd.xlane.f32.xlu0 %v2721
        %v2723 = vpop.xlane.xlu0 %2722
        %v2724 = vsel %vm2460, %v2683, 0.0
        %2725 = vadd.xlane.f32.xlu0 %v2724
        %v2726 = vpop.xlane.xlu0 %2725
        %v2727 = vsel %vm2460, %v2685, 0.0
        %2728 = vadd.xlane.f32.xlu0 %v2727
        %v2729 = vpop.xlane.xlu0 %2728
        %v2730 = vsel %vm2460, %v2687, 0.0
        %2731 = vadd.xlane.f32.xlu0 %v2730
        %v2732 = vpop.xlane.xlu0 %2731
        %v2733 = vsel %vm2460, %v2689, 0.0
        %2734 = vadd.xlane.f32.xlu0 %v2733
        %v2735 = vpop.xlane.xlu0 %2734
        %v2736 = vsel %vm2460, %v2691, 0.0
        %2737 = vadd.xlane.f32.xlu0 %v2736
        %v2738 = vpop.xlane.xlu0 %2737
        %v2739 = vsel %vm2460, %v2693, 0.0
        %2740 = vadd.xlane.f32.xlu0 %v2739
        %v2741 = vpop.xlane.xlu0 %2740
        %v2742 = vrcp.pop %v2696
        %v2743 = vmul.f32 %v2663, %v2742
        %v2744 = vrcp.pop %v2699
        %v2745 = vmul.f32 %v2665, %v2744
        %v2746 = vrcp.pop %v2702
        %v2747 = vmul.f32 %v2667, %v2746
        %v2748 = vrcp.pop %v2705
        %v2749 = vmul.f32 %v2669, %v2748
        %v2750 = vrcp.pop %v2708
        %v2751 = vmul.f32 %v2671, %v2750
        %v2752 = vrcp.pop %v2711
        %v2753 = vmul.f32 %v2673, %v2752
        %v2754 = vrcp.pop %v2714
        %v2755 = vmul.f32 %v2675, %v2754
        %v2756 = vrcp.pop %v2717
        %v2757 = vmul.f32 %v2677, %v2756
        %v2758 = vrcp.pop %v2720
        %v2759 = vmul.f32 %v2679, %v2758
        %v2760 = vrcp.pop %v2723
        %v2761 = vmul.f32 %v2681, %v2760
        %v2762 = vrcp.pop %v2726
        %v2763 = vmul.f32 %v2683, %v2762
        %v2764 = vrcp.pop %v2729
        %v2765 = vmul.f32 %v2685, %v2764
        %v2766 = vrcp.pop %v2732
        %v2767 = vmul.f32 %v2687, %v2766
        %v2768 = vrcp.pop %v2735
        %v2769 = vmul.f32 %v2689, %v2768
        %v2770 = vrcp.pop %v2738
        %v2771 = vmul.f32 %v2691, %v2770
        %v2772 = vrcp.pop %v2741
        %v2773 = vmul.f32 %v2693, %v2772
        %v2774 = vsel %vm2460, %v2743, 0.0
        %v2775 = vsel %vm2460, %v2745, 0.0
        %v2776 = vsel %vm2460, %v2747, 0.0
        %v2777 = vsel %vm2460, %v2749, 0.0
        %v2778 = vsel %vm2460, %v2751, 0.0
        %v2779 = vsel %vm2460, %v2753, 0.0
        %v2780 = vsel %vm2460, %v2755, 0.0
        %v2781 = vsel %vm2460, %v2757, 0.0
        %v2782 = vsel %vm2460, %v2759, 0.0
        %v2783 = vsel %vm2460, %v2761, 0.0
        %v2784 = vsel %vm2460, %v2763, 0.0
        %v2785 = vsel %vm2460, %v2765, 0.0
        %v2786 = vsel %vm2460, %v2767, 0.0
        %v2787 = vsel %vm2460, %v2769, 0.0
        %v2788 = vsel %vm2460, %v2771, 0.0
        %v2789 = vsel %vm2460, %v2773, 0.0
        %2790 = vst [vmem:[%s560] sm:$0xff] %v2774
        %2791 = vst [vmem:[%s560 + $0x8] sm:$0xff] %v2775
        %2792 = vst [vmem:[%s560 + $0x10] sm:$0xff] %v2776
        %2793 = vst [vmem:[%s560 + $0x18] sm:$0xff] %v2777
        %2794 = vst [vmem:[%s560 + $0x20] sm:$0xff] %v2778
        %2795 = vst [vmem:[%s560 + $0x28] sm:$0xff] %v2779
        %2796 = vst [vmem:[%s560 + $0x30] sm:$0xff] %v2780
        %2797 = vst [vmem:[%s560 + $0x38] sm:$0xff] %v2781
        %2798 = vst [vmem:[%s560 + $0x40] sm:$0xff] %v2782
        %2799 = vst [vmem:[%s560 + $0x48] sm:$0xff] %v2783
        %2800 = vst [vmem:[%s560 + $0x50] sm:$0xff] %v2784
        %2801 = vst [vmem:[%s560 + $0x58] sm:$0xff] %v2785
        %2802 = vst [vmem:[%s560 + $0x60] sm:$0xff] %v2786
        %2803 = vst [vmem:[%s560 + $0x68] sm:$0xff] %v2787
        %2804 = vst [vmem:[%s560 + $0x70] sm:$0xff] %v2788
        %2805 = vst [vmem:[%s560 + $0x78] sm:$0xff] %v2789
        %v2806 = vpack.c.bf16 %v2745, %v2743
        %v2807 = vpack.c.bf16 %v2749, %v2747
        %v2808 = vpack.c.bf16 %v2753, %v2751
        %v2809 = vpack.c.bf16 %v2757, %v2755
        %v2810 = vpack.c.bf16 %v2761, %v2759
        %v2811 = vpack.c.bf16 %v2765, %v2763
        %v2812 = vpack.c.bf16 %v2769, %v2767
        %v2813 = vpack.c.bf16 %v2773, %v2771
        %v2814 = vld [vmem:[%s9] sm:$0xff]
        %v2815 = vld [vmem:[%s9 + $0x8] sm:$0xff]
        %v2816 = vld [vmem:[%s9 + $0x10] sm:$0xff]
        %v2817 = vld [vmem:[%s9 + $0x18] sm:$0xff]
        %v2818 = vld [vmem:[%s9 + $0x20] sm:$0xff]
        %v2819 = vld [vmem:[%s9 + $0x28] sm:$0xff]
        %v2820 = vld [vmem:[%s9 + $0x30] sm:$0xff]
        %v2821 = vld [vmem:[%s9 + $0x38] sm:$0xff]
        %v2822 = vld [vmem:[%s9 + $0x40] sm:$0xff]
        %v2823 = vld [vmem:[%s9 + $0x48] sm:$0xff]
        %v2824 = vld [vmem:[%s9 + $0x50] sm:$0xff]
        %v2825 = vld [vmem:[%s9 + $0x58] sm:$0xff]
        %v2826 = vld [vmem:[%s9 + $0x60] sm:$0xff]
        %v2827 = vld [vmem:[%s9 + $0x68] sm:$0xff]
        %v2828 = vld [vmem:[%s9 + $0x70] sm:$0xff]
        %v2829 = vld [vmem:[%s9 + $0x78] sm:$0xff]
        %v2830 = vld [vmem:[%s10] sm:$0xf]
        %v2832 = vlaneseq
        %v2833 = vshrl.u32 %v2832, 7
        %v2834 = vsub.s32 0, %v2833
        %v2835 = vrot.slane %v2830, %v2834
        %v2836 = vlaneseq
        %v2837 = vshrl.u32 %v2836, 7
        %v2838 = vsub.s32 1, %v2837
        %v2839 = vrot.slane %v2830, %v2838
        %v2840 = vlaneseq
        %v2841 = vshrl.u32 %v2840, 7
        %v2842 = vsub.s32 2, %v2841
        %v2843 = vrot.slane %v2830, %v2842
        %v2844 = vlaneseq
        %v2845 = vshrl.u32 %v2844, 7
        %v2846 = vsub.s32 3, %v2845
        %v2847 = vrot.slane %v2830, %v2846
        %v2868 = vunpack.c.l.b16 %v2814
        %v2869 = vunpack.c.h.b16 %v2814
        %v2870 = vunpack.c.l.b16 %v2815
        %v2871 = vunpack.c.h.b16 %v2815
        %v2872 = vunpack.c.l.b16 %v2816
        %v2873 = vunpack.c.h.b16 %v2816
        %v2874 = vunpack.c.l.b16 %v2817
        %v2875 = vunpack.c.h.b16 %v2817
        %v2876 = vunpack.c.l.b16 %v2818
        %v2877 = vunpack.c.h.b16 %v2818
        %v2878 = vunpack.c.l.b16 %v2819
        %v2879 = vunpack.c.h.b16 %v2819
        %v2880 = vunpack.c.l.b16 %v2820
        %v2881 = vunpack.c.h.b16 %v2820
        %v2882 = vunpack.c.l.b16 %v2821
        %v2883 = vunpack.c.h.b16 %v2821
        %v2884 = vunpack.c.l.b16 %v2822
        %v2885 = vunpack.c.h.b16 %v2822
        %v2886 = vunpack.c.l.b16 %v2823
        %v2887 = vunpack.c.h.b16 %v2823
        %v2888 = vunpack.c.l.b16 %v2824
        %v2889 = vunpack.c.h.b16 %v2824
        %v2890 = vunpack.c.l.b16 %v2825
        %v2891 = vunpack.c.h.b16 %v2825
        %v2892 = vunpack.c.l.b16 %v2826
        %v2893 = vunpack.c.h.b16 %v2826
        %v2894 = vunpack.c.l.b16 %v2827
        %v2895 = vunpack.c.h.b16 %v2827
        %v2896 = vunpack.c.l.b16 %v2828
        %v2897 = vunpack.c.h.b16 %v2828
        %v2898 = vunpack.c.l.b16 %v2829
        %v2899 = vunpack.c.h.b16 %v2829
        %v2900 = vpack.c.b16 %v2872, %v2868
        %v2901 = vpack.c.b16 %v2873, %v2869
        %v2902 = vpack.c.b16 %v2874, %v2870
        %v2903 = vpack.c.b16 %v2875, %v2871
        %v2904 = vpack.c.b16 %v2880, %v2876
        %v2905 = vpack.c.b16 %v2881, %v2877
        %v2906 = vpack.c.b16 %v2882, %v2878
        %v2907 = vpack.c.b16 %v2883, %v2879
        %v2908 = vpack.c.b16 %v2888, %v2884
        %v2909 = vpack.c.b16 %v2889, %v2885
        %v2910 = vpack.c.b16 %v2890, %v2886
        %v2911 = vpack.c.b16 %v2891, %v2887
        %v2912 = vpack.c.b16 %v2896, %v2892
        %v2913 = vpack.c.b16 %v2897, %v2893
        %v2914 = vpack.c.b16 %v2898, %v2894
        %v2915 = vpack.c.b16 %v2899, %v2895
        %v2933 = vsel %vm2460, %v2806, 0
        %v2936 = vsel %vm2460, %v2807, 0
        %v2939 = vsel %vm2460, %v2808, 0
        %v2942 = vsel %vm2460, %v2809, 0
        %v2945 = vsel %vm2460, %v2810, 0
        %v2948 = vsel %vm2460, %v2811, 0
        %v2951 = vsel %vm2460, %v2812, 0
        %v2954 = vsel %vm2460, %v2813, 0
        %2956 = vmatprep.subr.bf16.mxu0 %v2901
        %2957 = vmatpush1.bf16.msra.mxu0 %v2900
        %2958 = vmatprep.subr.bf16.mxu0 %v2905
        %2959 = vmatpush1.bf16.msra.mxu0 %v2904
        %2960 = vmatprep.subr.bf16.mxu0 %v2909
        %2961 = vmatpush1.bf16.msra.mxu0 %v2908
        %2962 = vmatprep.subr.bf16.mxu0 %v2913
        %2963 = vmatpush1.bf16.msra.mxu0 %v2912
        %2964 = vmatprep.subr.bf16.mxu0 0
        %2965 = vmatpush1.bf16.msra.mxu0 0
        %2966 = vmatprep.subr.bf16.mxu0 0
        %2967 = vmatpush1.bf16.msra.mxu0 0
        %2968 = vmatprep.subr.bf16.mxu0 0
        %2969 = vmatpush1.bf16.msra.mxu0 0
        %2970 = vmatprep.subr.bf16.mxu0 0
        %2971 = vmatpush1.bf16.msra.mxu0 0
        %2972 = vmatprep.subr.bf16.mxu0 0
        %2973 = vmatpush1.bf16.msra.mxu0 0
        %2974 = vmatprep.subr.bf16.mxu0 0
        %2975 = vmatpush1.bf16.msra.mxu0 0
        %2976 = vmatprep.subr.bf16.mxu0 0
        %2977 = vmatpush1.bf16.msra.mxu0 0
        %2978 = vmatprep.subr.bf16.mxu0 0
        %2979 = vmatpush1.bf16.msra.mxu0 0
        %2980 = vmatprep.subr.bf16.mxu0 0
        %2981 = vmatpush1.bf16.msra.mxu0 0
        %2982 = vmatprep.subr.bf16.mxu0 0
        %2983 = vmatpush1.bf16.msra.mxu0 0
        %2984 = vmatprep.subr.bf16.mxu0 0
        %2985 = vmatpush1.bf16.msra.mxu0 0
        %2986 = vmatprep.subr.bf16.mxu0 0
        %2987 = vmatpush1.bf16.msra.mxu0 0
        %2988 = vmatprep.mubr.bf16.mxu0 0
        %2989 = vmatmul.mubr.bf16.gmra.mrb[0].mxu0 %v2933
        %v2990 = vpop.f32.mrb[0].mxu0
        %v2991 = vadd.f32 %v2835, %v2990
        %v2992 = vpop.f32.mrb[0].mxu0
        %v2993 = vadd.f32 %v2839, %v2992
        %v2994 = vpop.f32.mrb[0].mxu0
        %v2995 = vadd.f32 %v2835, %v2994
        %v2996 = vpop.f32.mrb[0].mxu0
        %v2997 = vadd.f32 %v2839, %v2996
        %2998 = vmatprep.mubr.bf16.mxu0 0
        %2999 = vmatmul.mubr.bf16.gmra.mrb[0].mxu0 %v2936
        %v3000 = vpop.f32.mrb[0].mxu0
        %v3001 = vadd.f32 %v2835, %v3000
        %v3002 = vpop.f32.mrb[0].mxu0
        %v3003 = vadd.f32 %v2839, %v3002
        %v3004 = vpop.f32.mrb[0].mxu0
        %v3005 = vadd.f32 %v2835, %v3004
        %v3006 = vpop.f32.mrb[0].mxu0
        %v3007 = vadd.f32 %v2839, %v3006
        %3008 = vmatprep.mubr.bf16.mxu0 0
        %3009 = vmatmul.mubr.bf16.gmra.mrb[0].mxu0 %v2939
        %v3010 = vpop.f32.mrb[0].mxu0
        %v3011 = vadd.f32 %v2835, %v3010
        %v3012 = vpop.f32.mrb[0].mxu0
        %v3013 = vadd.f32 %v2839, %v3012
        %v3014 = vpop.f32.mrb[0].mxu0
        %v3015 = vadd.f32 %v2835, %v3014
        %v3016 = vpop.f32.mrb[0].mxu0
        %v3017 = vadd.f32 %v2839, %v3016
        %3018 = vmatprep.mubr.bf16.mxu0 0
        %3019 = vmatmul.mubr.bf16.gmra.mrb[0].mxu0 %v2942
        %v3020 = vpop.f32.mrb[0].mxu0
        %v3021 = vadd.f32 %v2835, %v3020
        %v3022 = vpop.f32.mrb[0].mxu0
        %v3023 = vadd.f32 %v2839, %v3022
        %v3024 = vpop.f32.mrb[0].mxu0
        %v3025 = vadd.f32 %v2835, %v3024
        %v3026 = vpop.f32.mrb[0].mxu0
        %v3027 = vadd.f32 %v2839, %v3026
        %3028 = vmatprep.mubr.bf16.mxu0 0
        %3029 = vmatmul.mubr.bf16.gmra.mrb[0].mxu0 %v2945
        %v3030 = vpop.f32.mrb[0].mxu0
        %v3031 = vadd.f32 %v2835, %v3030
        %v3032 = vpop.f32.mrb[0].mxu0
        %v3033 = vadd.f32 %v2839, %v3032
        %v3034 = vpop.f32.mrb[0].mxu0
        %v3035 = vadd.f32 %v2835, %v3034
        %v3036 = vpop.f32.mrb[0].mxu0
        %v3037 = vadd.f32 %v2839, %v3036
        %3038 = vmatprep.mubr.bf16.mxu0 0
        %3039 = vmatmul.mubr.bf16.gmra.mrb[0].mxu0 %v2948
        %v3040 = vpop.f32.mrb[0].mxu0
        %v3041 = vadd.f32 %v2835, %v3040
        %v3042 = vpop.f32.mrb[0].mxu0
        %v3043 = vadd.f32 %v2839, %v3042
        %v3044 = vpop.f32.mrb[0].mxu0
        %v3045 = vadd.f32 %v2835, %v3044
        %v3046 = vpop.f32.mrb[0].mxu0
        %v3047 = vadd.f32 %v2839, %v3046
        %3048 = vmatprep.mubr.bf16.mxu0 0
        %3049 = vmatmul.mubr.bf16.gmra.mrb[0].mxu0 %v2951
        %v3050 = vpop.f32.mrb[0].mxu0
        %v3051 = vadd.f32 %v2835, %v3050
        %v3052 = vpop.f32.mrb[0].mxu0
        %v3053 = vadd.f32 %v2839, %v3052
        %v3054 = vpop.f32.mrb[0].mxu0
        %v3055 = vadd.f32 %v2835, %v3054
        %v3056 = vpop.f32.mrb[0].mxu0
        %v3057 = vadd.f32 %v2839, %v3056
        %3058 = vmatprep.mubr.bf16.mxu0 0
        %3059 = vmatmul.mubr.bf16.gmra.mrb[0].mxu0 %v2954
        %v3060 = vpop.f32.mrb[0].mxu0
        %v3061 = vadd.f32 %v2835, %v3060
        %v3062 = vpop.f32.mrb[0].mxu0
        %v3063 = vadd.f32 %v2839, %v3062
        %v3064 = vpop.f32.mrb[0].mxu0
        %v3065 = vadd.f32 %v2835, %v3064
        %v3066 = vpop.f32.mrb[0].mxu0
        %v3067 = vadd.f32 %v2839, %v3066
        %3068 = vdwg.mxu0
        %3069 = vmatprep.subr.bf16.mxu0 %v2903
        %3070 = vmatpush1.bf16.msra.mxu0 %v2902
        %3071 = vmatprep.subr.bf16.mxu0 %v2907
        %3072 = vmatpush1.bf16.msra.mxu0 %v2906
        %3073 = vmatprep.subr.bf16.mxu0 %v2911
        %3074 = vmatpush1.bf16.msra.mxu0 %v2910
        %3075 = vmatprep.subr.bf16.mxu0 %v2915
        %3076 = vmatpush1.bf16.msra.mxu0 %v2914
        %3077 = vmatprep.subr.bf16.mxu0 0
        %3078 = vmatpush1.bf16.msra.mxu0 0
        %3079 = vmatprep.subr.bf16.mxu0 0
        %3080 = vmatpush1.bf16.msra.mxu0 0
        %3081 = vmatprep.subr.bf16.mxu0 0
        %3082 = vmatpush1.bf16.msra.mxu0 0
        %3083 = vmatprep.subr.bf16.mxu0 0
        %3084 = vmatpush1.bf16.msra.mxu0 0
        %3085 = vmatprep.subr.bf16.mxu0 0
        %3086 = vmatpush1.bf16.msra.mxu0 0
        %3087 = vmatprep.subr.bf16.mxu0 0
        %3088 = vmatpush1.bf16.msra.mxu0 0
        %3089 = vmatprep.subr.bf16.mxu0 0
        %3090 = vmatpush1.bf16.msra.mxu0 0
        %3091 = vmatprep.subr.bf16.mxu0 0
        %3092 = vmatpush1.bf16.msra.mxu0 0
        %3093 = vmatprep.subr.bf16.mxu0 0
        %3094 = vmatpush1.bf16.msra.mxu0 0
        %3095 = vmatprep.subr.bf16.mxu0 0
        %3096 = vmatpush1.bf16.msra.mxu0 0
        %3097 = vmatprep.subr.bf16.mxu0 0
        %3098 = vmatpush1.bf16.msra.mxu0 0
        %3099 = vmatprep.subr.bf16.mxu0 0
        %3100 = vmatpush1.bf16.msra.mxu0 0
        %3101 = vmatprep.mubr.bf16.mxu0 0
        %3102 = vmatmul.mubr.bf16.gmra.mrb[0].mxu0 %v2933
        %v3103 = vpop.f32.mrb[0].mxu0
        %v3104 = vadd.f32 %v2843, %v3103
        %v3105 = vpop.f32.mrb[0].mxu0
        %v3106 = vadd.f32 %v2847, %v3105
        %v3107 = vpop.f32.mrb[0].mxu0
        %v3108 = vadd.f32 %v2843, %v3107
        %v3109 = vpop.f32.mrb[0].mxu0
        %v3110 = vadd.f32 %v2847, %v3109
        %3111 = vmatprep.mubr.bf16.mxu0 0
        %3112 = vmatmul.mubr.bf16.gmra.mrb[0].mxu0 %v2936
        %v3113 = vpop.f32.mrb[0].mxu0
        %v3114 = vadd.f32 %v2843, %v3113
        %v3115 = vpop.f32.mrb[0].mxu0
        %v3116 = vadd.f32 %v2847, %v3115
        %v3117 = vpop.f32.mrb[0].mxu0
        %v3118 = vadd.f32 %v2843, %v3117
        %v3119 = vpop.f32.mrb[0].mxu0
        %v3120 = vadd.f32 %v2847, %v3119
        %3121 = vmatprep.mubr.bf16.mxu0 0
        %3122 = vmatmul.mubr.bf16.gmra.mrb[0].mxu0 %v2939
        %v3123 = vpop.f32.mrb[0].mxu0
        %v3124 = vadd.f32 %v2843, %v3123
        %v3125 = vpop.f32.mrb[0].mxu0
        %v3126 = vadd.f32 %v2847, %v3125
        %v3127 = vpop.f32.mrb[0].mxu0
        %v3128 = vadd.f32 %v2843, %v3127
        %v3129 = vpop.f32.mrb[0].mxu0
        %v3130 = vadd.f32 %v2847, %v3129
        %3131 = vmatprep.mubr.bf16.mxu0 0
        %3132 = vmatmul.mubr.bf16.gmra.mrb[0].mxu0 %v2942
        %v3133 = vpop.f32.mrb[0].mxu0
        %v3134 = vadd.f32 %v2843, %v3133
        %v3135 = vpop.f32.mrb[0].mxu0
        %v3136 = vadd.f32 %v2847, %v3135
        %v3137 = vpop.f32.mrb[0].mxu0
        %v3138 = vadd.f32 %v2843, %v3137
        %v3139 = vpop.f32.mrb[0].mxu0
        %v3140 = vadd.f32 %v2847, %v3139
        %3141 = vmatprep.mubr.bf16.mxu0 0
        %3142 = vmatmul.mubr.bf16.gmra.mrb[0].mxu0 %v2945
        %v3143 = vpop.f32.mrb[0].mxu0
        %v3144 = vadd.f32 %v2843, %v3143
        %v3145 = vpop.f32.mrb[0].mxu0
        %v3146 = vadd.f32 %v2847, %v3145
        %v3147 = vpop.f32.mrb[0].mxu0
        %v3148 = vadd.f32 %v2843, %v3147
        %v3149 = vpop.f32.mrb[0].mxu0
        %v3150 = vadd.f32 %v2847, %v3149
        %3151 = vmatprep.mubr.bf16.mxu0 0
        %3152 = vmatmul.mubr.bf16.gmra.mrb[0].mxu0 %v2948
        %v3153 = vpop.f32.mrb[0].mxu0
        %v3154 = vadd.f32 %v2843, %v3153
        %v3155 = vpop.f32.mrb[0].mxu0
        %v3156 = vadd.f32 %v2847, %v3155
        %v3157 = vpop.f32.mrb[0].mxu0
        %v3158 = vadd.f32 %v2843, %v3157
        %v3159 = vpop.f32.mrb[0].mxu0
        %v3160 = vadd.f32 %v2847, %v3159
        %3161 = vmatprep.mubr.bf16.mxu0 0
        %3162 = vmatmul.mubr.bf16.gmra.mrb[0].mxu0 %v2951
        %v3163 = vpop.f32.mrb[0].mxu0
        %v3164 = vadd.f32 %v2843, %v3163
        %v3165 = vpop.f32.mrb[0].mxu0
        %v3166 = vadd.f32 %v2847, %v3165
        %v3167 = vpop.f32.mrb[0].mxu0
        %v3168 = vadd.f32 %v2843, %v3167
        %v3169 = vpop.f32.mrb[0].mxu0
        %v3170 = vadd.f32 %v2847, %v3169
        %3171 = vmatprep.mubr.bf16.mxu0 0
        %3172 = vmatmul.mubr.bf16.gmra.mrb[0].mxu0 %v2954
        %v3173 = vpop.f32.mrb[0].mxu0
        %v3174 = vadd.f32 %v2843, %v3173
        %v3175 = vpop.f32.mrb[0].mxu0
        %v3176 = vadd.f32 %v2847, %v3175
        %v3177 = vpop.f32.mrb[0].mxu0
        %v3178 = vadd.f32 %v2843, %v3177
        %v3179 = vpop.f32.mrb[0].mxu0
        %v3180 = vadd.f32 %v2847, %v3179
        %3181 = vdwg.mxu0
        %v3182 = vmax.f32 %v2991, %v2993
        %v3183 = vmax.f32 %v3182, %v3104
        %v3184 = vmax.f32 %v3183, %v3106
        %3185 = vmax.xlane.f32.xlu0 %v3184
        %v3186 = vpop.xlane.xlu0 %3185
        %v3187 = vmax.f32 %v2995, %v2997
        %v3188 = vmax.f32 %v3187, %v3108
        %v3189 = vmax.f32 %v3188, %v3110
        %3190 = vmax.xlane.f32.xlu0 %v3189
        %v3191 = vpop.xlane.xlu0 %3190
        %v3192 = vmax.f32 %v3001, %v3003
        %v3193 = vmax.f32 %v3192, %v3114
        %v3194 = vmax.f32 %v3193, %v3116
        %3195 = vmax.xlane.f32.xlu0 %v3194
        %v3196 = vpop.xlane.xlu0 %3195
        %v3197 = vmax.f32 %v3005, %v3007
        %v3198 = vmax.f32 %v3197, %v3118
        %v3199 = vmax.f32 %v3198, %v3120
        %3200 = vmax.xlane.f32.xlu0 %v3199
        %v3201 = vpop.xlane.xlu0 %3200
        %v3202 = vmax.f32 %v3011, %v3013
        %v3203 = vmax.f32 %v3202, %v3124
        %v3204 = vmax.f32 %v3203, %v3126
        %3205 = vmax.xlane.f32.xlu0 %v3204
        %v3206 = vpop.xlane.xlu0 %3205
        %v3207 = vmax.f32 %v3015, %v3017
        %v3208 = vmax.f32 %v3207, %v3128
        %v3209 = vmax.f32 %v3208, %v3130
        %3210 = vmax.xlane.f32.xlu0 %v3209
        %v3211 = vpop.xlane.xlu0 %3210
        %v3212 = vmax.f32 %v3021, %v3023
        %v3213 = vmax.f32 %v3212, %v3134
        %v3214 = vmax.f32 %v3213, %v3136
        %3215 = vmax.xlane.f32.xlu0 %v3214
        %v3216 = vpop.xlane.xlu0 %3215
        %v3217 = vmax.f32 %v3025, %v3027
        %v3218 = vmax.f32 %v3217, %v3138
        %v3219 = vmax.f32 %v3218, %v3140
        %3220 = vmax.xlane.f32.xlu0 %v3219
        %v3221 = vpop.xlane.xlu0 %3220
        %v3222 = vmax.f32 %v3031, %v3033
        %v3223 = vmax.f32 %v3222, %v3144
        %v3224 = vmax.f32 %v3223, %v3146
        %3225 = vmax.xlane.f32.xlu0 %v3224
        %v3226 = vpop.xlane.xlu0 %3225
        %v3227 = vmax.f32 %v3035, %v3037
        %v3228 = vmax.f32 %v3227, %v3148
        %v3229 = vmax.f32 %v3228, %v3150
        %3230 = vmax.xlane.f32.xlu0 %v3229
        %v3231 = vpop.xlane.xlu0 %3230
        %v3232 = vmax.f32 %v3041, %v3043
        %v3233 = vmax.f32 %v3232, %v3154
        %v3234 = vmax.f32 %v3233, %v3156
        %3235 = vmax.xlane.f32.xlu0 %v3234
        %v3236 = vpop.xlane.xlu0 %3235
        %v3237 = vmax.f32 %v3045, %v3047
        %v3238 = vmax.f32 %v3237, %v3158
        %v3239 = vmax.f32 %v3238, %v3160
        %3240 = vmax.xlane.f32.xlu0 %v3239
        %v3241 = vpop.xlane.xlu0 %3240
        %v3242 = vmax.f32 %v3051, %v3053
        %v3243 = vmax.f32 %v3242, %v3164
        %v3244 = vmax.f32 %v3243, %v3166
        %3245 = vmax.xlane.f32.xlu0 %v3244
        %v3246 = vpop.xlane.xlu0 %3245
        %v3247 = vmax.f32 %v3055, %v3057
        %v3248 = vmax.f32 %v3247, %v3168
        %v3249 = vmax.f32 %v3248, %v3170
        %3250 = vmax.xlane.f32.xlu0 %v3249
        %v3251 = vpop.xlane.xlu0 %3250
        %v3252 = vmax.f32 %v3061, %v3063
        %v3253 = vmax.f32 %v3252, %v3174
        %v3254 = vmax.f32 %v3253, %v3176
        %3255 = vmax.xlane.f32.xlu0 %v3254
        %v3256 = vpop.xlane.xlu0 %3255
        %v3257 = vmax.f32 %v3065, %v3067
        %v3258 = vmax.f32 %v3257, %v3178
        %v3259 = vmax.f32 %v3258, %v3180
        %3260 = vmax.xlane.f32.xlu0 %v3259
        %v3261 = vpop.xlane.xlu0 %3260
        %v3262 = vsub.f32 %v2991, %v3186
        %v3263 = vsub.f32 %v2993, %v3186
        %v3264 = vsub.f32 %v3104, %v3186
        %v3265 = vsub.f32 %v3106, %v3186
        %v3266 = vsub.f32 %v2995, %v3191
        %v3267 = vsub.f32 %v2997, %v3191
        %v3268 = vsub.f32 %v3108, %v3191
        %v3269 = vsub.f32 %v3110, %v3191
        %v3270 = vsub.f32 %v3001, %v3196
        %v3271 = vsub.f32 %v3003, %v3196
        %v3272 = vsub.f32 %v3114, %v3196
        %v3273 = vsub.f32 %v3116, %v3196
        %v3274 = vsub.f32 %v3005, %v3201
        %v3275 = vsub.f32 %v3007, %v3201
        %v3276 = vsub.f32 %v3118, %v3201
        %v3277 = vsub.f32 %v3120, %v3201
        %v3278 = vsub.f32 %v3011, %v3206
        %v3279 = vsub.f32 %v3013, %v3206
        %v3280 = vsub.f32 %v3124, %v3206
        %v3281 = vsub.f32 %v3126, %v3206
        %v3282 = vsub.f32 %v3015, %v3211
        %v3283 = vsub.f32 %v3017, %v3211
        %v3284 = vsub.f32 %v3128, %v3211
        %v3285 = vsub.f32 %v3130, %v3211
        %v3286 = vsub.f32 %v3021, %v3216
        %v3287 = vsub.f32 %v3023, %v3216
        %v3288 = vsub.f32 %v3134, %v3216
        %v3289 = vsub.f32 %v3136, %v3216
        %v3290 = vsub.f32 %v3025, %v3221
        %v3291 = vsub.f32 %v3027, %v3221
        %v3292 = vsub.f32 %v3138, %v3221
        %v3293 = vsub.f32 %v3140, %v3221
        %v3294 = vsub.f32 %v3031, %v3226
        %v3295 = vsub.f32 %v3033, %v3226
        %v3296 = vsub.f32 %v3144, %v3226
        %v3297 = vsub.f32 %v3146, %v3226
        %v3298 = vsub.f32 %v3035, %v3231
        %v3299 = vsub.f32 %v3037, %v3231
        %v3300 = vsub.f32 %v3148, %v3231
        %v3301 = vsub.f32 %v3150, %v3231
        %v3302 = vsub.f32 %v3041, %v3236
        %v3303 = vsub.f32 %v3043, %v3236
        %v3304 = vsub.f32 %v3154, %v3236
        %v3305 = vsub.f32 %v3156, %v3236
        %v3306 = vsub.f32 %v3045, %v3241
        %v3307 = vsub.f32 %v3047, %v3241
        %v3308 = vsub.f32 %v3158, %v3241
        %v3309 = vsub.f32 %v3160, %v3241
        %v3310 = vsub.f32 %v3051, %v3246
        %v3311 = vsub.f32 %v3053, %v3246
        %v3312 = vsub.f32 %v3164, %v3246
        %v3313 = vsub.f32 %v3166, %v3246
        %v3314 = vsub.f32 %v3055, %v3251
        %v3315 = vsub.f32 %v3057, %v3251
        %v3316 = vsub.f32 %v3168, %v3251
        %v3317 = vsub.f32 %v3170, %v3251
        %v3318 = vsub.f32 %v3061, %v3256
        %v3319 = vsub.f32 %v3063, %v3256
        %v3320 = vsub.f32 %v3174, %v3256
        %v3321 = vsub.f32 %v3176, %v3256
        %v3322 = vsub.f32 %v3065, %v3261
        %v3323 = vsub.f32 %v3067, %v3261
        %v3324 = vsub.f32 %v3178, %v3261
        %v3325 = vsub.f32 %v3180, %v3261
        %v3326 = vmul.f32 %v3262, 1.442695
        %v3327 = vpow.pop %v3326
        %v3328 = vmul.f32 %v3263, 1.442695
        %v3329 = vpow.pop %v3328
        %v3330 = vmul.f32 %v3264, 1.442695
        %v3331 = vpow.pop %v3330
        %v3332 = vmul.f32 %v3265, 1.442695
        %v3333 = vpow.pop %v3332
        %v3334 = vmul.f32 %v3266, 1.442695
        %v3335 = vpow.pop %v3334
        %v3336 = vmul.f32 %v3267, 1.442695
        %v3337 = vpow.pop %v3336
        %v3338 = vmul.f32 %v3268, 1.442695
        %v3339 = vpow.pop %v3338
        %v3340 = vmul.f32 %v3269, 1.442695
        %v3341 = vpow.pop %v3340
        %v3342 = vmul.f32 %v3270, 1.442695
        %v3343 = vpow.pop %v3342
        %v3344 = vmul.f32 %v3271, 1.442695
        %v3345 = vpow.pop %v3344
        %v3346 = vmul.f32 %v3272, 1.442695
        %v3347 = vpow.pop %v3346
        %v3348 = vmul.f32 %v3273, 1.442695
        %v3349 = vpow.pop %v3348
        %v3350 = vmul.f32 %v3274, 1.442695
        %v3351 = vpow.pop %v3350
        %v3352 = vmul.f32 %v3275, 1.442695
        %v3353 = vpow.pop %v3352
        %v3354 = vmul.f32 %v3276, 1.442695
        %v3355 = vpow.pop %v3354
        %v3356 = vmul.f32 %v3277, 1.442695
        %v3357 = vpow.pop %v3356
        %v3358 = vmul.f32 %v3278, 1.442695
        %v3359 = vpow.pop %v3358
        %v3360 = vmul.f32 %v3279, 1.442695
        %v3361 = vpow.pop %v3360
        %v3362 = vmul.f32 %v3280, 1.442695
        %v3363 = vpow.pop %v3362
        %v3364 = vmul.f32 %v3281, 1.442695
        %v3365 = vpow.pop %v3364
        %v3366 = vmul.f32 %v3282, 1.442695
        %v3367 = vpow.pop %v3366
        %v3368 = vmul.f32 %v3283, 1.442695
        %v3369 = vpow.pop %v3368
        %v3370 = vmul.f32 %v3284, 1.442695
        %v3371 = vpow.pop %v3370
        %v3372 = vmul.f32 %v3285, 1.442695
        %v3373 = vpow.pop %v3372
        %v3374 = vmul.f32 %v3286, 1.442695
        %v3375 = vpow.pop %v3374
        %v3376 = vmul.f32 %v3287, 1.442695
        %v3377 = vpow.pop %v3376
        %v3378 = vmul.f32 %v3288, 1.442695
        %v3379 = vpow.pop %v3378
        %v3380 = vmul.f32 %v3289, 1.442695
        %v3381 = vpow.pop %v3380
        %v3382 = vmul.f32 %v3290, 1.442695
        %v3383 = vpow.pop %v3382
        %v3384 = vmul.f32 %v3291, 1.442695
        %v3385 = vpow.pop %v3384
        %v3386 = vmul.f32 %v3292, 1.442695
        %v3387 = vpow.pop %v3386
        %v3388 = vmul.f32 %v3293, 1.442695
        %v3389 = vpow.pop %v3388
        %v3390 = vmul.f32 %v3294, 1.442695
        %v3391 = vpow.pop %v3390
        %v3392 = vmul.f32 %v3295, 1.442695
        %v3393 = vpow.pop %v3392
        %v3394 = vmul.f32 %v3296, 1.442695
        %v3395 = vpow.pop %v3394
        %v3396 = vmul.f32 %v3297, 1.442695
        %v3397 = vpow.pop %v3396
        %v3398 = vmul.f32 %v3298, 1.442695
        %v3399 = vpow.pop %v3398
        %v3400 = vmul.f32 %v3299, 1.442695
        %v3401 = vpow.pop %v3400
        %v3402 = vmul.f32 %v3300, 1.442695
        %v3403 = vpow.pop %v3402
        %v3404 = vmul.f32 %v3301, 1.442695
        %v3405 = vpow.pop %v3404
        %v3406 = vmul.f32 %v3302, 1.442695
        %v3407 = vpow.pop %v3406
        %v3408 = vmul.f32 %v3303, 1.442695
        %v3409 = vpow.pop %v3408
        %v3410 = vmul.f32 %v3304, 1.442695
        %v3411 = vpow.pop %v3410
        %v3412 = vmul.f32 %v3305, 1.442695
        %v3413 = vpow.pop %v3412
        %v3414 = vmul.f32 %v3306, 1.442695
        %v3415 = vpow.pop %v3414
        %v3416 = vmul.f32 %v3307, 1.442695
        %v3417 = vpow.pop %v3416
        %v3418 = vmul.f32 %v3308, 1.442695
        %v3419 = vpow.pop %v3418
        %v3420 = vmul.f32 %v3309, 1.442695
        %v3421 = vpow.pop %v3420
        %v3422 = vmul.f32 %v3310, 1.442695
        %v3423 = vpow.pop %v3422
        %v3424 = vmul.f32 %v3311, 1.442695
        %v3425 = vpow.pop %v3424
        %v3426 = vmul.f32 %v3312, 1.442695
        %v3427 = vpow.pop %v3426
        %v3428 = vmul.f32 %v3313, 1.442695
        %v3429 = vpow.pop %v3428
        %v3430 = vmul.f32 %v3314, 1.442695
        %v3431 = vpow.pop %v3430
        %v3432 = vmul.f32 %v3315, 1.442695
        %v3433 = vpow.pop %v3432
        %v3434 = vmul.f32 %v3316, 1.442695
        %v3435 = vpow.pop %v3434
        %v3436 = vmul.f32 %v3317, 1.442695
        %v3437 = vpow.pop %v3436
        %v3438 = vmul.f32 %v3318, 1.442695
        %v3439 = vpow.pop %v3438
        %v3440 = vmul.f32 %v3319, 1.442695
        %v3441 = vpow.pop %v3440
        %v3442 = vmul.f32 %v3320, 1.442695
        %v3443 = vpow.pop %v3442
        %v3444 = vmul.f32 %v3321, 1.442695
        %v3445 = vpow.pop %v3444
        %v3446 = vmul.f32 %v3322, 1.442695
        %v3447 = vpow.pop %v3446
        %v3448 = vmul.f32 %v3323, 1.442695
        %v3449 = vpow.pop %v3448
        %v3450 = vmul.f32 %v3324, 1.442695
        %v3451 = vpow.pop %v3450
        %v3452 = vmul.f32 %v3325, 1.442695
        %v3453 = vpow.pop %v3452
        %v3454 = vadd.f32 %v3327, %v3329
        %v3455 = vadd.f32 %v3454, %v3331
        %v3456 = vadd.f32 %v3455, %v3333
        %3457 = vadd.xlane.f32.xlu0 %v3456
        %v3458 = vpop.xlane.xlu0 %3457
        %v3459 = vadd.f32 %v3335, %v3337
        %v3460 = vadd.f32 %v3459, %v3339
        %v3461 = vadd.f32 %v3460, %v3341
        %3462 = vadd.xlane.f32.xlu0 %v3461
        %v3463 = vpop.xlane.xlu0 %3462
        %v3464 = vadd.f32 %v3343, %v3345
        %v3465 = vadd.f32 %v3464, %v3347
        %v3466 = vadd.f32 %v3465, %v3349
        %3467 = vadd.xlane.f32.xlu0 %v3466
        %v3468 = vpop.xlane.xlu0 %3467
        %v3469 = vadd.f32 %v3351, %v3353
        %v3470 = vadd.f32 %v3469, %v3355
        %v3471 = vadd.f32 %v3470, %v3357
        %3472 = vadd.xlane.f32.xlu0 %v3471
        %v3473 = vpop.xlane.xlu0 %3472
        %v3474 = vadd.f32 %v3359, %v3361
        %v3475 = vadd.f32 %v3474, %v3363
        %v3476 = vadd.f32 %v3475, %v3365
        %3477 = vadd.xlane.f32.xlu0 %v3476
        %v3478 = vpop.xlane.xlu0 %3477
        %v3479 = vadd.f32 %v3367, %v3369
        %v3480 = vadd.f32 %v3479, %v3371
        %v3481 = vadd.f32 %v3480, %v3373
        %3482 = vadd.xlane.f32.xlu0 %v3481
        %v3483 = vpop.xlane.xlu0 %3482
        %v3484 = vadd.f32 %v3375, %v3377
        %v3485 = vadd.f32 %v3484, %v3379
        %v3486 = vadd.f32 %v3485, %v3381
        %3487 = vadd.xlane.f32.xlu0 %v3486
        %v3488 = vpop.xlane.xlu0 %3487
        %v3489 = vadd.f32 %v3383, %v3385
        %v3490 = vadd.f32 %v3489, %v3387
        %v3491 = vadd.f32 %v3490, %v3389
        %3492 = vadd.xlane.f32.xlu0 %v3491
        %v3493 = vpop.xlane.xlu0 %3492
        %v3494 = vadd.f32 %v3391, %v3393
        %v3495 = vadd.f32 %v3494, %v3395
        %v3496 = vadd.f32 %v3495, %v3397
        %3497 = vadd.xlane.f32.xlu0 %v3496
        %v3498 = vpop.xlane.xlu0 %3497
        %v3499 = vadd.f32 %v3399, %v3401
        %v3500 = vadd.f32 %v3499, %v3403
        %v3501 = vadd.f32 %v3500, %v3405
        %3502 = vadd.xlane.f32.xlu0 %v3501
        %v3503 = vpop.xlane.xlu0 %3502
        %v3504 = vadd.f32 %v3407, %v3409
        %v3505 = vadd.f32 %v3504, %v3411
        %v3506 = vadd.f32 %v3505, %v3413
        %3507 = vadd.xlane.f32.xlu0 %v3506
        %v3508 = vpop.xlane.xlu0 %3507
        %v3509 = vadd.f32 %v3415, %v3417
        %v3510 = vadd.f32 %v3509, %v3419
        %v3511 = vadd.f32 %v3510, %v3421
        %3512 = vadd.xlane.f32.xlu0 %v3511
        %v3513 = vpop.xlane.xlu0 %3512
        %v3514 = vadd.f32 %v3423, %v3425
        %v3515 = vadd.f32 %v3514, %v3427
        %v3516 = vadd.f32 %v3515, %v3429
        %3517 = vadd.xlane.f32.xlu0 %v3516
        %v3518 = vpop.xlane.xlu0 %3517
        %v3519 = vadd.f32 %v3431, %v3433
        %v3520 = vadd.f32 %v3519, %v3435
        %v3521 = vadd.f32 %v3520, %v3437
        %3522 = vadd.xlane.f32.xlu0 %v3521
        %v3523 = vpop.xlane.xlu0 %3522
        %v3524 = vadd.f32 %v3439, %v3441
        %v3525 = vadd.f32 %v3524, %v3443
        %v3526 = vadd.f32 %v3525, %v3445
        %3527 = vadd.xlane.f32.xlu0 %v3526
        %v3528 = vpop.xlane.xlu0 %3527
        %v3529 = vadd.f32 %v3447, %v3449
        %v3530 = vadd.f32 %v3529, %v3451
        %v3531 = vadd.f32 %v3530, %v3453
        %3532 = vadd.xlane.f32.xlu0 %v3531
        %v3533 = vpop.xlane.xlu0 %3532
        %v3534 = vrcp.pop %v3458
        %v3535 = vmul.f32 %v3327, %v3534
        %v3536 = vmul.f32 %v3329, %v3534
        %v3537 = vmul.f32 %v3331, %v3534
        %v3538 = vmul.f32 %v3333, %v3534
        %v3539 = vrcp.pop %v3463
        %v3540 = vmul.f32 %v3335, %v3539
        %v3541 = vmul.f32 %v3337, %v3539
        %v3542 = vmul.f32 %v3339, %v3539
        %v3543 = vmul.f32 %v3341, %v3539
        %v3544 = vrcp.pop %v3468
        %v3545 = vmul.f32 %v3343, %v3544
        %v3546 = vmul.f32 %v3345, %v3544
        %v3547 = vmul.f32 %v3347, %v3544
        %v3548 = vmul.f32 %v3349, %v3544
        %v3549 = vrcp.pop %v3473
        %v3550 = vmul.f32 %v3351, %v3549
        %v3551 = vmul.f32 %v3353, %v3549
        %v3552 = vmul.f32 %v3355, %v3549
        %v3553 = vmul.f32 %v3357, %v3549
        %v3554 = vrcp.pop %v3478
        %v3555 = vmul.f32 %v3359, %v3554
        %v3556 = vmul.f32 %v3361, %v3554
        %v3557 = vmul.f32 %v3363, %v3554
        %v3558 = vmul.f32 %v3365, %v3554
        %v3559 = vrcp.pop %v3483
        %v3560 = vmul.f32 %v3367, %v3559
        %v3561 = vmul.f32 %v3369, %v3559
        %v3562 = vmul.f32 %v3371, %v3559
        %v3563 = vmul.f32 %v3373, %v3559
        %v3564 = vrcp.pop %v3488
        %v3565 = vmul.f32 %v3375, %v3564
        %v3566 = vmul.f32 %v3377, %v3564
        %v3567 = vmul.f32 %v3379, %v3564
        %v3568 = vmul.f32 %v3381, %v3564
        %v3569 = vrcp.pop %v3493
        %v3570 = vmul.f32 %v3383, %v3569
        %v3571 = vmul.f32 %v3385, %v3569
        %v3572 = vmul.f32 %v3387, %v3569
        %v3573 = vmul.f32 %v3389, %v3569
        %v3574 = vrcp.pop %v3498
        %v3575 = vmul.f32 %v3391, %v3574
        %v3576 = vmul.f32 %v3393, %v3574
        %v3577 = vmul.f32 %v3395, %v3574
        %v3578 = vmul.f32 %v3397, %v3574
        %v3579 = vrcp.pop %v3503
        %v3580 = vmul.f32 %v3399, %v3579
        %v3581 = vmul.f32 %v3401, %v3579
        %v3582 = vmul.f32 %v3403, %v3579
        %v3583 = vmul.f32 %v3405, %v3579
        %v3584 = vrcp.pop %v3508
        %v3585 = vmul.f32 %v3407, %v3584
        %v3586 = vmul.f32 %v3409, %v3584
        %v3587 = vmul.f32 %v3411, %v3584
        %v3588 = vmul.f32 %v3413, %v3584
        %v3589 = vrcp.pop %v3513
        %v3590 = vmul.f32 %v3415, %v3589
        %v3591 = vmul.f32 %v3417, %v3589
        %v3592 = vmul.f32 %v3419, %v3589
        %v3593 = vmul.f32 %v3421, %v3589
        %v3594 = vrcp.pop %v3518
        %v3595 = vmul.f32 %v3423, %v3594
        %v3596 = vmul.f32 %v3425, %v3594
        %v3597 = vmul.f32 %v3427, %v3594
        %v3598 = vmul.f32 %v3429, %v3594
        %v3599 = vrcp.pop %v3523
        %v3600 = vmul.f32 %v3431, %v3599
        %v3601 = vmul.f32 %v3433, %v3599
        %v3602 = vmul.f32 %v3435, %v3599
        %v3603 = vmul.f32 %v3437, %v3599
        %v3604 = vrcp.pop %v3528
        %v3605 = vmul.f32 %v3439, %v3604
        %v3606 = vmul.f32 %v3441, %v3604
        %v3607 = vmul.f32 %v3443, %v3604
        %v3608 = vmul.f32 %v3445, %v3604
        %v3609 = vrcp.pop %v3533
        %v3610 = vmul.f32 %v3447, %v3609
        %v3611 = vmul.f32 %v3449, %v3609
        %v3612 = vmul.f32 %v3451, %v3609
        %v3613 = vmul.f32 %v3453, %v3609
        %v3614 = vpack.c.bf16 %v3540, %v3535
        %v3615 = vpack.c.bf16 %v3541, %v3536
        %v3616 = vpack.c.bf16 %v3542, %v3537
        %v3617 = vpack.c.bf16 %v3543, %v3538
        %v3618 = vpack.c.bf16 %v3550, %v3545
        %v3619 = vpack.c.bf16 %v3551, %v3546
        %v3620 = vpack.c.bf16 %v3552, %v3547
        %v3621 = vpack.c.bf16 %v3553, %v3548
        %v3622 = vpack.c.bf16 %v3560, %v3555
        %v3623 = vpack.c.bf16 %v3561, %v3556
        %v3624 = vpack.c.bf16 %v3562, %v3557
        %v3625 = vpack.c.bf16 %v3563, %v3558
        %v3626 = vpack.c.bf16 %v3570, %v3565
        %v3627 = vpack.c.bf16 %v3571, %v3566
        %v3628 = vpack.c.bf16 %v3572, %v3567
        %v3629 = vpack.c.bf16 %v3573, %v3568
        %v3630 = vpack.c.bf16 %v3580, %v3575
        %v3631 = vpack.c.bf16 %v3581, %v3576
        %v3632 = vpack.c.bf16 %v3582, %v3577
        %v3633 = vpack.c.bf16 %v3583, %v3578
        %v3634 = vpack.c.bf16 %v3590, %v3585
        %v3635 = vpack.c.bf16 %v3591, %v3586
        %v3636 = vpack.c.bf16 %v3592, %v3587
        %v3637 = vpack.c.bf16 %v3593, %v3588
        %v3638 = vpack.c.bf16 %v3600, %v3595
        %v3639 = vpack.c.bf16 %v3601, %v3596
        %v3640 = vpack.c.bf16 %v3602, %v3597
        %v3641 = vpack.c.bf16 %v3603, %v3598
        %v3642 = vpack.c.bf16 %v3610, %v3605
        %v3643 = vpack.c.bf16 %v3611, %v3606
        %v3644 = vpack.c.bf16 %v3612, %v3607
        %v3645 = vpack.c.bf16 %v3613, %v3608
        %v3678 = vunpack.c.l.b16 %v3614
        %v3679 = vunpack.c.l.b16 %v3615
        %v3680 = vunpack.c.l.b16 %v3616
        %v3681 = vunpack.c.l.b16 %v3617
        %v3682 = vunpack.c.h.b16 %v3614
        %v3683 = vunpack.c.h.b16 %v3615
        %v3684 = vunpack.c.h.b16 %v3616
        %v3685 = vunpack.c.h.b16 %v3617
        %v3686 = vunpack.c.l.b16 %v3618
        %v3687 = vunpack.c.l.b16 %v3619
        %v3688 = vunpack.c.l.b16 %v3620
        %v3689 = vunpack.c.l.b16 %v3621
        %v3690 = vunpack.c.h.b16 %v3618
        %v3691 = vunpack.c.h.b16 %v3619
        %v3692 = vunpack.c.h.b16 %v3620
        %v3693 = vunpack.c.h.b16 %v3621
        %v3694 = vunpack.c.l.b16 %v3622
        %v3695 = vunpack.c.l.b16 %v3623
        %v3696 = vunpack.c.l.b16 %v3624
        %v3697 = vunpack.c.l.b16 %v3625
        %v3698 = vunpack.c.h.b16 %v3622
        %v3699 = vunpack.c.h.b16 %v3623
        %v3700 = vunpack.c.h.b16 %v3624
        %v3701 = vunpack.c.h.b16 %v3625
        %v3702 = vunpack.c.l.b16 %v3626
        %v3703 = vunpack.c.l.b16 %v3627
        %v3704 = vunpack.c.l.b16 %v3628
        %v3705 = vunpack.c.l.b16 %v3629
        %v3706 = vunpack.c.h.b16 %v3626
        %v3707 = vunpack.c.h.b16 %v3627
        %v3708 = vunpack.c.h.b16 %v3628
        %v3709 = vunpack.c.h.b16 %v3629
        %v3710 = vunpack.c.l.b16 %v3630
        %v3711 = vunpack.c.l.b16 %v3631
        %v3712 = vunpack.c.l.b16 %v3632
        %v3713 = vunpack.c.l.b16 %v3633
        %v3714 = vunpack.c.h.b16 %v3630
        %v3715 = vunpack.c.h.b16 %v3631
        %v3716 = vunpack.c.h.b16 %v3632
        %v3717 = vunpack.c.h.b16 %v3633
        %v3718 = vunpack.c.l.b16 %v3634
        %v3719 = vunpack.c.l.b16 %v3635
        %v3720 = vunpack.c.l.b16 %v3636
        %v3721 = vunpack.c.l.b16 %v3637
        %v3722 = vunpack.c.h.b16 %v3634
        %v3723 = vunpack.c.h.b16 %v3635
        %v3724 = vunpack.c.h.b16 %v3636
        %v3725 = vunpack.c.h.b16 %v3637
        %v3726 = vunpack.c.l.b16 %v3638
        %v3727 = vunpack.c.l.b16 %v3639
        %v3728 = vunpack.c.l.b16 %v3640
        %v3729 = vunpack.c.l.b16 %v3641
        %v3730 = vunpack.c.h.b16 %v3638
        %v3731 = vunpack.c.h.b16 %v3639
        %v3732 = vunpack.c.h.b16 %v3640
        %v3733 = vunpack.c.h.b16 %v3641
        %v3734 = vunpack.c.l.b16 %v3642
        %v3735 = vunpack.c.l.b16 %v3643
        %v3736 = vunpack.c.l.b16 %v3644
        %v3737 = vunpack.c.l.b16 %v3645
        %v3738 = vunpack.c.h.b16 %v3642
        %v3739 = vunpack.c.h.b16 %v3643
        %v3740 = vunpack.c.h.b16 %v3644
        %v3741 = vunpack.c.h.b16 %v3645
        %v3742 = vpack.c.b16 %v3679, %v3678
        %v3743 = vpack.c.b16 %v3681, %v3680
        %v3744 = vpack.c.b16 %v3683, %v3682
        %v3745 = vpack.c.b16 %v3685, %v3684
        %v3746 = vpack.c.b16 %v3687, %v3686
        %v3747 = vpack.c.b16 %v3689, %v3688
        %v3748 = vpack.c.b16 %v3691, %v3690
        %v3749 = vpack.c.b16 %v3693, %v3692
        %v3750 = vpack.c.b16 %v3695, %v3694
        %v3751 = vpack.c.b16 %v3697, %v3696
        %v3752 = vpack.c.b16 %v3699, %v3698
        %v3753 = vpack.c.b16 %v3701, %v3700
        %v3754 = vpack.c.b16 %v3703, %v3702
        %v3755 = vpack.c.b16 %v3705, %v3704
        %v3756 = vpack.c.b16 %v3707, %v3706
        %v3757 = vpack.c.b16 %v3709, %v3708
        %v3758 = vpack.c.b16 %v3711, %v3710
        %v3759 = vpack.c.b16 %v3713, %v3712
        %v3760 = vpack.c.b16 %v3715, %v3714
        %v3761 = vpack.c.b16 %v3717, %v3716
        %v3762 = vpack.c.b16 %v3719, %v3718
        %v3763 = vpack.c.b16 %v3721, %v3720
        %v3764 = vpack.c.b16 %v3723, %v3722
        %v3765 = vpack.c.b16 %v3725, %v3724
        %v3766 = vpack.c.b16 %v3727, %v3726
        %v3767 = vpack.c.b16 %v3729, %v3728
        %v3768 = vpack.c.b16 %v3731, %v3730
        %v3769 = vpack.c.b16 %v3733, %v3732
        %v3770 = vpack.c.b16 %v3735, %v3734
        %v3771 = vpack.c.b16 %v3737, %v3736
        %v3772 = vpack.c.b16 %v3739, %v3738
        %v3773 = vpack.c.b16 %v3741, %v3740
        %3806 = vst [vmem:[%s553] sm:$0xff] %v3742
        %3807 = vst [vmem:[%s553 + $0x8] sm:$0xff] %v3743
        %3808 = vst [vmem:[%s553 + $0x10] sm:$0xff] %v3744
        %3809 = vst [vmem:[%s553 + $0x18] sm:$0xff] %v3745
        %3810 = vst [vmem:[%s553 + $0x20] sm:$0xff] %v3746
        %3811 = vst [vmem:[%s553 + $0x28] sm:$0xff] %v3747
        %3812 = vst [vmem:[%s553 + $0x30] sm:$0xff] %v3748
        %3813 = vst [vmem:[%s553 + $0x38] sm:$0xff] %v3749
        %3814 = vst [vmem:[%s553 + $0x40] sm:$0xff] %v3750
        %3815 = vst [vmem:[%s553 + $0x48] sm:$0xff] %v3751
        %3816 = vst [vmem:[%s553 + $0x50] sm:$0xff] %v3752
        %3817 = vst [vmem:[%s553 + $0x58] sm:$0xff] %v3753
        %3818 = vst [vmem:[%s553 + $0x60] sm:$0xff] %v3754
        %3819 = vst [vmem:[%s553 + $0x68] sm:$0xff] %v3755
        %3820 = vst [vmem:[%s553 + $0x70] sm:$0xff] %v3756
        %3821 = vst [vmem:[%s553 + $0x78] sm:$0xff] %v3757
        %3822 = vst [vmem:[%s553 + $0x80] sm:$0xff] %v3758
        %3823 = vst [vmem:[%s553 + $0x88] sm:$0xff] %v3759
        %3824 = vst [vmem:[%s553 + $0x90] sm:$0xff] %v3760
        %3825 = vst [vmem:[%s553 + $0x98] sm:$0xff] %v3761
        %3826 = vst [vmem:[%s553 + $0xa0] sm:$0xff] %v3762
        %3827 = vst [vmem:[%s553 + $0xa8] sm:$0xff] %v3763
        %3828 = vst [vmem:[%s553 + $0xb0] sm:$0xff] %v3764
        %3829 = vst [vmem:[%s553 + $0xb8] sm:$0xff] %v3765
        %3830 = vst [vmem:[%s553 + $0xc0] sm:$0xff] %v3766
        %3831 = vst [vmem:[%s553 + $0xc8] sm:$0xff] %v3767
        %3832 = vst [vmem:[%s553 + $0xd0] sm:$0xff] %v3768
        %3833 = vst [vmem:[%s553 + $0xd8] sm:$0xff] %v3769
        %3834 = vst [vmem:[%s553 + $0xe0] sm:$0xff] %v3770
        %3835 = vst [vmem:[%s553 + $0xe8] sm:$0xff] %v3771
        %3836 = vst [vmem:[%s553 + $0xf0] sm:$0xff] %v3772
        %3837 = vst [vmem:[%s553 + $0xf8] sm:$0xff] %v3773
        %s3838 = sand.u32 %s289, 1
        %s3839 = scalar_lea.sflag [#allocation4], %s3838
        %s3840 = sand.u32 %s289, 1
        %s3841 = smul.addr %s3840, 256
        %s3842 = scalar_lea.vmem [#allocation10], %s3841
        %s3843 = sand.u32 %s40, 1
        %s3844 = scalar_lea.sflag [#allocation12], %s3843
        %s3845 = sand.u32 %s315, 1
        %s3846 = smul.addr %s3845, 128
        %s3847 = scalar_lea.vmem [#allocation11], %s3846
        %s3848 = sand.u32 %s40, 1
        %s3849 = scalar_lea.sflag [#allocation12], %s3848
        %s3850 = sand.u32 %s341, 1
        %s3851 = smul.addr %s3850, 128
        %s3852 = scalar_lea.vmem [#allocation13], %s3851
        %s3853 = sand.u32 %s367, 1
        %s3854 = scalar_lea.sflag [#allocation15], %s3853
        %s3855 = sand.u32 %s367, 1
        %s3856 = smul.addr %s3855, 256
        %s3857 = scalar_lea.vmem [#allocation14], %s3856
        // Predicated region
        $region81: #{tpu_custom_call.1} parent=63 // pred_check
          %p3858 = pneg %p299
        $region82: #{tpu_custom_call.1} parent=63 // pred_check_branch
          %3860 = sbr.rel (%p3858) target = $region84
        $region83: #{tpu_custom_call.1} parent=63 // pred_region
          %s3861 = smul.u32 16, %s40
          %s3863 = ssub.s32 4096, 4096
          %3864 = vsyncadd %s3839, %s3863
          %s3865 = smul.addr %s3861, 4
          %s3866 = smul.addr %s3865, 64
          %s3867 = scalar_lea.hbm %s11, %s3866
          %s3868 = sshll.u32 %s3842, 4
          %s3869 = int_to_ptr.vmem [resolvable:$true] %s3868
          %3874 = dma.vmem_to_hbm [thread:$0]  %s3869, 4096, %s3867, %s3839, 256, 256, 16
        $region84: #{tpu_custom_call.1} parent=63 // pred_fallthru
          _
        // Predicated region
        $region85: #{tpu_custom_call.1} parent=63 // pred_check
          %p3875 = pneg %p325
        $region86: #{tpu_custom_call.1} parent=63 // pred_check_branch
          %3877 = sbr.rel (%p3875) target = $region88
        $region87: #{tpu_custom_call.1} parent=63 // pred_region
          %s3878 = smul.u32 16, %s40
          %s3880 = ssub.s32 2048, 2048
          %3881 = vsyncadd %s3844, %s3880
          %s3882 = smul.addr %s3878, 128
          %s3883 = scalar_lea.hbm %s12, %s3882
          %s3884 = sshll.u32 %s3847, 4
          %s3885 = int_to_ptr.vmem [resolvable:$true] %s3884
          %3890 = dma.vmem_to_hbm [thread:$0]  %s3885, 2048, %s3883, %s3844, 128, 128, 8
        $region88: #{tpu_custom_call.1} parent=63 // pred_fallthru
          _
        // Predicated region
        $region89: #{tpu_custom_call.1} parent=63 // pred_check
          %p3891 = pneg %p351
        $region90: #{tpu_custom_call.1} parent=63 // pred_check_branch
          %3893 = sbr.rel (%p3891) target = $region92
        $region91: #{tpu_custom_call.1} parent=63 // pred_region
          %s3894 = smul.u32 16, %s40
          %s3896 = ssub.s32 2048, 2048
          %3897 = vsyncadd %s3849, %s3896
          %s3898 = smul.addr %s3894, 128
          %s3899 = scalar_lea.hbm %s13, %s3898
          %s3900 = sshll.u32 %s3852, 4
          %s3901 = int_to_ptr.vmem [resolvable:$true] %s3900
          %3906 = dma.vmem_to_hbm [thread:$0]  %s3901, 2048, %s3899, %s3849, 128, 128, 8
        $region92: #{tpu_custom_call.1} parent=63 // pred_fallthru
          _
        // Predicated region
        $region93: #{tpu_custom_call.1} parent=63 // pred_check
          %p3907 = pneg %p377
        $region94: #{tpu_custom_call.1} parent=63 // pred_check_branch
          %3909 = sbr.rel (%p3907) target = $region96
        $region95: #{tpu_custom_call.1} parent=63 // pred_region
          %s3910 = smul.u32 16, %s40
          %s3912 = ssub.s32 4096, 4096
          %3913 = vsyncadd %s3854, %s3912
          %s3914 = smul.addr %s3910, 4
          %s3915 = smul.addr %s3914, 64
          %s3916 = scalar_lea.hbm %s14, %s3915
          %s3917 = sshll.u32 %s3857, 4
          %s3918 = int_to_ptr.vmem [resolvable:$true] %s3917
          %3923 = dma.vmem_to_hbm [thread:$0]  %s3918, 4096, %s3916, %s3854, 256, 256, 16
        $region96: #{tpu_custom_call.1} parent=63 // pred_fallthru
          _
      $region64: #{tpu_custom_call.1} parent=5 // pred_fallthru
        _
      %p3924 = scmp.le.s32.totalorder 2, %s35
      // Predicated region
      $region97: #{tpu_custom_call.1} parent=5 // pred_check
        %p3925 = pneg %p3924
      $region98: #{tpu_custom_call.1} parent=5 // pred_check_branch
        %3927 = sbr.rel (%p3925) target = $region100
      $region99: #{tpu_custom_call.1} parent=5 // pred_region
        %s3928 = ssub.s32 %s35, 2
        // Predicated region
        $region101: #{tpu_custom_call.1} parent=99 // pred_check
          %p3929 = pneg %p305
        $region102: #{tpu_custom_call.1} parent=99 // pred_check_branch
          %3931 = sbr.rel (%p3929) target = $region104
        $region103: #{tpu_custom_call.1} parent=99 // pred_region
          %s3932 = sand.u32 %s290, 1
          %s3933 = scalar_lea.sflag [#allocation4], %s3932
          %s3934 = sand.u32 %s290, 1
          %s3935 = smul.addr %s3934, 256
          %s3936 = scalar_lea.vmem [#allocation10], %s3935
          %3937 = dma.done %s3933, 4096
        $region104: #{tpu_custom_call.1} parent=99 // pred_fallthru
          _
        // Predicated region
        $region105: #{tpu_custom_call.1} parent=99 // pred_check
          %p3938 = pneg %p331
        $region106: #{tpu_custom_call.1} parent=99 // pred_check_branch
          %3940 = sbr.rel (%p3938) target = $region108
        $region107: #{tpu_custom_call.1} parent=99 // pred_region
          %s3941 = sand.u32 %s41, 1
          %s3942 = scalar_lea.sflag [#allocation12], %s3941
          %s3943 = sand.u32 %s316, 1
          %s3944 = smul.addr %s3943, 128
          %s3945 = scalar_lea.vmem [#allocation11], %s3944
          %3946 = dma.done %s3942, 2048
        $region108: #{tpu_custom_call.1} parent=99 // pred_fallthru
          _
        // Predicated region
        $region109: #{tpu_custom_call.1} parent=99 // pred_check
          %p3947 = pneg %p357
        $region110: #{tpu_custom_call.1} parent=99 // pred_check_branch
          %3949 = sbr.rel (%p3947) target = $region112
        $region111: #{tpu_custom_call.1} parent=99 // pred_region
          %s3950 = sand.u32 %s41, 1
          %s3951 = scalar_lea.sflag [#allocation12], %s3950
          %s3952 = sand.u32 %s342, 1
          %s3953 = smul.addr %s3952, 128
          %s3954 = scalar_lea.vmem [#allocation13], %s3953
          %3955 = dma.done %s3951, 2048
        $region112: #{tpu_custom_call.1} parent=99 // pred_fallthru
          _
        // Predicated region
        $region113: #{tpu_custom_call.1} parent=99 // pred_check
          %p3956 = pneg %p383
        $region114: #{tpu_custom_call.1} parent=99 // pred_check_branch
          %3958 = sbr.rel (%p3956) target = $region116
        $region115: #{tpu_custom_call.1} parent=99 // pred_region
          %s3959 = sand.u32 %s368, 1
          %s3960 = scalar_lea.sflag [#allocation15], %s3959
          %s3961 = sand.u32 %s368, 1
          %s3962 = smul.addr %s3961, 256
          %s3963 = scalar_lea.vmem [#allocation14], %s3962
          %3964 = dma.done %s3960, 4096
        $region116: #{tpu_custom_call.1} parent=99 // pred_fallthru
          _
      $region100: #{tpu_custom_call.1} parent=5 // pred_fallthru
        _
    $region6: #{tpu_custom_call.1} parent=1 // loop_footer
      %s39 = sadd.s32 1, %s35
    $region7: #{tpu_custom_call.1} parent=1 // loop_footer_branch
      %34 = sbr.rel target = $region3
    $region8: #{tpu_custom_call.1} parent=1 // loop_exit
      _
    %3965 = vsyncpa [#allocation3], 1
    %s3966 = scalar_lea.sflag [#allocation3], 1
    %3967 = vsyncpa %s3966, 1
    %3968 = vsyncpa [#allocation6], 1
    %3969 = vsyncpa [#allocation9], 1
    %3970 = vsyncpa [#allocation4], 1
    %s3971 = scalar_lea.sflag [#allocation4], 1
    %3972 = vsyncpa %s3971, 1
    %3973 = vsyncpa [#allocation12], 1
    %s3974 = scalar_lea.sflag [#allocation12], 1
    %3975 = vsyncpa %s3974, 1
    %3976 = vsyncpa [#allocation15], 1
    %s3977 = scalar_lea.sflag [#allocation15], 1
    %3978 = vsyncpa %s3977, 1

</llo_original>
